<compile_context>
chip_gen: v6e
topology: v6e:2x2x1
jax: 0.10.0
libtpu: 0.0.40
codegen_flags: <defaults>
</compile_context>

<pallas_src>
import jax
import jax.numpy as jnp
import numpy as np
from jax.experimental import pallas as pl
from jax.experimental.pallas import tpu as pltpu

EMBED_DIM = 154
HIDDEN = 128
NUM_CLASSES = 10
NUM_LAYERS = 2
VOCAB_SIZE = 100          # synthetic small vocab (tokenizer.vocab_size stand-in)

E_PAD = 256               # embed dim zero-padded to 2 x 128 lanes
OUT_PAD = 128             # FC output padded to one lane-dense tile
SUB = 8                   # f32 sublane count; batch is padded to a multiple


# ------------------------------ fused kernel --------------------------------

def _cell(gates, c, H):
    """PyTorch LSTM cell, gate order: input, forget, cell(g), output."""
    i_g = jax.nn.sigmoid(gates[:, 0 * H:1 * H])
    f_g = jax.nn.sigmoid(gates[:, 1 * H:2 * H])
    g_g = jnp.tanh(gates[:, 2 * H:3 * H])
    o_g = jax.nn.sigmoid(gates[:, 3 * H:4 * H])
    c_new = f_g * c + i_g * g_g
    h_new = o_g * jnp.tanh(c_new)
    return h_new, c_new


def _textrnn_kernel(x_ref, wih0_ref, whh0_ref, b0_ref, b1_ref, fcb_ref,
                    wih1_hbm, whh1f_hbm, fcw_hbm,
                    out_ref,
                    seq_sc, g0_sc, g1_sc, wih1_sc, whh1f_sc, fcw_sc, dma_sems):
    """Fused 2-layer bidirectional LSTM + FC on the last timestep.

    x_ref:     (T*BP, E_PAD)   time-major, batch padded to BP=8, zero-padded K
    wih0_ref:  (E_PAD, 8H)     layer-0 [fwd|bwd] input weights, pre-transposed
    whh0_ref:  (2, H, 4H)      layer-0 [fwd, bwd] recurrent weights
    b0_ref:    (1, 8H)         layer-0 [fwd|bwd] combined b_ih+b_hh
    b1_ref:    (2, 1, 4H)      layer-1 [fwd, bwd] combined biases
    fcb_ref:   (1, OUT_PAD)
    wih1_hbm:  (2, 2H, 4H)     HBM (pl.ANY), async-copied into wih1_sc
    whh1f_hbm: (H, 4H)         HBM (pl.ANY), async-copied into whh1f_sc
    fcw_hbm:   (2H, OUT_PAD)   HBM (pl.ANY), async-copied into fcw_sc
    out_ref:   (BP, OUT_PAD)   padded logits (slice to (B, NUM_CLASSES) outside)
    """
    BP = out_ref.shape[0]                 # padded batch (multiple of 8)
    TB = x_ref.shape[0]
    T = TB // BP
    H = whh0_ref.shape[1]

    # ---- start layer-1 + FC weight DMAs; hidden under layer-0 compute ------
    cp_wih1 = pltpu.make_async_copy(wih1_hbm, wih1_sc, dma_sems.at[0])
    cp_whh1 = pltpu.make_async_copy(whh1f_hbm, whh1f_sc, dma_sems.at[1])
    cp_fcw = pltpu.make_async_copy(fcw_hbm, fcw_sc, dma_sems.at[2])
    cp_wih1.start()
    cp_whh1.start()
    cp_fcw.start()

    # ------- layer 0: fused fwd|bwd hoisted input projection (one matmul) ---
    g0_sc[...] = (jnp.dot(x_ref[...], wih0_ref[...],
                          preferred_element_type=jnp.float32) + b0_ref[...])

    whh0_f = whh0_ref[0]                  # (H, 4H), loop-invariant
    whh0_b = whh0_ref[1]

    h_f = jnp.zeros((BP, H), jnp.float32)
    c_f = jnp.zeros((BP, H), jnp.float32)
    h_b = jnp.zeros((BP, H), jnp.float32)
    c_b = jnp.zeros((BP, H), jnp.float32)

    # Two independent recurrent chains (fwd t = s, bwd t = T-1-s) interleaved
    # in one fully unrolled loop; all slices are aligned (8, 128k) tiles.
    for s in range(T):
        tf = s
        tb = T - 1 - s
        gf = (g0_sc[tf * BP:(tf + 1) * BP, 0:4 * H]
              + jnp.dot(h_f, whh0_f, preferred_element_type=jnp.float32))
        gb = (g0_sc[tb * BP:(tb + 1) * BP, 4 * H:8 * H]
              + jnp.dot(h_b, whh0_b, preferred_element_type=jnp.float32))
        h_f, c_f = _cell(gf, c_f, H)
        h_b, c_b = _cell(gb, c_b, H)
        seq_sc[tf * BP:(tf + 1) * BP, 0:H] = h_f
        seq_sc[tb * BP:(tb + 1) * BP, H:2 * H] = h_b

    # layer-1 / FC weights must be resident from here on.
    cp_wih1.wait()
    cp_whh1.wait()
    cp_fcw.wait()

    # -------- layer 1 forward: only the final hidden state feeds the FC -----
    g1_sc[...] = (jnp.dot(seq_sc[...], wih1_sc[0],
                          preferred_element_type=jnp.float32) + b1_ref[0])
    whh1_f = whh1f_sc[...]
    h = jnp.zeros((BP, H), jnp.float32)
    c = jnp.zeros((BP, H), jnp.float32)
    for t in range(T):
        g = (g1_sc[t * BP:(t + 1) * BP, :]
             + jnp.dot(h, whh1_f, preferred_element_type=jnp.float32))
        h, c = _cell(g, c, H)
    h_fwd_last = h

    # -------- layer 1 backward at t=T-1: its FIRST step from zero state, ----
    # -------- so it depends only on seq[T-1] (single cell, no recurrence) ---
    g_b = (jnp.dot(seq_sc[(T - 1) * BP:T * BP, :], wih1_sc[1],
                   preferred_element_type=jnp.float32) + b1_ref[1])
    h_bwd_last, _ = _cell(g_b, jnp.zeros((BP, H), jnp.float32), H)

    # ------------------- FC on the last timestep (no concat) ----------------
    out_ref[...] = (jnp.dot(h_fwd_last, fcw_sc[0:H, :],
                            preferred_element_type=jnp.float32)
                    + jnp.dot(h_bwd_last, fcw_sc[H:2 * H, :],
                              preferred_element_type=jnp.float32)
                    + fcb_ref[...])


# ------------------------------ wrapper --------------------------------------

@jax.jit
def text_rnn_forward(kparams, input_ids):
    """input_ids: (B, T) int32 -> logits (B, NUM_CLASSES)."""
    B, T = input_ids.shape
    BP = max(SUB, ((B + SUB - 1) // SUB) * SUB)     # batch padded to 8 sublanes

    # Embedding lookup (gather is glue; stays in plain JAX), columns already
    # zero-padded to E_PAD so the kernel sees lane-aligned K.
    emb = jnp.take(kparams["embedding"], input_ids, axis=0)         # (B, T, E_PAD)
    x = jnp.transpose(emb, (1, 0, 2))                               # (T, B, E_PAD)
    x = jnp.pad(x, ((0, 0), (0, BP - B), (0, 0))).reshape(T * BP, E_PAD)

    out_padded = pl.pallas_call(
        _textrnn_kernel,
        out_shape=jax.ShapeDtypeStruct((BP, OUT_PAD), jnp.float32),
        in_specs=[pl.BlockSpec(memory_space=pltpu.MemorySpace.VMEM)] * 6
                 + [pl.BlockSpec(memory_space=pl.ANY)] * 3,
        out_specs=pl.BlockSpec(memory_space=pltpu.MemorySpace.VMEM),
        scratch_shapes=[
            pltpu.VMEM((T * BP, 2 * HIDDEN), jnp.float32),          # seq_sc
            pltpu.VMEM((T * BP, 8 * HIDDEN), jnp.float32),          # g0_sc
            pltpu.VMEM((T * BP, 4 * HIDDEN), jnp.float32),          # g1_sc
            pltpu.VMEM((2, 2 * HIDDEN, 4 * HIDDEN), jnp.float32),   # wih1_sc
            pltpu.VMEM((HIDDEN, 4 * HIDDEN), jnp.float32),          # whh1f_sc
            pltpu.VMEM((2 * HIDDEN, OUT_PAD), jnp.float32),         # fcw_sc
            pltpu.SemaphoreType.DMA((3,)),
        ],
    )(x, kparams["wih0"], kparams["whh0"], kparams["b0"], kparams["b1"],
      kparams["fcb"], kparams["wih1"], kparams["whh1f"], kparams["fcw"])

    return out_padded[:B, :NUM_CLASSES]


# ------------------------- deterministic parameters --------------------------

def init_params(key):
    """Raw parameters in PyTorch layout (for the reference)."""
    ks = jax.random.split(key, 3 + NUM_LAYERS * 8)
    k = iter(ks)
    scale = 1.0 / np.sqrt(HIDDEN)

    emb = 0.1 * jax.random.normal(next(k), (VOCAB_SIZE, EMBED_DIM), jnp.float32)
    emb = emb.at[VOCAB_SIZE - 1].set(0.0)  # padding_idx = vocab_size - 1

    lstm = []
    for layer in range(NUM_LAYERS):
        d_in = EMBED_DIM if layer == 0 else 2 * HIDDEN

        def u(kk, shape):
            return jax.random.uniform(kk, shape, jnp.float32, -scale, scale)

        lstm.append(dict(
            w_ih_f=u(next(k), (4 * HIDDEN, d_in)),
            w_hh_f=u(next(k), (4 * HIDDEN, HIDDEN)),
            b_f=u(next(k), (4 * HIDDEN,)) + u(next(k), (4 * HIDDEN,)),  # b_ih+b_hh
            w_ih_b=u(next(k), (4 * HIDDEN, d_in)),
            w_hh_b=u(next(k), (4 * HIDDEN, HIDDEN)),
            b_b=u(next(k), (4 * HIDDEN,)) + u(next(k), (4 * HIDDEN,)),
        ))

    fscale = 1.0 / np.sqrt(2 * HIDDEN)
    fc_w = jax.random.uniform(next(k), (NUM_CLASSES, 2 * HIDDEN), jnp.float32,
                              -fscale, fscale)
    fc_b = jax.random.uniform(next(k), (NUM_CLASSES,), jnp.float32,
                              -fscale, fscale)
    return dict(embedding=emb, lstm=lstm, fc_w=fc_w, fc_b=fc_b)


def prepare_kernel_params(params):
    """One-time prep: transpose / pad / fuse weights into kernel layout."""
    emb_pad = jnp.pad(params["embedding"],
                      ((0, 0), (0, E_PAD - EMBED_DIM)))              # (V, E_PAD)

    l0 = params["lstm"][0]
    # Layer 0: fwd|bwd input weights fused along the output dim, K zero-padded.
    wih0 = jnp.concatenate([l0["w_ih_f"].T, l0["w_ih_b"].T], axis=1)  # (E, 8H)
    wih0 = jnp.pad(wih0, ((0, E_PAD - EMBED_DIM), (0, 0)))            # (E_PAD, 8H)
    whh0 = jnp.stack([l0["w_hh_f"].T, l0["w_hh_b"].T])                # (2, H, 4H)
    b0 = jnp.concatenate([l0["b_f"], l0["b_b"]]).reshape(1, -1)       # (1, 8H)

    l1 = params["lstm"][1]
    wih1 = jnp.stack([l1["w_ih_f"].T, l1["w_ih_b"].T])                # (2, 2H, 4H)
    whh1f = l1["w_hh_f"].T                                            # (H, 4H)
    b1 = jnp.stack([l1["b_f"].reshape(1, -1), l1["b_b"].reshape(1, -1)])

    fcw = jnp.pad(params["fc_w"].T,
                  ((0, 0), (0, OUT_PAD - NUM_CLASSES)))               # (2H, OUT_PAD)
    fcb = jnp.pad(params["fc_b"].reshape(1, -1),
                  ((0, 0), (0, OUT_PAD - NUM_CLASSES)))               # (1, OUT_PAD)

    return dict(embedding=emb_pad, wih0=wih0, whh0=whh0, b0=b0,
                wih1=wih1, whh1f=whh1f, b1=b1, fcw=fcw, fcb=fcb)


# ----------------------------- pure-JAX reference ----------------------------

def _lstm_dir_ref(x_tbd, w_ih, w_hh, b):
    H = w_hh.shape[1]
    B = x_tbd.shape[1]

    def step(carry, x_t):
        h, c = carry
        gates = x_t @ w_ih.T + h @ w_hh.T + b
        i, f, g, o = jnp.split(gates, 4, axis=-1)
        c = jax.nn.sigmoid(f) * c + jax.nn.sigmoid(i) * jnp.tanh(g)
        h = jax.nn.sigmoid(o) * jnp.tanh(c)
        return (h, c), h

    init = (jnp.zeros((B, H), jnp.float32), jnp.zeros((B, H), jnp.float32))
    _, hs = jax.lax.scan(step, init, x_tbd)
    return hs


def text_rnn_reference(params, input_ids):
    emb = jnp.take(params["embedding"], input_ids, axis=0)
    x = jnp.transpose(emb, (1, 0, 2)).astype(jnp.float32)
    for layer in range(NUM_LAYERS):
        p = params["lstm"][layer]
        out_f = _lstm_dir_ref(x, p["w_ih_f"], p["w_hh_f"], p["b_f"])
        out_b = _lstm_dir_ref(x[::-1], p["w_ih_b"], p["w_hh_b"], p["b_b"])[::-1]
        x = jnp.concatenate([out_f, out_b], axis=-1)
        # TODO(synk): nn.LSTM inter-layer dropout(p=0.5) is active only in
        # training mode; eval-mode (identity) semantics are used here.
    return x[-1] @ params["fc_w"].T + params["fc_b"]


# ---------------------------------- main -------------------------------------

if __name__ == "__main__":
    key = jax.random.PRNGKey(0)
    k_par, k_ids = jax.random.split(key)
    params = init_params(k_par)
    kparams = prepare_kernel_params(params)

    B, T = 2, 8
    input_ids = jax.random.randint(k_ids, (B, T), 0, VOCAB_SIZE, dtype=jnp.int32)

    out = text_rnn_forward(kparams, input_ids)
    out = jax.block_until_ready(out)

    ref = jax.block_until_ready(text_rnn_reference(params, input_ids))
    assert out.shape == (B, NUM_CLASSES), out.shape
    np.testing.assert_allclose(np.asarray(out), np.asarray(ref),
                               rtol=1e-4, atol=1e-4)
    print("KERNEL_OK")
</pallas_src>

<mosaic_0001>
module attributes {stable_mosaic.version = 11 : i64} {
  func.func @_textrnn_kernel(%arg0: memref<64x256xf32, #tpu.memory_space<vmem>>, %arg1: memref<256x1024xf32, #tpu.memory_space<vmem>>, %arg2: memref<2x128x512xf32, #tpu.memory_space<vmem>>, %arg3: memref<1x1024xf32, #tpu.memory_space<vmem>>, %arg4: memref<2x1x512xf32, #tpu.memory_space<vmem>>, %arg5: memref<1x128xf32, #tpu.memory_space<vmem>>, %arg6: memref<2x256x512xf32, #tpu.memory_space<any>>, %arg7: memref<128x512xf32, #tpu.memory_space<any>>, %arg8: memref<256x128xf32, #tpu.memory_space<any>>, %arg9: memref<8x128xf32, #tpu.memory_space<vmem>>, %arg10: memref<64x256xf32, #tpu.memory_space<vmem>>, %arg11: memref<64x1024xf32, #tpu.memory_space<vmem>>, %arg12: memref<64x512xf32, #tpu.memory_space<vmem>>, %arg13: memref<2x256x512xf32, #tpu.memory_space<vmem>>, %arg14: memref<128x512xf32, #tpu.memory_space<vmem>>, %arg15: memref<256x128xf32, #tpu.memory_space<vmem>>, %arg16: memref<3x!tpu.dma_semaphore, #tpu.memory_space<semaphore_mem>>) attributes {dimension_semantics = [], scalar_prefetch = 0 : i64, scratch_operands = 7 : i64, tpu.core_type = #tpu.core_type<tc>} {
    %c0_i32 = arith.constant 0 : i32
    %0 = tpu.memref_slice %arg16[%c0_i32] : memref<3x!tpu.dma_semaphore, #tpu.memory_space<semaphore_mem>> -> memref<1x!tpu.dma_semaphore, #tpu.memory_space<semaphore_mem>>
    %1 = tpu.memref_squeeze %0 : memref<1x!tpu.dma_semaphore, #tpu.memory_space<semaphore_mem>> -> memref<!tpu.dma_semaphore, #tpu.memory_space<semaphore_mem>>
    tpu.enqueue_dma source(%arg6 : memref<2x256x512xf32, #tpu.memory_space<any>>) target(%arg13 : memref<2x256x512xf32, #tpu.memory_space<vmem>>) target_semaphore(%1 : memref<!tpu.dma_semaphore, #tpu.memory_space<semaphore_mem>>)
    %c1_i32 = arith.constant 1 : i32
    %2 = tpu.memref_slice %arg16[%c1_i32] : memref<3x!tpu.dma_semaphore, #tpu.memory_space<semaphore_mem>> -> memref<1x!tpu.dma_semaphore, #tpu.memory_space<semaphore_mem>>
    %3 = tpu.memref_squeeze %2 : memref<1x!tpu.dma_semaphore, #tpu.memory_space<semaphore_mem>> -> memref<!tpu.dma_semaphore, #tpu.memory_space<semaphore_mem>>
    tpu.enqueue_dma source(%arg7 : memref<128x512xf32, #tpu.memory_space<any>>) target(%arg14 : memref<128x512xf32, #tpu.memory_space<vmem>>) target_semaphore(%3 : memref<!tpu.dma_semaphore, #tpu.memory_space<semaphore_mem>>)
    %c2_i32 = arith.constant 2 : i32
    %4 = tpu.memref_slice %arg16[%c2_i32] : memref<3x!tpu.dma_semaphore, #tpu.memory_space<semaphore_mem>> -> memref<1x!tpu.dma_semaphore, #tpu.memory_space<semaphore_mem>>
    %5 = tpu.memref_squeeze %4 : memref<1x!tpu.dma_semaphore, #tpu.memory_space<semaphore_mem>> -> memref<!tpu.dma_semaphore, #tpu.memory_space<semaphore_mem>>
    tpu.enqueue_dma source(%arg8 : memref<256x128xf32, #tpu.memory_space<any>>) target(%arg15 : memref<256x128xf32, #tpu.memory_space<vmem>>) target_semaphore(%5 : memref<!tpu.dma_semaphore, #tpu.memory_space<semaphore_mem>>)
    %c0 = arith.constant 0 : index
    %c0_0 = arith.constant 0 : index
    %6 = vector.load %arg0[%c0, %c0_0] : memref<64x256xf32, #tpu.memory_space<vmem>>, vector<64x256xf32>
    %c0_1 = arith.constant 0 : index
    %c0_2 = arith.constant 0 : index
    %7 = vector.load %arg1[%c0_1, %c0_2] : memref<256x1024xf32, #tpu.memory_space<vmem>>, vector<256x1024xf32>
    %cst = arith.constant dense<0.000000e+00> : vector<64x1024xf32>
    %8 = tpu.matmul %6, %7, %cst {dimension_numbers = #tpu.dot_dimension_numbers<[1], [0], [0], [1], [0, 0, 1, 1], [], []>} : vector<64x256xf32>, vector<256x1024xf32>, vector<64x1024xf32> -> vector<64x1024xf32>
    %c0_3 = arith.constant 0 : index
    %c0_4 = arith.constant 0 : index
    %9 = vector.load %arg3[%c0_3, %c0_4] : memref<1x1024xf32, #tpu.memory_space<vmem>>, vector<1x1024xf32>
    %10 = vector.broadcast %9 : vector<1x1024xf32> to vector<64x1024xf32>
    %11 = arith.addf %8, %10 : vector<64x1024xf32>
    %c0_5 = arith.constant 0 : index
    %c0_6 = arith.constant 0 : index
    %12 = vector.load %arg11[%c0_5, %c0_6] : memref<64x1024xf32, #tpu.memory_space<vmem>>, vector<64x1024xf32>
    tpu.vector_store %arg11[%c0_5, %c0_6], %11 {strides = array<i32>} : memref<64x1024xf32, #tpu.memory_space<vmem>>, vector<64x1024xf32>,
    %c0_7 = arith.constant 0 : index
    %c0_8 = arith.constant 0 : index
    %c0_9 = arith.constant 0 : index
    %13 = vector.load %arg2[%c0_7, %c0_8, %c0_9] : memref<2x128x512xf32, #tpu.memory_space<vmem>>, vector<1x128x512xf32>
    %14 = vector.shape_cast %13 : vector<1x128x512xf32> to vector<128x512xf32>
    %c1 = arith.constant 1 : index
    %c0_10 = arith.constant 0 : index
    %c0_11 = arith.constant 0 : index
    %15 = vector.load %arg2[%c1, %c0_10, %c0_11] : memref<2x128x512xf32, #tpu.memory_space<vmem>>, vector<1x128x512xf32>
    %16 = vector.shape_cast %15 : vector<1x128x512xf32> to vector<128x512xf32>
    %cst_12 = arith.constant 0.000000e+00 : f32
    %17 = vector.broadcast %cst_12 : f32 to vector<8x128xf32>
    %cst_13 = arith.constant 0.000000e+00 : f32
    %18 = vector.broadcast %cst_13 : f32 to vector<8x128xf32>
    %cst_14 = arith.constant 0.000000e+00 : f32
    %19 = vector.broadcast %cst_14 : f32 to vector<8x128xf32>
    %cst_15 = arith.constant 0.000000e+00 : f32
    %20 = vector.broadcast %cst_15 : f32 to vector<8x128xf32>
    %c0_16 = arith.constant 0 : index
    %c0_17 = arith.constant 0 : index
    %21 = vector.load %arg11[%c0_16, %c0_17] : memref<64x1024xf32, #tpu.memory_space<vmem>>, vector<8x512xf32>
    %cst_18 = arith.constant dense<0.000000e+00> : vector<8x512xf32>
    %22 = tpu.matmul %17, %14, %cst_18 {dimension_numbers = #tpu.dot_dimension_numbers<[1], [0], [0], [1], [0, 0, 1, 1], [], []>} : vector<8x128xf32>, vector<128x512xf32>, vector<8x512xf32> -> vector<8x512xf32>
    %23 = arith.addf %21, %22 : vector<8x512xf32>
    %c56 = arith.constant 56 : index
    %c512 = arith.constant 512 : index
    %24 = vector.load %arg11[%c56, %c512] : memref<64x1024xf32, #tpu.memory_space<vmem>>, vector<8x512xf32>
    %cst_19 = arith.constant dense<0.000000e+00> : vector<8x512xf32>
    %25 = tpu.matmul %19, %16, %cst_19 {dimension_numbers = #tpu.dot_dimension_numbers<[1], [0], [0], [1], [0, 0, 1, 1], [], []>} : vector<8x128xf32>, vector<128x512xf32>, vector<8x512xf32> -> vector<8x512xf32>
    %26 = arith.addf %24, %25 : vector<8x512xf32>
    %27 = vector.extract_strided_slice %23 {offsets = [0, 0], sizes = [8, 128], strides = [1, 1]} : vector<8x512xf32> to vector<8x128xf32>
    %28 = arith.negf %27 : vector<8x128xf32>
    %29 = math.exp %28 : vector<8x128xf32>
    %cst_20 = arith.constant 1.000000e+00 : f32
    %30 = vector.broadcast %cst_20 : f32 to vector<8x128xf32>
    %31 = arith.addf %30, %29 : vector<8x128xf32>
    %32 = arith.divf %30, %31 : vector<8x128xf32>
    %33 = vector.extract_strided_slice %23 {offsets = [0, 128], sizes = [8, 128], strides = [1, 1]} : vector<8x512xf32> to vector<8x128xf32>
    %34 = arith.negf %33 : vector<8x128xf32>
    %35 = math.exp %34 : vector<8x128xf32>
    %cst_21 = arith.constant 1.000000e+00 : f32
    %36 = vector.broadcast %cst_21 : f32 to vector<8x128xf32>
    %37 = arith.addf %36, %35 : vector<8x128xf32>
    %38 = arith.divf %36, %37 : vector<8x128xf32>
    %39 = vector.extract_strided_slice %23 {offsets = [0, 256], sizes = [8, 128], strides = [1, 1]} : vector<8x512xf32> to vector<8x128xf32>
    %40 = math.tanh %39 : vector<8x128xf32>
    %41 = vector.extract_strided_slice %23 {offsets = [0, 384], sizes = [8, 128], strides = [1, 1]} : vector<8x512xf32> to vector<8x128xf32>
    %42 = arith.negf %41 : vector<8x128xf32>
    %43 = math.exp %42 : vector<8x128xf32>
    %cst_22 = arith.constant 1.000000e+00 : f32
    %44 = vector.broadcast %cst_22 : f32 to vector<8x128xf32>
    %45 = arith.addf %44, %43 : vector<8x128xf32>
    %46 = arith.divf %44, %45 : vector<8x128xf32>
    %47 = arith.mulf %38, %18 : vector<8x128xf32>
    %48 = arith.mulf %32, %40 : vector<8x128xf32>
    %49 = arith.addf %47, %48 : vector<8x128xf32>
    %50 = math.tanh %49 : vector<8x128xf32>
    %51 = arith.mulf %46, %50 : vector<8x128xf32>
    %52 = vector.extract_strided_slice %26 {offsets = [0, 0], sizes = [8, 128], strides = [1, 1]} : vector<8x512xf32> to vector<8x128xf32>
    %53 = arith.negf %52 : vector<8x128xf32>
    %54 = math.exp %53 : vector<8x128xf32>
    %cst_23 = arith.constant 1.000000e+00 : f32
    %55 = vector.broadcast %cst_23 : f32 to vector<8x128xf32>
    %56 = arith.addf %55, %54 : vector<8x128xf32>
    %57 = arith.divf %55, %56 : vector<8x128xf32>
    %58 = vector.extract_strided_slice %26 {offsets = [0, 128], sizes = [8, 128], strides = [1, 1]} : vector<8x512xf32> to vector<8x128xf32>
    %59 = arith.negf %58 : vector<8x128xf32>
    %60 = math.exp %59 : vector<8x128xf32>
    %cst_24 = arith.constant 1.000000e+00 : f32
    %61 = vector.broadcast %cst_24 : f32 to vector<8x128xf32>
    %62 = arith.addf %61, %60 : vector<8x128xf32>
    %63 = arith.divf %61, %62 : vector<8x128xf32>
    %64 = vector.extract_strided_slice %26 {offsets = [0, 256], sizes = [8, 128], strides = [1, 1]} : vector<8x512xf32> to vector<8x128xf32>
    %65 = math.tanh %64 : vector<8x128xf32>
    %66 = vector.extract_strided_slice %26 {offsets = [0, 384], sizes = [8, 128], strides = [1, 1]} : vector<8x512xf32> to vector<8x128xf32>
    %67 = arith.negf %66 : vector<8x128xf32>
    %68 = math.exp %67 : vector<8x128xf32>
    %cst_25 = arith.constant 1.000000e+00 : f32
    %69 = vector.broadcast %cst_25 : f32 to vector<8x128xf32>
    %70 = arith.addf %69, %68 : vector<8x128xf32>
    %71 = arith.divf %69, %70 : vector<8x128xf32>
    %72 = arith.mulf %63, %20 : vector<8x128xf32>
    %73 = arith.mulf %57, %65 : vector<8x128xf32>
    %74 = arith.addf %72, %73 : vector<8x128xf32>
    %75 = math.tanh %74 : vector<8x128xf32>
    %76 = arith.mulf %71, %75 : vector<8x128xf32>
    %c0_26 = arith.constant 0 : index
    %c0_27 = arith.constant 0 : index
    %77 = vector.load %arg10[%c0_26, %c0_27] : memref<64x256xf32, #tpu.memory_space<vmem>>, vector<8x128xf32>
    tpu.vector_store %arg10[%c0_26, %c0_27], %51 {strides = array<i32>} : memref<64x256xf32, #tpu.memory_space<vmem>>, vector<8x128xf32>,
    %c56_28 = arith.constant 56 : index
    %c128 = arith.constant 128 : index
    %78 = vector.load %arg10[%c56_28, %c128] : memref<64x256xf32, #tpu.memory_space<vmem>>, vector<8x128xf32>
    tpu.vector_store %arg10[%c56_28, %c128], %76 {strides = array<i32>} : memref<64x256xf32, #tpu.memory_space<vmem>>, vector<8x128xf32>,
    %c8 = arith.constant 8 : index
    %c0_29 = arith.constant 0 : index
    %79 = vector.load %arg11[%c8, %c0_29] : memref<64x1024xf32, #tpu.memory_space<vmem>>, vector<8x512xf32>
    %cst_30 = arith.constant dense<0.000000e+00> : vector<8x512xf32>
    %80 = tpu.matmul %51, %14, %cst_30 {dimension_numbers = #tpu.dot_dimension_numbers<[1], [0], [0], [1], [0, 0, 1, 1], [], []>} : vector<8x128xf32>, vector<128x512xf32>, vector<8x512xf32> -> vector<8x512xf32>
    %81 = arith.addf %79, %80 : vector<8x512xf32>
    %c48 = arith.constant 48 : index
    %c512_31 = arith.constant 512 : index
    %82 = vector.load %arg11[%c48, %c512_31] : memref<64x1024xf32, #tpu.memory_space<vmem>>, vector<8x512xf32>
    %cst_32 = arith.constant dense<0.000000e+00> : vector<8x512xf32>
    %83 = tpu.matmul %76, %16, %cst_32 {dimension_numbers = #tpu.dot_dimension_numbers<[1], [0], [0], [1], [0, 0, 1, 1], [], []>} : vector<8x128xf32>, vector<128x512xf32>, vector<8x512xf32> -> vector<8x512xf32>
    %84 = arith.addf %82, %83 : vector<8x512xf32>
    %85 = vector.extract_strided_slice %81 {offsets = [0, 0], sizes = [8, 128], strides = [1, 1]} : vector<8x512xf32> to vector<8x128xf32>
    %86 = arith.negf %85 : vector<8x128xf32>
    %87 = math.exp %86 : vector<8x128xf32>
    %cst_33 = arith.constant 1.000000e+00 : f32
    %88 = vector.broadcast %cst_33 : f32 to vector<8x128xf32>
    %89 = arith.addf %88, %87 : vector<8x128xf32>
    %90 = arith.divf %88, %89 : vector<8x128xf32>
    %91 = vector.extract_strided_slice %81 {offsets = [0, 128], sizes = [8, 128], strides = [1, 1]} : vector<8x512xf32> to vector<8x128xf32>
    %92 = arith.negf %91 : vector<8x128xf32>
    %93 = math.exp %92 : vector<8x128xf32>
    %cst_34 = arith.constant 1.000000e+00 : f32
    %94 = vector.broadcast %cst_34 : f32 to vector<8x128xf32>
    %95 = arith.addf %94, %93 : vector<8x128xf32>
    %96 = arith.divf %94, %95 : vector<8x128xf32>
    %97 = vector.extract_strided_slice %81 {offsets = [0, 256], sizes = [8, 128], strides = [1, 1]} : vector<8x512xf32> to vector<8x128xf32>
    %98 = math.tanh %97 : vector<8x128xf32>
    %99 = vector.extract_strided_slice %81 {offsets = [0, 384], sizes = [8, 128], strides = [1, 1]} : vector<8x512xf32> to vector<8x128xf32>
    %100 = arith.negf %99 : vector<8x128xf32>
    %101 = math.exp %100 : vector<8x128xf32>
    %cst_35 = arith.constant 1.000000e+00 : f32
    %102 = vector.broadcast %cst_35 : f32 to vector<8x128xf32>
    %103 = arith.addf %102, %101 : vector<8x128xf32>
    %104 = arith.divf %102, %103 : vector<8x128xf32>
    %105 = arith.mulf %96, %49 : vector<8x128xf32>
    %106 = arith.mulf %90, %98 : vector<8x128xf32>
    %107 = arith.addf %105, %106 : vector<8x128xf32>
    %108 = math.tanh %107 : vector<8x128xf32>
    %109 = arith.mulf %104, %108 : vector<8x128xf32>
    %110 = vector.extract_strided_slice %84 {offsets = [0, 0], sizes = [8, 128], strides = [1, 1]} : vector<8x512xf32> to vector<8x128xf32>
    %111 = arith.negf %110 : vector<8x128xf32>
    %112 = math.exp %111 : vector<8x128xf32>
    %cst_36 = arith.constant 1.000000e+00 : f32
    %113 = vector.broadcast %cst_36 : f32 to vector<8x128xf32>
    %114 = arith.addf %113, %112 : vector<8x128xf32>
    %115 = arith.divf %113, %114 : vector<8x128xf32>
    %116 = vector.extract_strided_slice %84 {offsets = [0, 128], sizes = [8, 128], strides = [1, 1]} : vector<8x512xf32> to vector<8x128xf32>
    %117 = arith.negf %116 : vector<8x128xf32>
    %118 = math.exp %117 : vector<8x128xf32>
    %cst_37 = arith.constant 1.000000e+00 : f32
    %119 = vector.broadcast %cst_37 : f32 to vector<8x128xf32>
    %120 = arith.addf %119, %118 : vector<8x128xf32>
    %121 = arith.divf %119, %120 : vector<8x128xf32>
    %122 = vector.extract_strided_slice %84 {offsets = [0, 256], sizes = [8, 128], strides = [1, 1]} : vector<8x512xf32> to vector<8x128xf32>
    %123 = math.tanh %122 : vector<8x128xf32>
    %124 = vector.extract_strided_slice %84 {offsets = [0, 384], sizes = [8, 128], strides = [1, 1]} : vector<8x512xf32> to vector<8x128xf32>
    %125 = arith.negf %124 : vector<8x128xf32>
    %126 = math.exp %125 : vector<8x128xf32>
    %cst_38 = arith.constant 1.000000e+00 : f32
    %127 = vector.broadcast %cst_38 : f32 to vector<8x128xf32>
    %128 = arith.addf %127, %126 : vector<8x128xf32>
    %129 = arith.divf %127, %128 : vector<8x128xf32>
    %130 = arith.mulf %121, %74 : vector<8x128xf32>
    %131 = arith.mulf %115, %123 : vector<8x128xf32>
    %132 = arith.addf %130, %131 : vector<8x128xf32>
    %133 = math.tanh %132 : vector<8x128xf32>
    %134 = arith.mulf %129, %133 : vector<8x128xf32>
    %c8_39 = arith.constant 8 : index
    %c0_40 = arith.constant 0 : index
    %135 = vector.load %arg10[%c8_39, %c0_40] : memref<64x256xf32, #tpu.memory_space<vmem>>, vector<8x128xf32>
    tpu.vector_store %arg10[%c8_39, %c0_40], %109 {strides = array<i32>} : memref<64x256xf32, #tpu.memory_space<vmem>>, vector<8x128xf32>,
    %c48_41 = arith.constant 48 : index
    %c128_42 = arith.constant 128 : index
    %136 = vector.load %arg10[%c48_41, %c128_42] : memref<64x256xf32, #tpu.memory_space<vmem>>, vector<8x128xf32>
    tpu.vector_store %arg10[%c48_41, %c128_42], %134 {strides = array<i32>} : memref<64x256xf32, #tpu.memory_space<vmem>>, vector<8x128xf32>,
    %c16 = arith.constant 16 : index
    %c0_43 = arith.constant 0 : index
    %137 = vector.load %arg11[%c16, %c0_43] : memref<64x1024xf32, #tpu.memory_space<vmem>>, vector<8x512xf32>
    %cst_44 = arith.constant dense<0.000000e+00> : vector<8x512xf32>
    %138 = tpu.matmul %109, %14, %cst_44 {dimension_numbers = #tpu.dot_dimension_numbers<[1], [0], [0], [1], [0, 0, 1, 1], [], []>} : vector<8x128xf32>, vector<128x512xf32>, vector<8x512xf32> -> vector<8x512xf32>
    %139 = arith.addf %137, %138 : vector<8x512xf32>
    %c40 = arith.constant 40 : index
    %c512_45 = arith.constant 512 : index
    %140 = vector.load %arg11[%c40, %c512_45] : memref<64x1024xf32, #tpu.memory_space<vmem>>, vector<8x512xf32>
    %cst_46 = arith.constant dense<0.000000e+00> : vector<8x512xf32>
    %141 = tpu.matmul %134, %16, %cst_46 {dimension_numbers = #tpu.dot_dimension_numbers<[1], [0], [0], [1], [0, 0, 1, 1], [], []>} : vector<8x128xf32>, vector<128x512xf32>, vector<8x512xf32> -> vector<8x512xf32>
    %142 = arith.addf %140, %141 : vector<8x512xf32>
    %143 = vector.extract_strided_slice %139 {offsets = [0, 0], sizes = [8, 128], strides = [1, 1]} : vector<8x512xf32> to vector<8x128xf32>
    %144 = arith.negf %143 : vector<8x128xf32>
    %145 = math.exp %144 : vector<8x128xf32>
    %cst_47 = arith.constant 1.000000e+00 : f32
    %146 = vector.broadcast %cst_47 : f32 to vector<8x128xf32>
    %147 = arith.addf %146, %145 : vector<8x128xf32>
    %148 = arith.divf %146, %147 : vector<8x128xf32>
    %149 = vector.extract_strided_slice %139 {offsets = [0, 128], sizes = [8, 128], strides = [1, 1]} : vector<8x512xf32> to vector<8x128xf32>
    %150 = arith.negf %149 : vector<8x128xf32>
    %151 = math.exp %150 : vector<8x128xf32>
    %cst_48 = arith.constant 1.000000e+00 : f32
    %152 = vector.broadcast %cst_48 : f32 to vector<8x128xf32>
    %153 = arith.addf %152, %151 : vector<8x128xf32>
    %154 = arith.divf %152, %153 : vector<8x128xf32>
    %155 = vector.extract_strided_slice %139 {offsets = [0, 256], sizes = [8, 128], strides = [1, 1]} : vector<8x512xf32> to vector<8x128xf32>
    %156 = math.tanh %155 : vector<8x128xf32>
    %157 = vector.extract_strided_slice %139 {offsets = [0, 384], sizes = [8, 128], strides = [1, 1]} : vector<8x512xf32> to vector<8x128xf32>
    %158 = arith.negf %157 : vector<8x128xf32>
    %159 = math.exp %158 : vector<8x128xf32>
    %cst_49 = arith.constant 1.000000e+00 : f32
    %160 = vector.broadcast %cst_49 : f32 to vector<8x128xf32>
    %161 = arith.addf %160, %159 : vector<8x128xf32>
    %162 = arith.divf %160, %161 : vector<8x128xf32>
    %163 = arith.mulf %154, %107 : vector<8x128xf32>
    %164 = arith.mulf %148, %156 : vector<8x128xf32>
    %165 = arith.addf %163, %164 : vector<8x128xf32>
    %166 = math.tanh %165 : vector<8x128xf32>
    %167 = arith.mulf %162, %166 : vector<8x128xf32>
    %168 = vector.extract_strided_slice %142 {offsets = [0, 0], sizes = [8, 128], strides = [1, 1]} : vector<8x512xf32> to vector<8x128xf32>
    %169 = arith.negf %168 : vector<8x128xf32>
    %170 = math.exp %169 : vector<8x128xf32>
    %cst_50 = arith.constant 1.000000e+00 : f32
    %171 = vector.broadcast %cst_50 : f32 to vector<8x128xf32>
    %172 = arith.addf %171, %170 : vector<8x128xf32>
    %173 = arith.divf %171, %172 : vector<8x128xf32>
    %174 = vector.extract_strided_slice %142 {offsets = [0, 128], sizes = [8, 128], strides = [1, 1]} : vector<8x512xf32> to vector<8x128xf32>
    %175 = arith.negf %174 : vector<8x128xf32>
    %176 = math.exp %175 : vector<8x128xf32>
    %cst_51 = arith.constant 1.000000e+00 : f32
    %177 = vector.broadcast %cst_51 : f32 to vector<8x128xf32>
    %178 = arith.addf %177, %176 : vector<8x128xf32>
    %179 = arith.divf %177, %178 : vector<8x128xf32>
    %180 = vector.extract_strided_slice %142 {offsets = [0, 256], sizes = [8, 128], strides = [1, 1]} : vector<8x512xf32> to vector<8x128xf32>
    %181 = math.tanh %180 : vector<8x128xf32>
    %182 = vector.extract_strided_slice %142 {offsets = [0, 384], sizes = [8, 128], strides = [1, 1]} : vector<8x512xf32> to vector<8x128xf32>
    %183 = arith.negf %182 : vector<8x128xf32>
    %184 = math.exp %183 : vector<8x128xf32>
    %cst_52 = arith.constant 1.000000e+00 : f32
    %185 = vector.broadcast %cst_52 : f32 to vector<8x128xf32>
    %186 = arith.addf %185, %184 : vector<8x128xf32>
    %187 = arith.divf %185, %186 : vector<8x128xf32>
    %188 = arith.mulf %179, %132 : vector<8x128xf32>
    %189 = arith.mulf %173, %181 : vector<8x128xf32>
    %190 = arith.addf %188, %189 : vector<8x128xf32>
    %191 = math.tanh %190 : vector<8x128xf32>
    %192 = arith.mulf %187, %191 : vector<8x128xf32>
    %c16_53 = arith.constant 16 : index
    %c0_54 = arith.constant 0 : index
    %193 = vector.load %arg10[%c16_53, %c0_54] : memref<64x256xf32, #tpu.memory_space<vmem>>, vector<8x128xf32>
    tpu.vector_store %arg10[%c16_53, %c0_54], %167 {strides = array<i32>} : memref<64x256xf32, #tpu.memory_space<vmem>>, vector<8x128xf32>,
    %c40_55 = arith.constant 40 : index
    %c128_56 = arith.constant 128 : index
    %194 = vector.load %arg10[%c40_55, %c128_56] : memref<64x256xf32, #tpu.memory_space<vmem>>, vector<8x128xf32>
    tpu.vector_store %arg10[%c40_55, %c128_56], %192 {strides = array<i32>} : memref<64x256xf32, #tpu.memory_space<vmem>>, vector<8x128xf32>,
    %c24 = arith.constant 24 : index
    %c0_57 = arith.constant 0 : index
    %195 = vector.load %arg11[%c24, %c0_57] : memref<64x1024xf32, #tpu.memory_space<vmem>>, vector<8x512xf32>
    %cst_58 = arith.constant dense<0.000000e+00> : vector<8x512xf32>
    %196 = tpu.matmul %167, %14, %cst_58 {dimension_numbers = #tpu.dot_dimension_numbers<[1], [0], [0], [1], [0, 0, 1, 1], [], []>} : vector<8x128xf32>, vector<128x512xf32>, vector<8x512xf32> -> vector<8x512xf32>
    %197 = arith.addf %195, %196 : vector<8x512xf32>
    %c32 = arith.constant 32 : index
    %c512_59 = arith.constant 512 : index
    %198 = vector.load %arg11[%c32, %c512_59] : memref<64x1024xf32, #tpu.memory_space<vmem>>, vector<8x512xf32>
    %cst_60 = arith.constant dense<0.000000e+00> : vector<8x512xf32>
    %199 = tpu.matmul %192, %16, %cst_60 {dimension_numbers = #tpu.dot_dimension_numbers<[1], [0], [0], [1], [0, 0, 1, 1], [], []>} : vector<8x128xf32>, vector<128x512xf32>, vector<8x512xf32> -> vector<8x512xf32>
    %200 = arith.addf %198, %199 : vector<8x512xf32>
    %201 = vector.extract_strided_slice %197 {offsets = [0, 0], sizes = [8, 128], strides = [1, 1]} : vector<8x512xf32> to vector<8x128xf32>
    %202 = arith.negf %201 : vector<8x128xf32>
    %203 = math.exp %202 : vector<8x128xf32>
    %cst_61 = arith.constant 1.000000e+00 : f32
    %204 = vector.broadcast %cst_61 : f32 to vector<8x128xf32>
    %205 = arith.addf %204, %203 : vector<8x128xf32>
    %206 = arith.divf %204, %205 : vector<8x128xf32>
    %207 = vector.extract_strided_slice %197 {offsets = [0, 128], sizes = [8, 128], strides = [1, 1]} : vector<8x512xf32> to vector<8x128xf32>
    %208 = arith.negf %207 : vector<8x128xf32>
    %209 = math.exp %208 : vector<8x128xf32>
    %cst_62 = arith.constant 1.000000e+00 : f32
    %210 = vector.broadcast %cst_62 : f32 to vector<8x128xf32>
    %211 = arith.addf %210, %209 : vector<8x128xf32>
    %212 = arith.divf %210, %211 : vector<8x128xf32>
    %213 = vector.extract_strided_slice %197 {offsets = [0, 256], sizes = [8, 128], strides = [1, 1]} : vector<8x512xf32> to vector<8x128xf32>
    %214 = math.tanh %213 : vector<8x128xf32>
    %215 = vector.extract_strided_slice %197 {offsets = [0, 384], sizes = [8, 128], strides = [1, 1]} : vector<8x512xf32> to vector<8x128xf32>
    %216 = arith.negf %215 : vector<8x128xf32>
    %217 = math.exp %216 : vector<8x128xf32>
    %cst_63 = arith.constant 1.000000e+00 : f32
    %218 = vector.broadcast %cst_63 : f32 to vector<8x128xf32>
    %219 = arith.addf %218, %217 : vector<8x128xf32>
    %220 = arith.divf %218, %219 : vector<8x128xf32>
    %221 = arith.mulf %212, %165 : vector<8x128xf32>
    %222 = arith.mulf %206, %214 : vector<8x128xf32>
    %223 = arith.addf %221, %222 : vector<8x128xf32>
    %224 = math.tanh %223 : vector<8x128xf32>
    %225 = arith.mulf %220, %224 : vector<8x128xf32>
    %226 = vector.extract_strided_slice %200 {offsets = [0, 0], sizes = [8, 128], strides = [1, 1]} : vector<8x512xf32> to vector<8x128xf32>
    %227 = arith.negf %226 : vector<8x128xf32>
    %228 = math.exp %227 : vector<8x128xf32>
    %cst_64 = arith.constant 1.000000e+00 : f32
    %229 = vector.broadcast %cst_64 : f32 to vector<8x128xf32>
    %230 = arith.addf %229, %228 : vector<8x128xf32>
    %231 = arith.divf %229, %230 : vector<8x128xf32>
    %232 = vector.extract_strided_slice %200 {offsets = [0, 128], sizes = [8, 128], strides = [1, 1]} : vector<8x512xf32> to vector<8x128xf32>
    %233 = arith.negf %232 : vector<8x128xf32>
    %234 = math.exp %233 : vector<8x128xf32>
    %cst_65 = arith.constant 1.000000e+00 : f32
    %235 = vector.broadcast %cst_65 : f32 to vector<8x128xf32>
    %236 = arith.addf %235, %234 : vector<8x128xf32>
    %237 = arith.divf %235, %236 : vector<8x128xf32>
    %238 = vector.extract_strided_slice %200 {offsets = [0, 256], sizes = [8, 128], strides = [1, 1]} : vector<8x512xf32> to vector<8x128xf32>
    %239 = math.tanh %238 : vector<8x128xf32>
    %240 = vector.extract_strided_slice %200 {offsets = [0, 384], sizes = [8, 128], strides = [1, 1]} : vector<8x512xf32> to vector<8x128xf32>
    %241 = arith.negf %240 : vector<8x128xf32>
    %242 = math.exp %241 : vector<8x128xf32>
    %cst_66 = arith.constant 1.000000e+00 : f32
    %243 = vector.broadcast %cst_66 : f32 to vector<8x128xf32>
    %244 = arith.addf %243, %242 : vector<8x128xf32>
    %245 = arith.divf %243, %244 : vector<8x128xf32>
    %246 = arith.mulf %237, %190 : vector<8x128xf32>
    %247 = arith.mulf %231, %239 : vector<8x128xf32>
    %248 = arith.addf %246, %247 : vector<8x128xf32>
    %249 = math.tanh %248 : vector<8x128xf32>
    %250 = arith.mulf %245, %249 : vector<8x128xf32>
    %c24_67 = arith.constant 24 : index
    %c0_68 = arith.constant 0 : index
    %251 = vector.load %arg10[%c24_67, %c0_68] : memref<64x256xf32, #tpu.memory_space<vmem>>, vector<8x128xf32>
    tpu.vector_store %arg10[%c24_67, %c0_68], %225 {strides = array<i32>} : memref<64x256xf32, #tpu.memory_space<vmem>>, vector<8x128xf32>,
    %c32_69 = arith.constant 32 : index
    %c128_70 = arith.constant 128 : index
    %252 = vector.load %arg10[%c32_69, %c128_70] : memref<64x256xf32, #tpu.memory_space<vmem>>, vector<8x128xf32>
    tpu.vector_store %arg10[%c32_69, %c128_70], %250 {strides = array<i32>} : memref<64x256xf32, #tpu.memory_space<vmem>>, vector<8x128xf32>,
    %c32_71 = arith.constant 32 : index
    %c0_72 = arith.constant 0 : index
    %253 = vector.load %arg11[%c32_71, %c0_72] : memref<64x1024xf32, #tpu.memory_space<vmem>>, vector<8x512xf32>
    %cst_73 = arith.constant dense<0.000000e+00> : vector<8x512xf32>
    %254 = tpu.matmul %225, %14, %cst_73 {dimension_numbers = #tpu.dot_dimension_numbers<[1], [0], [0], [1], [0, 0, 1, 1], [], []>} : vector<8x128xf32>, vector<128x512xf32>, vector<8x512xf32> -> vector<8x512xf32>
    %255 = arith.addf %253, %254 : vector<8x512xf32>
    %c24_74 = arith.constant 24 : index
    %c512_75 = arith.constant 512 : index
    %256 = vector.load %arg11[%c24_74, %c512_75] : memref<64x1024xf32, #tpu.memory_space<vmem>>, vector<8x512xf32>
    %cst_76 = arith.constant dense<0.000000e+00> : vector<8x512xf32>
    %257 = tpu.matmul %250, %16, %cst_76 {dimension_numbers = #tpu.dot_dimension_numbers<[1], [0], [0], [1], [0, 0, 1, 1], [], []>} : vector<8x128xf32>, vector<128x512xf32>, vector<8x512xf32> -> vector<8x512xf32>
    %258 = arith.addf %256, %257 : vector<8x512xf32>
    %259 = vector.extract_strided_slice %255 {offsets = [0, 0], sizes = [8, 128], strides = [1, 1]} : vector<8x512xf32> to vector<8x128xf32>
    %260 = arith.negf %259 : vector<8x128xf32>
    %261 = math.exp %260 : vector<8x128xf32>
    %cst_77 = arith.constant 1.000000e+00 : f32
    %262 = vector.broadcast %cst_77 : f32 to vector<8x128xf32>
    %263 = arith.addf %262, %261 : vector<8x128xf32>
    %264 = arith.divf %262, %263 : vector<8x128xf32>
    %265 = vector.extract_strided_slice %255 {offsets = [0, 128], sizes = [8, 128], strides = [1, 1]} : vector<8x512xf32> to vector<8x128xf32>
    %266 = arith.negf %265 : vector<8x128xf32>
    %267 = math.exp %266 : vector<8x128xf32>
    %cst_78 = arith.constant 1.000000e+00 : f32
    %268 = vector.broadcast %cst_78 : f32 to vector<8x128xf32>
    %269 = arith.addf %268, %267 : vector<8x128xf32>
    %270 = arith.divf %268, %269 : vector<8x128xf32>
    %271 = vector.extract_strided_slice %255 {offsets = [0, 256], sizes = [8, 128], strides = [1, 1]} : vector<8x512xf32> to vector<8x128xf32>
    %272 = math.tanh %271 : vector<8x128xf32>
    %273 = vector.extract_strided_slice %255 {offsets = [0, 384], sizes = [8, 128], strides = [1, 1]} : vector<8x512xf32> to vector<8x128xf32>
    %274 = arith.negf %273 : vector<8x128xf32>
    %275 = math.exp %274 : vector<8x128xf32>
    %cst_79 = arith.constant 1.000000e+00 : f32
    %276 = vector.broadcast %cst_79 : f32 to vector<8x128xf32>
    %277 = arith.addf %276, %275 : vector<8x128xf32>
    %278 = arith.divf %276, %277 : vector<8x128xf32>
    %279 = arith.mulf %270, %223 : vector<8x128xf32>
    %280 = arith.mulf %264, %272 : vector<8x128xf32>
    %281 = arith.addf %279, %280 : vector<8x128xf32>
    %282 = math.tanh %281 : vector<8x128xf32>
    %283 = arith.mulf %278, %282 : vector<8x128xf32>
    %284 = vector.extract_strided_slice %258 {offsets = [0, 0], sizes = [8, 128], strides = [1, 1]} : vector<8x512xf32> to vector<8x128xf32>
    %285 = arith.negf %284 : vector<8x128xf32>
    %286 = math.exp %285 : vector<8x128xf32>
    %cst_80 = arith.constant 1.000000e+00 : f32
    %287 = vector.broadcast %cst_80 : f32 to vector<8x128xf32>
    %288 = arith.addf %287, %286 : vector<8x128xf32>
    %289 = arith.divf %287, %288 : vector<8x128xf32>
    %290 = vector.extract_strided_slice %258 {offsets = [0, 128], sizes = [8, 128], strides = [1, 1]} : vector<8x512xf32> to vector<8x128xf32>
    %291 = arith.negf %290 : vector<8x128xf32>
    %292 = math.exp %291 : vector<8x128xf32>
    %cst_81 = arith.constant 1.000000e+00 : f32
    %293 = vector.broadcast %cst_81 : f32 to vector<8x128xf32>
    %294 = arith.addf %293, %292 : vector<8x128xf32>
    %295 = arith.divf %293, %294 : vector<8x128xf32>
    %296 = vector.extract_strided_slice %258 {offsets = [0, 256], sizes = [8, 128], strides = [1, 1]} : vector<8x512xf32> to vector<8x128xf32>
    %297 = math.tanh %296 : vector<8x128xf32>
    %298 = vector.extract_strided_slice %258 {offsets = [0, 384], sizes = [8, 128], strides = [1, 1]} : vector<8x512xf32> to vector<8x128xf32>
    %299 = arith.negf %298 : vector<8x128xf32>
    %300 = math.exp %299 : vector<8x128xf32>
    %cst_82 = arith.constant 1.000000e+00 : f32
    %301 = vector.broadcast %cst_82 : f32 to vector<8x128xf32>
    %302 = arith.addf %301, %300 : vector<8x128xf32>
    %303 = arith.divf %301, %302 : vector<8x128xf32>
    %304 = arith.mulf %295, %248 : vector<8x128xf32>
    %305 = arith.mulf %289, %297 : vector<8x128xf32>
    %306 = arith.addf %304, %305 : vector<8x128xf32>
    %307 = math.tanh %306 : vector<8x128xf32>
    %308 = arith.mulf %303, %307 : vector<8x128xf32>
    %c32_83 = arith.constant 32 : index
    %c0_84 = arith.constant 0 : index
    %309 = vector.load %arg10[%c32_83, %c0_84] : memref<64x256xf32, #tpu.memory_space<vmem>>, vector<8x128xf32>
    tpu.vector_store %arg10[%c32_83, %c0_84], %283 {strides = array<i32>} : memref<64x256xf32, #tpu.memory_space<vmem>>, vector<8x128xf32>,
    %c24_85 = arith.constant 24 : index
    %c128_86 = arith.constant 128 : index
    %310 = vector.load %arg10[%c24_85, %c128_86] : memref<64x256xf32, #tpu.memory_space<vmem>>, vector<8x128xf32>
    tpu.vector_store %arg10[%c24_85, %c128_86], %308 {strides = array<i32>} : memref<64x256xf32, #tpu.memory_space<vmem>>, vector<8x128xf32>,
    %c40_87 = arith.constant 40 : index
    %c0_88 = arith.constant 0 : index
    %311 = vector.load %arg11[%c40_87, %c0_88] : memref<64x1024xf32, #tpu.memory_space<vmem>>, vector<8x512xf32>
    %cst_89 = arith.constant dense<0.000000e+00> : vector<8x512xf32>
    %312 = tpu.matmul %283, %14, %cst_89 {dimension_numbers = #tpu.dot_dimension_numbers<[1], [0], [0], [1], [0, 0, 1, 1], [], []>} : vector<8x128xf32>, vector<128x512xf32>, vector<8x512xf32> -> vector<8x512xf32>
    %313 = arith.addf %311, %312 : vector<8x512xf32>
    %c16_90 = arith.constant 16 : index
    %c512_91 = arith.constant 512 : index
    %314 = vector.load %arg11[%c16_90, %c512_91] : memref<64x1024xf32, #tpu.memory_space<vmem>>, vector<8x512xf32>
    %cst_92 = arith.constant dense<0.000000e+00> : vector<8x512xf32>
    %315 = tpu.matmul %308, %16, %cst_92 {dimension_numbers = #tpu.dot_dimension_numbers<[1], [0], [0], [1], [0, 0, 1, 1], [], []>} : vector<8x128xf32>, vector<128x512xf32>, vector<8x512xf32> -> vector<8x512xf32>
    %316 = arith.addf %314, %315 : vector<8x512xf32>
    %317 = vector.extract_strided_slice %313 {offsets = [0, 0], sizes = [8, 128], strides = [1, 1]} : vector<8x512xf32> to vector<8x128xf32>
    %318 = arith.negf %317 : vector<8x128xf32>
    %319 = math.exp %318 : vector<8x128xf32>
    %cst_93 = arith.constant 1.000000e+00 : f32
    %320 = vector.broadcast %cst_93 : f32 to vector<8x128xf32>
    %321 = arith.addf %320, %319 : vector<8x128xf32>
    %322 = arith.divf %320, %321 : vector<8x128xf32>
    %323 = vector.extract_strided_slice %313 {offsets = [0, 128], sizes = [8, 128], strides = [1, 1]} : vector<8x512xf32> to vector<8x128xf32>
    %324 = arith.negf %323 : vector<8x128xf32>
    %325 = math.exp %324 : vector<8x128xf32>
    %cst_94 = arith.constant 1.000000e+00 : f32
    %326 = vector.broadcast %cst_94 : f32 to vector<8x128xf32>
    %327 = arith.addf %326, %325 : vector<8x128xf32>
    %328 = arith.divf %326, %327 : vector<8x128xf32>
    %329 = vector.extract_strided_slice %313 {offsets = [0, 256], sizes = [8, 128], strides = [1, 1]} : vector<8x512xf32> to vector<8x128xf32>
    %330 = math.tanh %329 : vector<8x128xf32>
    %331 = vector.extract_strided_slice %313 {offsets = [0, 384], sizes = [8, 128], strides = [1, 1]} : vector<8x512xf32> to vector<8x128xf32>
    %332 = arith.negf %331 : vector<8x128xf32>
    %333 = math.exp %332 : vector<8x128xf32>
    %cst_95 = arith.constant 1.000000e+00 : f32
    %334 = vector.broadcast %cst_95 : f32 to vector<8x128xf32>
    %335 = arith.addf %334, %333 : vector<8x128xf32>
    %336 = arith.divf %334, %335 : vector<8x128xf32>
    %337 = arith.mulf %328, %281 : vector<8x128xf32>
    %338 = arith.mulf %322, %330 : vector<8x128xf32>
    %339 = arith.addf %337, %338 : vector<8x128xf32>
    %340 = math.tanh %339 : vector<8x128xf32>
    %341 = arith.mulf %336, %340 : vector<8x128xf32>
    %342 = vector.extract_strided_slice %316 {offsets = [0, 0], sizes = [8, 128], strides = [1, 1]} : vector<8x512xf32> to vector<8x128xf32>
    %343 = arith.negf %342 : vector<8x128xf32>
    %344 = math.exp %343 : vector<8x128xf32>
    %cst_96 = arith.constant 1.000000e+00 : f32
    %345 = vector.broadcast %cst_96 : f32 to vector<8x128xf32>
    %346 = arith.addf %345, %344 : vector<8x128xf32>
    %347 = arith.divf %345, %346 : vector<8x128xf32>
    %348 = vector.extract_strided_slice %316 {offsets = [0, 128], sizes = [8, 128], strides = [1, 1]} : vector<8x512xf32> to vector<8x128xf32>
    %349 = arith.negf %348 : vector<8x128xf32>
    %350 = math.exp %349 : vector<8x128xf32>
    %cst_97 = arith.constant 1.000000e+00 : f32
    %351 = vector.broadcast %cst_97 : f32 to vector<8x128xf32>
    %352 = arith.addf %351, %350 : vector<8x128xf32>
    %353 = arith.divf %351, %352 : vector<8x128xf32>
    %354 = vector.extract_strided_slice %316 {offsets = [0, 256], sizes = [8, 128], strides = [1, 1]} : vector<8x512xf32> to vector<8x128xf32>
    %355 = math.tanh %354 : vector<8x128xf32>
    %356 = vector.extract_strided_slice %316 {offsets = [0, 384], sizes = [8, 128], strides = [1, 1]} : vector<8x512xf32> to vector<8x128xf32>
    %357 = arith.negf %356 : vector<8x128xf32>
    %358 = math.exp %357 : vector<8x128xf32>
    %cst_98 = arith.constant 1.000000e+00 : f32
    %359 = vector.broadcast %cst_98 : f32 to vector<8x128xf32>
    %360 = arith.addf %359, %358 : vector<8x128xf32>
    %361 = arith.divf %359, %360 : vector<8x128xf32>
    %362 = arith.mulf %353, %306 : vector<8x128xf32>
    %363 = arith.mulf %347, %355 : vector<8x128xf32>
    %364 = arith.addf %362, %363 : vector<8x128xf32>
    %365 = math.tanh %364 : vector<8x128xf32>
    %366 = arith.mulf %361, %365 : vector<8x128xf32>
    %c40_99 = arith.constant 40 : index
    %c0_100 = arith.constant 0 : index
    %367 = vector.load %arg10[%c40_99, %c0_100] : memref<64x256xf32, #tpu.memory_space<vmem>>, vector<8x128xf32>
    tpu.vector_store %arg10[%c40_99, %c0_100], %341 {strides = array<i32>} : memref<64x256xf32, #tpu.memory_space<vmem>>, vector<8x128xf32>,
    %c16_101 = arith.constant 16 : index
    %c128_102 = arith.constant 128 : index
    %368 = vector.load %arg10[%c16_101, %c128_102] : memref<64x256xf32, #tpu.memory_space<vmem>>, vector<8x128xf32>
    tpu.vector_store %arg10[%c16_101, %c128_102], %366 {strides = array<i32>} : memref<64x256xf32, #tpu.memory_space<vmem>>, vector<8x128xf32>,
    %c48_103 = arith.constant 48 : index
    %c0_104 = arith.constant 0 : index
    %369 = vector.load %arg11[%c48_103, %c0_104] : memref<64x1024xf32, #tpu.memory_space<vmem>>, vector<8x512xf32>
    %cst_105 = arith.constant dense<0.000000e+00> : vector<8x512xf32>
    %370 = tpu.matmul %341, %14, %cst_105 {dimension_numbers = #tpu.dot_dimension_numbers<[1], [0], [0], [1], [0, 0, 1, 1], [], []>} : vector<8x128xf32>, vector<128x512xf32>, vector<8x512xf32> -> vector<8x512xf32>
    %371 = arith.addf %369, %370 : vector<8x512xf32>
    %c8_106 = arith.constant 8 : index
    %c512_107 = arith.constant 512 : index
    %372 = vector.load %arg11[%c8_106, %c512_107] : memref<64x1024xf32, #tpu.memory_space<vmem>>, vector<8x512xf32>
    %cst_108 = arith.constant dense<0.000000e+00> : vector<8x512xf32>
    %373 = tpu.matmul %366, %16, %cst_108 {dimension_numbers = #tpu.dot_dimension_numbers<[1], [0], [0], [1], [0, 0, 1, 1], [], []>} : vector<8x128xf32>, vector<128x512xf32>, vector<8x512xf32> -> vector<8x512xf32>
    %374 = arith.addf %372, %373 : vector<8x512xf32>
    %375 = vector.extract_strided_slice %371 {offsets = [0, 0], sizes = [8, 128], strides = [1, 1]} : vector<8x512xf32> to vector<8x128xf32>
    %376 = arith.negf %375 : vector<8x128xf32>
    %377 = math.exp %376 : vector<8x128xf32>
    %cst_109 = arith.constant 1.000000e+00 : f32
    %378 = vector.broadcast %cst_109 : f32 to vector<8x128xf32>
    %379 = arith.addf %378, %377 : vector<8x128xf32>
    %380 = arith.divf %378, %379 : vector<8x128xf32>
    %381 = vector.extract_strided_slice %371 {offsets = [0, 128], sizes = [8, 128], strides = [1, 1]} : vector<8x512xf32> to vector<8x128xf32>
    %382 = arith.negf %381 : vector<8x128xf32>
    %383 = math.exp %382 : vector<8x128xf32>
    %cst_110 = arith.constant 1.000000e+00 : f32
    %384 = vector.broadcast %cst_110 : f32 to vector<8x128xf32>
    %385 = arith.addf %384, %383 : vector<8x128xf32>
    %386 = arith.divf %384, %385 : vector<8x128xf32>
    %387 = vector.extract_strided_slice %371 {offsets = [0, 256], sizes = [8, 128], strides = [1, 1]} : vector<8x512xf32> to vector<8x128xf32>
    %388 = math.tanh %387 : vector<8x128xf32>
    %389 = vector.extract_strided_slice %371 {offsets = [0, 384], sizes = [8, 128], strides = [1, 1]} : vector<8x512xf32> to vector<8x128xf32>
    %390 = arith.negf %389 : vector<8x128xf32>
    %391 = math.exp %390 : vector<8x128xf32>
    %cst_111 = arith.constant 1.000000e+00 : f32
    %392 = vector.broadcast %cst_111 : f32 to vector<8x128xf32>
    %393 = arith.addf %392, %391 : vector<8x128xf32>
    %394 = arith.divf %392, %393 : vector<8x128xf32>
    %395 = arith.mulf %386, %339 : vector<8x128xf32>
    %396 = arith.mulf %380, %388 : vector<8x128xf32>
    %397 = arith.addf %395, %396 : vector<8x128xf32>
    %398 = math.tanh %397 : vector<8x128xf32>
    %399 = arith.mulf %394, %398 : vector<8x128xf32>
    %400 = vector.extract_strided_slice %374 {offsets = [0, 0], sizes = [8, 128], strides = [1, 1]} : vector<8x512xf32> to vector<8x128xf32>
    %401 = arith.negf %400 : vector<8x128xf32>
    %402 = math.exp %401 : vector<8x128xf32>
    %cst_112 = arith.constant 1.000000e+00 : f32
    %403 = vector.broadcast %cst_112 : f32 to vector<8x128xf32>
    %404 = arith.addf %403, %402 : vector<8x128xf32>
    %405 = arith.divf %403, %404 : vector<8x128xf32>
    %406 = vector.extract_strided_slice %374 {offsets = [0, 128], sizes = [8, 128], strides = [1, 1]} : vector<8x512xf32> to vector<8x128xf32>
    %407 = arith.negf %406 : vector<8x128xf32>
    %408 = math.exp %407 : vector<8x128xf32>
    %cst_113 = arith.constant 1.000000e+00 : f32
    %409 = vector.broadcast %cst_113 : f32 to vector<8x128xf32>
    %410 = arith.addf %409, %408 : vector<8x128xf32>
    %411 = arith.divf %409, %410 : vector<8x128xf32>
    %412 = vector.extract_strided_slice %374 {offsets = [0, 256], sizes = [8, 128], strides = [1, 1]} : vector<8x512xf32> to vector<8x128xf32>
    %413 = math.tanh %412 : vector<8x128xf32>
    %414 = vector.extract_strided_slice %374 {offsets = [0, 384], sizes = [8, 128], strides = [1, 1]} : vector<8x512xf32> to vector<8x128xf32>
    %415 = arith.negf %414 : vector<8x128xf32>
    %416 = math.exp %415 : vector<8x128xf32>
    %cst_114 = arith.constant 1.000000e+00 : f32
    %417 = vector.broadcast %cst_114 : f32 to vector<8x128xf32>
    %418 = arith.addf %417, %416 : vector<8x128xf32>
    %419 = arith.divf %417, %418 : vector<8x128xf32>
    %420 = arith.mulf %411, %364 : vector<8x128xf32>
    %421 = arith.mulf %405, %413 : vector<8x128xf32>
    %422 = arith.addf %420, %421 : vector<8x128xf32>
    %423 = math.tanh %422 : vector<8x128xf32>
    %424 = arith.mulf %419, %423 : vector<8x128xf32>
    %c48_115 = arith.constant 48 : index
    %c0_116 = arith.constant 0 : index
    %425 = vector.load %arg10[%c48_115, %c0_116] : memref<64x256xf32, #tpu.memory_space<vmem>>, vector<8x128xf32>
    tpu.vector_store %arg10[%c48_115, %c0_116], %399 {strides = array<i32>} : memref<64x256xf32, #tpu.memory_space<vmem>>, vector<8x128xf32>,
    %c8_117 = arith.constant 8 : index
    %c128_118 = arith.constant 128 : index
    %426 = vector.load %arg10[%c8_117, %c128_118] : memref<64x256xf32, #tpu.memory_space<vmem>>, vector<8x128xf32>
    tpu.vector_store %arg10[%c8_117, %c128_118], %424 {strides = array<i32>} : memref<64x256xf32, #tpu.memory_space<vmem>>, vector<8x128xf32>,
    %c56_119 = arith.constant 56 : index
    %c0_120 = arith.constant 0 : index
    %427 = vector.load %arg11[%c56_119, %c0_120] : memref<64x1024xf32, #tpu.memory_space<vmem>>, vector<8x512xf32>
    %cst_121 = arith.constant dense<0.000000e+00> : vector<8x512xf32>
    %428 = tpu.matmul %399, %14, %cst_121 {dimension_numbers = #tpu.dot_dimension_numbers<[1], [0], [0], [1], [0, 0, 1, 1], [], []>} : vector<8x128xf32>, vector<128x512xf32>, vector<8x512xf32> -> vector<8x512xf32>
    %429 = arith.addf %427, %428 : vector<8x512xf32>
    %c0_122 = arith.constant 0 : index
    %c512_123 = arith.constant 512 : index
    %430 = vector.load %arg11[%c0_122, %c512_123] : memref<64x1024xf32, #tpu.memory_space<vmem>>, vector<8x512xf32>
    %cst_124 = arith.constant dense<0.000000e+00> : vector<8x512xf32>
    %431 = tpu.matmul %424, %16, %cst_124 {dimension_numbers = #tpu.dot_dimension_numbers<[1], [0], [0], [1], [0, 0, 1, 1], [], []>} : vector<8x128xf32>, vector<128x512xf32>, vector<8x512xf32> -> vector<8x512xf32>
    %432 = arith.addf %430, %431 : vector<8x512xf32>
    %433 = vector.extract_strided_slice %429 {offsets = [0, 0], sizes = [8, 128], strides = [1, 1]} : vector<8x512xf32> to vector<8x128xf32>
    %434 = arith.negf %433 : vector<8x128xf32>
    %435 = math.exp %434 : vector<8x128xf32>
    %cst_125 = arith.constant 1.000000e+00 : f32
    %436 = vector.broadcast %cst_125 : f32 to vector<8x128xf32>
    %437 = arith.addf %436, %435 : vector<8x128xf32>
    %438 = arith.divf %436, %437 : vector<8x128xf32>
    %439 = vector.extract_strided_slice %429 {offsets = [0, 128], sizes = [8, 128], strides = [1, 1]} : vector<8x512xf32> to vector<8x128xf32>
    %440 = arith.negf %439 : vector<8x128xf32>
    %441 = math.exp %440 : vector<8x128xf32>
    %cst_126 = arith.constant 1.000000e+00 : f32
    %442 = vector.broadcast %cst_126 : f32 to vector<8x128xf32>
    %443 = arith.addf %442, %441 : vector<8x128xf32>
    %444 = arith.divf %442, %443 : vector<8x128xf32>
    %445 = vector.extract_strided_slice %429 {offsets = [0, 256], sizes = [8, 128], strides = [1, 1]} : vector<8x512xf32> to vector<8x128xf32>
    %446 = math.tanh %445 : vector<8x128xf32>
    %447 = vector.extract_strided_slice %429 {offsets = [0, 384], sizes = [8, 128], strides = [1, 1]} : vector<8x512xf32> to vector<8x128xf32>
    %448 = arith.negf %447 : vector<8x128xf32>
    %449 = math.exp %448 : vector<8x128xf32>
    %cst_127 = arith.constant 1.000000e+00 : f32
    %450 = vector.broadcast %cst_127 : f32 to vector<8x128xf32>
    %451 = arith.addf %450, %449 : vector<8x128xf32>
    %452 = arith.divf %450, %451 : vector<8x128xf32>
    %453 = arith.mulf %444, %397 : vector<8x128xf32>
    %454 = arith.mulf %438, %446 : vector<8x128xf32>
    %455 = arith.addf %453, %454 : vector<8x128xf32>
    %456 = math.tanh %455 : vector<8x128xf32>
    %457 = arith.mulf %452, %456 : vector<8x128xf32>
    %458 = vector.extract_strided_slice %432 {offsets = [0, 0], sizes = [8, 128], strides = [1, 1]} : vector<8x512xf32> to vector<8x128xf32>
    %459 = arith.negf %458 : vector<8x128xf32>
    %460 = math.exp %459 : vector<8x128xf32>
    %cst_128 = arith.constant 1.000000e+00 : f32
    %461 = vector.broadcast %cst_128 : f32 to vector<8x128xf32>
    %462 = arith.addf %461, %460 : vector<8x128xf32>
    %463 = arith.divf %461, %462 : vector<8x128xf32>
    %464 = vector.extract_strided_slice %432 {offsets = [0, 128], sizes = [8, 128], strides = [1, 1]} : vector<8x512xf32> to vector<8x128xf32>
    %465 = arith.negf %464 : vector<8x128xf32>
    %466 = math.exp %465 : vector<8x128xf32>
    %cst_129 = arith.constant 1.000000e+00 : f32
    %467 = vector.broadcast %cst_129 : f32 to vector<8x128xf32>
    %468 = arith.addf %467, %466 : vector<8x128xf32>
    %469 = arith.divf %467, %468 : vector<8x128xf32>
    %470 = vector.extract_strided_slice %432 {offsets = [0, 256], sizes = [8, 128], strides = [1, 1]} : vector<8x512xf32> to vector<8x128xf32>
    %471 = math.tanh %470 : vector<8x128xf32>
    %472 = vector.extract_strided_slice %432 {offsets = [0, 384], sizes = [8, 128], strides = [1, 1]} : vector<8x512xf32> to vector<8x128xf32>
    %473 = arith.negf %472 : vector<8x128xf32>
    %474 = math.exp %473 : vector<8x128xf32>
    %cst_130 = arith.constant 1.000000e+00 : f32
    %475 = vector.broadcast %cst_130 : f32 to vector<8x128xf32>
    %476 = arith.addf %475, %474 : vector<8x128xf32>
    %477 = arith.divf %475, %476 : vector<8x128xf32>
    %478 = arith.mulf %469, %422 : vector<8x128xf32>
    %479 = arith.mulf %463, %471 : vector<8x128xf32>
    %480 = arith.addf %478, %479 : vector<8x128xf32>
    %481 = math.tanh %480 : vector<8x128xf32>
    %482 = arith.mulf %477, %481 : vector<8x128xf32>
    %c56_131 = arith.constant 56 : index
    %c0_132 = arith.constant 0 : index
    %483 = vector.load %arg10[%c56_131, %c0_132] : memref<64x256xf32, #tpu.memory_space<vmem>>, vector<8x128xf32>
    tpu.vector_store %arg10[%c56_131, %c0_132], %457 {strides = array<i32>} : memref<64x256xf32, #tpu.memory_space<vmem>>, vector<8x128xf32>,
    %c0_133 = arith.constant 0 : index
    %c128_134 = arith.constant 128 : index
    %484 = vector.load %arg10[%c0_133, %c128_134] : memref<64x256xf32, #tpu.memory_space<vmem>>, vector<8x128xf32>
    tpu.vector_store %arg10[%c0_133, %c128_134], %482 {strides = array<i32>} : memref<64x256xf32, #tpu.memory_space<vmem>>, vector<8x128xf32>,
    %c0_i32_135 = arith.constant 0 : i32
    %485 = tpu.memref_slice %arg16[%c0_i32_135] : memref<3x!tpu.dma_semaphore, #tpu.memory_space<semaphore_mem>> -> memref<1x!tpu.dma_semaphore, #tpu.memory_space<semaphore_mem>>
    %486 = tpu.memref_squeeze %485 : memref<1x!tpu.dma_semaphore, #tpu.memory_space<semaphore_mem>> -> memref<!tpu.dma_semaphore, #tpu.memory_space<semaphore_mem>>
    tpu.wait_dma2 semaphore(%486 : memref<!tpu.dma_semaphore, #tpu.memory_space<semaphore_mem>>) src(%arg6 : memref<2x256x512xf32, #tpu.memory_space<any>>) dst(%arg13 : memref<2x256x512xf32, #tpu.memory_space<vmem>>)
    %c1_i32_136 = arith.constant 1 : i32
    %487 = tpu.memref_slice %arg16[%c1_i32_136] : memref<3x!tpu.dma_semaphore, #tpu.memory_space<semaphore_mem>> -> memref<1x!tpu.dma_semaphore, #tpu.memory_space<semaphore_mem>>
    %488 = tpu.memref_squeeze %487 : memref<1x!tpu.dma_semaphore, #tpu.memory_space<semaphore_mem>> -> memref<!tpu.dma_semaphore, #tpu.memory_space<semaphore_mem>>
    tpu.wait_dma2 semaphore(%488 : memref<!tpu.dma_semaphore, #tpu.memory_space<semaphore_mem>>) src(%arg7 : memref<128x512xf32, #tpu.memory_space<any>>) dst(%arg14 : memref<128x512xf32, #tpu.memory_space<vmem>>)
    %c2_i32_137 = arith.constant 2 : i32
    %489 = tpu.memref_slice %arg16[%c2_i32_137] : memref<3x!tpu.dma_semaphore, #tpu.memory_space<semaphore_mem>> -> memref<1x!tpu.dma_semaphore, #tpu.memory_space<semaphore_mem>>
    %490 = tpu.memref_squeeze %489 : memref<1x!tpu.dma_semaphore, #tpu.memory_space<semaphore_mem>> -> memref<!tpu.dma_semaphore, #tpu.memory_space<semaphore_mem>>
    tpu.wait_dma2 semaphore(%490 : memref<!tpu.dma_semaphore, #tpu.memory_space<semaphore_mem>>) src(%arg8 : memref<256x128xf32, #tpu.memory_space<any>>) dst(%arg15 : memref<256x128xf32, #tpu.memory_space<vmem>>)
    %c0_138 = arith.constant 0 : index
    %c0_139 = arith.constant 0 : index
    %491 = vector.load %arg10[%c0_138, %c0_139] : memref<64x256xf32, #tpu.memory_space<vmem>>, vector<64x256xf32>
    %c0_140 = arith.constant 0 : index
    %c0_141 = arith.constant 0 : index
    %c0_142 = arith.constant 0 : index
    %492 = vector.load %arg13[%c0_140, %c0_141, %c0_142] : memref<2x256x512xf32, #tpu.memory_space<vmem>>, vector<1x256x512xf32>
    %493 = vector.shape_cast %492 : vector<1x256x512xf32> to vector<256x512xf32>
    %cst_143 = arith.constant dense<0.000000e+00> : vector<64x512xf32>
    %494 = tpu.matmul %491, %493, %cst_143 {dimension_numbers = #tpu.dot_dimension_numbers<[1], [0], [0], [1], [0, 0, 1, 1], [], []>} : vector<64x256xf32>, vector<256x512xf32>, vector<64x512xf32> -> vector<64x512xf32>
    %c0_144 = arith.constant 0 : index
    %c0_145 = arith.constant 0 : index
    %c0_146 = arith.constant 0 : index
    %495 = vector.load %arg4[%c0_144, %c0_145, %c0_146] : memref<2x1x512xf32, #tpu.memory_space<vmem>>, vector<1x1x512xf32>
    %496 = vector.shape_cast %495 : vector<1x1x512xf32> to vector<1x512xf32>
    %497 = vector.broadcast %496 : vector<1x512xf32> to vector<64x512xf32>
    %498 = arith.addf %494, %497 : vector<64x512xf32>
    %c0_147 = arith.constant 0 : index
    %c0_148 = arith.constant 0 : index
    %499 = vector.load %arg12[%c0_147, %c0_148] : memref<64x512xf32, #tpu.memory_space<vmem>>, vector<64x512xf32>
    tpu.vector_store %arg12[%c0_147, %c0_148], %498 {strides = array<i32>} : memref<64x512xf32, #tpu.memory_space<vmem>>, vector<64x512xf32>,
    %c0_149 = arith.constant 0 : index
    %c0_150 = arith.constant 0 : index
    %500 = vector.load %arg14[%c0_149, %c0_150] : memref<128x512xf32, #tpu.memory_space<vmem>>, vector<128x512xf32>
    %cst_151 = arith.constant 0.000000e+00 : f32
    %501 = vector.broadcast %cst_151 : f32 to vector<8x128xf32>
    %cst_152 = arith.constant 0.000000e+00 : f32
    %502 = vector.broadcast %cst_152 : f32 to vector<8x128xf32>
    %c0_153 = arith.constant 0 : index
    %c0_154 = arith.constant 0 : index
    %503 = vector.load %arg12[%c0_153, %c0_154] : memref<64x512xf32, #tpu.memory_space<vmem>>, vector<8x512xf32>
    %cst_155 = arith.constant dense<0.000000e+00> : vector<8x512xf32>
    %504 = tpu.matmul %501, %500, %cst_155 {dimension_numbers = #tpu.dot_dimension_numbers<[1], [0], [0], [1], [0, 0, 1, 1], [], []>} : vector<8x128xf32>, vector<128x512xf32>, vector<8x512xf32> -> vector<8x512xf32>
    %505 = arith.addf %503, %504 : vector<8x512xf32>
    %506 = vector.extract_strided_slice %505 {offsets = [0, 0], sizes = [8, 128], strides = [1, 1]} : vector<8x512xf32> to vector<8x128xf32>
    %507 = arith.negf %506 : vector<8x128xf32>
    %508 = math.exp %507 : vector<8x128xf32>
    %cst_156 = arith.constant 1.000000e+00 : f32
    %509 = vector.broadcast %cst_156 : f32 to vector<8x128xf32>
    %510 = arith.addf %509, %508 : vector<8x128xf32>
    %511 = arith.divf %509, %510 : vector<8x128xf32>
    %512 = vector.extract_strided_slice %505 {offsets = [0, 128], sizes = [8, 128], strides = [1, 1]} : vector<8x512xf32> to vector<8x128xf32>
    %513 = arith.negf %512 : vector<8x128xf32>
    %514 = math.exp %513 : vector<8x128xf32>
    %cst_157 = arith.constant 1.000000e+00 : f32
    %515 = vector.broadcast %cst_157 : f32 to vector<8x128xf32>
    %516 = arith.addf %515, %514 : vector<8x128xf32>
    %517 = arith.divf %515, %516 : vector<8x128xf32>
    %518 = vector.extract_strided_slice %505 {offsets = [0, 256], sizes = [8, 128], strides = [1, 1]} : vector<8x512xf32> to vector<8x128xf32>
    %519 = math.tanh %518 : vector<8x128xf32>
    %520 = vector.extract_strided_slice %505 {offsets = [0, 384], sizes = [8, 128], strides = [1, 1]} : vector<8x512xf32> to vector<8x128xf32>
    %521 = arith.negf %520 : vector<8x128xf32>
    %522 = math.exp %521 : vector<8x128xf32>
    %cst_158 = arith.constant 1.000000e+00 : f32
    %523 = vector.broadcast %cst_158 : f32 to vector<8x128xf32>
    %524 = arith.addf %523, %522 : vector<8x128xf32>
    %525 = arith.divf %523, %524 : vector<8x128xf32>
    %526 = arith.mulf %517, %502 : vector<8x128xf32>
    %527 = arith.mulf %511, %519 : vector<8x128xf32>
    %528 = arith.addf %526, %527 : vector<8x128xf32>
    %529 = math.tanh %528 : vector<8x128xf32>
    %530 = arith.mulf %525, %529 : vector<8x128xf32>
    %c8_159 = arith.constant 8 : index
    %c0_160 = arith.constant 0 : index
    %531 = vector.load %arg12[%c8_159, %c0_160] : memref<64x512xf32, #tpu.memory_space<vmem>>, vector<8x512xf32>
    %cst_161 = arith.constant dense<0.000000e+00> : vector<8x512xf32>
    %532 = tpu.matmul %530, %500, %cst_161 {dimension_numbers = #tpu.dot_dimension_numbers<[1], [0], [0], [1], [0, 0, 1, 1], [], []>} : vector<8x128xf32>, vector<128x512xf32>, vector<8x512xf32> -> vector<8x512xf32>
    %533 = arith.addf %531, %532 : vector<8x512xf32>
    %534 = vector.extract_strided_slice %533 {offsets = [0, 0], sizes = [8, 128], strides = [1, 1]} : vector<8x512xf32> to vector<8x128xf32>
    %535 = arith.negf %534 : vector<8x128xf32>
    %536 = math.exp %535 : vector<8x128xf32>
    %cst_162 = arith.constant 1.000000e+00 : f32
    %537 = vector.broadcast %cst_162 : f32 to vector<8x128xf32>
    %538 = arith.addf %537, %536 : vector<8x128xf32>
    %539 = arith.divf %537, %538 : vector<8x128xf32>
    %540 = vector.extract_strided_slice %533 {offsets = [0, 128], sizes = [8, 128], strides = [1, 1]} : vector<8x512xf32> to vector<8x128xf32>
    %541 = arith.negf %540 : vector<8x128xf32>
    %542 = math.exp %541 : vector<8x128xf32>
    %cst_163 = arith.constant 1.000000e+00 : f32
    %543 = vector.broadcast %cst_163 : f32 to vector<8x128xf32>
    %544 = arith.addf %543, %542 : vector<8x128xf32>
    %545 = arith.divf %543, %544 : vector<8x128xf32>
    %546 = vector.extract_strided_slice %533 {offsets = [0, 256], sizes = [8, 128], strides = [1, 1]} : vector<8x512xf32> to vector<8x128xf32>
    %547 = math.tanh %546 : vector<8x128xf32>
    %548 = vector.extract_strided_slice %533 {offsets = [0, 384], sizes = [8, 128], strides = [1, 1]} : vector<8x512xf32> to vector<8x128xf32>
    %549 = arith.negf %548 : vector<8x128xf32>
    %550 = math.exp %549 : vector<8x128xf32>
    %cst_164 = arith.constant 1.000000e+00 : f32
    %551 = vector.broadcast %cst_164 : f32 to vector<8x128xf32>
    %552 = arith.addf %551, %550 : vector<8x128xf32>
    %553 = arith.divf %551, %552 : vector<8x128xf32>
    %554 = arith.mulf %545, %528 : vector<8x128xf32>
    %555 = arith.mulf %539, %547 : vector<8x128xf32>
    %556 = arith.addf %554, %555 : vector<8x128xf32>
    %557 = math.tanh %556 : vector<8x128xf32>
    %558 = arith.mulf %553, %557 : vector<8x128xf32>
    %c16_165 = arith.constant 16 : index
    %c0_166 = arith.constant 0 : index
    %559 = vector.load %arg12[%c16_165, %c0_166] : memref<64x512xf32, #tpu.memory_space<vmem>>, vector<8x512xf32>
    %cst_167 = arith.constant dense<0.000000e+00> : vector<8x512xf32>
    %560 = tpu.matmul %558, %500, %cst_167 {dimension_numbers = #tpu.dot_dimension_numbers<[1], [0], [0], [1], [0, 0, 1, 1], [], []>} : vector<8x128xf32>, vector<128x512xf32>, vector<8x512xf32> -> vector<8x512xf32>
    %561 = arith.addf %559, %560 : vector<8x512xf32>
    %562 = vector.extract_strided_slice %561 {offsets = [0, 0], sizes = [8, 128], strides = [1, 1]} : vector<8x512xf32> to vector<8x128xf32>
    %563 = arith.negf %562 : vector<8x128xf32>
    %564 = math.exp %563 : vector<8x128xf32>
    %cst_168 = arith.constant 1.000000e+00 : f32
    %565 = vector.broadcast %cst_168 : f32 to vector<8x128xf32>
    %566 = arith.addf %565, %564 : vector<8x128xf32>
    %567 = arith.divf %565, %566 : vector<8x128xf32>
    %568 = vector.extract_strided_slice %561 {offsets = [0, 128], sizes = [8, 128], strides = [1, 1]} : vector<8x512xf32> to vector<8x128xf32>
    %569 = arith.negf %568 : vector<8x128xf32>
    %570 = math.exp %569 : vector<8x128xf32>
    %cst_169 = arith.constant 1.000000e+00 : f32
    %571 = vector.broadcast %cst_169 : f32 to vector<8x128xf32>
    %572 = arith.addf %571, %570 : vector<8x128xf32>
    %573 = arith.divf %571, %572 : vector<8x128xf32>
    %574 = vector.extract_strided_slice %561 {offsets = [0, 256], sizes = [8, 128], strides = [1, 1]} : vector<8x512xf32> to vector<8x128xf32>
    %575 = math.tanh %574 : vector<8x128xf32>
    %576 = vector.extract_strided_slice %561 {offsets = [0, 384], sizes = [8, 128], strides = [1, 1]} : vector<8x512xf32> to vector<8x128xf32>
    %577 = arith.negf %576 : vector<8x128xf32>
    %578 = math.exp %577 : vector<8x128xf32>
    %cst_170 = arith.constant 1.000000e+00 : f32
    %579 = vector.broadcast %cst_170 : f32 to vector<8x128xf32>
    %580 = arith.addf %579, %578 : vector<8x128xf32>
    %581 = arith.divf %579, %580 : vector<8x128xf32>
    %582 = arith.mulf %573, %556 : vector<8x128xf32>
    %583 = arith.mulf %567, %575 : vector<8x128xf32>
    %584 = arith.addf %582, %583 : vector<8x128xf32>
    %585 = math.tanh %584 : vector<8x128xf32>
    %586 = arith.mulf %581, %585 : vector<8x128xf32>
    %c24_171 = arith.constant 24 : index
    %c0_172 = arith.constant 0 : index
    %587 = vector.load %arg12[%c24_171, %c0_172] : memref<64x512xf32, #tpu.memory_space<vmem>>, vector<8x512xf32>
    %cst_173 = arith.constant dense<0.000000e+00> : vector<8x512xf32>
    %588 = tpu.matmul %586, %500, %cst_173 {dimension_numbers = #tpu.dot_dimension_numbers<[1], [0], [0], [1], [0, 0, 1, 1], [], []>} : vector<8x128xf32>, vector<128x512xf32>, vector<8x512xf32> -> vector<8x512xf32>
    %589 = arith.addf %587, %588 : vector<8x512xf32>
    %590 = vector.extract_strided_slice %589 {offsets = [0, 0], sizes = [8, 128], strides = [1, 1]} : vector<8x512xf32> to vector<8x128xf32>
    %591 = arith.negf %590 : vector<8x128xf32>
    %592 = math.exp %591 : vector<8x128xf32>
    %cst_174 = arith.constant 1.000000e+00 : f32
    %593 = vector.broadcast %cst_174 : f32 to vector<8x128xf32>
    %594 = arith.addf %593, %592 : vector<8x128xf32>
    %595 = arith.divf %593, %594 : vector<8x128xf32>
    %596 = vector.extract_strided_slice %589 {offsets = [0, 128], sizes = [8, 128], strides = [1, 1]} : vector<8x512xf32> to vector<8x128xf32>
    %597 = arith.negf %596 : vector<8x128xf32>
    %598 = math.exp %597 : vector<8x128xf32>
    %cst_175 = arith.constant 1.000000e+00 : f32
    %599 = vector.broadcast %cst_175 : f32 to vector<8x128xf32>
    %600 = arith.addf %599, %598 : vector<8x128xf32>
    %601 = arith.divf %599, %600 : vector<8x128xf32>
    %602 = vector.extract_strided_slice %589 {offsets = [0, 256], sizes = [8, 128], strides = [1, 1]} : vector<8x512xf32> to vector<8x128xf32>
    %603 = math.tanh %602 : vector<8x128xf32>
    %604 = vector.extract_strided_slice %589 {offsets = [0, 384], sizes = [8, 128], strides = [1, 1]} : vector<8x512xf32> to vector<8x128xf32>
    %605 = arith.negf %604 : vector<8x128xf32>
    %606 = math.exp %605 : vector<8x128xf32>
    %cst_176 = arith.constant 1.000000e+00 : f32
    %607 = vector.broadcast %cst_176 : f32 to vector<8x128xf32>
    %608 = arith.addf %607, %606 : vector<8x128xf32>
    %609 = arith.divf %607, %608 : vector<8x128xf32>
    %610 = arith.mulf %601, %584 : vector<8x128xf32>
    %611 = arith.mulf %595, %603 : vector<8x128xf32>
    %612 = arith.addf %610, %611 : vector<8x128xf32>
    %613 = math.tanh %612 : vector<8x128xf32>
    %614 = arith.mulf %609, %613 : vector<8x128xf32>
    %c32_177 = arith.constant 32 : index
    %c0_178 = arith.constant 0 : index
    %615 = vector.load %arg12[%c32_177, %c0_178] : memref<64x512xf32, #tpu.memory_space<vmem>>, vector<8x512xf32>
    %cst_179 = arith.constant dense<0.000000e+00> : vector<8x512xf32>
    %616 = tpu.matmul %614, %500, %cst_179 {dimension_numbers = #tpu.dot_dimension_numbers<[1], [0], [0], [1], [0, 0, 1, 1], [], []>} : vector<8x128xf32>, vector<128x512xf32>, vector<8x512xf32> -> vector<8x512xf32>
    %617 = arith.addf %615, %616 : vector<8x512xf32>
    %618 = vector.extract_strided_slice %617 {offsets = [0, 0], sizes = [8, 128], strides = [1, 1]} : vector<8x512xf32> to vector<8x128xf32>
    %619 = arith.negf %618 : vector<8x128xf32>
    %620 = math.exp %619 : vector<8x128xf32>
    %cst_180 = arith.constant 1.000000e+00 : f32
    %621 = vector.broadcast %cst_180 : f32 to vector<8x128xf32>
    %622 = arith.addf %621, %620 : vector<8x128xf32>
    %623 = arith.divf %621, %622 : vector<8x128xf32>
    %624 = vector.extract_strided_slice %617 {offsets = [0, 128], sizes = [8, 128], strides = [1, 1]} : vector<8x512xf32> to vector<8x128xf32>
    %625 = arith.negf %624 : vector<8x128xf32>
    %626 = math.exp %625 : vector<8x128xf32>
    %cst_181 = arith.constant 1.000000e+00 : f32
    %627 = vector.broadcast %cst_181 : f32 to vector<8x128xf32>
    %628 = arith.addf %627, %626 : vector<8x128xf32>
    %629 = arith.divf %627, %628 : vector<8x128xf32>
    %630 = vector.extract_strided_slice %617 {offsets = [0, 256], sizes = [8, 128], strides = [1, 1]} : vector<8x512xf32> to vector<8x128xf32>
    %631 = math.tanh %630 : vector<8x128xf32>
    %632 = vector.extract_strided_slice %617 {offsets = [0, 384], sizes = [8, 128], strides = [1, 1]} : vector<8x512xf32> to vector<8x128xf32>
    %633 = arith.negf %632 : vector<8x128xf32>
    %634 = math.exp %633 : vector<8x128xf32>
    %cst_182 = arith.constant 1.000000e+00 : f32
    %635 = vector.broadcast %cst_182 : f32 to vector<8x128xf32>
    %636 = arith.addf %635, %634 : vector<8x128xf32>
    %637 = arith.divf %635, %636 : vector<8x128xf32>
    %638 = arith.mulf %629, %612 : vector<8x128xf32>
    %639 = arith.mulf %623, %631 : vector<8x128xf32>
    %640 = arith.addf %638, %639 : vector<8x128xf32>
    %641 = math.tanh %640 : vector<8x128xf32>
    %642 = arith.mulf %637, %641 : vector<8x128xf32>
    %c40_183 = arith.constant 40 : index
    %c0_184 = arith.constant 0 : index
    %643 = vector.load %arg12[%c40_183, %c0_184] : memref<64x512xf32, #tpu.memory_space<vmem>>, vector<8x512xf32>
    %cst_185 = arith.constant dense<0.000000e+00> : vector<8x512xf32>
    %644 = tpu.matmul %642, %500, %cst_185 {dimension_numbers = #tpu.dot_dimension_numbers<[1], [0], [0], [1], [0, 0, 1, 1], [], []>} : vector<8x128xf32>, vector<128x512xf32>, vector<8x512xf32> -> vector<8x512xf32>
    %645 = arith.addf %643, %644 : vector<8x512xf32>
    %646 = vector.extract_strided_slice %645 {offsets = [0, 0], sizes = [8, 128], strides = [1, 1]} : vector<8x512xf32> to vector<8x128xf32>
    %647 = arith.negf %646 : vector<8x128xf32>
    %648 = math.exp %647 : vector<8x128xf32>
    %cst_186 = arith.constant 1.000000e+00 : f32
    %649 = vector.broadcast %cst_186 : f32 to vector<8x128xf32>
    %650 = arith.addf %649, %648 : vector<8x128xf32>
    %651 = arith.divf %649, %650 : vector<8x128xf32>
    %652 = vector.extract_strided_slice %645 {offsets = [0, 128], sizes = [8, 128], strides = [1, 1]} : vector<8x512xf32> to vector<8x128xf32>
    %653 = arith.negf %652 : vector<8x128xf32>
    %654 = math.exp %653 : vector<8x128xf32>
    %cst_187 = arith.constant 1.000000e+00 : f32
    %655 = vector.broadcast %cst_187 : f32 to vector<8x128xf32>
    %656 = arith.addf %655, %654 : vector<8x128xf32>
    %657 = arith.divf %655, %656 : vector<8x128xf32>
    %658 = vector.extract_strided_slice %645 {offsets = [0, 256], sizes = [8, 128], strides = [1, 1]} : vector<8x512xf32> to vector<8x128xf32>
    %659 = math.tanh %658 : vector<8x128xf32>
    %660 = vector.extract_strided_slice %645 {offsets = [0, 384], sizes = [8, 128], strides = [1, 1]} : vector<8x512xf32> to vector<8x128xf32>
    %661 = arith.negf %660 : vector<8x128xf32>
    %662 = math.exp %661 : vector<8x128xf32>
    %cst_188 = arith.constant 1.000000e+00 : f32
    %663 = vector.broadcast %cst_188 : f32 to vector<8x128xf32>
    %664 = arith.addf %663, %662 : vector<8x128xf32>
    %665 = arith.divf %663, %664 : vector<8x128xf32>
    %666 = arith.mulf %657, %640 : vector<8x128xf32>
    %667 = arith.mulf %651, %659 : vector<8x128xf32>
    %668 = arith.addf %666, %667 : vector<8x128xf32>
    %669 = math.tanh %668 : vector<8x128xf32>
    %670 = arith.mulf %665, %669 : vector<8x128xf32>
    %c48_189 = arith.constant 48 : index
    %c0_190 = arith.constant 0 : index
    %671 = vector.load %arg12[%c48_189, %c0_190] : memref<64x512xf32, #tpu.memory_space<vmem>>, vector<8x512xf32>
    %cst_191 = arith.constant dense<0.000000e+00> : vector<8x512xf32>
    %672 = tpu.matmul %670, %500, %cst_191 {dimension_numbers = #tpu.dot_dimension_numbers<[1], [0], [0], [1], [0, 0, 1, 1], [], []>} : vector<8x128xf32>, vector<128x512xf32>, vector<8x512xf32> -> vector<8x512xf32>
    %673 = arith.addf %671, %672 : vector<8x512xf32>
    %674 = vector.extract_strided_slice %673 {offsets = [0, 0], sizes = [8, 128], strides = [1, 1]} : vector<8x512xf32> to vector<8x128xf32>
    %675 = arith.negf %674 : vector<8x128xf32>
    %676 = math.exp %675 : vector<8x128xf32>
    %cst_192 = arith.constant 1.000000e+00 : f32
    %677 = vector.broadcast %cst_192 : f32 to vector<8x128xf32>
    %678 = arith.addf %677, %676 : vector<8x128xf32>
    %679 = arith.divf %677, %678 : vector<8x128xf32>
    %680 = vector.extract_strided_slice %673 {offsets = [0, 128], sizes = [8, 128], strides = [1, 1]} : vector<8x512xf32> to vector<8x128xf32>
    %681 = arith.negf %680 : vector<8x128xf32>
    %682 = math.exp %681 : vector<8x128xf32>
    %cst_193 = arith.constant 1.000000e+00 : f32
    %683 = vector.broadcast %cst_193 : f32 to vector<8x128xf32>
    %684 = arith.addf %683, %682 : vector<8x128xf32>
    %685 = arith.divf %683, %684 : vector<8x128xf32>
    %686 = vector.extract_strided_slice %673 {offsets = [0, 256], sizes = [8, 128], strides = [1, 1]} : vector<8x512xf32> to vector<8x128xf32>
    %687 = math.tanh %686 : vector<8x128xf32>
    %688 = vector.extract_strided_slice %673 {offsets = [0, 384], sizes = [8, 128], strides = [1, 1]} : vector<8x512xf32> to vector<8x128xf32>
    %689 = arith.negf %688 : vector<8x128xf32>
    %690 = math.exp %689 : vector<8x128xf32>
    %cst_194 = arith.constant 1.000000e+00 : f32
    %691 = vector.broadcast %cst_194 : f32 to vector<8x128xf32>
    %692 = arith.addf %691, %690 : vector<8x128xf32>
    %693 = arith.divf %691, %692 : vector<8x128xf32>
    %694 = arith.mulf %685, %668 : vector<8x128xf32>
    %695 = arith.mulf %679, %687 : vector<8x128xf32>
    %696 = arith.addf %694, %695 : vector<8x128xf32>
    %697 = math.tanh %696 : vector<8x128xf32>
    %698 = arith.mulf %693, %697 : vector<8x128xf32>
    %c56_195 = arith.constant 56 : index
    %c0_196 = arith.constant 0 : index
    %699 = vector.load %arg12[%c56_195, %c0_196] : memref<64x512xf32, #tpu.memory_space<vmem>>, vector<8x512xf32>
    %cst_197 = arith.constant dense<0.000000e+00> : vector<8x512xf32>
    %700 = tpu.matmul %698, %500, %cst_197 {dimension_numbers = #tpu.dot_dimension_numbers<[1], [0], [0], [1], [0, 0, 1, 1], [], []>} : vector<8x128xf32>, vector<128x512xf32>, vector<8x512xf32> -> vector<8x512xf32>
    %701 = arith.addf %699, %700 : vector<8x512xf32>
    %702 = vector.extract_strided_slice %701 {offsets = [0, 0], sizes = [8, 128], strides = [1, 1]} : vector<8x512xf32> to vector<8x128xf32>
    %703 = arith.negf %702 : vector<8x128xf32>
    %704 = math.exp %703 : vector<8x128xf32>
    %cst_198 = arith.constant 1.000000e+00 : f32
    %705 = vector.broadcast %cst_198 : f32 to vector<8x128xf32>
    %706 = arith.addf %705, %704 : vector<8x128xf32>
    %707 = arith.divf %705, %706 : vector<8x128xf32>
    %708 = vector.extract_strided_slice %701 {offsets = [0, 128], sizes = [8, 128], strides = [1, 1]} : vector<8x512xf32> to vector<8x128xf32>
    %709 = arith.negf %708 : vector<8x128xf32>
    %710 = math.exp %709 : vector<8x128xf32>
    %cst_199 = arith.constant 1.000000e+00 : f32
    %711 = vector.broadcast %cst_199 : f32 to vector<8x128xf32>
    %712 = arith.addf %711, %710 : vector<8x128xf32>
    %713 = arith.divf %711, %712 : vector<8x128xf32>
    %714 = vector.extract_strided_slice %701 {offsets = [0, 256], sizes = [8, 128], strides = [1, 1]} : vector<8x512xf32> to vector<8x128xf32>
    %715 = math.tanh %714 : vector<8x128xf32>
    %716 = vector.extract_strided_slice %701 {offsets = [0, 384], sizes = [8, 128], strides = [1, 1]} : vector<8x512xf32> to vector<8x128xf32>
    %717 = arith.negf %716 : vector<8x128xf32>
    %718 = math.exp %717 : vector<8x128xf32>
    %cst_200 = arith.constant 1.000000e+00 : f32
    %719 = vector.broadcast %cst_200 : f32 to vector<8x128xf32>
    %720 = arith.addf %719, %718 : vector<8x128xf32>
    %721 = arith.divf %719, %720 : vector<8x128xf32>
    %722 = arith.mulf %713, %696 : vector<8x128xf32>
    %723 = arith.mulf %707, %715 : vector<8x128xf32>
    %724 = arith.addf %722, %723 : vector<8x128xf32>
    %725 = math.tanh %724 : vector<8x128xf32>
    %726 = arith.mulf %721, %725 : vector<8x128xf32>
    %c56_201 = arith.constant 56 : index
    %c0_202 = arith.constant 0 : index
    %727 = vector.load %arg10[%c56_201, %c0_202] : memref<64x256xf32, #tpu.memory_space<vmem>>, vector<8x256xf32>
    %c1_203 = arith.constant 1 : index
    %c0_204 = arith.constant 0 : index
    %c0_205 = arith.constant 0 : index
    %728 = vector.load %arg13[%c1_203, %c0_204, %c0_205] : memref<2x256x512xf32, #tpu.memory_space<vmem>>, vector<1x256x512xf32>
    %729 = vector.shape_cast %728 : vector<1x256x512xf32> to vector<256x512xf32>
    %cst_206 = arith.constant dense<0.000000e+00> : vector<8x512xf32>
    %730 = tpu.matmul %727, %729, %cst_206 {dimension_numbers = #tpu.dot_dimension_numbers<[1], [0], [0], [1], [0, 0, 1, 1], [], []>} : vector<8x256xf32>, vector<256x512xf32>, vector<8x512xf32> -> vector<8x512xf32>
    %c1_207 = arith.constant 1 : index
    %c0_208 = arith.constant 0 : index
    %c0_209 = arith.constant 0 : index
    %731 = vector.load %arg4[%c1_207, %c0_208, %c0_209] : memref<2x1x512xf32, #tpu.memory_space<vmem>>, vector<1x1x512xf32>
    %732 = vector.shape_cast %731 : vector<1x1x512xf32> to vector<1x512xf32>
    %733 = vector.broadcast %732 : vector<1x512xf32> to vector<8x512xf32>
    %734 = arith.addf %730, %733 : vector<8x512xf32>
    %cst_210 = arith.constant 0.000000e+00 : f32
    %735 = vector.broadcast %cst_210 : f32 to vector<8x128xf32>
    %736 = vector.extract_strided_slice %734 {offsets = [0, 0], sizes = [8, 128], strides = [1, 1]} : vector<8x512xf32> to vector<8x128xf32>
    %737 = arith.negf %736 : vector<8x128xf32>
    %738 = math.exp %737 : vector<8x128xf32>
    %cst_211 = arith.constant 1.000000e+00 : f32
    %739 = vector.broadcast %cst_211 : f32 to vector<8x128xf32>
    %740 = arith.addf %739, %738 : vector<8x128xf32>
    %741 = arith.divf %739, %740 : vector<8x128xf32>
    %742 = vector.extract_strided_slice %734 {offsets = [0, 128], sizes = [8, 128], strides = [1, 1]} : vector<8x512xf32> to vector<8x128xf32>
    %743 = arith.negf %742 : vector<8x128xf32>
    %744 = math.exp %743 : vector<8x128xf32>
    %cst_212 = arith.constant 1.000000e+00 : f32
    %745 = vector.broadcast %cst_212 : f32 to vector<8x128xf32>
    %746 = arith.addf %745, %744 : vector<8x128xf32>
    %747 = arith.divf %745, %746 : vector<8x128xf32>
    %748 = vector.extract_strided_slice %734 {offsets = [0, 256], sizes = [8, 128], strides = [1, 1]} : vector<8x512xf32> to vector<8x128xf32>
    %749 = math.tanh %748 : vector<8x128xf32>
    %750 = vector.extract_strided_slice %734 {offsets = [0, 384], sizes = [8, 128], strides = [1, 1]} : vector<8x512xf32> to vector<8x128xf32>
    %751 = arith.negf %750 : vector<8x128xf32>
    %752 = math.exp %751 : vector<8x128xf32>
    %cst_213 = arith.constant 1.000000e+00 : f32
    %753 = vector.broadcast %cst_213 : f32 to vector<8x128xf32>
    %754 = arith.addf %753, %752 : vector<8x128xf32>
    %755 = arith.divf %753, %754 : vector<8x128xf32>
    %756 = arith.mulf %747, %735 : vector<8x128xf32>
    %757 = arith.mulf %741, %749 : vector<8x128xf32>
    %758 = arith.addf %756, %757 : vector<8x128xf32>
    %759 = math.tanh %758 : vector<8x128xf32>
    %760 = arith.mulf %755, %759 : vector<8x128xf32>
    %c0_214 = arith.constant 0 : index
    %c0_215 = arith.constant 0 : index
    %761 = vector.load %arg15[%c0_214, %c0_215] : memref<256x128xf32, #tpu.memory_space<vmem>>, vector<128x128xf32>
    %cst_216 = arith.constant dense<0.000000e+00> : vector<8x128xf32>
    %762 = tpu.matmul %726, %761, %cst_216 {dimension_numbers = #tpu.dot_dimension_numbers<[1], [0], [0], [1], [0, 0, 1, 1], [], []>} : vector<8x128xf32>, vector<128x128xf32>, vector<8x128xf32> -> vector<8x128xf32>
    %c128_217 = arith.constant 128 : index
    %c0_218 = arith.constant 0 : index
    %763 = vector.load %arg15[%c128_217, %c0_218] : memref<256x128xf32, #tpu.memory_space<vmem>>, vector<128x128xf32>
    %cst_219 = arith.constant dense<0.000000e+00> : vector<8x128xf32>
    %764 = tpu.matmul %760, %763, %cst_219 {dimension_numbers = #tpu.dot_dimension_numbers<[1], [0], [0], [1], [0, 0, 1, 1], [], []>} : vector<8x128xf32>, vector<128x128xf32>, vector<8x128xf32> -> vector<8x128xf32>
    %765 = arith.addf %762, %764 : vector<8x128xf32>
    %c0_220 = arith.constant 0 : index
    %c0_221 = arith.constant 0 : index
    %766 = vector.load %arg5[%c0_220, %c0_221] : memref<1x128xf32, #tpu.memory_space<vmem>>, vector<1x128xf32>
    %767 = vector.broadcast %766 : vector<1x128xf32> to vector<8x128xf32>
    %768 = arith.addf %765, %767 : vector<8x128xf32>
    %c0_222 = arith.constant 0 : index
    %c0_223 = arith.constant 0 : index
    %769 = vector.load %arg9[%c0_222, %c0_223] : memref<8x128xf32, #tpu.memory_space<vmem>>, vector<8x128xf32>
    tpu.vector_store %arg9[%c0_222, %c0_223], %768 {strides = array<i32>} : memref<8x128xf32, #tpu.memory_space<vmem>>, vector<8x128xf32>,
    return
  }
}

</mosaic_0001>

<llo_original>
// kernel: text_rnn_forward.1
$region0: #{text_rnn_forward.1}
  #allocation0 [shape = 'u32[]', space=smem, size = 0x4, offset = 0x4, fixed_abs, tag = 'smem constant byte address 0x4 - core index']
  #allocation1 [shape = 'u32[144,128]{1,0:T(1,128)}', space=vmem, size = 0x12000, scoped, tag = 'internal scratch']
  #allocation2 [shape = 'f32[64,256]{1,0:T(8,128)}', space=vmem, size = 0x10000, scoped, tag = 'scratch operand']
  #allocation3 [shape = 'f32[64,1024]{1,0:T(8,128)}', space=vmem, size = 0x40000, scoped, tag = 'scratch operand']
  #allocation4 [shape = 'f32[64,512]{1,0:T(8,128)}', space=vmem, size = 0x20000, scoped, tag = 'scratch operand']
  #allocation5 [shape = 'f32[2,256,512]{2,1,0:T(8,128)}', space=vmem, size = 0x100000, scoped, tag = 'scratch operand']
  #allocation6 [shape = 'f32[128,512]{1,0:T(8,128)}', space=vmem, size = 0x40000, scoped, tag = 'scratch operand']
  #allocation7 [shape = 'f32[256,128]{1,0:T(8,128)}', space=vmem, size = 0x20000, scoped, tag = 'scratch operand']
  #allocation8 [shape = 's32[3]{0}', space=sflag, size = 0xc, scoped, tag = 'scratch operand']
  #allocation13 [shape = 's32[]', space=sflag, size = 0x4, offset = 0, fixed_abs, tag = 'sflag constant byte address 0x0 - dummy sync flag']
  #allocation14 [shape = 's32[]', space=sflag, size = 0x4, offset = 0, fixed_abs, tag = 'sflag constant byte address 0x0 - dummy sync flag']
  #allocation15 [shape = 'u32[]', space=smem, size = 0x4, offset = 0x44, fixed_abs, tag = 'smem constant byte address 0x44 - assertion arg 0']
  #allocation16 [shape = 'u32[]', space=smem, size = 0x4, offset = 0x48, fixed_abs, tag = 'smem constant byte address 0x48 - assertion arg 1']
  #allocation17 [shape = 's32[]', space=sflag, size = 0x4, offset = 0, fixed_abs, tag = 'sflag constant byte address 0x0 - dummy sync flag']
  #allocation18 [shape = 's32[]', space=sflag, size = 0x4, offset = 0, fixed_abs, tag = 'sflag constant byte address 0x0 - dummy sync flag']
  #allocation19 [shape = 's32[]', space=sflag, size = 0x4, offset = 0, fixed_abs, tag = 'sflag constant byte address 0x0 - dummy sync flag']
  %s0 = inlined_call_operand.vmem [shape: f32[64,256], index: 0, kind: input, shape index: {}]
  %s1 = inlined_call_operand.hbm [shape: f32[256,1024], index: 1, kind: input, shape index: {}]
  %s2 = inlined_call_operand.hbm [shape: f32[2,128,512], index: 2, kind: input, shape index: {}]
  %s3 = inlined_call_operand.vmem [shape: f32[1,1024], index: 3, kind: input, shape index: {}]
  %s4 = inlined_call_operand.vmem [shape: f32[2,1,512], index: 4, kind: input, shape index: {}]
  %s5 = inlined_call_operand.vmem [shape: f32[1,128], index: 5, kind: input, shape index: {}]
  %s6 = inlined_call_operand.hbm [shape: f32[2,256,512], index: 6, kind: input, shape index: {}]
  %s7 = inlined_call_operand.vmem [shape: f32[128,512], index: 7, kind: input, shape index: {}]
  %s8 = inlined_call_operand.hbm [shape: f32[256,128], index: 8, kind: input, shape index: {}]
  %s9 = inlined_call_operand.vmem [shape: f32[8,128], index: 9, kind: output, shape index: {}]
  %s10 = sld [smem:[#allocation0]]
  $region84: #{text_rnn_forward.1} parent=0
    _
  %s12 = ssub.s32 1, %s10
  %s13 = scalar_select 0, %s12, %s10
  $region1: #{text_rnn_forward.1} parent=0
    #allocation9 [shape = 'u8[1048576]{0}', space=vmem, size = 0x100000, scoped, tag = 'input window, operand 1, single buffered']
    #allocation10 [shape = 's32[1]{0}', space=sflag, size = 0x4, scoped, tag = 'scoped memory for text_rnn_forward.1']
    #allocation11 [shape = 'u8[524288]{0}', space=vmem, size = 0x80000, scoped, tag = 'input window, operand 2, single buffered']
    #allocation12 [shape = 's32[1]{0}', space=sflag, size = 0x4, scoped, tag = 'scoped memory for text_rnn_forward.1']
    %14 = vsyncpa [#allocation10], 0
    %15 = vsyncpa [#allocation12], 0
    // Predicated region
    $region2: #{text_rnn_forward.1} parent=1 // pred_check
      _
    $region3: #{text_rnn_forward.1} parent=1 // pred_check_branch
      %17 = sbr.rel (0) target = $region5
    $region4: #{text_rnn_forward.1} parent=1 // pred_region
      _
    $region5: #{text_rnn_forward.1} parent=1 // pred_fallthru
      _
    // Predicated region
    $region6: #{text_rnn_forward.1} parent=1 // pred_check
      _
    $region7: #{text_rnn_forward.1} parent=1 // pred_check_branch
      %19 = sbr.rel (0) target = $region9
    $region8: #{text_rnn_forward.1} parent=1 // pred_region
      %s21 = ssub.s32 32768, 32768
      %22 = vsyncadd [#allocation10], %s21
      %s23 = sshll.u32 [#allocation9], 4
      %s24 = int_to_ptr.vmem [resolvable:$true] %s23
      %29 = dma.hbm_to_vmem [thread:$0]  %s1, 32768, %s24, [#allocation10], 1024, 1024, 64
    $region9: #{text_rnn_forward.1} parent=1 // pred_fallthru
      _
    // Predicated region
    $region10: #{text_rnn_forward.1} parent=1 // pred_check
      _
    $region11: #{text_rnn_forward.1} parent=1 // pred_check_branch
      %31 = sbr.rel (0) target = $region13
    $region12: #{text_rnn_forward.1} parent=1 // pred_region
      %s33 = ssub.s32 16384, 16384
      %34 = vsyncadd [#allocation12], %s33
      %s35 = sshll.u32 [#allocation11], 4
      %s36 = int_to_ptr.vmem [resolvable:$true] %s35
      %41 = dma.hbm_to_vmem [thread:$0]  %s2, 16384, %s36, [#allocation12], 512, 512, 32
    $region13: #{text_rnn_forward.1} parent=1 // pred_fallthru
      _
    // Predicated region
    $region14: #{text_rnn_forward.1} parent=1 // pred_check
      _
    $region15: #{text_rnn_forward.1} parent=1 // pred_check_branch
      %43 = sbr.rel (0) target = $region17
    $region16: #{text_rnn_forward.1} parent=1 // pred_region
      _
    $region17: #{text_rnn_forward.1} parent=1 // pred_fallthru
      _
    // Predicated region
    $region18: #{text_rnn_forward.1} parent=1 // pred_check
      _
    $region19: #{text_rnn_forward.1} parent=1 // pred_check_branch
      %45 = sbr.rel (0) target = $region21
    $region20: #{text_rnn_forward.1} parent=1 // pred_region
      _
    $region21: #{text_rnn_forward.1} parent=1 // pred_fallthru
      _
    // Predicated region
    $region22: #{text_rnn_forward.1} parent=1 // pred_check
      _
    $region23: #{text_rnn_forward.1} parent=1 // pred_check_branch
      %47 = sbr.rel (0) target = $region25
    $region24: #{text_rnn_forward.1} parent=1 // pred_region
      _
    $region25: #{text_rnn_forward.1} parent=1 // pred_fallthru
      _
    // Predicated region
    $region26: #{text_rnn_forward.1} parent=1 // pred_check
      _
    $region27: #{text_rnn_forward.1} parent=1 // pred_check_branch
      %49 = sbr.rel (0) target = $region29
    $region28: #{text_rnn_forward.1} parent=1 // pred_region
      %50 = dma.done [#allocation10], 32768
    $region29: #{text_rnn_forward.1} parent=1 // pred_fallthru
      _
    // Predicated region
    $region30: #{text_rnn_forward.1} parent=1 // pred_check
      _
    $region31: #{text_rnn_forward.1} parent=1 // pred_check_branch
      %52 = sbr.rel (0) target = $region33
    $region32: #{text_rnn_forward.1} parent=1 // pred_region
      %53 = dma.done [#allocation12], 16384
    $region33: #{text_rnn_forward.1} parent=1 // pred_fallthru
      _
    // Predicated region
    $region34: #{text_rnn_forward.1} parent=1 // pred_check
      _
    $region35: #{text_rnn_forward.1} parent=1 // pred_check_branch
      %55 = sbr.rel target = $region37
    $region36: #{text_rnn_forward.1} parent=1 // pred_region
      %56 = sst [smem:[#allocation15]] [#allocation14]
      %57 = sst [smem:[#allocation16]] [#allocation13]
    $region37: #{text_rnn_forward.1} parent=1 // pred_fallthru
      _
    %59 = shalt.err (0)
    %s61 = sshll.u32 [#allocation5], 4
    %s62 = int_to_ptr.vmem [resolvable:$true] %s61
    %64 = dma.hbm_to_vmem [thread:$0]  %s6, 32768, %s62, [#allocation8]
    %s65 = scalar_lea.sflag [#allocation8], 1
    %p67 = scmp.lt.u32.totalorder 512, 8
    %p68 = pneg %p67
    // Predicated region
    $region38: #{text_rnn_forward.1} parent=1 // pred_check
      _
    $region39: #{text_rnn_forward.1} parent=1 // pred_check_branch
      %70 = sbr.rel (%p67) target = $region41
    $region40: #{text_rnn_forward.1} parent=1 // pred_region
      %s86 = sand.u32 512, 7
      %p87 = scmp.eq.s32.totalorder %s86, 0
      // Predicated region
      $region53: #{text_rnn_forward.1} parent=40 // pred_check
        %p88 = pneg %p87
      $region54: #{text_rnn_forward.1} parent=40 // pred_check_branch
        %90 = sbr.rel (%p88) target = $region56
      $region55: #{text_rnn_forward.1} parent=40 // pred_region
        loop: start=0, step=1, limit=1
        $region57: #{text_rnn_forward.1} parent=55 // loop_pre_header
          _
        $region58: #{text_rnn_forward.1} parent=55 // loop_header
          %s92 = sphi 0, %s96
          %p93 = scmp.ge.s32.totalorder %s92, 1
          %s97 = sphi %s7, %s7
          %s98 = sphi [#allocation6], [#allocation6]
        $region59: #{text_rnn_forward.1} parent=55 // loop_header_branch
          %95 = sbr.rel (%p93) target = $region63
        $region60: #{text_rnn_forward.1} parent=55 // loop_body
          %v99 = vld [vmem:[%s97] sm:$0xff]
          %100 = vst [vmem:[%s98] sm:$0xff] %v99
          %v101 = vld [vmem:[%s97 + $0x8] sm:$0xff]
          %102 = vst [vmem:[%s98 + $0x8] sm:$0xff] %v101
          %v103 = vld [vmem:[%s97 + $0x10] sm:$0xff]
          %104 = vst [vmem:[%s98 + $0x10] sm:$0xff] %v103
          %v105 = vld [vmem:[%s97 + $0x18] sm:$0xff]
          %106 = vst [vmem:[%s98 + $0x18] sm:$0xff] %v105
          %v107 = vld [vmem:[%s97 + $0x20] sm:$0xff]
          %108 = vst [vmem:[%s98 + $0x20] sm:$0xff] %v107
          %v109 = vld [vmem:[%s97 + $0x28] sm:$0xff]
          %110 = vst [vmem:[%s98 + $0x28] sm:$0xff] %v109
          %v111 = vld [vmem:[%s97 + $0x30] sm:$0xff]
          %112 = vst [vmem:[%s98 + $0x30] sm:$0xff] %v111
          %v113 = vld [vmem:[%s97 + $0x38] sm:$0xff]
          %114 = vst [vmem:[%s98 + $0x38] sm:$0xff] %v113
          %v115 = vld [vmem:[%s97 + $0x40] sm:$0xff]
          %116 = vst [vmem:[%s98 + $0x40] sm:$0xff] %v115
          %v117 = vld [vmem:[%s97 + $0x48] sm:$0xff]
          %118 = vst [vmem:[%s98 + $0x48] sm:$0xff] %v117
          %v119 = vld [vmem:[%s97 + $0x50] sm:$0xff]
          %120 = vst [vmem:[%s98 + $0x50] sm:$0xff] %v119
          %v121 = vld [vmem:[%s97 + $0x58] sm:$0xff]
          %122 = vst [vmem:[%s98 + $0x58] sm:$0xff] %v121
          %v123 = vld [vmem:[%s97 + $0x60] sm:$0xff]
          %124 = vst [vmem:[%s98 + $0x60] sm:$0xff] %v123
          %v125 = vld [vmem:[%s97 + $0x68] sm:$0xff]
          %126 = vst [vmem:[%s98 + $0x68] sm:$0xff] %v125
          %v127 = vld [vmem:[%s97 + $0x70] sm:$0xff]
          %128 = vst [vmem:[%s98 + $0x70] sm:$0xff] %v127
          %v129 = vld [vmem:[%s97 + $0x78] sm:$0xff]
          %130 = vst [vmem:[%s98 + $0x78] sm:$0xff] %v129
          %v131 = vld [vmem:[%s97 + $0x80] sm:$0xff]
          %132 = vst [vmem:[%s98 + $0x80] sm:$0xff] %v131
          %v133 = vld [vmem:[%s97 + $0x88] sm:$0xff]
          %134 = vst [vmem:[%s98 + $0x88] sm:$0xff] %v133
          %v135 = vld [vmem:[%s97 + $0x90] sm:$0xff]
          %136 = vst [vmem:[%s98 + $0x90] sm:$0xff] %v135
          %v137 = vld [vmem:[%s97 + $0x98] sm:$0xff]
          %138 = vst [vmem:[%s98 + $0x98] sm:$0xff] %v137
          %v139 = vld [vmem:[%s97 + $0xa0] sm:$0xff]
          %140 = vst [vmem:[%s98 + $0xa0] sm:$0xff] %v139
          %v141 = vld [vmem:[%s97 + $0xa8] sm:$0xff]
          %142 = vst [vmem:[%s98 + $0xa8] sm:$0xff] %v141
          %v143 = vld [vmem:[%s97 + $0xb0] sm:$0xff]
          %144 = vst [vmem:[%s98 + $0xb0] sm:$0xff] %v143
          %v145 = vld [vmem:[%s97 + $0xb8] sm:$0xff]
          %146 = vst [vmem:[%s98 + $0xb8] sm:$0xff] %v145
          %v147 = vld [vmem:[%s97 + $0xc0] sm:$0xff]
          %148 = vst [vmem:[%s98 + $0xc0] sm:$0xff] %v147
          %v149 = vld [vmem:[%s97 + $0xc8] sm:$0xff]
          %150 = vst [vmem:[%s98 + $0xc8] sm:$0xff] %v149
          %v151 = vld [vmem:[%s97 + $0xd0] sm:$0xff]
          %152 = vst [vmem:[%s98 + $0xd0] sm:$0xff] %v151
          %v153 = vld [vmem:[%s97 + $0xd8] sm:$0xff]
          %154 = vst [vmem:[%s98 + $0xd8] sm:$0xff] %v153
          %v155 = vld [vmem:[%s97 + $0xe0] sm:$0xff]
          %156 = vst [vmem:[%s98 + $0xe0] sm:$0xff] %v155
          %v157 = vld [vmem:[%s97 + $0xe8] sm:$0xff]
          %158 = vst [vmem:[%s98 + $0xe8] sm:$0xff] %v157
          %v159 = vld [vmem:[%s97 + $0xf0] sm:$0xff]
          %160 = vst [vmem:[%s98 + $0xf0] sm:$0xff] %v159
          %v161 = vld [vmem:[%s97 + $0xf8] sm:$0xff]
          %162 = vst [vmem:[%s98 + $0xf8] sm:$0xff] %v161
          %v163 = vld [vmem:[%s97 + $0x100] sm:$0xff]
          %164 = vst [vmem:[%s98 + $0x100] sm:$0xff] %v163
          %v165 = vld [vmem:[%s97 + $0x108] sm:$0xff]
          %166 = vst [vmem:[%s98 + $0x108] sm:$0xff] %v165
          %v167 = vld [vmem:[%s97 + $0x110] sm:$0xff]
          %168 = vst [vmem:[%s98 + $0x110] sm:$0xff] %v167
          %v169 = vld [vmem:[%s97 + $0x118] sm:$0xff]
          %170 = vst [vmem:[%s98 + $0x118] sm:$0xff] %v169
          %v171 = vld [vmem:[%s97 + $0x120] sm:$0xff]
          %172 = vst [vmem:[%s98 + $0x120] sm:$0xff] %v171
          %v173 = vld [vmem:[%s97 + $0x128] sm:$0xff]
          %174 = vst [vmem:[%s98 + $0x128] sm:$0xff] %v173
          %v175 = vld [vmem:[%s97 + $0x130] sm:$0xff]
          %176 = vst [vmem:[%s98 + $0x130] sm:$0xff] %v175
          %v177 = vld [vmem:[%s97 + $0x138] sm:$0xff]
          %178 = vst [vmem:[%s98 + $0x138] sm:$0xff] %v177
          %v179 = vld [vmem:[%s97 + $0x140] sm:$0xff]
          %180 = vst [vmem:[%s98 + $0x140] sm:$0xff] %v179
          %v181 = vld [vmem:[%s97 + $0x148] sm:$0xff]
          %182 = vst [vmem:[%s98 + $0x148] sm:$0xff] %v181
          %v183 = vld [vmem:[%s97 + $0x150] sm:$0xff]
          %184 = vst [vmem:[%s98 + $0x150] sm:$0xff] %v183
          %v185 = vld [vmem:[%s97 + $0x158] sm:$0xff]
          %186 = vst [vmem:[%s98 + $0x158] sm:$0xff] %v185
          %v187 = vld [vmem:[%s97 + $0x160] sm:$0xff]
          %188 = vst [vmem:[%s98 + $0x160] sm:$0xff] %v187
          %v189 = vld [vmem:[%s97 + $0x168] sm:$0xff]
          %190 = vst [vmem:[%s98 + $0x168] sm:$0xff] %v189
          %v191 = vld [vmem:[%s97 + $0x170] sm:$0xff]
          %192 = vst [vmem:[%s98 + $0x170] sm:$0xff] %v191
          %v193 = vld [vmem:[%s97 + $0x178] sm:$0xff]
          %194 = vst [vmem:[%s98 + $0x178] sm:$0xff] %v193
          %v195 = vld [vmem:[%s97 + $0x180] sm:$0xff]
          %196 = vst [vmem:[%s98 + $0x180] sm:$0xff] %v195
          %v197 = vld [vmem:[%s97 + $0x188] sm:$0xff]
          %198 = vst [vmem:[%s98 + $0x188] sm:$0xff] %v197
          %v199 = vld [vmem:[%s97 + $0x190] sm:$0xff]
          %200 = vst [vmem:[%s98 + $0x190] sm:$0xff] %v199
          %v201 = vld [vmem:[%s97 + $0x198] sm:$0xff]
          %202 = vst [vmem:[%s98 + $0x198] sm:$0xff] %v201
          %v203 = vld [vmem:[%s97 + $0x1a0] sm:$0xff]
          %204 = vst [vmem:[%s98 + $0x1a0] sm:$0xff] %v203
          %v205 = vld [vmem:[%s97 + $0x1a8] sm:$0xff]
          %206 = vst [vmem:[%s98 + $0x1a8] sm:$0xff] %v205
          %v207 = vld [vmem:[%s97 + $0x1b0] sm:$0xff]
          %208 = vst [vmem:[%s98 + $0x1b0] sm:$0xff] %v207
          %v209 = vld [vmem:[%s97 + $0x1b8] sm:$0xff]
          %210 = vst [vmem:[%s98 + $0x1b8] sm:$0xff] %v209
          %v211 = vld [vmem:[%s97 + $0x1c0] sm:$0xff]
          %212 = vst [vmem:[%s98 + $0x1c0] sm:$0xff] %v211
          %v213 = vld [vmem:[%s97 + $0x1c8] sm:$0xff]
          %214 = vst [vmem:[%s98 + $0x1c8] sm:$0xff] %v213
          %v215 = vld [vmem:[%s97 + $0x1d0] sm:$0xff]
          %216 = vst [vmem:[%s98 + $0x1d0] sm:$0xff] %v215
          %v217 = vld [vmem:[%s97 + $0x1d8] sm:$0xff]
          %218 = vst [vmem:[%s98 + $0x1d8] sm:$0xff] %v217
          %v219 = vld [vmem:[%s97 + $0x1e0] sm:$0xff]
          %220 = vst [vmem:[%s98 + $0x1e0] sm:$0xff] %v219
          %v221 = vld [vmem:[%s97 + $0x1e8] sm:$0xff]
          %222 = vst [vmem:[%s98 + $0x1e8] sm:$0xff] %v221
          %v223 = vld [vmem:[%s97 + $0x1f0] sm:$0xff]
          %224 = vst [vmem:[%s98 + $0x1f0] sm:$0xff] %v223
          %v225 = vld [vmem:[%s97 + $0x1f8] sm:$0xff]
          %226 = vst [vmem:[%s98 + $0x1f8] sm:$0xff] %v225
        $region61: #{text_rnn_forward.1} parent=55 // loop_footer
          %s96 = sadd.s32 1, %s92
        $region62: #{text_rnn_forward.1} parent=55 // loop_footer_branch
          %91 = sbr.rel target = $region58
        $region63: #{text_rnn_forward.1} parent=55 // loop_exit
          _
      $region56: #{text_rnn_forward.1} parent=40 // pred_fallthru
        _
      %p227 = pneg %p87
      // Predicated region
      $region64: #{text_rnn_forward.1} parent=40 // pred_check
        _
      $region65: #{text_rnn_forward.1} parent=40 // pred_check_branch
        %229 = sbr.rel (%p87) target = $region67
      $region66: #{text_rnn_forward.1} parent=40 // pred_region
        %s230 = sand.u32 512, 7
      $region67: #{text_rnn_forward.1} parent=40 // pred_fallthru
        _
    $region41: #{text_rnn_forward.1} parent=1 // pred_fallthru
      _
    // Predicated region
    $region42: #{text_rnn_forward.1} parent=1 // pred_check
      %p71 = pneg %p67
    $region43: #{text_rnn_forward.1} parent=1 // pred_check_branch
      %73 = sbr.rel (%p71) target = $region45
    $region44: #{text_rnn_forward.1} parent=1 // pred_region
      %s74 = sshll.u32 1, 512
      %s75 = ssub.s32 %s74, 1
      loop: start=0, step=1, limit=1
      $region46: #{text_rnn_forward.1} parent=44 // loop_pre_header
        _
      $region47: #{text_rnn_forward.1} parent=44 // loop_header
        %s77 = sphi 0, %s81
        %p78 = scmp.ge.s32.totalorder %s77, 1
        %s82 = sphi %s7, %s7
        %s83 = sphi [#allocation6], [#allocation6]
      $region48: #{text_rnn_forward.1} parent=44 // loop_header_branch
        %80 = sbr.rel (%p78) target = $region52
      $region49: #{text_rnn_forward.1} parent=44 // loop_body
        %v84 = vld [vmem:[%s82] sm:%s75]
        %85 = vst [vmem:[%s83] sm:%s75] %v84
      $region50: #{text_rnn_forward.1} parent=44 // loop_footer
        %s81 = sadd.s32 1, %s77
      $region51: #{text_rnn_forward.1} parent=44 // loop_footer_branch
        %76 = sbr.rel target = $region47
      $region52: #{text_rnn_forward.1} parent=44 // loop_exit
        _
    $region45: #{text_rnn_forward.1} parent=1 // pred_fallthru
      _
    // Predicated region
    $region68: #{text_rnn_forward.1} parent=1 // pred_check
      _
    $region69: #{text_rnn_forward.1} parent=1 // pred_check_branch
      %233 = sbr.rel (0) target = $region71
    $region70: #{text_rnn_forward.1} parent=1 // pred_region
      %234 = vsyncadd %s65, 8192
    $region71: #{text_rnn_forward.1} parent=1 // pred_fallthru
      _
    %s235 = scalar_lea.sflag [#allocation8], 2
    // Predicated region
    $region72: #{text_rnn_forward.1} parent=1 // pred_check
      _
    $region73: #{text_rnn_forward.1} parent=1 // pred_check_branch
      %237 = sbr.rel target = $region75
    $region74: #{text_rnn_forward.1} parent=1 // pred_region
      %238 = sst [smem:[#allocation15]] [#allocation19]
      %239 = sst [smem:[#allocation16]] [#allocation18]
    $region75: #{text_rnn_forward.1} parent=1 // pred_fallthru
      _
    %241 = shalt.err (0)
    %s243 = sshll.u32 [#allocation7], 4
    %s244 = int_to_ptr.vmem [resolvable:$true] %s243
    %246 = dma.hbm_to_vmem [thread:$0]  %s8, 4096, %s244, %s235
    %v247 = vld [vmem:[%s0] sm:$0xff]
    %v248 = vld [vmem:[%s0 + $0x8] sm:$0xff]
    %v249 = vld [vmem:[%s0 + $0x10] sm:$0xff]
    %v250 = vld [vmem:[%s0 + $0x18] sm:$0xff]
    %v251 = vld [vmem:[%s0 + $0x20] sm:$0xff]
    %v252 = vld [vmem:[%s0 + $0x28] sm:$0xff]
    %v253 = vld [vmem:[%s0 + $0x30] sm:$0xff]
    %v254 = vld [vmem:[%s0 + $0x38] sm:$0xff]
    %v255 = vld [vmem:[%s0 + $0x40] sm:$0xff]
    %v256 = vld [vmem:[%s0 + $0x48] sm:$0xff]
    %v257 = vld [vmem:[%s0 + $0x50] sm:$0xff]
    %v258 = vld [vmem:[%s0 + $0x58] sm:$0xff]
    %v259 = vld [vmem:[%s0 + $0x60] sm:$0xff]
    %v260 = vld [vmem:[%s0 + $0x68] sm:$0xff]
    %v261 = vld [vmem:[%s0 + $0x70] sm:$0xff]
    %v262 = vld [vmem:[%s0 + $0x78] sm:$0xff]
    %v263 = vld [vmem:[#allocation9] sm:$0xff]
    %v264 = vld [vmem:[#allocation9 + $0x8] sm:$0xff]
    %v265 = vld [vmem:[#allocation9 + $0x10] sm:$0xff]
    %v266 = vld [vmem:[#allocation9 + $0x18] sm:$0xff]
    %v267 = vld [vmem:[#allocation9 + $0x20] sm:$0xff]
    %v268 = vld [vmem:[#allocation9 + $0x28] sm:$0xff]
    %v269 = vld [vmem:[#allocation9 + $0x30] sm:$0xff]
    %v270 = vld [vmem:[#allocation9 + $0x38] sm:$0xff]
    %v271 = vld [vmem:[#allocation9 + $0x40] sm:$0xff]
    %v272 = vld [vmem:[#allocation9 + $0x48] sm:$0xff]
    %v273 = vld [vmem:[#allocation9 + $0x50] sm:$0xff]
    %v274 = vld [vmem:[#allocation9 + $0x58] sm:$0xff]
    %v275 = vld [vmem:[#allocation9 + $0x60] sm:$0xff]
    %v276 = vld [vmem:[#allocation9 + $0x68] sm:$0xff]
    %v277 = vld [vmem:[#allocation9 + $0x70] sm:$0xff]
    %v278 = vld [vmem:[#allocation9 + $0x78] sm:$0xff]
    %v279 = vld [vmem:[#allocation9 + $0x80] sm:$0xff]
    %v280 = vld [vmem:[#allocation9 + $0x88] sm:$0xff]
    %v281 = vld [vmem:[#allocation9 + $0x90] sm:$0xff]
    %v282 = vld [vmem:[#allocation9 + $0x98] sm:$0xff]
    %v283 = vld [vmem:[#allocation9 + $0xa0] sm:$0xff]
    %v284 = vld [vmem:[#allocation9 + $0xa8] sm:$0xff]
    %v285 = vld [vmem:[#allocation9 + $0xb0] sm:$0xff]
    %v286 = vld [vmem:[#allocation9 + $0xb8] sm:$0xff]
    %v287 = vld [vmem:[#allocation9 + $0xc0] sm:$0xff]
    %v288 = vld [vmem:[#allocation9 + $0xc8] sm:$0xff]
    %v289 = vld [vmem:[#allocation9 + $0xd0] sm:$0xff]
    %v290 = vld [vmem:[#allocation9 + $0xd8] sm:$0xff]
    %v291 = vld [vmem:[#allocation9 + $0xe0] sm:$0xff]
    %v292 = vld [vmem:[#allocation9 + $0xe8] sm:$0xff]
    %v293 = vld [vmem:[#allocation9 + $0xf0] sm:$0xff]
    %v294 = vld [vmem:[#allocation9 + $0xf8] sm:$0xff]
    %v295 = vld [vmem:[#allocation9 + $0x100] sm:$0xff]
    %v296 = vld [vmem:[#allocation9 + $0x108] sm:$0xff]
    %v297 = vld [vmem:[#allocation9 + $0x110] sm:$0xff]
    %v298 = vld [vmem:[#allocation9 + $0x118] sm:$0xff]
    %v299 = vld [vmem:[#allocation9 + $0x120] sm:$0xff]
    %v300 = vld [vmem:[#allocation9 + $0x128] sm:$0xff]
    %v301 = vld [vmem:[#allocation9 + $0x130] sm:$0xff]
    %v302 = vld [vmem:[#allocation9 + $0x138] sm:$0xff]
    %v303 = vld [vmem:[#allocation9 + $0x140] sm:$0xff]
    %v304 = vld [vmem:[#allocation9 + $0x148] sm:$0xff]
    %v305 = vld [vmem:[#allocation9 + $0x150] sm:$0xff]
    %v306 = vld [vmem:[#allocation9 + $0x158] sm:$0xff]
    %v307 = vld [vmem:[#allocation9 + $0x160] sm:$0xff]
    %v308 = vld [vmem:[#allocation9 + $0x168] sm:$0xff]
    %v309 = vld [vmem:[#allocation9 + $0x170] sm:$0xff]
    %v310 = vld [vmem:[#allocation9 + $0x178] sm:$0xff]
    %v311 = vld [vmem:[#allocation9 + $0x180] sm:$0xff]
    %v312 = vld [vmem:[#allocation9 + $0x188] sm:$0xff]
    %v313 = vld [vmem:[#allocation9 + $0x190] sm:$0xff]
    %v314 = vld [vmem:[#allocation9 + $0x198] sm:$0xff]
    %v315 = vld [vmem:[#allocation9 + $0x1a0] sm:$0xff]
    %v316 = vld [vmem:[#allocation9 + $0x1a8] sm:$0xff]
    %v317 = vld [vmem:[#allocation9 + $0x1b0] sm:$0xff]
    %v318 = vld [vmem:[#allocation9 + $0x1b8] sm:$0xff]
    %v319 = vld [vmem:[#allocation9 + $0x1c0] sm:$0xff]
    %v320 = vld [vmem:[#allocation9 + $0x1c8] sm:$0xff]
    %v321 = vld [vmem:[#allocation9 + $0x1d0] sm:$0xff]
    %v322 = vld [vmem:[#allocation9 + $0x1d8] sm:$0xff]
    %v323 = vld [vmem:[#allocation9 + $0x1e0] sm:$0xff]
    %v324 = vld [vmem:[#allocation9 + $0x1e8] sm:$0xff]
    %v325 = vld [vmem:[#allocation9 + $0x1f0] sm:$0xff]
    %v326 = vld [vmem:[#allocation9 + $0x1f8] sm:$0xff]
    %v327 = vld [vmem:[#allocation9 + $0x200] sm:$0xff]
    %v328 = vld [vmem:[#allocation9 + $0x208] sm:$0xff]
    %v329 = vld [vmem:[#allocation9 + $0x210] sm:$0xff]
    %v330 = vld [vmem:[#allocation9 + $0x218] sm:$0xff]
    %v331 = vld [vmem:[#allocation9 + $0x220] sm:$0xff]
    %v332 = vld [vmem:[#allocation9 + $0x228] sm:$0xff]
    %v333 = vld [vmem:[#allocation9 + $0x230] sm:$0xff]
    %v334 = vld [vmem:[#allocation9 + $0x238] sm:$0xff]
    %v335 = vld [vmem:[#allocation9 + $0x240] sm:$0xff]
    %v336 = vld [vmem:[#allocation9 + $0x248] sm:$0xff]
    %v337 = vld [vmem:[#allocation9 + $0x250] sm:$0xff]
    %v338 = vld [vmem:[#allocation9 + $0x258] sm:$0xff]
    %v339 = vld [vmem:[#allocation9 + $0x260] sm:$0xff]
    %v340 = vld [vmem:[#allocation9 + $0x268] sm:$0xff]
    %v341 = vld [vmem:[#allocation9 + $0x270] sm:$0xff]
    %v342 = vld [vmem:[#allocation9 + $0x278] sm:$0xff]
    %v343 = vld [vmem:[#allocation9 + $0x280] sm:$0xff]
    %v344 = vld [vmem:[#allocation9 + $0x288] sm:$0xff]
    %v345 = vld [vmem:[#allocation9 + $0x290] sm:$0xff]
    %v346 = vld [vmem:[#allocation9 + $0x298] sm:$0xff]
    %v347 = vld [vmem:[#allocation9 + $0x2a0] sm:$0xff]
    %v348 = vld [vmem:[#allocation9 + $0x2a8] sm:$0xff]
    %v349 = vld [vmem:[#allocation9 + $0x2b0] sm:$0xff]
    %v350 = vld [vmem:[#allocation9 + $0x2b8] sm:$0xff]
    %v351 = vld [vmem:[#allocation9 + $0x2c0] sm:$0xff]
    %v352 = vld [vmem:[#allocation9 + $0x2c8] sm:$0xff]
    %v353 = vld [vmem:[#allocation9 + $0x2d0] sm:$0xff]
    %v354 = vld [vmem:[#allocation9 + $0x2d8] sm:$0xff]
    %v355 = vld [vmem:[#allocation9 + $0x2e0] sm:$0xff]
    %v356 = vld [vmem:[#allocation9 + $0x2e8] sm:$0xff]
    %v357 = vld [vmem:[#allocation9 + $0x2f0] sm:$0xff]
    %v358 = vld [vmem:[#allocation9 + $0x2f8] sm:$0xff]
    %v359 = vld [vmem:[#allocation9 + $0x300] sm:$0xff]
    %v360 = vld [vmem:[#allocation9 + $0x308] sm:$0xff]
    %v361 = vld [vmem:[#allocation9 + $0x310] sm:$0xff]
    %v362 = vld [vmem:[#allocation9 + $0x318] sm:$0xff]
    %v363 = vld [vmem:[#allocation9 + $0x320] sm:$0xff]
    %v364 = vld [vmem:[#allocation9 + $0x328] sm:$0xff]
    %v365 = vld [vmem:[#allocation9 + $0x330] sm:$0xff]
    %v366 = vld [vmem:[#allocation9 + $0x338] sm:$0xff]
    %v367 = vld [vmem:[#allocation9 + $0x340] sm:$0xff]
    %v368 = vld [vmem:[#allocation9 + $0x348] sm:$0xff]
    %v369 = vld [vmem:[#allocation9 + $0x350] sm:$0xff]
    %v370 = vld [vmem:[#allocation9 + $0x358] sm:$0xff]
    %v371 = vld [vmem:[#allocation9 + $0x360] sm:$0xff]
    %v372 = vld [vmem:[#allocation9 + $0x368] sm:$0xff]
    %v373 = vld [vmem:[#allocation9 + $0x370] sm:$0xff]
    %v374 = vld [vmem:[#allocation9 + $0x378] sm:$0xff]
    %v375 = vld [vmem:[#allocation9 + $0x380] sm:$0xff]
    %v376 = vld [vmem:[#allocation9 + $0x388] sm:$0xff]
    %v377 = vld [vmem:[#allocation9 + $0x390] sm:$0xff]
    %v378 = vld [vmem:[#allocation9 + $0x398] sm:$0xff]
    %v379 = vld [vmem:[#allocation9 + $0x3a0] sm:$0xff]
    %v380 = vld [vmem:[#allocation9 + $0x3a8] sm:$0xff]
    %v381 = vld [vmem:[#allocation9 + $0x3b0] sm:$0xff]
    %v382 = vld [vmem:[#allocation9 + $0x3b8] sm:$0xff]
    %v383 = vld [vmem:[#allocation9 + $0x3c0] sm:$0xff]
    %v384 = vld [vmem:[#allocation9 + $0x3c8] sm:$0xff]
    %v385 = vld [vmem:[#allocation9 + $0x3d0] sm:$0xff]
    %v386 = vld [vmem:[#allocation9 + $0x3d8] sm:$0xff]
    %v387 = vld [vmem:[#allocation9 + $0x3e0] sm:$0xff]
    %v388 = vld [vmem:[#allocation9 + $0x3e8] sm:$0xff]
    %v389 = vld [vmem:[#allocation9 + $0x3f0] sm:$0xff]
    %v390 = vld [vmem:[#allocation9 + $0x3f8] sm:$0xff]
    %v391 = vld [vmem:[#allocation9 + $0x400] sm:$0xff]
    %v392 = vld [vmem:[#allocation9 + $0x408] sm:$0xff]
    %v393 = vld [vmem:[#allocation9 + $0x410] sm:$0xff]
    %v394 = vld [vmem:[#allocation9 + $0x418] sm:$0xff]
    %v395 = vld [vmem:[#allocation9 + $0x420] sm:$0xff]
    %v396 = vld [vmem:[#allocation9 + $0x428] sm:$0xff]
    %v397 = vld [vmem:[#allocation9 + $0x430] sm:$0xff]
    %v398 = vld [vmem:[#allocation9 + $0x438] sm:$0xff]
    %v399 = vld [vmem:[#allocation9 + $0x440] sm:$0xff]
    %v400 = vld [vmem:[#allocation9 + $0x448] sm:$0xff]
    %v401 = vld [vmem:[#allocation9 + $0x450] sm:$0xff]
    %v402 = vld [vmem:[#allocation9 + $0x458] sm:$0xff]
    %v403 = vld [vmem:[#allocation9 + $0x460] sm:$0xff]
    %v404 = vld [vmem:[#allocation9 + $0x468] sm:$0xff]
    %v405 = vld [vmem:[#allocation9 + $0x470] sm:$0xff]
    %v406 = vld [vmem:[#allocation9 + $0x478] sm:$0xff]
    %v407 = vld [vmem:[#allocation9 + $0x480] sm:$0xff]
    %v408 = vld [vmem:[#allocation9 + $0x488] sm:$0xff]
    %v409 = vld [vmem:[#allocation9 + $0x490] sm:$0xff]
    %v410 = vld [vmem:[#allocation9 + $0x498] sm:$0xff]
    %v411 = vld [vmem:[#allocation9 + $0x4a0] sm:$0xff]
    %v412 = vld [vmem:[#allocation9 + $0x4a8] sm:$0xff]
    %v413 = vld [vmem:[#allocation9 + $0x4b0] sm:$0xff]
    %v414 = vld [vmem:[#allocation9 + $0x4b8] sm:$0xff]
    %v415 = vld [vmem:[#allocation9 + $0x4c0] sm:$0xff]
    %v416 = vld [vmem:[#allocation9 + $0x4c8] sm:$0xff]
    %v417 = vld [vmem:[#allocation9 + $0x4d0] sm:$0xff]
    %v418 = vld [vmem:[#allocation9 + $0x4d8] sm:$0xff]
    %v419 = vld [vmem:[#allocation9 + $0x4e0] sm:$0xff]
    %v420 = vld [vmem:[#allocation9 + $0x4e8] sm:$0xff]
    %v421 = vld [vmem:[#allocation9 + $0x4f0] sm:$0xff]
    %v422 = vld [vmem:[#allocation9 + $0x4f8] sm:$0xff]
    %v423 = vld [vmem:[#allocation9 + $0x500] sm:$0xff]
    %v424 = vld [vmem:[#allocation9 + $0x508] sm:$0xff]
    %v425 = vld [vmem:[#allocation9 + $0x510] sm:$0xff]
    %v426 = vld [vmem:[#allocation9 + $0x518] sm:$0xff]
    %v427 = vld [vmem:[#allocation9 + $0x520] sm:$0xff]
    %v428 = vld [vmem:[#allocation9 + $0x528] sm:$0xff]
    %v429 = vld [vmem:[#allocation9 + $0x530] sm:$0xff]
    %v430 = vld [vmem:[#allocation9 + $0x538] sm:$0xff]
    %v431 = vld [vmem:[#allocation9 + $0x540] sm:$0xff]
    %v432 = vld [vmem:[#allocation9 + $0x548] sm:$0xff]
    %v433 = vld [vmem:[#allocation9 + $0x550] sm:$0xff]
    %v434 = vld [vmem:[#allocation9 + $0x558] sm:$0xff]
    %v435 = vld [vmem:[#allocation9 + $0x560] sm:$0xff]
    %v436 = vld [vmem:[#allocation9 + $0x568] sm:$0xff]
    %v437 = vld [vmem:[#allocation9 + $0x570] sm:$0xff]
    %v438 = vld [vmem:[#allocation9 + $0x578] sm:$0xff]
    %v439 = vld [vmem:[#allocation9 + $0x580] sm:$0xff]
    %v440 = vld [vmem:[#allocation9 + $0x588] sm:$0xff]
    %v441 = vld [vmem:[#allocation9 + $0x590] sm:$0xff]
    %v442 = vld [vmem:[#allocation9 + $0x598] sm:$0xff]
    %v443 = vld [vmem:[#allocation9 + $0x5a0] sm:$0xff]
    %v444 = vld [vmem:[#allocation9 + $0x5a8] sm:$0xff]
    %v445 = vld [vmem:[#allocation9 + $0x5b0] sm:$0xff]
    %v446 = vld [vmem:[#allocation9 + $0x5b8] sm:$0xff]
    %v447 = vld [vmem:[#allocation9 + $0x5c0] sm:$0xff]
    %v448 = vld [vmem:[#allocation9 + $0x5c8] sm:$0xff]
    %v449 = vld [vmem:[#allocation9 + $0x5d0] sm:$0xff]
    %v450 = vld [vmem:[#allocation9 + $0x5d8] sm:$0xff]
    %v451 = vld [vmem:[#allocation9 + $0x5e0] sm:$0xff]
    %v452 = vld [vmem:[#allocation9 + $0x5e8] sm:$0xff]
    %v453 = vld [vmem:[#allocation9 + $0x5f0] sm:$0xff]
    %v454 = vld [vmem:[#allocation9 + $0x5f8] sm:$0xff]
    %v455 = vld [vmem:[#allocation9 + $0x600] sm:$0xff]
    %v456 = vld [vmem:[#allocation9 + $0x608] sm:$0xff]
    %v457 = vld [vmem:[#allocation9 + $0x610] sm:$0xff]
    %v458 = vld [vmem:[#allocation9 + $0x618] sm:$0xff]
    %v459 = vld [vmem:[#allocation9 + $0x620] sm:$0xff]
    %v460 = vld [vmem:[#allocation9 + $0x628] sm:$0xff]
    %v461 = vld [vmem:[#allocation9 + $0x630] sm:$0xff]
    %v462 = vld [vmem:[#allocation9 + $0x638] sm:$0xff]
    %v463 = vld [vmem:[#allocation9 + $0x640] sm:$0xff]
    %v464 = vld [vmem:[#allocation9 + $0x648] sm:$0xff]
    %v465 = vld [vmem:[#allocation9 + $0x650] sm:$0xff]
    %v466 = vld [vmem:[#allocation9 + $0x658] sm:$0xff]
    %v467 = vld [vmem:[#allocation9 + $0x660] sm:$0xff]
    %v468 = vld [vmem:[#allocation9 + $0x668] sm:$0xff]
    %v469 = vld [vmem:[#allocation9 + $0x670] sm:$0xff]
    %v470 = vld [vmem:[#allocation9 + $0x678] sm:$0xff]
    %v471 = vld [vmem:[#allocation9 + $0x680] sm:$0xff]
    %v472 = vld [vmem:[#allocation9 + $0x688] sm:$0xff]
    %v473 = vld [vmem:[#allocation9 + $0x690] sm:$0xff]
    %v474 = vld [vmem:[#allocation9 + $0x698] sm:$0xff]
    %v475 = vld [vmem:[#allocation9 + $0x6a0] sm:$0xff]
    %v476 = vld [vmem:[#allocation9 + $0x6a8] sm:$0xff]
    %v477 = vld [vmem:[#allocation9 + $0x6b0] sm:$0xff]
    %v478 = vld [vmem:[#allocation9 + $0x6b8] sm:$0xff]
    %v479 = vld [vmem:[#allocation9 + $0x6c0] sm:$0xff]
    %v480 = vld [vmem:[#allocation9 + $0x6c8] sm:$0xff]
    %v481 = vld [vmem:[#allocation9 + $0x6d0] sm:$0xff]
    %v482 = vld [vmem:[#allocation9 + $0x6d8] sm:$0xff]
    %v483 = vld [vmem:[#allocation9 + $0x6e0] sm:$0xff]
    %v484 = vld [vmem:[#allocation9 + $0x6e8] sm:$0xff]
    %v485 = vld [vmem:[#allocation9 + $0x6f0] sm:$0xff]
    %v486 = vld [vmem:[#allocation9 + $0x6f8] sm:$0xff]
    %v487 = vld [vmem:[#allocation9 + $0x700] sm:$0xff]
    %v488 = vld [vmem:[#allocation9 + $0x708] sm:$0xff]
    %v489 = vld [vmem:[#allocation9 + $0x710] sm:$0xff]
    %v490 = vld [vmem:[#allocation9 + $0x718] sm:$0xff]
    %v491 = vld [vmem:[#allocation9 + $0x720] sm:$0xff]
    %v492 = vld [vmem:[#allocation9 + $0x728] sm:$0xff]
    %v493 = vld [vmem:[#allocation9 + $0x730] sm:$0xff]
    %v494 = vld [vmem:[#allocation9 + $0x738] sm:$0xff]
    %v495 = vld [vmem:[#allocation9 + $0x740] sm:$0xff]
    %v496 = vld [vmem:[#allocation9 + $0x748] sm:$0xff]
    %v497 = vld [vmem:[#allocation9 + $0x750] sm:$0xff]
    %v498 = vld [vmem:[#allocation9 + $0x758] sm:$0xff]
    %v499 = vld [vmem:[#allocation9 + $0x760] sm:$0xff]
    %v500 = vld [vmem:[#allocation9 + $0x768] sm:$0xff]
    %v501 = vld [vmem:[#allocation9 + $0x770] sm:$0xff]
    %v502 = vld [vmem:[#allocation9 + $0x778] sm:$0xff]
    %v503 = vld [vmem:[#allocation9 + $0x780] sm:$0xff]
    %v504 = vld [vmem:[#allocation9 + $0x788] sm:$0xff]
    %v505 = vld [vmem:[#allocation9 + $0x790] sm:$0xff]
    %v506 = vld [vmem:[#allocation9 + $0x798] sm:$0xff]
    %v507 = vld [vmem:[#allocation9 + $0x7a0] sm:$0xff]
    %v508 = vld [vmem:[#allocation9 + $0x7a8] sm:$0xff]
    %v509 = vld [vmem:[#allocation9 + $0x7b0] sm:$0xff]
    %v510 = vld [vmem:[#allocation9 + $0x7b8] sm:$0xff]
    %v511 = vld [vmem:[#allocation9 + $0x7c0] sm:$0xff]
    %v512 = vld [vmem:[#allocation9 + $0x7c8] sm:$0xff]
    %v513 = vld [vmem:[#allocation9 + $0x7d0] sm:$0xff]
    %v514 = vld [vmem:[#allocation9 + $0x7d8] sm:$0xff]
    %v515 = vld [vmem:[#allocation9 + $0x7e0] sm:$0xff]
    %v516 = vld [vmem:[#allocation9 + $0x7e8] sm:$0xff]
    %v517 = vld [vmem:[#allocation9 + $0x7f0] sm:$0xff]
    %v518 = vld [vmem:[#allocation9 + $0x7f8] sm:$0xff]
    %v519 = vld [vmem:[%s3] sm:$0xff]
    %v521 = vlaneseq
    %v522 = vshrl.u32 %v521, 7
    %v523 = vsub.s32 0, %v522
    %v524 = vrot.slane %v519, %v523
    %v525 = vlaneseq
    %v526 = vshrl.u32 %v525, 7
    %v527 = vsub.s32 1, %v526
    %v528 = vrot.slane %v519, %v527
    %v529 = vlaneseq
    %v530 = vshrl.u32 %v529, 7
    %v531 = vsub.s32 2, %v530
    %v532 = vrot.slane %v519, %v531
    %v533 = vlaneseq
    %v534 = vshrl.u32 %v533, 7
    %v535 = vsub.s32 3, %v534
    %v536 = vrot.slane %v519, %v535
    %v537 = vlaneseq
    %v538 = vshrl.u32 %v537, 7
    %v539 = vsub.s32 4, %v538
    %v540 = vrot.slane %v519, %v539
    %v541 = vlaneseq
    %v542 = vshrl.u32 %v541, 7
    %v543 = vsub.s32 5, %v542
    %v544 = vrot.slane %v519, %v543
    %v545 = vlaneseq
    %v546 = vshrl.u32 %v545, 7
    %v547 = vsub.s32 6, %v546
    %v548 = vrot.slane %v519, %v547
    %v549 = vlaneseq
    %v550 = vshrl.u32 %v549, 7
    %v551 = vsub.s32 7, %v550
    %v552 = vrot.slane %v519, %v551
    %561 = vmatprep.subr.mxu0 %v384
    %562 = vmatpush1.msra.mxu0 %v383
    %563 = vmatprep.subr.mxu0 %v376
    %564 = vmatpush1.msra.mxu0 %v375
    %565 = vmatprep.subr.mxu0 %v368
    %566 = vmatpush1.msra.mxu0 %v367
    %567 = vmatprep.subr.mxu0 %v360
    %568 = vmatpush1.msra.mxu0 %v359
    %569 = vmatprep.subr.mxu0 %v352
    %570 = vmatpush1.msra.mxu0 %v351
    %571 = vmatprep.subr.mxu0 %v344
    %572 = vmatpush1.msra.mxu0 %v343
    %573 = vmatprep.subr.mxu0 %v336
    %574 = vmatpush1.msra.mxu0 %v335
    %575 = vmatprep.subr.mxu0 %v328
    %576 = vmatpush1.msra.mxu0 %v327
    %577 = vmatprep.subr.mxu0 %v320
    %578 = vmatpush1.msra.mxu0 %v319
    %579 = vmatprep.subr.mxu0 %v312
    %580 = vmatpush1.msra.mxu0 %v311
    %581 = vmatprep.subr.mxu0 %v304
    %582 = vmatpush1.msra.mxu0 %v303
    %583 = vmatprep.subr.mxu0 %v296
    %584 = vmatpush1.msra.mxu0 %v295
    %585 = vmatprep.subr.mxu0 %v288
    %586 = vmatpush1.msra.mxu0 %v287
    %587 = vmatprep.subr.mxu0 %v280
    %588 = vmatpush1.msra.mxu0 %v279
    %589 = vmatprep.subr.mxu0 %v272
    %590 = vmatpush1.msra.mxu0 %v271
    %591 = vmatprep.subr.mxu0 %v264
    %592 = vmatpush1.msra.mxu0 %v263
    %593 = vmatprep.subr.mxu0 %v512
    %594 = vmatpush2.msra.mxu0 %v511
    %595 = vmatprep.subr.mxu0 %v504
    %596 = vmatpush2.msra.mxu0 %v503
    %597 = vmatprep.subr.mxu0 %v496
    %598 = vmatpush2.msra.mxu0 %v495
    %599 = vmatprep.subr.mxu0 %v488
    %600 = vmatpush2.msra.mxu0 %v487
    %601 = vmatprep.subr.mxu0 %v480
    %602 = vmatpush2.msra.mxu0 %v479
    %603 = vmatprep.subr.mxu0 %v472
    %604 = vmatpush2.msra.mxu0 %v471
    %605 = vmatprep.subr.mxu0 %v464
    %606 = vmatpush2.msra.mxu0 %v463
    %607 = vmatprep.subr.mxu0 %v456
    %608 = vmatpush2.msra.mxu0 %v455
    %609 = vmatprep.subr.mxu0 %v448
    %610 = vmatpush2.msra.mxu0 %v447
    %611 = vmatprep.subr.mxu0 %v440
    %612 = vmatpush2.msra.mxu0 %v439
    %613 = vmatprep.subr.mxu0 %v432
    %614 = vmatpush2.msra.mxu0 %v431
    %615 = vmatprep.subr.mxu0 %v424
    %616 = vmatpush2.msra.mxu0 %v423
    %617 = vmatprep.subr.mxu0 %v416
    %618 = vmatpush2.msra.mxu0 %v415
    %619 = vmatprep.subr.mxu0 %v408
    %620 = vmatpush2.msra.mxu0 %v407
    %621 = vmatprep.subr.mxu0 %v400
    %622 = vmatpush2.msra.mxu0 %v399
    %623 = vmatprep.subr.mxu0 %v392
    %624 = vmatpush2.msra.mxu0 %v391
    %625 = vmatprep.mubr.f32.mxu0 %v248
    %626 = vmatmul.mubr.f32.gmra.mxu0 %v247
    %v627 = vpop.f32.mrf.mxu0
    %v628 = vadd.f32 %v524, %v627
    %v629 = vpop.f32.mrf.mxu0
    %v630 = vadd.f32 %v528, %v629
    %631 = vmatprep.mubr.f32.mxu0 %v250
    %632 = vmatmul.mubr.f32.gmra.mxu0 %v249
    %v633 = vpop.f32.mrf.mxu0
    %v634 = vadd.f32 %v524, %v633
    %v635 = vpop.f32.mrf.mxu0
    %v636 = vadd.f32 %v528, %v635
    %637 = vmatprep.mubr.f32.mxu0 %v252
    %638 = vmatmul.mubr.f32.gmra.mxu0 %v251
    %v639 = vpop.f32.mrf.mxu0
    %v640 = vadd.f32 %v524, %v639
    %v641 = vpop.f32.mrf.mxu0
    %v642 = vadd.f32 %v528, %v641
    %643 = vmatprep.mubr.f32.mxu0 %v254
    %644 = vmatmul.mubr.f32.gmra.mxu0 %v253
    %v645 = vpop.f32.mrf.mxu0
    %v646 = vadd.f32 %v524, %v645
    %v647 = vpop.f32.mrf.mxu0
    %v648 = vadd.f32 %v528, %v647
    %649 = vmatprep.mubr.f32.mxu0 %v256
    %650 = vmatmul.mubr.f32.gmra.mxu0 %v255
    %v651 = vpop.f32.mrf.mxu0
    %v652 = vadd.f32 %v524, %v651
    %v653 = vpop.f32.mrf.mxu0
    %v654 = vadd.f32 %v528, %v653
    %655 = vmatprep.mubr.f32.mxu0 %v258
    %656 = vmatmul.mubr.f32.gmra.mxu0 %v257
    %v657 = vpop.f32.mrf.mxu0
    %v658 = vadd.f32 %v524, %v657
    %v659 = vpop.f32.mrf.mxu0
    %v660 = vadd.f32 %v528, %v659
    %661 = vmatprep.mubr.f32.mxu0 %v260
    %662 = vmatmul.mubr.f32.gmra.mxu0 %v259
    %v663 = vpop.f32.mrf.mxu0
    %v664 = vadd.f32 %v524, %v663
    %v665 = vpop.f32.mrf.mxu0
    %v666 = vadd.f32 %v528, %v665
    %667 = vmatprep.mubr.f32.mxu0 %v262
    %668 = vmatmul.mubr.f32.gmra.mxu0 %v261
    %v669 = vpop.f32.mrf.mxu0
    %v670 = vadd.f32 %v524, %v669
    %v671 = vpop.f32.mrf.mxu0
    %v672 = vadd.f32 %v528, %v671
    %673 = vdwg.mxu0
    %674 = vmatprep.subr.mxu0 %v386
    %675 = vmatpush1.msra.mxu0 %v385
    %676 = vmatprep.subr.mxu0 %v378
    %677 = vmatpush1.msra.mxu0 %v377
    %678 = vmatprep.subr.mxu0 %v370
    %679 = vmatpush1.msra.mxu0 %v369
    %680 = vmatprep.subr.mxu0 %v362
    %681 = vmatpush1.msra.mxu0 %v361
    %682 = vmatprep.subr.mxu0 %v354
    %683 = vmatpush1.msra.mxu0 %v353
    %684 = vmatprep.subr.mxu0 %v346
    %685 = vmatpush1.msra.mxu0 %v345
    %686 = vmatprep.subr.mxu0 %v338
    %687 = vmatpush1.msra.mxu0 %v337
    %688 = vmatprep.subr.mxu0 %v330
    %689 = vmatpush1.msra.mxu0 %v329
    %690 = vmatprep.subr.mxu0 %v322
    %691 = vmatpush1.msra.mxu0 %v321
    %692 = vmatprep.subr.mxu0 %v314
    %693 = vmatpush1.msra.mxu0 %v313
    %694 = vmatprep.subr.mxu0 %v306
    %695 = vmatpush1.msra.mxu0 %v305
    %696 = vmatprep.subr.mxu0 %v298
    %697 = vmatpush1.msra.mxu0 %v297
    %698 = vmatprep.subr.mxu0 %v290
    %699 = vmatpush1.msra.mxu0 %v289
    %700 = vmatprep.subr.mxu0 %v282
    %701 = vmatpush1.msra.mxu0 %v281
    %702 = vmatprep.subr.mxu0 %v274
    %703 = vmatpush1.msra.mxu0 %v273
    %704 = vmatprep.subr.mxu0 %v266
    %705 = vmatpush1.msra.mxu0 %v265
    %706 = vmatprep.subr.mxu0 %v514
    %707 = vmatpush2.msra.mxu0 %v513
    %708 = vmatprep.subr.mxu0 %v506
    %709 = vmatpush2.msra.mxu0 %v505
    %710 = vmatprep.subr.mxu0 %v498
    %711 = vmatpush2.msra.mxu0 %v497
    %712 = vmatprep.subr.mxu0 %v490
    %713 = vmatpush2.msra.mxu0 %v489
    %714 = vmatprep.subr.mxu0 %v482
    %715 = vmatpush2.msra.mxu0 %v481
    %716 = vmatprep.subr.mxu0 %v474
    %717 = vmatpush2.msra.mxu0 %v473
    %718 = vmatprep.subr.mxu0 %v466
    %719 = vmatpush2.msra.mxu0 %v465
    %720 = vmatprep.subr.mxu0 %v458
    %721 = vmatpush2.msra.mxu0 %v457
    %722 = vmatprep.subr.mxu0 %v450
    %723 = vmatpush2.msra.mxu0 %v449
    %724 = vmatprep.subr.mxu0 %v442
    %725 = vmatpush2.msra.mxu0 %v441
    %726 = vmatprep.subr.mxu0 %v434
    %727 = vmatpush2.msra.mxu0 %v433
    %728 = vmatprep.subr.mxu0 %v426
    %729 = vmatpush2.msra.mxu0 %v425
    %730 = vmatprep.subr.mxu0 %v418
    %731 = vmatpush2.msra.mxu0 %v417
    %732 = vmatprep.subr.mxu0 %v410
    %733 = vmatpush2.msra.mxu0 %v409
    %734 = vmatprep.subr.mxu0 %v402
    %735 = vmatpush2.msra.mxu0 %v401
    %736 = vmatprep.subr.mxu0 %v394
    %737 = vmatpush2.msra.mxu0 %v393
    %738 = vmatprep.mubr.f32.mxu0 %v248
    %739 = vmatmul.mubr.f32.gmra.mxu0 %v247
    %v740 = vpop.f32.mrf.mxu0
    %v741 = vadd.f32 %v532, %v740
    %v742 = vpop.f32.mrf.mxu0
    %v743 = vadd.f32 %v536, %v742
    %744 = vmatprep.mubr.f32.mxu0 %v250
    %745 = vmatmul.mubr.f32.gmra.mxu0 %v249
    %v746 = vpop.f32.mrf.mxu0
    %v747 = vadd.f32 %v532, %v746
    %v748 = vpop.f32.mrf.mxu0
    %v749 = vadd.f32 %v536, %v748
    %750 = vmatprep.mubr.f32.mxu0 %v252
    %751 = vmatmul.mubr.f32.gmra.mxu0 %v251
    %v752 = vpop.f32.mrf.mxu0
    %v753 = vadd.f32 %v532, %v752
    %v754 = vpop.f32.mrf.mxu0
    %v755 = vadd.f32 %v536, %v754
    %756 = vmatprep.mubr.f32.mxu0 %v254
    %757 = vmatmul.mubr.f32.gmra.mxu0 %v253
    %v758 = vpop.f32.mrf.mxu0
    %v759 = vadd.f32 %v532, %v758
    %v760 = vpop.f32.mrf.mxu0
    %v761 = vadd.f32 %v536, %v760
    %762 = vmatprep.mubr.f32.mxu0 %v256
    %763 = vmatmul.mubr.f32.gmra.mxu0 %v255
    %v764 = vpop.f32.mrf.mxu0
    %v765 = vadd.f32 %v532, %v764
    %v766 = vpop.f32.mrf.mxu0
    %v767 = vadd.f32 %v536, %v766
    %768 = vmatprep.mubr.f32.mxu0 %v258
    %769 = vmatmul.mubr.f32.gmra.mxu0 %v257
    %v770 = vpop.f32.mrf.mxu0
    %v771 = vadd.f32 %v532, %v770
    %v772 = vpop.f32.mrf.mxu0
    %v773 = vadd.f32 %v536, %v772
    %774 = vmatprep.mubr.f32.mxu0 %v260
    %775 = vmatmul.mubr.f32.gmra.mxu0 %v259
    %v776 = vpop.f32.mrf.mxu0
    %v777 = vadd.f32 %v532, %v776
    %v778 = vpop.f32.mrf.mxu0
    %v779 = vadd.f32 %v536, %v778
    %780 = vmatprep.mubr.f32.mxu0 %v262
    %781 = vmatmul.mubr.f32.gmra.mxu0 %v261
    %v782 = vpop.f32.mrf.mxu0
    %v783 = vadd.f32 %v532, %v782
    %v784 = vpop.f32.mrf.mxu0
    %v785 = vadd.f32 %v536, %v784
    %786 = vdwg.mxu0
    %787 = vmatprep.subr.mxu0 %v388
    %788 = vmatpush1.msra.mxu0 %v387
    %789 = vmatprep.subr.mxu0 %v380
    %790 = vmatpush1.msra.mxu0 %v379
    %791 = vmatprep.subr.mxu0 %v372
    %792 = vmatpush1.msra.mxu0 %v371
    %793 = vmatprep.subr.mxu0 %v364
    %794 = vmatpush1.msra.mxu0 %v363
    %795 = vmatprep.subr.mxu0 %v356
    %796 = vmatpush1.msra.mxu0 %v355
    %797 = vmatprep.subr.mxu0 %v348
    %798 = vmatpush1.msra.mxu0 %v347
    %799 = vmatprep.subr.mxu0 %v340
    %800 = vmatpush1.msra.mxu0 %v339
    %801 = vmatprep.subr.mxu0 %v332
    %802 = vmatpush1.msra.mxu0 %v331
    %803 = vmatprep.subr.mxu0 %v324
    %804 = vmatpush1.msra.mxu0 %v323
    %805 = vmatprep.subr.mxu0 %v316
    %806 = vmatpush1.msra.mxu0 %v315
    %807 = vmatprep.subr.mxu0 %v308
    %808 = vmatpush1.msra.mxu0 %v307
    %809 = vmatprep.subr.mxu0 %v300
    %810 = vmatpush1.msra.mxu0 %v299
    %811 = vmatprep.subr.mxu0 %v292
    %812 = vmatpush1.msra.mxu0 %v291
    %813 = vmatprep.subr.mxu0 %v284
    %814 = vmatpush1.msra.mxu0 %v283
    %815 = vmatprep.subr.mxu0 %v276
    %816 = vmatpush1.msra.mxu0 %v275
    %817 = vmatprep.subr.mxu0 %v268
    %818 = vmatpush1.msra.mxu0 %v267
    %819 = vmatprep.subr.mxu0 %v516
    %820 = vmatpush2.msra.mxu0 %v515
    %821 = vmatprep.subr.mxu0 %v508
    %822 = vmatpush2.msra.mxu0 %v507
    %823 = vmatprep.subr.mxu0 %v500
    %824 = vmatpush2.msra.mxu0 %v499
    %825 = vmatprep.subr.mxu0 %v492
    %826 = vmatpush2.msra.mxu0 %v491
    %827 = vmatprep.subr.mxu0 %v484
    %828 = vmatpush2.msra.mxu0 %v483
    %829 = vmatprep.subr.mxu0 %v476
    %830 = vmatpush2.msra.mxu0 %v475
    %831 = vmatprep.subr.mxu0 %v468
    %832 = vmatpush2.msra.mxu0 %v467
    %833 = vmatprep.subr.mxu0 %v460
    %834 = vmatpush2.msra.mxu0 %v459
    %835 = vmatprep.subr.mxu0 %v452
    %836 = vmatpush2.msra.mxu0 %v451
    %837 = vmatprep.subr.mxu0 %v444
    %838 = vmatpush2.msra.mxu0 %v443
    %839 = vmatprep.subr.mxu0 %v436
    %840 = vmatpush2.msra.mxu0 %v435
    %841 = vmatprep.subr.mxu0 %v428
    %842 = vmatpush2.msra.mxu0 %v427
    %843 = vmatprep.subr.mxu0 %v420
    %844 = vmatpush2.msra.mxu0 %v419
    %845 = vmatprep.subr.mxu0 %v412
    %846 = vmatpush2.msra.mxu0 %v411
    %847 = vmatprep.subr.mxu0 %v404
    %848 = vmatpush2.msra.mxu0 %v403
    %849 = vmatprep.subr.mxu0 %v396
    %850 = vmatpush2.msra.mxu0 %v395
    %851 = vmatprep.mubr.f32.mxu0 %v248
    %852 = vmatmul.mubr.f32.gmra.mxu0 %v247
    %v853 = vpop.f32.mrf.mxu0
    %v854 = vadd.f32 %v540, %v853
    %v855 = vpop.f32.mrf.mxu0
    %v856 = vadd.f32 %v544, %v855
    %857 = vmatprep.mubr.f32.mxu0 %v250
    %858 = vmatmul.mubr.f32.gmra.mxu0 %v249
    %v859 = vpop.f32.mrf.mxu0
    %v860 = vadd.f32 %v540, %v859
    %v861 = vpop.f32.mrf.mxu0
    %v862 = vadd.f32 %v544, %v861
    %863 = vmatprep.mubr.f32.mxu0 %v252
    %864 = vmatmul.mubr.f32.gmra.mxu0 %v251
    %v865 = vpop.f32.mrf.mxu0
    %v866 = vadd.f32 %v540, %v865
    %v867 = vpop.f32.mrf.mxu0
    %v868 = vadd.f32 %v544, %v867
    %869 = vmatprep.mubr.f32.mxu0 %v254
    %870 = vmatmul.mubr.f32.gmra.mxu0 %v253
    %v871 = vpop.f32.mrf.mxu0
    %v872 = vadd.f32 %v540, %v871
    %v873 = vpop.f32.mrf.mxu0
    %v874 = vadd.f32 %v544, %v873
    %875 = vmatprep.mubr.f32.mxu0 %v256
    %876 = vmatmul.mubr.f32.gmra.mxu0 %v255
    %v877 = vpop.f32.mrf.mxu0
    %v878 = vadd.f32 %v540, %v877
    %v879 = vpop.f32.mrf.mxu0
    %v880 = vadd.f32 %v544, %v879
    %881 = vmatprep.mubr.f32.mxu0 %v258
    %882 = vmatmul.mubr.f32.gmra.mxu0 %v257
    %v883 = vpop.f32.mrf.mxu0
    %v884 = vadd.f32 %v540, %v883
    %v885 = vpop.f32.mrf.mxu0
    %v886 = vadd.f32 %v544, %v885
    %887 = vmatprep.mubr.f32.mxu0 %v260
    %888 = vmatmul.mubr.f32.gmra.mxu0 %v259
    %v889 = vpop.f32.mrf.mxu0
    %v890 = vadd.f32 %v540, %v889
    %v891 = vpop.f32.mrf.mxu0
    %v892 = vadd.f32 %v544, %v891
    %893 = vmatprep.mubr.f32.mxu0 %v262
    %894 = vmatmul.mubr.f32.gmra.mxu0 %v261
    %v895 = vpop.f32.mrf.mxu0
    %v896 = vadd.f32 %v540, %v895
    %v897 = vpop.f32.mrf.mxu0
    %v898 = vadd.f32 %v544, %v897
    %899 = vdwg.mxu0
    %900 = vmatprep.subr.mxu0 %v390
    %901 = vmatpush1.msra.mxu0 %v389
    %902 = vmatprep.subr.mxu0 %v382
    %903 = vmatpush1.msra.mxu0 %v381
    %904 = vmatprep.subr.mxu0 %v374
    %905 = vmatpush1.msra.mxu0 %v373
    %906 = vmatprep.subr.mxu0 %v366
    %907 = vmatpush1.msra.mxu0 %v365
    %908 = vmatprep.subr.mxu0 %v358
    %909 = vmatpush1.msra.mxu0 %v357
    %910 = vmatprep.subr.mxu0 %v350
    %911 = vmatpush1.msra.mxu0 %v349
    %912 = vmatprep.subr.mxu0 %v342
    %913 = vmatpush1.msra.mxu0 %v341
    %914 = vmatprep.subr.mxu0 %v334
    %915 = vmatpush1.msra.mxu0 %v333
    %916 = vmatprep.subr.mxu0 %v326
    %917 = vmatpush1.msra.mxu0 %v325
    %918 = vmatprep.subr.mxu0 %v318
    %919 = vmatpush1.msra.mxu0 %v317
    %920 = vmatprep.subr.mxu0 %v310
    %921 = vmatpush1.msra.mxu0 %v309
    %922 = vmatprep.subr.mxu0 %v302
    %923 = vmatpush1.msra.mxu0 %v301
    %924 = vmatprep.subr.mxu0 %v294
    %925 = vmatpush1.msra.mxu0 %v293
    %926 = vmatprep.subr.mxu0 %v286
    %927 = vmatpush1.msra.mxu0 %v285
    %928 = vmatprep.subr.mxu0 %v278
    %929 = vmatpush1.msra.mxu0 %v277
    %930 = vmatprep.subr.mxu0 %v270
    %931 = vmatpush1.msra.mxu0 %v269
    %932 = vmatprep.subr.mxu0 %v518
    %933 = vmatpush2.msra.mxu0 %v517
    %934 = vmatprep.subr.mxu0 %v510
    %935 = vmatpush2.msra.mxu0 %v509
    %936 = vmatprep.subr.mxu0 %v502
    %937 = vmatpush2.msra.mxu0 %v501
    %938 = vmatprep.subr.mxu0 %v494
    %939 = vmatpush2.msra.mxu0 %v493
    %940 = vmatprep.subr.mxu0 %v486
    %941 = vmatpush2.msra.mxu0 %v485
    %942 = vmatprep.subr.mxu0 %v478
    %943 = vmatpush2.msra.mxu0 %v477
    %944 = vmatprep.subr.mxu0 %v470
    %945 = vmatpush2.msra.mxu0 %v469
    %946 = vmatprep.subr.mxu0 %v462
    %947 = vmatpush2.msra.mxu0 %v461
    %948 = vmatprep.subr.mxu0 %v454
    %949 = vmatpush2.msra.mxu0 %v453
    %950 = vmatprep.subr.mxu0 %v446
    %951 = vmatpush2.msra.mxu0 %v445
    %952 = vmatprep.subr.mxu0 %v438
    %953 = vmatpush2.msra.mxu0 %v437
    %954 = vmatprep.subr.mxu0 %v430
    %955 = vmatpush2.msra.mxu0 %v429
    %956 = vmatprep.subr.mxu0 %v422
    %957 = vmatpush2.msra.mxu0 %v421
    %958 = vmatprep.subr.mxu0 %v414
    %959 = vmatpush2.msra.mxu0 %v413
    %960 = vmatprep.subr.mxu0 %v406
    %961 = vmatpush2.msra.mxu0 %v405
    %962 = vmatprep.subr.mxu0 %v398
    %963 = vmatpush2.msra.mxu0 %v397
    %964 = vmatprep.mubr.f32.mxu0 %v248
    %965 = vmatmul.mubr.f32.gmra.mxu0 %v247
    %v966 = vpop.f32.mrf.mxu0
    %v967 = vadd.f32 %v548, %v966
    %v968 = vpop.f32.mrf.mxu0
    %v969 = vadd.f32 %v552, %v968
    %970 = vmatprep.mubr.f32.mxu0 %v250
    %971 = vmatmul.mubr.f32.gmra.mxu0 %v249
    %v972 = vpop.f32.mrf.mxu0
    %v973 = vadd.f32 %v548, %v972
    %v974 = vpop.f32.mrf.mxu0
    %v975 = vadd.f32 %v552, %v974
    %976 = vmatprep.mubr.f32.mxu0 %v252
    %977 = vmatmul.mubr.f32.gmra.mxu0 %v251
    %v978 = vpop.f32.mrf.mxu0
    %v979 = vadd.f32 %v548, %v978
    %v980 = vpop.f32.mrf.mxu0
    %v981 = vadd.f32 %v552, %v980
    %982 = vmatprep.mubr.f32.mxu0 %v254
    %983 = vmatmul.mubr.f32.gmra.mxu0 %v253
    %v984 = vpop.f32.mrf.mxu0
    %v985 = vadd.f32 %v548, %v984
    %v986 = vpop.f32.mrf.mxu0
    %v987 = vadd.f32 %v552, %v986
    %988 = vmatprep.mubr.f32.mxu0 %v256
    %989 = vmatmul.mubr.f32.gmra.mxu0 %v255
    %v990 = vpop.f32.mrf.mxu0
    %v991 = vadd.f32 %v548, %v990
    %v992 = vpop.f32.mrf.mxu0
    %v993 = vadd.f32 %v552, %v992
    %994 = vmatprep.mubr.f32.mxu0 %v258
    %995 = vmatmul.mubr.f32.gmra.mxu0 %v257
    %v996 = vpop.f32.mrf.mxu0
    %v997 = vadd.f32 %v548, %v996
    %v998 = vpop.f32.mrf.mxu0
    %v999 = vadd.f32 %v552, %v998
    %1000 = vmatprep.mubr.f32.mxu0 %v260
    %1001 = vmatmul.mubr.f32.gmra.mxu0 %v259
    %v1002 = vpop.f32.mrf.mxu0
    %v1003 = vadd.f32 %v548, %v1002
    %v1004 = vpop.f32.mrf.mxu0
    %v1005 = vadd.f32 %v552, %v1004
    %1006 = vmatprep.mubr.f32.mxu0 %v262
    %1007 = vmatmul.mubr.f32.gmra.mxu0 %v261
    %v1008 = vpop.f32.mrf.mxu0
    %v1009 = vadd.f32 %v548, %v1008
    %v1010 = vpop.f32.mrf.mxu0
    %v1011 = vadd.f32 %v552, %v1010
    %1012 = vdwg.mxu0
    %1013 = vst [vmem:[#allocation3] sm:$0xff] %v628
    %1014 = vst [vmem:[#allocation3 + $0x8] sm:$0xff] %v630
    %1015 = vst [vmem:[#allocation3 + $0x10] sm:$0xff] %v741
    %1016 = vst [vmem:[#allocation3 + $0x18] sm:$0xff] %v743
    %1017 = vst [vmem:[#allocation3 + $0x20] sm:$0xff] %v854
    %1018 = vst [vmem:[#allocation3 + $0x28] sm:$0xff] %v856
    %1019 = vst [vmem:[#allocation3 + $0x30] sm:$0xff] %v967
    %1020 = vst [vmem:[#allocation3 + $0x38] sm:$0xff] %v969
    %1021 = vst [vmem:[#allocation3 + $0x40] sm:$0xff] %v634
    %1022 = vst [vmem:[#allocation3 + $0x48] sm:$0xff] %v636
    %1023 = vst [vmem:[#allocation3 + $0x50] sm:$0xff] %v747
    %1024 = vst [vmem:[#allocation3 + $0x58] sm:$0xff] %v749
    %1025 = vst [vmem:[#allocation3 + $0x60] sm:$0xff] %v860
    %1026 = vst [vmem:[#allocation3 + $0x68] sm:$0xff] %v862
    %1027 = vst [vmem:[#allocation3 + $0x70] sm:$0xff] %v973
    %1028 = vst [vmem:[#allocation3 + $0x78] sm:$0xff] %v975
    %1029 = vst [vmem:[#allocation3 + $0x80] sm:$0xff] %v640
    %1030 = vst [vmem:[#allocation3 + $0x88] sm:$0xff] %v642
    %1031 = vst [vmem:[#allocation3 + $0x90] sm:$0xff] %v753
    %1032 = vst [vmem:[#allocation3 + $0x98] sm:$0xff] %v755
    %1033 = vst [vmem:[#allocation3 + $0xa0] sm:$0xff] %v866
    %1034 = vst [vmem:[#allocation3 + $0xa8] sm:$0xff] %v868
    %1035 = vst [vmem:[#allocation3 + $0xb0] sm:$0xff] %v979
    %1036 = vst [vmem:[#allocation3 + $0xb8] sm:$0xff] %v981
    %1037 = vst [vmem:[#allocation3 + $0xc0] sm:$0xff] %v646
    %1038 = vst [vmem:[#allocation3 + $0xc8] sm:$0xff] %v648
    %1039 = vst [vmem:[#allocation3 + $0xd0] sm:$0xff] %v759
    %1040 = vst [vmem:[#allocation3 + $0xd8] sm:$0xff] %v761
    %1041 = vst [vmem:[#allocation3 + $0xe0] sm:$0xff] %v872
    %1042 = vst [vmem:[#allocation3 + $0xe8] sm:$0xff] %v874
    %1043 = vst [vmem:[#allocation3 + $0xf0] sm:$0xff] %v985
    %1044 = vst [vmem:[#allocation3 + $0xf8] sm:$0xff] %v987
    %1045 = vst [vmem:[#allocation3 + $0x100] sm:$0xff] %v652
    %1046 = vst [vmem:[#allocation3 + $0x108] sm:$0xff] %v654
    %1047 = vst [vmem:[#allocation3 + $0x110] sm:$0xff] %v765
    %1048 = vst [vmem:[#allocation3 + $0x118] sm:$0xff] %v767
    %1049 = vst [vmem:[#allocation3 + $0x120] sm:$0xff] %v878
    %1050 = vst [vmem:[#allocation3 + $0x128] sm:$0xff] %v880
    %1051 = vst [vmem:[#allocation3 + $0x130] sm:$0xff] %v991
    %1052 = vst [vmem:[#allocation3 + $0x138] sm:$0xff] %v993
    %1053 = vst [vmem:[#allocation3 + $0x140] sm:$0xff] %v658
    %1054 = vst [vmem:[#allocation3 + $0x148] sm:$0xff] %v660
    %1055 = vst [vmem:[#allocation3 + $0x150] sm:$0xff] %v771
    %1056 = vst [vmem:[#allocation3 + $0x158] sm:$0xff] %v773
    %1057 = vst [vmem:[#allocation3 + $0x160] sm:$0xff] %v884
    %1058 = vst [vmem:[#allocation3 + $0x168] sm:$0xff] %v886
    %1059 = vst [vmem:[#allocation3 + $0x170] sm:$0xff] %v997
    %1060 = vst [vmem:[#allocation3 + $0x178] sm:$0xff] %v999
    %1061 = vst [vmem:[#allocation3 + $0x180] sm:$0xff] %v664
    %1062 = vst [vmem:[#allocation3 + $0x188] sm:$0xff] %v666
    %1063 = vst [vmem:[#allocation3 + $0x190] sm:$0xff] %v777
    %1064 = vst [vmem:[#allocation3 + $0x198] sm:$0xff] %v779
    %1065 = vst [vmem:[#allocation3 + $0x1a0] sm:$0xff] %v890
    %1066 = vst [vmem:[#allocation3 + $0x1a8] sm:$0xff] %v892
    %1067 = vst [vmem:[#allocation3 + $0x1b0] sm:$0xff] %v1003
    %1068 = vst [vmem:[#allocation3 + $0x1b8] sm:$0xff] %v1005
    %1069 = vst [vmem:[#allocation3 + $0x1c0] sm:$0xff] %v670
    %1070 = vst [vmem:[#allocation3 + $0x1c8] sm:$0xff] %v672
    %1071 = vst [vmem:[#allocation3 + $0x1d0] sm:$0xff] %v783
    %1072 = vst [vmem:[#allocation3 + $0x1d8] sm:$0xff] %v785
    %1073 = vst [vmem:[#allocation3 + $0x1e0] sm:$0xff] %v896
    %1074 = vst [vmem:[#allocation3 + $0x1e8] sm:$0xff] %v898
    %1075 = vst [vmem:[#allocation3 + $0x1f0] sm:$0xff] %v1009
    %1076 = vst [vmem:[#allocation3 + $0x1f8] sm:$0xff] %v1011
    %v1077 = vld [vmem:[#allocation11] sm:$0xff]
    %v1078 = vld [vmem:[#allocation11 + $0x8] sm:$0xff]
    %v1079 = vld [vmem:[#allocation11 + $0x10] sm:$0xff]
    %v1080 = vld [vmem:[#allocation11 + $0x18] sm:$0xff]
    %v1081 = vld [vmem:[#allocation11 + $0x20] sm:$0xff]
    %v1082 = vld [vmem:[#allocation11 + $0x28] sm:$0xff]
    %v1083 = vld [vmem:[#allocation11 + $0x30] sm:$0xff]
    %v1084 = vld [vmem:[#allocation11 + $0x38] sm:$0xff]
    %v1085 = vld [vmem:[#allocation11 + $0x40] sm:$0xff]
    %v1086 = vld [vmem:[#allocation11 + $0x48] sm:$0xff]
    %v1087 = vld [vmem:[#allocation11 + $0x50] sm:$0xff]
    %v1088 = vld [vmem:[#allocation11 + $0x58] sm:$0xff]
    %v1089 = vld [vmem:[#allocation11 + $0x60] sm:$0xff]
    %v1090 = vld [vmem:[#allocation11 + $0x68] sm:$0xff]
    %v1091 = vld [vmem:[#allocation11 + $0x70] sm:$0xff]
    %v1092 = vld [vmem:[#allocation11 + $0x78] sm:$0xff]
    %v1093 = vld [vmem:[#allocation11 + $0x80] sm:$0xff]
    %v1094 = vld [vmem:[#allocation11 + $0x88] sm:$0xff]
    %v1095 = vld [vmem:[#allocation11 + $0x90] sm:$0xff]
    %v1096 = vld [vmem:[#allocation11 + $0x98] sm:$0xff]
    %v1097 = vld [vmem:[#allocation11 + $0xa0] sm:$0xff]
    %v1098 = vld [vmem:[#allocation11 + $0xa8] sm:$0xff]
    %v1099 = vld [vmem:[#allocation11 + $0xb0] sm:$0xff]
    %v1100 = vld [vmem:[#allocation11 + $0xb8] sm:$0xff]
    %v1101 = vld [vmem:[#allocation11 + $0xc0] sm:$0xff]
    %v1102 = vld [vmem:[#allocation11 + $0xc8] sm:$0xff]
    %v1103 = vld [vmem:[#allocation11 + $0xd0] sm:$0xff]
    %v1104 = vld [vmem:[#allocation11 + $0xd8] sm:$0xff]
    %v1105 = vld [vmem:[#allocation11 + $0xe0] sm:$0xff]
    %v1106 = vld [vmem:[#allocation11 + $0xe8] sm:$0xff]
    %v1107 = vld [vmem:[#allocation11 + $0xf0] sm:$0xff]
    %v1108 = vld [vmem:[#allocation11 + $0xf8] sm:$0xff]
    %v1109 = vld [vmem:[#allocation11 + $0x100] sm:$0xff]
    %v1110 = vld [vmem:[#allocation11 + $0x108] sm:$0xff]
    %v1111 = vld [vmem:[#allocation11 + $0x110] sm:$0xff]
    %v1112 = vld [vmem:[#allocation11 + $0x118] sm:$0xff]
    %v1113 = vld [vmem:[#allocation11 + $0x120] sm:$0xff]
    %v1114 = vld [vmem:[#allocation11 + $0x128] sm:$0xff]
    %v1115 = vld [vmem:[#allocation11 + $0x130] sm:$0xff]
    %v1116 = vld [vmem:[#allocation11 + $0x138] sm:$0xff]
    %v1117 = vld [vmem:[#allocation11 + $0x140] sm:$0xff]
    %v1118 = vld [vmem:[#allocation11 + $0x148] sm:$0xff]
    %v1119 = vld [vmem:[#allocation11 + $0x150] sm:$0xff]
    %v1120 = vld [vmem:[#allocation11 + $0x158] sm:$0xff]
    %v1121 = vld [vmem:[#allocation11 + $0x160] sm:$0xff]
    %v1122 = vld [vmem:[#allocation11 + $0x168] sm:$0xff]
    %v1123 = vld [vmem:[#allocation11 + $0x170] sm:$0xff]
    %v1124 = vld [vmem:[#allocation11 + $0x178] sm:$0xff]
    %v1125 = vld [vmem:[#allocation11 + $0x180] sm:$0xff]
    %v1126 = vld [vmem:[#allocation11 + $0x188] sm:$0xff]
    %v1127 = vld [vmem:[#allocation11 + $0x190] sm:$0xff]
    %v1128 = vld [vmem:[#allocation11 + $0x198] sm:$0xff]
    %v1129 = vld [vmem:[#allocation11 + $0x1a0] sm:$0xff]
    %v1130 = vld [vmem:[#allocation11 + $0x1a8] sm:$0xff]
    %v1131 = vld [vmem:[#allocation11 + $0x1b0] sm:$0xff]
    %v1132 = vld [vmem:[#allocation11 + $0x1b8] sm:$0xff]
    %v1133 = vld [vmem:[#allocation11 + $0x1c0] sm:$0xff]
    %v1134 = vld [vmem:[#allocation11 + $0x1c8] sm:$0xff]
    %v1135 = vld [vmem:[#allocation11 + $0x1d0] sm:$0xff]
    %v1136 = vld [vmem:[#allocation11 + $0x1d8] sm:$0xff]
    %v1137 = vld [vmem:[#allocation11 + $0x1e0] sm:$0xff]
    %v1138 = vld [vmem:[#allocation11 + $0x1e8] sm:$0xff]
    %v1139 = vld [vmem:[#allocation11 + $0x1f0] sm:$0xff]
    %v1140 = vld [vmem:[#allocation11 + $0x1f8] sm:$0xff]
    %s1141 = scalar_lea.vmem [#allocation11], 512
    %v1142 = vld [vmem:[%s1141] sm:$0xff]
    %v1143 = vld [vmem:[%s1141 + $0x8] sm:$0xff]
    %v1144 = vld [vmem:[%s1141 + $0x10] sm:$0xff]
    %v1145 = vld [vmem:[%s1141 + $0x18] sm:$0xff]
    %v1146 = vld [vmem:[%s1141 + $0x20] sm:$0xff]
    %v1147 = vld [vmem:[%s1141 + $0x28] sm:$0xff]
    %v1148 = vld [vmem:[%s1141 + $0x30] sm:$0xff]
    %v1149 = vld [vmem:[%s1141 + $0x38] sm:$0xff]
    %v1150 = vld [vmem:[%s1141 + $0x40] sm:$0xff]
    %v1151 = vld [vmem:[%s1141 + $0x48] sm:$0xff]
    %v1152 = vld [vmem:[%s1141 + $0x50] sm:$0xff]
    %v1153 = vld [vmem:[%s1141 + $0x58] sm:$0xff]
    %v1154 = vld [vmem:[%s1141 + $0x60] sm:$0xff]
    %v1155 = vld [vmem:[%s1141 + $0x68] sm:$0xff]
    %v1156 = vld [vmem:[%s1141 + $0x70] sm:$0xff]
    %v1157 = vld [vmem:[%s1141 + $0x78] sm:$0xff]
    %v1158 = vld [vmem:[%s1141 + $0x80] sm:$0xff]
    %v1159 = vld [vmem:[%s1141 + $0x88] sm:$0xff]
    %v1160 = vld [vmem:[%s1141 + $0x90] sm:$0xff]
    %v1161 = vld [vmem:[%s1141 + $0x98] sm:$0xff]
    %v1162 = vld [vmem:[%s1141 + $0xa0] sm:$0xff]
    %v1163 = vld [vmem:[%s1141 + $0xa8] sm:$0xff]
    %v1164 = vld [vmem:[%s1141 + $0xb0] sm:$0xff]
    %v1165 = vld [vmem:[%s1141 + $0xb8] sm:$0xff]
    %v1166 = vld [vmem:[%s1141 + $0xc0] sm:$0xff]
    %v1167 = vld [vmem:[%s1141 + $0xc8] sm:$0xff]
    %v1168 = vld [vmem:[%s1141 + $0xd0] sm:$0xff]
    %v1169 = vld [vmem:[%s1141 + $0xd8] sm:$0xff]
    %v1170 = vld [vmem:[%s1141 + $0xe0] sm:$0xff]
    %v1171 = vld [vmem:[%s1141 + $0xe8] sm:$0xff]
    %v1172 = vld [vmem:[%s1141 + $0xf0] sm:$0xff]
    %v1173 = vld [vmem:[%s1141 + $0xf8] sm:$0xff]
    %v1174 = vld [vmem:[%s1141 + $0x100] sm:$0xff]
    %v1175 = vld [vmem:[%s1141 + $0x108] sm:$0xff]
    %v1176 = vld [vmem:[%s1141 + $0x110] sm:$0xff]
    %v1177 = vld [vmem:[%s1141 + $0x118] sm:$0xff]
    %v1178 = vld [vmem:[%s1141 + $0x120] sm:$0xff]
    %v1179 = vld [vmem:[%s1141 + $0x128] sm:$0xff]
    %v1180 = vld [vmem:[%s1141 + $0x130] sm:$0xff]
    %v1181 = vld [vmem:[%s1141 + $0x138] sm:$0xff]
    %v1182 = vld [vmem:[%s1141 + $0x140] sm:$0xff]
    %v1183 = vld [vmem:[%s1141 + $0x148] sm:$0xff]
    %v1184 = vld [vmem:[%s1141 + $0x150] sm:$0xff]
    %v1185 = vld [vmem:[%s1141 + $0x158] sm:$0xff]
    %v1186 = vld [vmem:[%s1141 + $0x160] sm:$0xff]
    %v1187 = vld [vmem:[%s1141 + $0x168] sm:$0xff]
    %v1188 = vld [vmem:[%s1141 + $0x170] sm:$0xff]
    %v1189 = vld [vmem:[%s1141 + $0x178] sm:$0xff]
    %v1190 = vld [vmem:[%s1141 + $0x180] sm:$0xff]
    %v1191 = vld [vmem:[%s1141 + $0x188] sm:$0xff]
    %v1192 = vld [vmem:[%s1141 + $0x190] sm:$0xff]
    %v1193 = vld [vmem:[%s1141 + $0x198] sm:$0xff]
    %v1194 = vld [vmem:[%s1141 + $0x1a0] sm:$0xff]
    %v1195 = vld [vmem:[%s1141 + $0x1a8] sm:$0xff]
    %v1196 = vld [vmem:[%s1141 + $0x1b0] sm:$0xff]
    %v1197 = vld [vmem:[%s1141 + $0x1b8] sm:$0xff]
    %v1198 = vld [vmem:[%s1141 + $0x1c0] sm:$0xff]
    %v1199 = vld [vmem:[%s1141 + $0x1c8] sm:$0xff]
    %v1200 = vld [vmem:[%s1141 + $0x1d0] sm:$0xff]
    %v1201 = vld [vmem:[%s1141 + $0x1d8] sm:$0xff]
    %v1202 = vld [vmem:[%s1141 + $0x1e0] sm:$0xff]
    %v1203 = vld [vmem:[%s1141 + $0x1e8] sm:$0xff]
    %v1204 = vld [vmem:[%s1141 + $0x1f0] sm:$0xff]
    %v1205 = vld [vmem:[%s1141 + $0x1f8] sm:$0xff]
    %v1206 = vld [vmem:[#allocation3] sm:$0xff]
    %v1207 = vld [vmem:[#allocation3 + $0x8] sm:$0xff]
    %v1208 = vld [vmem:[#allocation3 + $0x10] sm:$0xff]
    %v1209 = vld [vmem:[#allocation3 + $0x18] sm:$0xff]
    %1210 = vmatprep.subr.mxu0 %v1138
    %1211 = vmatpush1.msra.mxu0 %v1137
    %1212 = vmatprep.subr.mxu0 %v1134
    %1213 = vmatpush1.msra.mxu0 %v1133
    %1214 = vmatprep.subr.mxu0 %v1130
    %1215 = vmatpush1.msra.mxu0 %v1129
    %1216 = vmatprep.subr.mxu0 %v1126
    %1217 = vmatpush1.msra.mxu0 %v1125
    %1218 = vmatprep.subr.mxu0 %v1122
    %1219 = vmatpush1.msra.mxu0 %v1121
    %1220 = vmatprep.subr.mxu0 %v1118
    %1221 = vmatpush1.msra.mxu0 %v1117
    %1222 = vmatprep.subr.mxu0 %v1114
    %1223 = vmatpush1.msra.mxu0 %v1113
    %1224 = vmatprep.subr.mxu0 %v1110
    %1225 = vmatpush1.msra.mxu0 %v1109
    %1226 = vmatprep.subr.mxu0 %v1106
    %1227 = vmatpush1.msra.mxu0 %v1105
    %1228 = vmatprep.subr.mxu0 %v1102
    %1229 = vmatpush1.msra.mxu0 %v1101
    %1230 = vmatprep.subr.mxu0 %v1098
    %1231 = vmatpush1.msra.mxu0 %v1097
    %1232 = vmatprep.subr.mxu0 %v1094
    %1233 = vmatpush1.msra.mxu0 %v1093
    %1234 = vmatprep.subr.mxu0 %v1090
    %1235 = vmatpush1.msra.mxu0 %v1089
    %1236 = vmatprep.subr.mxu0 %v1086
    %1237 = vmatpush1.msra.mxu0 %v1085
    %1238 = vmatprep.subr.mxu0 %v1082
    %1239 = vmatpush1.msra.mxu0 %v1081
    %1240 = vmatprep.subr.mxu0 %v1078
    %1241 = vmatpush1.msra.mxu0 %v1077
    %1242 = vmatprep.subr.mxu0 0.0
    %1243 = vmatpush2.msra.mxu0 0.0
    %1244 = vmatprep.subr.mxu0 0.0
    %1245 = vmatpush2.msra.mxu0 0.0
    %1246 = vmatprep.subr.mxu0 0.0
    %1247 = vmatpush2.msra.mxu0 0.0
    %1248 = vmatprep.subr.mxu0 0.0
    %1249 = vmatpush2.msra.mxu0 0.0
    %1250 = vmatprep.subr.mxu0 0.0
    %1251 = vmatpush2.msra.mxu0 0.0
    %1252 = vmatprep.subr.mxu0 0.0
    %1253 = vmatpush2.msra.mxu0 0.0
    %1254 = vmatprep.subr.mxu0 0.0
    %1255 = vmatpush2.msra.mxu0 0.0
    %1256 = vmatprep.subr.mxu0 0.0
    %1257 = vmatpush2.msra.mxu0 0.0
    %1258 = vmatprep.subr.mxu0 0.0
    %1259 = vmatpush2.msra.mxu0 0.0
    %1260 = vmatprep.subr.mxu0 0.0
    %1261 = vmatpush2.msra.mxu0 0.0
    %1262 = vmatprep.subr.mxu0 0.0
    %1263 = vmatpush2.msra.mxu0 0.0
    %1264 = vmatprep.subr.mxu0 0.0
    %1265 = vmatpush2.msra.mxu0 0.0
    %1266 = vmatprep.subr.mxu0 0.0
    %1267 = vmatpush2.msra.mxu0 0.0
    %1268 = vmatprep.subr.mxu0 0.0
    %1269 = vmatpush2.msra.mxu0 0.0
    %1270 = vmatprep.subr.mxu0 0.0
    %1271 = vmatpush2.msra.mxu0 0.0
    %1272 = vmatprep.subr.mxu0 0.0
    %1273 = vmatpush2.msra.mxu0 0.0
    %1274 = vmatprep.mubr.f32.mxu0 0.0
    %1275 = vmatmul.mubr.f32.gmra.mxu0 0.0
    %v1276 = vpop.f32.mrf.mxu0
    %v1277 = vadd.f32 0.0, %v1276
    %v1278 = vpop.f32.mrf.mxu0
    %v1279 = vadd.f32 0.0, %v1278
    %1280 = vdwg.mxu0
    %1281 = vmatprep.subr.mxu0 %v1140
    %1282 = vmatpush1.msra.mxu0 %v1139
    %1283 = vmatprep.subr.mxu0 %v1136
    %1284 = vmatpush1.msra.mxu0 %v1135
    %1285 = vmatprep.subr.mxu0 %v1132
    %1286 = vmatpush1.msra.mxu0 %v1131
    %1287 = vmatprep.subr.mxu0 %v1128
    %1288 = vmatpush1.msra.mxu0 %v1127
    %1289 = vmatprep.subr.mxu0 %v1124
    %1290 = vmatpush1.msra.mxu0 %v1123
    %1291 = vmatprep.subr.mxu0 %v1120
    %1292 = vmatpush1.msra.mxu0 %v1119
    %1293 = vmatprep.subr.mxu0 %v1116
    %1294 = vmatpush1.msra.mxu0 %v1115
    %1295 = vmatprep.subr.mxu0 %v1112
    %1296 = vmatpush1.msra.mxu0 %v1111
    %1297 = vmatprep.subr.mxu0 %v1108
    %1298 = vmatpush1.msra.mxu0 %v1107
    %1299 = vmatprep.subr.mxu0 %v1104
    %1300 = vmatpush1.msra.mxu0 %v1103
    %1301 = vmatprep.subr.mxu0 %v1100
    %1302 = vmatpush1.msra.mxu0 %v1099
    %1303 = vmatprep.subr.mxu0 %v1096
    %1304 = vmatpush1.msra.mxu0 %v1095
    %1305 = vmatprep.subr.mxu0 %v1092
    %1306 = vmatpush1.msra.mxu0 %v1091
    %1307 = vmatprep.subr.mxu0 %v1088
    %1308 = vmatpush1.msra.mxu0 %v1087
    %1309 = vmatprep.subr.mxu0 %v1084
    %1310 = vmatpush1.msra.mxu0 %v1083
    %1311 = vmatprep.subr.mxu0 %v1080
    %1312 = vmatpush1.msra.mxu0 %v1079
    %1313 = vmatprep.subr.mxu0 0.0
    %1314 = vmatpush2.msra.mxu0 0.0
    %1315 = vmatprep.subr.mxu0 0.0
    %1316 = vmatpush2.msra.mxu0 0.0
    %1317 = vmatprep.subr.mxu0 0.0
    %1318 = vmatpush2.msra.mxu0 0.0
    %1319 = vmatprep.subr.mxu0 0.0
    %1320 = vmatpush2.msra.mxu0 0.0
    %1321 = vmatprep.subr.mxu0 0.0
    %1322 = vmatpush2.msra.mxu0 0.0
    %1323 = vmatprep.subr.mxu0 0.0
    %1324 = vmatpush2.msra.mxu0 0.0
    %1325 = vmatprep.subr.mxu0 0.0
    %1326 = vmatpush2.msra.mxu0 0.0
    %1327 = vmatprep.subr.mxu0 0.0
    %1328 = vmatpush2.msra.mxu0 0.0
    %1329 = vmatprep.subr.mxu0 0.0
    %1330 = vmatpush2.msra.mxu0 0.0
    %1331 = vmatprep.subr.mxu0 0.0
    %1332 = vmatpush2.msra.mxu0 0.0
    %1333 = vmatprep.subr.mxu0 0.0
    %1334 = vmatpush2.msra.mxu0 0.0
    %1335 = vmatprep.subr.mxu0 0.0
    %1336 = vmatpush2.msra.mxu0 0.0
    %1337 = vmatprep.subr.mxu0 0.0
    %1338 = vmatpush2.msra.mxu0 0.0
    %1339 = vmatprep.subr.mxu0 0.0
    %1340 = vmatpush2.msra.mxu0 0.0
    %1341 = vmatprep.subr.mxu0 0.0
    %1342 = vmatpush2.msra.mxu0 0.0
    %1343 = vmatprep.subr.mxu0 0.0
    %1344 = vmatpush2.msra.mxu0 0.0
    %1345 = vmatprep.mubr.f32.mxu0 0.0
    %1346 = vmatmul.mubr.f32.gmra.mxu0 0.0
    %v1347 = vpop.f32.mrf.mxu0
    %v1348 = vadd.f32 0.0, %v1347
    %v1349 = vpop.f32.mrf.mxu0
    %v1350 = vadd.f32 0.0, %v1349
    %1351 = vdwg.mxu0
    %v1352 = vadd.f32 %v1206, %v1277
    %v1353 = vadd.f32 %v1207, %v1279
    %v1354 = vadd.f32 %v1208, %v1348
    %v1355 = vadd.f32 %v1209, %v1350
    %v1356 = vld [vmem:[#allocation3 + $0x1e0] sm:$0xff]
    %v1357 = vld [vmem:[#allocation3 + $0x1e8] sm:$0xff]
    %v1358 = vld [vmem:[#allocation3 + $0x1f0] sm:$0xff]
    %v1359 = vld [vmem:[#allocation3 + $0x1f8] sm:$0xff]
    %1360 = vmatprep.subr.mxu0 %v1203
    %1361 = vmatpush1.msra.mxu0 %v1202
    %1362 = vmatprep.subr.mxu0 %v1199
    %1363 = vmatpush1.msra.mxu0 %v1198
    %1364 = vmatprep.subr.mxu0 %v1195
    %1365 = vmatpush1.msra.mxu0 %v1194
    %1366 = vmatprep.subr.mxu0 %v1191
    %1367 = vmatpush1.msra.mxu0 %v1190
    %1368 = vmatprep.subr.mxu0 %v1187
    %1369 = vmatpush1.msra.mxu0 %v1186
    %1370 = vmatprep.subr.mxu0 %v1183
    %1371 = vmatpush1.msra.mxu0 %v1182
    %1372 = vmatprep.subr.mxu0 %v1179
    %1373 = vmatpush1.msra.mxu0 %v1178
    %1374 = vmatprep.subr.mxu0 %v1175
    %1375 = vmatpush1.msra.mxu0 %v1174
    %1376 = vmatprep.subr.mxu0 %v1171
    %1377 = vmatpush1.msra.mxu0 %v1170
    %1378 = vmatprep.subr.mxu0 %v1167
    %1379 = vmatpush1.msra.mxu0 %v1166
    %1380 = vmatprep.subr.mxu0 %v1163
    %1381 = vmatpush1.msra.mxu0 %v1162
    %1382 = vmatprep.subr.mxu0 %v1159
    %1383 = vmatpush1.msra.mxu0 %v1158
    %1384 = vmatprep.subr.mxu0 %v1155
    %1385 = vmatpush1.msra.mxu0 %v1154
    %1386 = vmatprep.subr.mxu0 %v1151
    %1387 = vmatpush1.msra.mxu0 %v1150
    %1388 = vmatprep.subr.mxu0 %v1147
    %1389 = vmatpush1.msra.mxu0 %v1146
    %1390 = vmatprep.subr.mxu0 %v1143
    %1391 = vmatpush1.msra.mxu0 %v1142
    %1392 = vmatprep.subr.mxu0 0.0
    %1393 = vmatpush2.msra.mxu0 0.0
    %1394 = vmatprep.subr.mxu0 0.0
    %1395 = vmatpush2.msra.mxu0 0.0
    %1396 = vmatprep.subr.mxu0 0.0
    %1397 = vmatpush2.msra.mxu0 0.0
    %1398 = vmatprep.subr.mxu0 0.0
    %1399 = vmatpush2.msra.mxu0 0.0
    %1400 = vmatprep.subr.mxu0 0.0
    %1401 = vmatpush2.msra.mxu0 0.0
    %1402 = vmatprep.subr.mxu0 0.0
    %1403 = vmatpush2.msra.mxu0 0.0
    %1404 = vmatprep.subr.mxu0 0.0
    %1405 = vmatpush2.msra.mxu0 0.0
    %1406 = vmatprep.subr.mxu0 0.0
    %1407 = vmatpush2.msra.mxu0 0.0
    %1408 = vmatprep.subr.mxu0 0.0
    %1409 = vmatpush2.msra.mxu0 0.0
    %1410 = vmatprep.subr.mxu0 0.0
    %1411 = vmatpush2.msra.mxu0 0.0
    %1412 = vmatprep.subr.mxu0 0.0
    %1413 = vmatpush2.msra.mxu0 0.0
    %1414 = vmatprep.subr.mxu0 0.0
    %1415 = vmatpush2.msra.mxu0 0.0
    %1416 = vmatprep.subr.mxu0 0.0
    %1417 = vmatpush2.msra.mxu0 0.0
    %1418 = vmatprep.subr.mxu0 0.0
    %1419 = vmatpush2.msra.mxu0 0.0
    %1420 = vmatprep.subr.mxu0 0.0
    %1421 = vmatpush2.msra.mxu0 0.0
    %1422 = vmatprep.subr.mxu0 0.0
    %1423 = vmatpush2.msra.mxu0 0.0
    %1424 = vmatprep.mubr.f32.mxu0 0.0
    %1425 = vmatmul.mubr.f32.gmra.mxu0 0.0
    %v1426 = vpop.f32.mrf.mxu0
    %v1427 = vadd.f32 0.0, %v1426
    %v1428 = vpop.f32.mrf.mxu0
    %v1429 = vadd.f32 0.0, %v1428
    %1430 = vdwg.mxu0
    %1431 = vmatprep.subr.mxu0 %v1205
    %1432 = vmatpush1.msra.mxu0 %v1204
    %1433 = vmatprep.subr.mxu0 %v1201
    %1434 = vmatpush1.msra.mxu0 %v1200
    %1435 = vmatprep.subr.mxu0 %v1197
    %1436 = vmatpush1.msra.mxu0 %v1196
    %1437 = vmatprep.subr.mxu0 %v1193
    %1438 = vmatpush1.msra.mxu0 %v1192
    %1439 = vmatprep.subr.mxu0 %v1189
    %1440 = vmatpush1.msra.mxu0 %v1188
    %1441 = vmatprep.subr.mxu0 %v1185
    %1442 = vmatpush1.msra.mxu0 %v1184
    %1443 = vmatprep.subr.mxu0 %v1181
    %1444 = vmatpush1.msra.mxu0 %v1180
    %1445 = vmatprep.subr.mxu0 %v1177
    %1446 = vmatpush1.msra.mxu0 %v1176
    %1447 = vmatprep.subr.mxu0 %v1173
    %1448 = vmatpush1.msra.mxu0 %v1172
    %1449 = vmatprep.subr.mxu0 %v1169
    %1450 = vmatpush1.msra.mxu0 %v1168
    %1451 = vmatprep.subr.mxu0 %v1165
    %1452 = vmatpush1.msra.mxu0 %v1164
    %1453 = vmatprep.subr.mxu0 %v1161
    %1454 = vmatpush1.msra.mxu0 %v1160
    %1455 = vmatprep.subr.mxu0 %v1157
    %1456 = vmatpush1.msra.mxu0 %v1156
    %1457 = vmatprep.subr.mxu0 %v1153
    %1458 = vmatpush1.msra.mxu0 %v1152
    %1459 = vmatprep.subr.mxu0 %v1149
    %1460 = vmatpush1.msra.mxu0 %v1148
    %1461 = vmatprep.subr.mxu0 %v1145
    %1462 = vmatpush1.msra.mxu0 %v1144
    %1463 = vmatprep.subr.mxu0 0.0
    %1464 = vmatpush2.msra.mxu0 0.0
    %1465 = vmatprep.subr.mxu0 0.0
    %1466 = vmatpush2.msra.mxu0 0.0
    %1467 = vmatprep.subr.mxu0 0.0
    %1468 = vmatpush2.msra.mxu0 0.0
    %1469 = vmatprep.subr.mxu0 0.0
    %1470 = vmatpush2.msra.mxu0 0.0
    %1471 = vmatprep.subr.mxu0 0.0
    %1472 = vmatpush2.msra.mxu0 0.0
    %1473 = vmatprep.subr.mxu0 0.0
    %1474 = vmatpush2.msra.mxu0 0.0
    %1475 = vmatprep.subr.mxu0 0.0
    %1476 = vmatpush2.msra.mxu0 0.0
    %1477 = vmatprep.subr.mxu0 0.0
    %1478 = vmatpush2.msra.mxu0 0.0
    %1479 = vmatprep.subr.mxu0 0.0
    %1480 = vmatpush2.msra.mxu0 0.0
    %1481 = vmatprep.subr.mxu0 0.0
    %1482 = vmatpush2.msra.mxu0 0.0
    %1483 = vmatprep.subr.mxu0 0.0
    %1484 = vmatpush2.msra.mxu0 0.0
    %1485 = vmatprep.subr.mxu0 0.0
    %1486 = vmatpush2.msra.mxu0 0.0
    %1487 = vmatprep.subr.mxu0 0.0
    %1488 = vmatpush2.msra.mxu0 0.0
    %1489 = vmatprep.subr.mxu0 0.0
    %1490 = vmatpush2.msra.mxu0 0.0
    %1491 = vmatprep.subr.mxu0 0.0
    %1492 = vmatpush2.msra.mxu0 0.0
    %1493 = vmatprep.subr.mxu0 0.0
    %1494 = vmatpush2.msra.mxu0 0.0
    %1495 = vmatprep.mubr.f32.mxu0 0.0
    %1496 = vmatmul.mubr.f32.gmra.mxu0 0.0
    %v1497 = vpop.f32.mrf.mxu0
    %v1498 = vadd.f32 0.0, %v1497
    %v1499 = vpop.f32.mrf.mxu0
    %v1500 = vadd.f32 0.0, %v1499
    %1501 = vdwg.mxu0
    %v1502 = vadd.f32 %v1356, %v1427
    %v1503 = vadd.f32 %v1357, %v1429
    %v1504 = vadd.f32 %v1358, %v1498
    %v1505 = vadd.f32 %v1359, %v1500
    %v1506 = vxor.u32 %v1352, 2147483648
    %v1507 = vmul.f32 %v1506, 1.442695
    %v1508 = vpow.pop %v1507
    %v1509 = vadd.f32 %v1508, 1.0
    %v1510 = vrcp.pop %v1509
    %v1511 = vmul.f32 1.0, %v1510
    %v1512 = vxor.u32 %v1353, 2147483648
    %v1513 = vmul.f32 %v1512, 1.442695
    %v1514 = vpow.pop %v1513
    %v1515 = vadd.f32 %v1514, 1.0
    %v1516 = vrcp.pop %v1515
    %v1517 = vmul.f32 1.0, %v1516
    %v1518 = vtanh.pop %v1354
    %v1519 = vxor.u32 %v1355, 2147483648
    %v1520 = vmul.f32 %v1519, 1.442695
    %v1521 = vpow.pop %v1520
    %v1522 = vadd.f32 %v1521, 1.0
    %v1523 = vrcp.pop %v1522
    %v1524 = vmul.f32 1.0, %v1523
    %v1525 = vmul.f32 %v1517, 0.0
    %v1526 = vmul.f32 %v1511, %v1518
    %v1527 = vadd.f32 %v1525, %v1526
    %v1528 = vtanh.pop %v1527
    %v1529 = vmul.f32 %v1524, %v1528
    %v1530 = vxor.u32 %v1502, 2147483648
    %v1531 = vmul.f32 %v1530, 1.442695
    %v1532 = vpow.pop %v1531
    %v1533 = vadd.f32 %v1532, 1.0
    %v1534 = vrcp.pop %v1533
    %v1535 = vmul.f32 1.0, %v1534
    %v1536 = vxor.u32 %v1503, 2147483648
    %v1537 = vmul.f32 %v1536, 1.442695
    %v1538 = vpow.pop %v1537
    %v1539 = vadd.f32 %v1538, 1.0
    %v1540 = vrcp.pop %v1539
    %v1541 = vmul.f32 1.0, %v1540
    %v1542 = vtanh.pop %v1504
    %v1543 = vxor.u32 %v1505, 2147483648
    %v1544 = vmul.f32 %v1543, 1.442695
    %v1545 = vpow.pop %v1544
    %v1546 = vadd.f32 %v1545, 1.0
    %v1547 = vrcp.pop %v1546
    %v1548 = vmul.f32 1.0, %v1547
    %v1549 = vmul.f32 %v1541, 0.0
    %v1550 = vmul.f32 %v1535, %v1542
    %v1551 = vadd.f32 %v1549, %v1550
    %v1552 = vtanh.pop %v1551
    %v1553 = vmul.f32 %v1548, %v1552
    %1554 = vst [vmem:[#allocation2] sm:$0xff] %v1529
    %1555 = vst [vmem:[#allocation2 + $0x78] sm:$0xff] %v1553
    %v1556 = vld [vmem:[#allocation3 + $0x40] sm:$0xff]
    %v1557 = vld [vmem:[#allocation3 + $0x48] sm:$0xff]
    %v1558 = vld [vmem:[#allocation3 + $0x50] sm:$0xff]
    %v1559 = vld [vmem:[#allocation3 + $0x58] sm:$0xff]
    %1560 = vmatprep.subr.mxu0 %v1138
    %1561 = vmatpush1.msra.mxu0 %v1137
    %1562 = vmatprep.subr.mxu0 %v1134
    %1563 = vmatpush1.msra.mxu0 %v1133
    %1564 = vmatprep.subr.mxu0 %v1130
    %1565 = vmatpush1.msra.mxu0 %v1129
    %1566 = vmatprep.subr.mxu0 %v1126
    %1567 = vmatpush1.msra.mxu0 %v1125
    %1568 = vmatprep.subr.mxu0 %v1122
    %1569 = vmatpush1.msra.mxu0 %v1121
    %1570 = vmatprep.subr.mxu0 %v1118
    %1571 = vmatpush1.msra.mxu0 %v1117
    %1572 = vmatprep.subr.mxu0 %v1114
    %1573 = vmatpush1.msra.mxu0 %v1113
    %1574 = vmatprep.subr.mxu0 %v1110
    %1575 = vmatpush1.msra.mxu0 %v1109
    %1576 = vmatprep.subr.mxu0 %v1106
    %1577 = vmatpush1.msra.mxu0 %v1105
    %1578 = vmatprep.subr.mxu0 %v1102
    %1579 = vmatpush1.msra.mxu0 %v1101
    %1580 = vmatprep.subr.mxu0 %v1098
    %1581 = vmatpush1.msra.mxu0 %v1097
    %1582 = vmatprep.subr.mxu0 %v1094
    %1583 = vmatpush1.msra.mxu0 %v1093
    %1584 = vmatprep.subr.mxu0 %v1090
    %1585 = vmatpush1.msra.mxu0 %v1089
    %1586 = vmatprep.subr.mxu0 %v1086
    %1587 = vmatpush1.msra.mxu0 %v1085
    %1588 = vmatprep.subr.mxu0 %v1082
    %1589 = vmatpush1.msra.mxu0 %v1081
    %1590 = vmatprep.subr.mxu0 %v1078
    %1591 = vmatpush1.msra.mxu0 %v1077
    %1592 = vmatprep.subr.mxu0 0.0
    %1593 = vmatpush2.msra.mxu0 0.0
    %1594 = vmatprep.subr.mxu0 0.0
    %1595 = vmatpush2.msra.mxu0 0.0
    %1596 = vmatprep.subr.mxu0 0.0
    %1597 = vmatpush2.msra.mxu0 0.0
    %1598 = vmatprep.subr.mxu0 0.0
    %1599 = vmatpush2.msra.mxu0 0.0
    %1600 = vmatprep.subr.mxu0 0.0
    %1601 = vmatpush2.msra.mxu0 0.0
    %1602 = vmatprep.subr.mxu0 0.0
    %1603 = vmatpush2.msra.mxu0 0.0
    %1604 = vmatprep.subr.mxu0 0.0
    %1605 = vmatpush2.msra.mxu0 0.0
    %1606 = vmatprep.subr.mxu0 0.0
    %1607 = vmatpush2.msra.mxu0 0.0
    %1608 = vmatprep.subr.mxu0 0.0
    %1609 = vmatpush2.msra.mxu0 0.0
    %1610 = vmatprep.subr.mxu0 0.0
    %1611 = vmatpush2.msra.mxu0 0.0
    %1612 = vmatprep.subr.mxu0 0.0
    %1613 = vmatpush2.msra.mxu0 0.0
    %1614 = vmatprep.subr.mxu0 0.0
    %1615 = vmatpush2.msra.mxu0 0.0
    %1616 = vmatprep.subr.mxu0 0.0
    %1617 = vmatpush2.msra.mxu0 0.0
    %1618 = vmatprep.subr.mxu0 0.0
    %1619 = vmatpush2.msra.mxu0 0.0
    %1620 = vmatprep.subr.mxu0 0.0
    %1621 = vmatpush2.msra.mxu0 0.0
    %1622 = vmatprep.subr.mxu0 0.0
    %1623 = vmatpush2.msra.mxu0 0.0
    %1624 = vmatprep.mubr.f32.mxu0 0.0
    %1625 = vmatmul.mubr.f32.gmra.mxu0 %v1529
    %v1626 = vpop.f32.mrf.mxu0
    %v1627 = vadd.f32 0.0, %v1626
    %v1628 = vpop.f32.mrf.mxu0
    %v1629 = vadd.f32 0.0, %v1628
    %1630 = vdwg.mxu0
    %1631 = vmatprep.subr.mxu0 %v1140
    %1632 = vmatpush1.msra.mxu0 %v1139
    %1633 = vmatprep.subr.mxu0 %v1136
    %1634 = vmatpush1.msra.mxu0 %v1135
    %1635 = vmatprep.subr.mxu0 %v1132
    %1636 = vmatpush1.msra.mxu0 %v1131
    %1637 = vmatprep.subr.mxu0 %v1128
    %1638 = vmatpush1.msra.mxu0 %v1127
    %1639 = vmatprep.subr.mxu0 %v1124
    %1640 = vmatpush1.msra.mxu0 %v1123
    %1641 = vmatprep.subr.mxu0 %v1120
    %1642 = vmatpush1.msra.mxu0 %v1119
    %1643 = vmatprep.subr.mxu0 %v1116
    %1644 = vmatpush1.msra.mxu0 %v1115
    %1645 = vmatprep.subr.mxu0 %v1112
    %1646 = vmatpush1.msra.mxu0 %v1111
    %1647 = vmatprep.subr.mxu0 %v1108
    %1648 = vmatpush1.msra.mxu0 %v1107
    %1649 = vmatprep.subr.mxu0 %v1104
    %1650 = vmatpush1.msra.mxu0 %v1103
    %1651 = vmatprep.subr.mxu0 %v1100
    %1652 = vmatpush1.msra.mxu0 %v1099
    %1653 = vmatprep.subr.mxu0 %v1096
    %1654 = vmatpush1.msra.mxu0 %v1095
    %1655 = vmatprep.subr.mxu0 %v1092
    %1656 = vmatpush1.msra.mxu0 %v1091
    %1657 = vmatprep.subr.mxu0 %v1088
    %1658 = vmatpush1.msra.mxu0 %v1087
    %1659 = vmatprep.subr.mxu0 %v1084
    %1660 = vmatpush1.msra.mxu0 %v1083
    %1661 = vmatprep.subr.mxu0 %v1080
    %1662 = vmatpush1.msra.mxu0 %v1079
    %1663 = vmatprep.subr.mxu0 0.0
    %1664 = vmatpush2.msra.mxu0 0.0
    %1665 = vmatprep.subr.mxu0 0.0
    %1666 = vmatpush2.msra.mxu0 0.0
    %1667 = vmatprep.subr.mxu0 0.0
    %1668 = vmatpush2.msra.mxu0 0.0
    %1669 = vmatprep.subr.mxu0 0.0
    %1670 = vmatpush2.msra.mxu0 0.0
    %1671 = vmatprep.subr.mxu0 0.0
    %1672 = vmatpush2.msra.mxu0 0.0
    %1673 = vmatprep.subr.mxu0 0.0
    %1674 = vmatpush2.msra.mxu0 0.0
    %1675 = vmatprep.subr.mxu0 0.0
    %1676 = vmatpush2.msra.mxu0 0.0
    %1677 = vmatprep.subr.mxu0 0.0
    %1678 = vmatpush2.msra.mxu0 0.0
    %1679 = vmatprep.subr.mxu0 0.0
    %1680 = vmatpush2.msra.mxu0 0.0
    %1681 = vmatprep.subr.mxu0 0.0
    %1682 = vmatpush2.msra.mxu0 0.0
    %1683 = vmatprep.subr.mxu0 0.0
    %1684 = vmatpush2.msra.mxu0 0.0
    %1685 = vmatprep.subr.mxu0 0.0
    %1686 = vmatpush2.msra.mxu0 0.0
    %1687 = vmatprep.subr.mxu0 0.0
    %1688 = vmatpush2.msra.mxu0 0.0
    %1689 = vmatprep.subr.mxu0 0.0
    %1690 = vmatpush2.msra.mxu0 0.0
    %1691 = vmatprep.subr.mxu0 0.0
    %1692 = vmatpush2.msra.mxu0 0.0
    %1693 = vmatprep.subr.mxu0 0.0
    %1694 = vmatpush2.msra.mxu0 0.0
    %1695 = vmatprep.mubr.f32.mxu0 0.0
    %1696 = vmatmul.mubr.f32.gmra.mxu0 %v1529
    %v1697 = vpop.f32.mrf.mxu0
    %v1698 = vadd.f32 0.0, %v1697
    %v1699 = vpop.f32.mrf.mxu0
    %v1700 = vadd.f32 0.0, %v1699
    %1701 = vdwg.mxu0
    %v1702 = vadd.f32 %v1556, %v1627
    %v1703 = vadd.f32 %v1557, %v1629
    %v1704 = vadd.f32 %v1558, %v1698
    %v1705 = vadd.f32 %v1559, %v1700
    %v1706 = vld [vmem:[#allocation3 + $0x1a0] sm:$0xff]
    %v1707 = vld [vmem:[#allocation3 + $0x1a8] sm:$0xff]
    %v1708 = vld [vmem:[#allocation3 + $0x1b0] sm:$0xff]
    %v1709 = vld [vmem:[#allocation3 + $0x1b8] sm:$0xff]
    %1710 = vmatprep.subr.mxu0 %v1203
    %1711 = vmatpush1.msra.mxu0 %v1202
    %1712 = vmatprep.subr.mxu0 %v1199
    %1713 = vmatpush1.msra.mxu0 %v1198
    %1714 = vmatprep.subr.mxu0 %v1195
    %1715 = vmatpush1.msra.mxu0 %v1194
    %1716 = vmatprep.subr.mxu0 %v1191
    %1717 = vmatpush1.msra.mxu0 %v1190
    %1718 = vmatprep.subr.mxu0 %v1187
    %1719 = vmatpush1.msra.mxu0 %v1186
    %1720 = vmatprep.subr.mxu0 %v1183
    %1721 = vmatpush1.msra.mxu0 %v1182
    %1722 = vmatprep.subr.mxu0 %v1179
    %1723 = vmatpush1.msra.mxu0 %v1178
    %1724 = vmatprep.subr.mxu0 %v1175
    %1725 = vmatpush1.msra.mxu0 %v1174
    %1726 = vmatprep.subr.mxu0 %v1171
    %1727 = vmatpush1.msra.mxu0 %v1170
    %1728 = vmatprep.subr.mxu0 %v1167
    %1729 = vmatpush1.msra.mxu0 %v1166
    %1730 = vmatprep.subr.mxu0 %v1163
    %1731 = vmatpush1.msra.mxu0 %v1162
    %1732 = vmatprep.subr.mxu0 %v1159
    %1733 = vmatpush1.msra.mxu0 %v1158
    %1734 = vmatprep.subr.mxu0 %v1155
    %1735 = vmatpush1.msra.mxu0 %v1154
    %1736 = vmatprep.subr.mxu0 %v1151
    %1737 = vmatpush1.msra.mxu0 %v1150
    %1738 = vmatprep.subr.mxu0 %v1147
    %1739 = vmatpush1.msra.mxu0 %v1146
    %1740 = vmatprep.subr.mxu0 %v1143
    %1741 = vmatpush1.msra.mxu0 %v1142
    %1742 = vmatprep.subr.mxu0 0.0
    %1743 = vmatpush2.msra.mxu0 0.0
    %1744 = vmatprep.subr.mxu0 0.0
    %1745 = vmatpush2.msra.mxu0 0.0
    %1746 = vmatprep.subr.mxu0 0.0
    %1747 = vmatpush2.msra.mxu0 0.0
    %1748 = vmatprep.subr.mxu0 0.0
    %1749 = vmatpush2.msra.mxu0 0.0
    %1750 = vmatprep.subr.mxu0 0.0
    %1751 = vmatpush2.msra.mxu0 0.0
    %1752 = vmatprep.subr.mxu0 0.0
    %1753 = vmatpush2.msra.mxu0 0.0
    %1754 = vmatprep.subr.mxu0 0.0
    %1755 = vmatpush2.msra.mxu0 0.0
    %1756 = vmatprep.subr.mxu0 0.0
    %1757 = vmatpush2.msra.mxu0 0.0
    %1758 = vmatprep.subr.mxu0 0.0
    %1759 = vmatpush2.msra.mxu0 0.0
    %1760 = vmatprep.subr.mxu0 0.0
    %1761 = vmatpush2.msra.mxu0 0.0
    %1762 = vmatprep.subr.mxu0 0.0
    %1763 = vmatpush2.msra.mxu0 0.0
    %1764 = vmatprep.subr.mxu0 0.0
    %1765 = vmatpush2.msra.mxu0 0.0
    %1766 = vmatprep.subr.mxu0 0.0
    %1767 = vmatpush2.msra.mxu0 0.0
    %1768 = vmatprep.subr.mxu0 0.0
    %1769 = vmatpush2.msra.mxu0 0.0
    %1770 = vmatprep.subr.mxu0 0.0
    %1771 = vmatpush2.msra.mxu0 0.0
    %1772 = vmatprep.subr.mxu0 0.0
    %1773 = vmatpush2.msra.mxu0 0.0
    %1774 = vmatprep.mubr.f32.mxu0 0.0
    %1775 = vmatmul.mubr.f32.gmra.mxu0 %v1553
    %v1776 = vpop.f32.mrf.mxu0
    %v1777 = vadd.f32 0.0, %v1776
    %v1778 = vpop.f32.mrf.mxu0
    %v1779 = vadd.f32 0.0, %v1778
    %1780 = vdwg.mxu0
    %1781 = vmatprep.subr.mxu0 %v1205
    %1782 = vmatpush1.msra.mxu0 %v1204
    %1783 = vmatprep.subr.mxu0 %v1201
    %1784 = vmatpush1.msra.mxu0 %v1200
    %1785 = vmatprep.subr.mxu0 %v1197
    %1786 = vmatpush1.msra.mxu0 %v1196
    %1787 = vmatprep.subr.mxu0 %v1193
    %1788 = vmatpush1.msra.mxu0 %v1192
    %1789 = vmatprep.subr.mxu0 %v1189
    %1790 = vmatpush1.msra.mxu0 %v1188
    %1791 = vmatprep.subr.mxu0 %v1185
    %1792 = vmatpush1.msra.mxu0 %v1184
    %1793 = vmatprep.subr.mxu0 %v1181
    %1794 = vmatpush1.msra.mxu0 %v1180
    %1795 = vmatprep.subr.mxu0 %v1177
    %1796 = vmatpush1.msra.mxu0 %v1176
    %1797 = vmatprep.subr.mxu0 %v1173
    %1798 = vmatpush1.msra.mxu0 %v1172
    %1799 = vmatprep.subr.mxu0 %v1169
    %1800 = vmatpush1.msra.mxu0 %v1168
    %1801 = vmatprep.subr.mxu0 %v1165
    %1802 = vmatpush1.msra.mxu0 %v1164
    %1803 = vmatprep.subr.mxu0 %v1161
    %1804 = vmatpush1.msra.mxu0 %v1160
    %1805 = vmatprep.subr.mxu0 %v1157
    %1806 = vmatpush1.msra.mxu0 %v1156
    %1807 = vmatprep.subr.mxu0 %v1153
    %1808 = vmatpush1.msra.mxu0 %v1152
    %1809 = vmatprep.subr.mxu0 %v1149
    %1810 = vmatpush1.msra.mxu0 %v1148
    %1811 = vmatprep.subr.mxu0 %v1145
    %1812 = vmatpush1.msra.mxu0 %v1144
    %1813 = vmatprep.subr.mxu0 0.0
    %1814 = vmatpush2.msra.mxu0 0.0
    %1815 = vmatprep.subr.mxu0 0.0
    %1816 = vmatpush2.msra.mxu0 0.0
    %1817 = vmatprep.subr.mxu0 0.0
    %1818 = vmatpush2.msra.mxu0 0.0
    %1819 = vmatprep.subr.mxu0 0.0
    %1820 = vmatpush2.msra.mxu0 0.0
    %1821 = vmatprep.subr.mxu0 0.0
    %1822 = vmatpush2.msra.mxu0 0.0
    %1823 = vmatprep.subr.mxu0 0.0
    %1824 = vmatpush2.msra.mxu0 0.0
    %1825 = vmatprep.subr.mxu0 0.0
    %1826 = vmatpush2.msra.mxu0 0.0
    %1827 = vmatprep.subr.mxu0 0.0
    %1828 = vmatpush2.msra.mxu0 0.0
    %1829 = vmatprep.subr.mxu0 0.0
    %1830 = vmatpush2.msra.mxu0 0.0
    %1831 = vmatprep.subr.mxu0 0.0
    %1832 = vmatpush2.msra.mxu0 0.0
    %1833 = vmatprep.subr.mxu0 0.0
    %1834 = vmatpush2.msra.mxu0 0.0
    %1835 = vmatprep.subr.mxu0 0.0
    %1836 = vmatpush2.msra.mxu0 0.0
    %1837 = vmatprep.subr.mxu0 0.0
    %1838 = vmatpush2.msra.mxu0 0.0
    %1839 = vmatprep.subr.mxu0 0.0
    %1840 = vmatpush2.msra.mxu0 0.0
    %1841 = vmatprep.subr.mxu0 0.0
    %1842 = vmatpush2.msra.mxu0 0.0
    %1843 = vmatprep.subr.mxu0 0.0
    %1844 = vmatpush2.msra.mxu0 0.0
    %1845 = vmatprep.mubr.f32.mxu0 0.0
    %1846 = vmatmul.mubr.f32.gmra.mxu0 %v1553
    %v1847 = vpop.f32.mrf.mxu0
    %v1848 = vadd.f32 0.0, %v1847
    %v1849 = vpop.f32.mrf.mxu0
    %v1850 = vadd.f32 0.0, %v1849
    %1851 = vdwg.mxu0
    %v1852 = vadd.f32 %v1706, %v1777
    %v1853 = vadd.f32 %v1707, %v1779
    %v1854 = vadd.f32 %v1708, %v1848
    %v1855 = vadd.f32 %v1709, %v1850
    %v1856 = vxor.u32 %v1702, 2147483648
    %v1857 = vmul.f32 %v1856, 1.442695
    %v1858 = vpow.pop %v1857
    %v1859 = vadd.f32 %v1858, 1.0
    %v1860 = vrcp.pop %v1859
    %v1861 = vmul.f32 1.0, %v1860
    %v1862 = vxor.u32 %v1703, 2147483648
    %v1863 = vmul.f32 %v1862, 1.442695
    %v1864 = vpow.pop %v1863
    %v1865 = vadd.f32 %v1864, 1.0
    %v1866 = vrcp.pop %v1865
    %v1867 = vmul.f32 1.0, %v1866
    %v1868 = vtanh.pop %v1704
    %v1869 = vxor.u32 %v1705, 2147483648
    %v1870 = vmul.f32 %v1869, 1.442695
    %v1871 = vpow.pop %v1870
    %v1872 = vadd.f32 %v1871, 1.0
    %v1873 = vrcp.pop %v1872
    %v1874 = vmul.f32 1.0, %v1873
    %v1875 = vmul.f32 %v1867, %v1527
    %v1876 = vmul.f32 %v1861, %v1868
    %v1877 = vadd.f32 %v1875, %v1876
    %v1878 = vtanh.pop %v1877
    %v1879 = vmul.f32 %v1874, %v1878
    %v1880 = vxor.u32 %v1852, 2147483648
    %v1881 = vmul.f32 %v1880, 1.442695
    %v1882 = vpow.pop %v1881
    %v1883 = vadd.f32 %v1882, 1.0
    %v1884 = vrcp.pop %v1883
    %v1885 = vmul.f32 1.0, %v1884
    %v1886 = vxor.u32 %v1853, 2147483648
    %v1887 = vmul.f32 %v1886, 1.442695
    %v1888 = vpow.pop %v1887
    %v1889 = vadd.f32 %v1888, 1.0
    %v1890 = vrcp.pop %v1889
    %v1891 = vmul.f32 1.0, %v1890
    %v1892 = vtanh.pop %v1854
    %v1893 = vxor.u32 %v1855, 2147483648
    %v1894 = vmul.f32 %v1893, 1.442695
    %v1895 = vpow.pop %v1894
    %v1896 = vadd.f32 %v1895, 1.0
    %v1897 = vrcp.pop %v1896
    %v1898 = vmul.f32 1.0, %v1897
    %v1899 = vmul.f32 %v1891, %v1551
    %v1900 = vmul.f32 %v1885, %v1892
    %v1901 = vadd.f32 %v1899, %v1900
    %v1902 = vtanh.pop %v1901
    %v1903 = vmul.f32 %v1898, %v1902
    %1904 = vst [vmem:[#allocation2 + $0x10] sm:$0xff] %v1879
    %1905 = vst [vmem:[#allocation2 + $0x68] sm:$0xff] %v1903
    %v1906 = vld [vmem:[#allocation3 + $0x80] sm:$0xff]
    %v1907 = vld [vmem:[#allocation3 + $0x88] sm:$0xff]
    %v1908 = vld [vmem:[#allocation3 + $0x90] sm:$0xff]
    %v1909 = vld [vmem:[#allocation3 + $0x98] sm:$0xff]
    %1910 = vmatprep.subr.mxu0 %v1138
    %1911 = vmatpush1.msra.mxu0 %v1137
    %1912 = vmatprep.subr.mxu0 %v1134
    %1913 = vmatpush1.msra.mxu0 %v1133
    %1914 = vmatprep.subr.mxu0 %v1130
    %1915 = vmatpush1.msra.mxu0 %v1129
    %1916 = vmatprep.subr.mxu0 %v1126
    %1917 = vmatpush1.msra.mxu0 %v1125
    %1918 = vmatprep.subr.mxu0 %v1122
    %1919 = vmatpush1.msra.mxu0 %v1121
    %1920 = vmatprep.subr.mxu0 %v1118
    %1921 = vmatpush1.msra.mxu0 %v1117
    %1922 = vmatprep.subr.mxu0 %v1114
    %1923 = vmatpush1.msra.mxu0 %v1113
    %1924 = vmatprep.subr.mxu0 %v1110
    %1925 = vmatpush1.msra.mxu0 %v1109
    %1926 = vmatprep.subr.mxu0 %v1106
    %1927 = vmatpush1.msra.mxu0 %v1105
    %1928 = vmatprep.subr.mxu0 %v1102
    %1929 = vmatpush1.msra.mxu0 %v1101
    %1930 = vmatprep.subr.mxu0 %v1098
    %1931 = vmatpush1.msra.mxu0 %v1097
    %1932 = vmatprep.subr.mxu0 %v1094
    %1933 = vmatpush1.msra.mxu0 %v1093
    %1934 = vmatprep.subr.mxu0 %v1090
    %1935 = vmatpush1.msra.mxu0 %v1089
    %1936 = vmatprep.subr.mxu0 %v1086
    %1937 = vmatpush1.msra.mxu0 %v1085
    %1938 = vmatprep.subr.mxu0 %v1082
    %1939 = vmatpush1.msra.mxu0 %v1081
    %1940 = vmatprep.subr.mxu0 %v1078
    %1941 = vmatpush1.msra.mxu0 %v1077
    %1942 = vmatprep.subr.mxu0 0.0
    %1943 = vmatpush2.msra.mxu0 0.0
    %1944 = vmatprep.subr.mxu0 0.0
    %1945 = vmatpush2.msra.mxu0 0.0
    %1946 = vmatprep.subr.mxu0 0.0
    %1947 = vmatpush2.msra.mxu0 0.0
    %1948 = vmatprep.subr.mxu0 0.0
    %1949 = vmatpush2.msra.mxu0 0.0
    %1950 = vmatprep.subr.mxu0 0.0
    %1951 = vmatpush2.msra.mxu0 0.0
    %1952 = vmatprep.subr.mxu0 0.0
    %1953 = vmatpush2.msra.mxu0 0.0
    %1954 = vmatprep.subr.mxu0 0.0
    %1955 = vmatpush2.msra.mxu0 0.0
    %1956 = vmatprep.subr.mxu0 0.0
    %1957 = vmatpush2.msra.mxu0 0.0
    %1958 = vmatprep.subr.mxu0 0.0
    %1959 = vmatpush2.msra.mxu0 0.0
    %1960 = vmatprep.subr.mxu0 0.0
    %1961 = vmatpush2.msra.mxu0 0.0
    %1962 = vmatprep.subr.mxu0 0.0
    %1963 = vmatpush2.msra.mxu0 0.0
    %1964 = vmatprep.subr.mxu0 0.0
    %1965 = vmatpush2.msra.mxu0 0.0
    %1966 = vmatprep.subr.mxu0 0.0
    %1967 = vmatpush2.msra.mxu0 0.0
    %1968 = vmatprep.subr.mxu0 0.0
    %1969 = vmatpush2.msra.mxu0 0.0
    %1970 = vmatprep.subr.mxu0 0.0
    %1971 = vmatpush2.msra.mxu0 0.0
    %1972 = vmatprep.subr.mxu0 0.0
    %1973 = vmatpush2.msra.mxu0 0.0
    %1974 = vmatprep.mubr.f32.mxu0 0.0
    %1975 = vmatmul.mubr.f32.gmra.mxu0 %v1879
    %v1976 = vpop.f32.mrf.mxu0
    %v1977 = vadd.f32 0.0, %v1976
    %v1978 = vpop.f32.mrf.mxu0
    %v1979 = vadd.f32 0.0, %v1978
    %1980 = vdwg.mxu0
    %1981 = vmatprep.subr.mxu0 %v1140
    %1982 = vmatpush1.msra.mxu0 %v1139
    %1983 = vmatprep.subr.mxu0 %v1136
    %1984 = vmatpush1.msra.mxu0 %v1135
    %1985 = vmatprep.subr.mxu0 %v1132
    %1986 = vmatpush1.msra.mxu0 %v1131
    %1987 = vmatprep.subr.mxu0 %v1128
    %1988 = vmatpush1.msra.mxu0 %v1127
    %1989 = vmatprep.subr.mxu0 %v1124
    %1990 = vmatpush1.msra.mxu0 %v1123
    %1991 = vmatprep.subr.mxu0 %v1120
    %1992 = vmatpush1.msra.mxu0 %v1119
    %1993 = vmatprep.subr.mxu0 %v1116
    %1994 = vmatpush1.msra.mxu0 %v1115
    %1995 = vmatprep.subr.mxu0 %v1112
    %1996 = vmatpush1.msra.mxu0 %v1111
    %1997 = vmatprep.subr.mxu0 %v1108
    %1998 = vmatpush1.msra.mxu0 %v1107
    %1999 = vmatprep.subr.mxu0 %v1104
    %2000 = vmatpush1.msra.mxu0 %v1103
    %2001 = vmatprep.subr.mxu0 %v1100
    %2002 = vmatpush1.msra.mxu0 %v1099
    %2003 = vmatprep.subr.mxu0 %v1096
    %2004 = vmatpush1.msra.mxu0 %v1095
    %2005 = vmatprep.subr.mxu0 %v1092
    %2006 = vmatpush1.msra.mxu0 %v1091
    %2007 = vmatprep.subr.mxu0 %v1088
    %2008 = vmatpush1.msra.mxu0 %v1087
    %2009 = vmatprep.subr.mxu0 %v1084
    %2010 = vmatpush1.msra.mxu0 %v1083
    %2011 = vmatprep.subr.mxu0 %v1080
    %2012 = vmatpush1.msra.mxu0 %v1079
    %2013 = vmatprep.subr.mxu0 0.0
    %2014 = vmatpush2.msra.mxu0 0.0
    %2015 = vmatprep.subr.mxu0 0.0
    %2016 = vmatpush2.msra.mxu0 0.0
    %2017 = vmatprep.subr.mxu0 0.0
    %2018 = vmatpush2.msra.mxu0 0.0
    %2019 = vmatprep.subr.mxu0 0.0
    %2020 = vmatpush2.msra.mxu0 0.0
    %2021 = vmatprep.subr.mxu0 0.0
    %2022 = vmatpush2.msra.mxu0 0.0
    %2023 = vmatprep.subr.mxu0 0.0
    %2024 = vmatpush2.msra.mxu0 0.0
    %2025 = vmatprep.subr.mxu0 0.0
    %2026 = vmatpush2.msra.mxu0 0.0
    %2027 = vmatprep.subr.mxu0 0.0
    %2028 = vmatpush2.msra.mxu0 0.0
    %2029 = vmatprep.subr.mxu0 0.0
    %2030 = vmatpush2.msra.mxu0 0.0
    %2031 = vmatprep.subr.mxu0 0.0
    %2032 = vmatpush2.msra.mxu0 0.0
    %2033 = vmatprep.subr.mxu0 0.0
    %2034 = vmatpush2.msra.mxu0 0.0
    %2035 = vmatprep.subr.mxu0 0.0
    %2036 = vmatpush2.msra.mxu0 0.0
    %2037 = vmatprep.subr.mxu0 0.0
    %2038 = vmatpush2.msra.mxu0 0.0
    %2039 = vmatprep.subr.mxu0 0.0
    %2040 = vmatpush2.msra.mxu0 0.0
    %2041 = vmatprep.subr.mxu0 0.0
    %2042 = vmatpush2.msra.mxu0 0.0
    %2043 = vmatprep.subr.mxu0 0.0
    %2044 = vmatpush2.msra.mxu0 0.0
    %2045 = vmatprep.mubr.f32.mxu0 0.0
    %2046 = vmatmul.mubr.f32.gmra.mxu0 %v1879
    %v2047 = vpop.f32.mrf.mxu0
    %v2048 = vadd.f32 0.0, %v2047
    %v2049 = vpop.f32.mrf.mxu0
    %v2050 = vadd.f32 0.0, %v2049
    %2051 = vdwg.mxu0
    %v2052 = vadd.f32 %v1906, %v1977
    %v2053 = vadd.f32 %v1907, %v1979
    %v2054 = vadd.f32 %v1908, %v2048
    %v2055 = vadd.f32 %v1909, %v2050
    %v2056 = vld [vmem:[#allocation3 + $0x160] sm:$0xff]
    %v2057 = vld [vmem:[#allocation3 + $0x168] sm:$0xff]
    %v2058 = vld [vmem:[#allocation3 + $0x170] sm:$0xff]
    %v2059 = vld [vmem:[#allocation3 + $0x178] sm:$0xff]
    %2060 = vmatprep.subr.mxu0 %v1203
    %2061 = vmatpush1.msra.mxu0 %v1202
    %2062 = vmatprep.subr.mxu0 %v1199
    %2063 = vmatpush1.msra.mxu0 %v1198
    %2064 = vmatprep.subr.mxu0 %v1195
    %2065 = vmatpush1.msra.mxu0 %v1194
    %2066 = vmatprep.subr.mxu0 %v1191
    %2067 = vmatpush1.msra.mxu0 %v1190
    %2068 = vmatprep.subr.mxu0 %v1187
    %2069 = vmatpush1.msra.mxu0 %v1186
    %2070 = vmatprep.subr.mxu0 %v1183
    %2071 = vmatpush1.msra.mxu0 %v1182
    %2072 = vmatprep.subr.mxu0 %v1179
    %2073 = vmatpush1.msra.mxu0 %v1178
    %2074 = vmatprep.subr.mxu0 %v1175
    %2075 = vmatpush1.msra.mxu0 %v1174
    %2076 = vmatprep.subr.mxu0 %v1171
    %2077 = vmatpush1.msra.mxu0 %v1170
    %2078 = vmatprep.subr.mxu0 %v1167
    %2079 = vmatpush1.msra.mxu0 %v1166
    %2080 = vmatprep.subr.mxu0 %v1163
    %2081 = vmatpush1.msra.mxu0 %v1162
    %2082 = vmatprep.subr.mxu0 %v1159
    %2083 = vmatpush1.msra.mxu0 %v1158
    %2084 = vmatprep.subr.mxu0 %v1155
    %2085 = vmatpush1.msra.mxu0 %v1154
    %2086 = vmatprep.subr.mxu0 %v1151
    %2087 = vmatpush1.msra.mxu0 %v1150
    %2088 = vmatprep.subr.mxu0 %v1147
    %2089 = vmatpush1.msra.mxu0 %v1146
    %2090 = vmatprep.subr.mxu0 %v1143
    %2091 = vmatpush1.msra.mxu0 %v1142
    %2092 = vmatprep.subr.mxu0 0.0
    %2093 = vmatpush2.msra.mxu0 0.0
    %2094 = vmatprep.subr.mxu0 0.0
    %2095 = vmatpush2.msra.mxu0 0.0
    %2096 = vmatprep.subr.mxu0 0.0
    %2097 = vmatpush2.msra.mxu0 0.0
    %2098 = vmatprep.subr.mxu0 0.0
    %2099 = vmatpush2.msra.mxu0 0.0
    %2100 = vmatprep.subr.mxu0 0.0
    %2101 = vmatpush2.msra.mxu0 0.0
    %2102 = vmatprep.subr.mxu0 0.0
    %2103 = vmatpush2.msra.mxu0 0.0
    %2104 = vmatprep.subr.mxu0 0.0
    %2105 = vmatpush2.msra.mxu0 0.0
    %2106 = vmatprep.subr.mxu0 0.0
    %2107 = vmatpush2.msra.mxu0 0.0
    %2108 = vmatprep.subr.mxu0 0.0
    %2109 = vmatpush2.msra.mxu0 0.0
    %2110 = vmatprep.subr.mxu0 0.0
    %2111 = vmatpush2.msra.mxu0 0.0
    %2112 = vmatprep.subr.mxu0 0.0
    %2113 = vmatpush2.msra.mxu0 0.0
    %2114 = vmatprep.subr.mxu0 0.0
    %2115 = vmatpush2.msra.mxu0 0.0
    %2116 = vmatprep.subr.mxu0 0.0
    %2117 = vmatpush2.msra.mxu0 0.0
    %2118 = vmatprep.subr.mxu0 0.0
    %2119 = vmatpush2.msra.mxu0 0.0
    %2120 = vmatprep.subr.mxu0 0.0
    %2121 = vmatpush2.msra.mxu0 0.0
    %2122 = vmatprep.subr.mxu0 0.0
    %2123 = vmatpush2.msra.mxu0 0.0
    %2124 = vmatprep.mubr.f32.mxu0 0.0
    %2125 = vmatmul.mubr.f32.gmra.mxu0 %v1903
    %v2126 = vpop.f32.mrf.mxu0
    %v2127 = vadd.f32 0.0, %v2126
    %v2128 = vpop.f32.mrf.mxu0
    %v2129 = vadd.f32 0.0, %v2128
    %2130 = vdwg.mxu0
    %2131 = vmatprep.subr.mxu0 %v1205
    %2132 = vmatpush1.msra.mxu0 %v1204
    %2133 = vmatprep.subr.mxu0 %v1201
    %2134 = vmatpush1.msra.mxu0 %v1200
    %2135 = vmatprep.subr.mxu0 %v1197
    %2136 = vmatpush1.msra.mxu0 %v1196
    %2137 = vmatprep.subr.mxu0 %v1193
    %2138 = vmatpush1.msra.mxu0 %v1192
    %2139 = vmatprep.subr.mxu0 %v1189
    %2140 = vmatpush1.msra.mxu0 %v1188
    %2141 = vmatprep.subr.mxu0 %v1185
    %2142 = vmatpush1.msra.mxu0 %v1184
    %2143 = vmatprep.subr.mxu0 %v1181
    %2144 = vmatpush1.msra.mxu0 %v1180
    %2145 = vmatprep.subr.mxu0 %v1177
    %2146 = vmatpush1.msra.mxu0 %v1176
    %2147 = vmatprep.subr.mxu0 %v1173
    %2148 = vmatpush1.msra.mxu0 %v1172
    %2149 = vmatprep.subr.mxu0 %v1169
    %2150 = vmatpush1.msra.mxu0 %v1168
    %2151 = vmatprep.subr.mxu0 %v1165
    %2152 = vmatpush1.msra.mxu0 %v1164
    %2153 = vmatprep.subr.mxu0 %v1161
    %2154 = vmatpush1.msra.mxu0 %v1160
    %2155 = vmatprep.subr.mxu0 %v1157
    %2156 = vmatpush1.msra.mxu0 %v1156
    %2157 = vmatprep.subr.mxu0 %v1153
    %2158 = vmatpush1.msra.mxu0 %v1152
    %2159 = vmatprep.subr.mxu0 %v1149
    %2160 = vmatpush1.msra.mxu0 %v1148
    %2161 = vmatprep.subr.mxu0 %v1145
    %2162 = vmatpush1.msra.mxu0 %v1144
    %2163 = vmatprep.subr.mxu0 0.0
    %2164 = vmatpush2.msra.mxu0 0.0
    %2165 = vmatprep.subr.mxu0 0.0
    %2166 = vmatpush2.msra.mxu0 0.0
    %2167 = vmatprep.subr.mxu0 0.0
    %2168 = vmatpush2.msra.mxu0 0.0
    %2169 = vmatprep.subr.mxu0 0.0
    %2170 = vmatpush2.msra.mxu0 0.0
    %2171 = vmatprep.subr.mxu0 0.0
    %2172 = vmatpush2.msra.mxu0 0.0
    %2173 = vmatprep.subr.mxu0 0.0
    %2174 = vmatpush2.msra.mxu0 0.0
    %2175 = vmatprep.subr.mxu0 0.0
    %2176 = vmatpush2.msra.mxu0 0.0
    %2177 = vmatprep.subr.mxu0 0.0
    %2178 = vmatpush2.msra.mxu0 0.0
    %2179 = vmatprep.subr.mxu0 0.0
    %2180 = vmatpush2.msra.mxu0 0.0
    %2181 = vmatprep.subr.mxu0 0.0
    %2182 = vmatpush2.msra.mxu0 0.0
    %2183 = vmatprep.subr.mxu0 0.0
    %2184 = vmatpush2.msra.mxu0 0.0
    %2185 = vmatprep.subr.mxu0 0.0
    %2186 = vmatpush2.msra.mxu0 0.0
    %2187 = vmatprep.subr.mxu0 0.0
    %2188 = vmatpush2.msra.mxu0 0.0
    %2189 = vmatprep.subr.mxu0 0.0
    %2190 = vmatpush2.msra.mxu0 0.0
    %2191 = vmatprep.subr.mxu0 0.0
    %2192 = vmatpush2.msra.mxu0 0.0
    %2193 = vmatprep.subr.mxu0 0.0
    %2194 = vmatpush2.msra.mxu0 0.0
    %2195 = vmatprep.mubr.f32.mxu0 0.0
    %2196 = vmatmul.mubr.f32.gmra.mxu0 %v1903
    %v2197 = vpop.f32.mrf.mxu0
    %v2198 = vadd.f32 0.0, %v2197
    %v2199 = vpop.f32.mrf.mxu0
    %v2200 = vadd.f32 0.0, %v2199
    %2201 = vdwg.mxu0
    %v2202 = vadd.f32 %v2056, %v2127
    %v2203 = vadd.f32 %v2057, %v2129
    %v2204 = vadd.f32 %v2058, %v2198
    %v2205 = vadd.f32 %v2059, %v2200
    %v2206 = vxor.u32 %v2052, 2147483648
    %v2207 = vmul.f32 %v2206, 1.442695
    %v2208 = vpow.pop %v2207
    %v2209 = vadd.f32 %v2208, 1.0
    %v2210 = vrcp.pop %v2209
    %v2211 = vmul.f32 1.0, %v2210
    %v2212 = vxor.u32 %v2053, 2147483648
    %v2213 = vmul.f32 %v2212, 1.442695
    %v2214 = vpow.pop %v2213
    %v2215 = vadd.f32 %v2214, 1.0
    %v2216 = vrcp.pop %v2215
    %v2217 = vmul.f32 1.0, %v2216
    %v2218 = vtanh.pop %v2054
    %v2219 = vxor.u32 %v2055, 2147483648
    %v2220 = vmul.f32 %v2219, 1.442695
    %v2221 = vpow.pop %v2220
    %v2222 = vadd.f32 %v2221, 1.0
    %v2223 = vrcp.pop %v2222
    %v2224 = vmul.f32 1.0, %v2223
    %v2225 = vmul.f32 %v2217, %v1877
    %v2226 = vmul.f32 %v2211, %v2218
    %v2227 = vadd.f32 %v2225, %v2226
    %v2228 = vtanh.pop %v2227
    %v2229 = vmul.f32 %v2224, %v2228
    %v2230 = vxor.u32 %v2202, 2147483648
    %v2231 = vmul.f32 %v2230, 1.442695
    %v2232 = vpow.pop %v2231
    %v2233 = vadd.f32 %v2232, 1.0
    %v2234 = vrcp.pop %v2233
    %v2235 = vmul.f32 1.0, %v2234
    %v2236 = vxor.u32 %v2203, 2147483648
    %v2237 = vmul.f32 %v2236, 1.442695
    %v2238 = vpow.pop %v2237
    %v2239 = vadd.f32 %v2238, 1.0
    %v2240 = vrcp.pop %v2239
    %v2241 = vmul.f32 1.0, %v2240
    %v2242 = vtanh.pop %v2204
    %v2243 = vxor.u32 %v2205, 2147483648
    %v2244 = vmul.f32 %v2243, 1.442695
    %v2245 = vpow.pop %v2244
    %v2246 = vadd.f32 %v2245, 1.0
    %v2247 = vrcp.pop %v2246
    %v2248 = vmul.f32 1.0, %v2247
    %v2249 = vmul.f32 %v2241, %v1901
    %v2250 = vmul.f32 %v2235, %v2242
    %v2251 = vadd.f32 %v2249, %v2250
    %v2252 = vtanh.pop %v2251
    %v2253 = vmul.f32 %v2248, %v2252
    %2254 = vst [vmem:[#allocation2 + $0x20] sm:$0xff] %v2229
    %2255 = vst [vmem:[#allocation2 + $0x58] sm:$0xff] %v2253
    %v2256 = vld [vmem:[#allocation3 + $0xc0] sm:$0xff]
    %v2257 = vld [vmem:[#allocation3 + $0xc8] sm:$0xff]
    %v2258 = vld [vmem:[#allocation3 + $0xd0] sm:$0xff]
    %v2259 = vld [vmem:[#allocation3 + $0xd8] sm:$0xff]
    %2260 = vmatprep.subr.mxu0 %v1138
    %2261 = vmatpush1.msra.mxu0 %v1137
    %2262 = vmatprep.subr.mxu0 %v1134
    %2263 = vmatpush1.msra.mxu0 %v1133
    %2264 = vmatprep.subr.mxu0 %v1130
    %2265 = vmatpush1.msra.mxu0 %v1129
    %2266 = vmatprep.subr.mxu0 %v1126
    %2267 = vmatpush1.msra.mxu0 %v1125
    %2268 = vmatprep.subr.mxu0 %v1122
    %2269 = vmatpush1.msra.mxu0 %v1121
    %2270 = vmatprep.subr.mxu0 %v1118
    %2271 = vmatpush1.msra.mxu0 %v1117
    %2272 = vmatprep.subr.mxu0 %v1114
    %2273 = vmatpush1.msra.mxu0 %v1113
    %2274 = vmatprep.subr.mxu0 %v1110
    %2275 = vmatpush1.msra.mxu0 %v1109
    %2276 = vmatprep.subr.mxu0 %v1106
    %2277 = vmatpush1.msra.mxu0 %v1105
    %2278 = vmatprep.subr.mxu0 %v1102
    %2279 = vmatpush1.msra.mxu0 %v1101
    %2280 = vmatprep.subr.mxu0 %v1098
    %2281 = vmatpush1.msra.mxu0 %v1097
    %2282 = vmatprep.subr.mxu0 %v1094
    %2283 = vmatpush1.msra.mxu0 %v1093
    %2284 = vmatprep.subr.mxu0 %v1090
    %2285 = vmatpush1.msra.mxu0 %v1089
    %2286 = vmatprep.subr.mxu0 %v1086
    %2287 = vmatpush1.msra.mxu0 %v1085
    %2288 = vmatprep.subr.mxu0 %v1082
    %2289 = vmatpush1.msra.mxu0 %v1081
    %2290 = vmatprep.subr.mxu0 %v1078
    %2291 = vmatpush1.msra.mxu0 %v1077
    %2292 = vmatprep.subr.mxu0 0.0
    %2293 = vmatpush2.msra.mxu0 0.0
    %2294 = vmatprep.subr.mxu0 0.0
    %2295 = vmatpush2.msra.mxu0 0.0
    %2296 = vmatprep.subr.mxu0 0.0
    %2297 = vmatpush2.msra.mxu0 0.0
    %2298 = vmatprep.subr.mxu0 0.0
    %2299 = vmatpush2.msra.mxu0 0.0
    %2300 = vmatprep.subr.mxu0 0.0
    %2301 = vmatpush2.msra.mxu0 0.0
    %2302 = vmatprep.subr.mxu0 0.0
    %2303 = vmatpush2.msra.mxu0 0.0
    %2304 = vmatprep.subr.mxu0 0.0
    %2305 = vmatpush2.msra.mxu0 0.0
    %2306 = vmatprep.subr.mxu0 0.0
    %2307 = vmatpush2.msra.mxu0 0.0
    %2308 = vmatprep.subr.mxu0 0.0
    %2309 = vmatpush2.msra.mxu0 0.0
    %2310 = vmatprep.subr.mxu0 0.0
    %2311 = vmatpush2.msra.mxu0 0.0
    %2312 = vmatprep.subr.mxu0 0.0
    %2313 = vmatpush2.msra.mxu0 0.0
    %2314 = vmatprep.subr.mxu0 0.0
    %2315 = vmatpush2.msra.mxu0 0.0
    %2316 = vmatprep.subr.mxu0 0.0
    %2317 = vmatpush2.msra.mxu0 0.0
    %2318 = vmatprep.subr.mxu0 0.0
    %2319 = vmatpush2.msra.mxu0 0.0
    %2320 = vmatprep.subr.mxu0 0.0
    %2321 = vmatpush2.msra.mxu0 0.0
    %2322 = vmatprep.subr.mxu0 0.0
    %2323 = vmatpush2.msra.mxu0 0.0
    %2324 = vmatprep.mubr.f32.mxu0 0.0
    %2325 = vmatmul.mubr.f32.gmra.mxu0 %v2229
    %v2326 = vpop.f32.mrf.mxu0
    %v2327 = vadd.f32 0.0, %v2326
    %v2328 = vpop.f32.mrf.mxu0
    %v2329 = vadd.f32 0.0, %v2328
    %2330 = vdwg.mxu0
    %2331 = vmatprep.subr.mxu0 %v1140
    %2332 = vmatpush1.msra.mxu0 %v1139
    %2333 = vmatprep.subr.mxu0 %v1136
    %2334 = vmatpush1.msra.mxu0 %v1135
    %2335 = vmatprep.subr.mxu0 %v1132
    %2336 = vmatpush1.msra.mxu0 %v1131
    %2337 = vmatprep.subr.mxu0 %v1128
    %2338 = vmatpush1.msra.mxu0 %v1127
    %2339 = vmatprep.subr.mxu0 %v1124
    %2340 = vmatpush1.msra.mxu0 %v1123
    %2341 = vmatprep.subr.mxu0 %v1120
    %2342 = vmatpush1.msra.mxu0 %v1119
    %2343 = vmatprep.subr.mxu0 %v1116
    %2344 = vmatpush1.msra.mxu0 %v1115
    %2345 = vmatprep.subr.mxu0 %v1112
    %2346 = vmatpush1.msra.mxu0 %v1111
    %2347 = vmatprep.subr.mxu0 %v1108
    %2348 = vmatpush1.msra.mxu0 %v1107
    %2349 = vmatprep.subr.mxu0 %v1104
    %2350 = vmatpush1.msra.mxu0 %v1103
    %2351 = vmatprep.subr.mxu0 %v1100
    %2352 = vmatpush1.msra.mxu0 %v1099
    %2353 = vmatprep.subr.mxu0 %v1096
    %2354 = vmatpush1.msra.mxu0 %v1095
    %2355 = vmatprep.subr.mxu0 %v1092
    %2356 = vmatpush1.msra.mxu0 %v1091
    %2357 = vmatprep.subr.mxu0 %v1088
    %2358 = vmatpush1.msra.mxu0 %v1087
    %2359 = vmatprep.subr.mxu0 %v1084
    %2360 = vmatpush1.msra.mxu0 %v1083
    %2361 = vmatprep.subr.mxu0 %v1080
    %2362 = vmatpush1.msra.mxu0 %v1079
    %2363 = vmatprep.subr.mxu0 0.0
    %2364 = vmatpush2.msra.mxu0 0.0
    %2365 = vmatprep.subr.mxu0 0.0
    %2366 = vmatpush2.msra.mxu0 0.0
    %2367 = vmatprep.subr.mxu0 0.0
    %2368 = vmatpush2.msra.mxu0 0.0
    %2369 = vmatprep.subr.mxu0 0.0
    %2370 = vmatpush2.msra.mxu0 0.0
    %2371 = vmatprep.subr.mxu0 0.0
    %2372 = vmatpush2.msra.mxu0 0.0
    %2373 = vmatprep.subr.mxu0 0.0
    %2374 = vmatpush2.msra.mxu0 0.0
    %2375 = vmatprep.subr.mxu0 0.0
    %2376 = vmatpush2.msra.mxu0 0.0
    %2377 = vmatprep.subr.mxu0 0.0
    %2378 = vmatpush2.msra.mxu0 0.0
    %2379 = vmatprep.subr.mxu0 0.0
    %2380 = vmatpush2.msra.mxu0 0.0
    %2381 = vmatprep.subr.mxu0 0.0
    %2382 = vmatpush2.msra.mxu0 0.0
    %2383 = vmatprep.subr.mxu0 0.0
    %2384 = vmatpush2.msra.mxu0 0.0
    %2385 = vmatprep.subr.mxu0 0.0
    %2386 = vmatpush2.msra.mxu0 0.0
    %2387 = vmatprep.subr.mxu0 0.0
    %2388 = vmatpush2.msra.mxu0 0.0
    %2389 = vmatprep.subr.mxu0 0.0
    %2390 = vmatpush2.msra.mxu0 0.0
    %2391 = vmatprep.subr.mxu0 0.0
    %2392 = vmatpush2.msra.mxu0 0.0
    %2393 = vmatprep.subr.mxu0 0.0
    %2394 = vmatpush2.msra.mxu0 0.0
    %2395 = vmatprep.mubr.f32.mxu0 0.0
    %2396 = vmatmul.mubr.f32.gmra.mxu0 %v2229
    %v2397 = vpop.f32.mrf.mxu0
    %v2398 = vadd.f32 0.0, %v2397
    %v2399 = vpop.f32.mrf.mxu0
    %v2400 = vadd.f32 0.0, %v2399
    %2401 = vdwg.mxu0
    %v2402 = vadd.f32 %v2256, %v2327
    %v2403 = vadd.f32 %v2257, %v2329
    %v2404 = vadd.f32 %v2258, %v2398
    %v2405 = vadd.f32 %v2259, %v2400
    %v2406 = vld [vmem:[#allocation3 + $0x120] sm:$0xff]
    %v2407 = vld [vmem:[#allocation3 + $0x128] sm:$0xff]
    %v2408 = vld [vmem:[#allocation3 + $0x130] sm:$0xff]
    %v2409 = vld [vmem:[#allocation3 + $0x138] sm:$0xff]
    %2410 = vmatprep.subr.mxu0 %v1203
    %2411 = vmatpush1.msra.mxu0 %v1202
    %2412 = vmatprep.subr.mxu0 %v1199
    %2413 = vmatpush1.msra.mxu0 %v1198
    %2414 = vmatprep.subr.mxu0 %v1195
    %2415 = vmatpush1.msra.mxu0 %v1194
    %2416 = vmatprep.subr.mxu0 %v1191
    %2417 = vmatpush1.msra.mxu0 %v1190
    %2418 = vmatprep.subr.mxu0 %v1187
    %2419 = vmatpush1.msra.mxu0 %v1186
    %2420 = vmatprep.subr.mxu0 %v1183
    %2421 = vmatpush1.msra.mxu0 %v1182
    %2422 = vmatprep.subr.mxu0 %v1179
    %2423 = vmatpush1.msra.mxu0 %v1178
    %2424 = vmatprep.subr.mxu0 %v1175
    %2425 = vmatpush1.msra.mxu0 %v1174
    %2426 = vmatprep.subr.mxu0 %v1171
    %2427 = vmatpush1.msra.mxu0 %v1170
    %2428 = vmatprep.subr.mxu0 %v1167
    %2429 = vmatpush1.msra.mxu0 %v1166
    %2430 = vmatprep.subr.mxu0 %v1163
    %2431 = vmatpush1.msra.mxu0 %v1162
    %2432 = vmatprep.subr.mxu0 %v1159
    %2433 = vmatpush1.msra.mxu0 %v1158
    %2434 = vmatprep.subr.mxu0 %v1155
    %2435 = vmatpush1.msra.mxu0 %v1154
    %2436 = vmatprep.subr.mxu0 %v1151
    %2437 = vmatpush1.msra.mxu0 %v1150
    %2438 = vmatprep.subr.mxu0 %v1147
    %2439 = vmatpush1.msra.mxu0 %v1146
    %2440 = vmatprep.subr.mxu0 %v1143
    %2441 = vmatpush1.msra.mxu0 %v1142
    %2442 = vmatprep.subr.mxu0 0.0
    %2443 = vmatpush2.msra.mxu0 0.0
    %2444 = vmatprep.subr.mxu0 0.0
    %2445 = vmatpush2.msra.mxu0 0.0
    %2446 = vmatprep.subr.mxu0 0.0
    %2447 = vmatpush2.msra.mxu0 0.0
    %2448 = vmatprep.subr.mxu0 0.0
    %2449 = vmatpush2.msra.mxu0 0.0
    %2450 = vmatprep.subr.mxu0 0.0
    %2451 = vmatpush2.msra.mxu0 0.0
    %2452 = vmatprep.subr.mxu0 0.0
    %2453 = vmatpush2.msra.mxu0 0.0
    %2454 = vmatprep.subr.mxu0 0.0
    %2455 = vmatpush2.msra.mxu0 0.0
    %2456 = vmatprep.subr.mxu0 0.0
    %2457 = vmatpush2.msra.mxu0 0.0
    %2458 = vmatprep.subr.mxu0 0.0
    %2459 = vmatpush2.msra.mxu0 0.0
    %2460 = vmatprep.subr.mxu0 0.0
    %2461 = vmatpush2.msra.mxu0 0.0
    %2462 = vmatprep.subr.mxu0 0.0
    %2463 = vmatpush2.msra.mxu0 0.0
    %2464 = vmatprep.subr.mxu0 0.0
    %2465 = vmatpush2.msra.mxu0 0.0
    %2466 = vmatprep.subr.mxu0 0.0
    %2467 = vmatpush2.msra.mxu0 0.0
    %2468 = vmatprep.subr.mxu0 0.0
    %2469 = vmatpush2.msra.mxu0 0.0
    %2470 = vmatprep.subr.mxu0 0.0
    %2471 = vmatpush2.msra.mxu0 0.0
    %2472 = vmatprep.subr.mxu0 0.0
    %2473 = vmatpush2.msra.mxu0 0.0
    %2474 = vmatprep.mubr.f32.mxu0 0.0
    %2475 = vmatmul.mubr.f32.gmra.mxu0 %v2253
    %v2476 = vpop.f32.mrf.mxu0
    %v2477 = vadd.f32 0.0, %v2476
    %v2478 = vpop.f32.mrf.mxu0
    %v2479 = vadd.f32 0.0, %v2478
    %2480 = vdwg.mxu0
    %2481 = vmatprep.subr.mxu0 %v1205
    %2482 = vmatpush1.msra.mxu0 %v1204
    %2483 = vmatprep.subr.mxu0 %v1201
    %2484 = vmatpush1.msra.mxu0 %v1200
    %2485 = vmatprep.subr.mxu0 %v1197
    %2486 = vmatpush1.msra.mxu0 %v1196
    %2487 = vmatprep.subr.mxu0 %v1193
    %2488 = vmatpush1.msra.mxu0 %v1192
    %2489 = vmatprep.subr.mxu0 %v1189
    %2490 = vmatpush1.msra.mxu0 %v1188
    %2491 = vmatprep.subr.mxu0 %v1185
    %2492 = vmatpush1.msra.mxu0 %v1184
    %2493 = vmatprep.subr.mxu0 %v1181
    %2494 = vmatpush1.msra.mxu0 %v1180
    %2495 = vmatprep.subr.mxu0 %v1177
    %2496 = vmatpush1.msra.mxu0 %v1176
    %2497 = vmatprep.subr.mxu0 %v1173
    %2498 = vmatpush1.msra.mxu0 %v1172
    %2499 = vmatprep.subr.mxu0 %v1169
    %2500 = vmatpush1.msra.mxu0 %v1168
    %2501 = vmatprep.subr.mxu0 %v1165
    %2502 = vmatpush1.msra.mxu0 %v1164
    %2503 = vmatprep.subr.mxu0 %v1161
    %2504 = vmatpush1.msra.mxu0 %v1160
    %2505 = vmatprep.subr.mxu0 %v1157
    %2506 = vmatpush1.msra.mxu0 %v1156
    %2507 = vmatprep.subr.mxu0 %v1153
    %2508 = vmatpush1.msra.mxu0 %v1152
    %2509 = vmatprep.subr.mxu0 %v1149
    %2510 = vmatpush1.msra.mxu0 %v1148
    %2511 = vmatprep.subr.mxu0 %v1145
    %2512 = vmatpush1.msra.mxu0 %v1144
    %2513 = vmatprep.subr.mxu0 0.0
    %2514 = vmatpush2.msra.mxu0 0.0
    %2515 = vmatprep.subr.mxu0 0.0
    %2516 = vmatpush2.msra.mxu0 0.0
    %2517 = vmatprep.subr.mxu0 0.0
    %2518 = vmatpush2.msra.mxu0 0.0
    %2519 = vmatprep.subr.mxu0 0.0
    %2520 = vmatpush2.msra.mxu0 0.0
    %2521 = vmatprep.subr.mxu0 0.0
    %2522 = vmatpush2.msra.mxu0 0.0
    %2523 = vmatprep.subr.mxu0 0.0
    %2524 = vmatpush2.msra.mxu0 0.0
    %2525 = vmatprep.subr.mxu0 0.0
    %2526 = vmatpush2.msra.mxu0 0.0
    %2527 = vmatprep.subr.mxu0 0.0
    %2528 = vmatpush2.msra.mxu0 0.0
    %2529 = vmatprep.subr.mxu0 0.0
    %2530 = vmatpush2.msra.mxu0 0.0
    %2531 = vmatprep.subr.mxu0 0.0
    %2532 = vmatpush2.msra.mxu0 0.0
    %2533 = vmatprep.subr.mxu0 0.0
    %2534 = vmatpush2.msra.mxu0 0.0
    %2535 = vmatprep.subr.mxu0 0.0
    %2536 = vmatpush2.msra.mxu0 0.0
    %2537 = vmatprep.subr.mxu0 0.0
    %2538 = vmatpush2.msra.mxu0 0.0
    %2539 = vmatprep.subr.mxu0 0.0
    %2540 = vmatpush2.msra.mxu0 0.0
    %2541 = vmatprep.subr.mxu0 0.0
    %2542 = vmatpush2.msra.mxu0 0.0
    %2543 = vmatprep.subr.mxu0 0.0
    %2544 = vmatpush2.msra.mxu0 0.0
    %2545 = vmatprep.mubr.f32.mxu0 0.0
    %2546 = vmatmul.mubr.f32.gmra.mxu0 %v2253
    %v2547 = vpop.f32.mrf.mxu0
    %v2548 = vadd.f32 0.0, %v2547
    %v2549 = vpop.f32.mrf.mxu0
    %v2550 = vadd.f32 0.0, %v2549
    %2551 = vdwg.mxu0
    %v2552 = vadd.f32 %v2406, %v2477
    %v2553 = vadd.f32 %v2407, %v2479
    %v2554 = vadd.f32 %v2408, %v2548
    %v2555 = vadd.f32 %v2409, %v2550
    %v2556 = vxor.u32 %v2402, 2147483648
    %v2557 = vmul.f32 %v2556, 1.442695
    %v2558 = vpow.pop %v2557
    %v2559 = vadd.f32 %v2558, 1.0
    %v2560 = vrcp.pop %v2559
    %v2561 = vmul.f32 1.0, %v2560
    %v2562 = vxor.u32 %v2403, 2147483648
    %v2563 = vmul.f32 %v2562, 1.442695
    %v2564 = vpow.pop %v2563
    %v2565 = vadd.f32 %v2564, 1.0
    %v2566 = vrcp.pop %v2565
    %v2567 = vmul.f32 1.0, %v2566
    %v2568 = vtanh.pop %v2404
    %v2569 = vxor.u32 %v2405, 2147483648
    %v2570 = vmul.f32 %v2569, 1.442695
    %v2571 = vpow.pop %v2570
    %v2572 = vadd.f32 %v2571, 1.0
    %v2573 = vrcp.pop %v2572
    %v2574 = vmul.f32 1.0, %v2573
    %v2575 = vmul.f32 %v2567, %v2227
    %v2576 = vmul.f32 %v2561, %v2568
    %v2577 = vadd.f32 %v2575, %v2576
    %v2578 = vtanh.pop %v2577
    %v2579 = vmul.f32 %v2574, %v2578
    %v2580 = vxor.u32 %v2552, 2147483648
    %v2581 = vmul.f32 %v2580, 1.442695
    %v2582 = vpow.pop %v2581
    %v2583 = vadd.f32 %v2582, 1.0
    %v2584 = vrcp.pop %v2583
    %v2585 = vmul.f32 1.0, %v2584
    %v2586 = vxor.u32 %v2553, 2147483648
    %v2587 = vmul.f32 %v2586, 1.442695
    %v2588 = vpow.pop %v2587
    %v2589 = vadd.f32 %v2588, 1.0
    %v2590 = vrcp.pop %v2589
    %v2591 = vmul.f32 1.0, %v2590
    %v2592 = vtanh.pop %v2554
    %v2593 = vxor.u32 %v2555, 2147483648
    %v2594 = vmul.f32 %v2593, 1.442695
    %v2595 = vpow.pop %v2594
    %v2596 = vadd.f32 %v2595, 1.0
    %v2597 = vrcp.pop %v2596
    %v2598 = vmul.f32 1.0, %v2597
    %v2599 = vmul.f32 %v2591, %v2251
    %v2600 = vmul.f32 %v2585, %v2592
    %v2601 = vadd.f32 %v2599, %v2600
    %v2602 = vtanh.pop %v2601
    %v2603 = vmul.f32 %v2598, %v2602
    %2604 = vst [vmem:[#allocation2 + $0x30] sm:$0xff] %v2579
    %2605 = vst [vmem:[#allocation2 + $0x48] sm:$0xff] %v2603
    %v2606 = vld [vmem:[#allocation3 + $0x100] sm:$0xff]
    %v2607 = vld [vmem:[#allocation3 + $0x108] sm:$0xff]
    %v2608 = vld [vmem:[#allocation3 + $0x110] sm:$0xff]
    %v2609 = vld [vmem:[#allocation3 + $0x118] sm:$0xff]
    %2610 = vmatprep.subr.mxu0 %v1138
    %2611 = vmatpush1.msra.mxu0 %v1137
    %2612 = vmatprep.subr.mxu0 %v1134
    %2613 = vmatpush1.msra.mxu0 %v1133
    %2614 = vmatprep.subr.mxu0 %v1130
    %2615 = vmatpush1.msra.mxu0 %v1129
    %2616 = vmatprep.subr.mxu0 %v1126
    %2617 = vmatpush1.msra.mxu0 %v1125
    %2618 = vmatprep.subr.mxu0 %v1122
    %2619 = vmatpush1.msra.mxu0 %v1121
    %2620 = vmatprep.subr.mxu0 %v1118
    %2621 = vmatpush1.msra.mxu0 %v1117
    %2622 = vmatprep.subr.mxu0 %v1114
    %2623 = vmatpush1.msra.mxu0 %v1113
    %2624 = vmatprep.subr.mxu0 %v1110
    %2625 = vmatpush1.msra.mxu0 %v1109
    %2626 = vmatprep.subr.mxu0 %v1106
    %2627 = vmatpush1.msra.mxu0 %v1105
    %2628 = vmatprep.subr.mxu0 %v1102
    %2629 = vmatpush1.msra.mxu0 %v1101
    %2630 = vmatprep.subr.mxu0 %v1098
    %2631 = vmatpush1.msra.mxu0 %v1097
    %2632 = vmatprep.subr.mxu0 %v1094
    %2633 = vmatpush1.msra.mxu0 %v1093
    %2634 = vmatprep.subr.mxu0 %v1090
    %2635 = vmatpush1.msra.mxu0 %v1089
    %2636 = vmatprep.subr.mxu0 %v1086
    %2637 = vmatpush1.msra.mxu0 %v1085
    %2638 = vmatprep.subr.mxu0 %v1082
    %2639 = vmatpush1.msra.mxu0 %v1081
    %2640 = vmatprep.subr.mxu0 %v1078
    %2641 = vmatpush1.msra.mxu0 %v1077
    %2642 = vmatprep.subr.mxu0 0.0
    %2643 = vmatpush2.msra.mxu0 0.0
    %2644 = vmatprep.subr.mxu0 0.0
    %2645 = vmatpush2.msra.mxu0 0.0
    %2646 = vmatprep.subr.mxu0 0.0
    %2647 = vmatpush2.msra.mxu0 0.0
    %2648 = vmatprep.subr.mxu0 0.0
    %2649 = vmatpush2.msra.mxu0 0.0
    %2650 = vmatprep.subr.mxu0 0.0
    %2651 = vmatpush2.msra.mxu0 0.0
    %2652 = vmatprep.subr.mxu0 0.0
    %2653 = vmatpush2.msra.mxu0 0.0
    %2654 = vmatprep.subr.mxu0 0.0
    %2655 = vmatpush2.msra.mxu0 0.0
    %2656 = vmatprep.subr.mxu0 0.0
    %2657 = vmatpush2.msra.mxu0 0.0
    %2658 = vmatprep.subr.mxu0 0.0
    %2659 = vmatpush2.msra.mxu0 0.0
    %2660 = vmatprep.subr.mxu0 0.0
    %2661 = vmatpush2.msra.mxu0 0.0
    %2662 = vmatprep.subr.mxu0 0.0
    %2663 = vmatpush2.msra.mxu0 0.0
    %2664 = vmatprep.subr.mxu0 0.0
    %2665 = vmatpush2.msra.mxu0 0.0
    %2666 = vmatprep.subr.mxu0 0.0
    %2667 = vmatpush2.msra.mxu0 0.0
    %2668 = vmatprep.subr.mxu0 0.0
    %2669 = vmatpush2.msra.mxu0 0.0
    %2670 = vmatprep.subr.mxu0 0.0
    %2671 = vmatpush2.msra.mxu0 0.0
    %2672 = vmatprep.subr.mxu0 0.0
    %2673 = vmatpush2.msra.mxu0 0.0
    %2674 = vmatprep.mubr.f32.mxu0 0.0
    %2675 = vmatmul.mubr.f32.gmra.mxu0 %v2579
    %v2676 = vpop.f32.mrf.mxu0
    %v2677 = vadd.f32 0.0, %v2676
    %v2678 = vpop.f32.mrf.mxu0
    %v2679 = vadd.f32 0.0, %v2678
    %2680 = vdwg.mxu0
    %2681 = vmatprep.subr.mxu0 %v1140
    %2682 = vmatpush1.msra.mxu0 %v1139
    %2683 = vmatprep.subr.mxu0 %v1136
    %2684 = vmatpush1.msra.mxu0 %v1135
    %2685 = vmatprep.subr.mxu0 %v1132
    %2686 = vmatpush1.msra.mxu0 %v1131
    %2687 = vmatprep.subr.mxu0 %v1128
    %2688 = vmatpush1.msra.mxu0 %v1127
    %2689 = vmatprep.subr.mxu0 %v1124
    %2690 = vmatpush1.msra.mxu0 %v1123
    %2691 = vmatprep.subr.mxu0 %v1120
    %2692 = vmatpush1.msra.mxu0 %v1119
    %2693 = vmatprep.subr.mxu0 %v1116
    %2694 = vmatpush1.msra.mxu0 %v1115
    %2695 = vmatprep.subr.mxu0 %v1112
    %2696 = vmatpush1.msra.mxu0 %v1111
    %2697 = vmatprep.subr.mxu0 %v1108
    %2698 = vmatpush1.msra.mxu0 %v1107
    %2699 = vmatprep.subr.mxu0 %v1104
    %2700 = vmatpush1.msra.mxu0 %v1103
    %2701 = vmatprep.subr.mxu0 %v1100
    %2702 = vmatpush1.msra.mxu0 %v1099
    %2703 = vmatprep.subr.mxu0 %v1096
    %2704 = vmatpush1.msra.mxu0 %v1095
    %2705 = vmatprep.subr.mxu0 %v1092
    %2706 = vmatpush1.msra.mxu0 %v1091
    %2707 = vmatprep.subr.mxu0 %v1088
    %2708 = vmatpush1.msra.mxu0 %v1087
    %2709 = vmatprep.subr.mxu0 %v1084
    %2710 = vmatpush1.msra.mxu0 %v1083
    %2711 = vmatprep.subr.mxu0 %v1080
    %2712 = vmatpush1.msra.mxu0 %v1079
    %2713 = vmatprep.subr.mxu0 0.0
    %2714 = vmatpush2.msra.mxu0 0.0
    %2715 = vmatprep.subr.mxu0 0.0
    %2716 = vmatpush2.msra.mxu0 0.0
    %2717 = vmatprep.subr.mxu0 0.0
    %2718 = vmatpush2.msra.mxu0 0.0
    %2719 = vmatprep.subr.mxu0 0.0
    %2720 = vmatpush2.msra.mxu0 0.0
    %2721 = vmatprep.subr.mxu0 0.0
    %2722 = vmatpush2.msra.mxu0 0.0
    %2723 = vmatprep.subr.mxu0 0.0
    %2724 = vmatpush2.msra.mxu0 0.0
    %2725 = vmatprep.subr.mxu0 0.0
    %2726 = vmatpush2.msra.mxu0 0.0
    %2727 = vmatprep.subr.mxu0 0.0
    %2728 = vmatpush2.msra.mxu0 0.0
    %2729 = vmatprep.subr.mxu0 0.0
    %2730 = vmatpush2.msra.mxu0 0.0
    %2731 = vmatprep.subr.mxu0 0.0
    %2732 = vmatpush2.msra.mxu0 0.0
    %2733 = vmatprep.subr.mxu0 0.0
    %2734 = vmatpush2.msra.mxu0 0.0
    %2735 = vmatprep.subr.mxu0 0.0
    %2736 = vmatpush2.msra.mxu0 0.0
    %2737 = vmatprep.subr.mxu0 0.0
    %2738 = vmatpush2.msra.mxu0 0.0
    %2739 = vmatprep.subr.mxu0 0.0
    %2740 = vmatpush2.msra.mxu0 0.0
    %2741 = vmatprep.subr.mxu0 0.0
    %2742 = vmatpush2.msra.mxu0 0.0
    %2743 = vmatprep.subr.mxu0 0.0
    %2744 = vmatpush2.msra.mxu0 0.0
    %2745 = vmatprep.mubr.f32.mxu0 0.0
    %2746 = vmatmul.mubr.f32.gmra.mxu0 %v2579
    %v2747 = vpop.f32.mrf.mxu0
    %v2748 = vadd.f32 0.0, %v2747
    %v2749 = vpop.f32.mrf.mxu0
    %v2750 = vadd.f32 0.0, %v2749
    %2751 = vdwg.mxu0
    %v2752 = vadd.f32 %v2606, %v2677
    %v2753 = vadd.f32 %v2607, %v2679
    %v2754 = vadd.f32 %v2608, %v2748
    %v2755 = vadd.f32 %v2609, %v2750
    %v2756 = vld [vmem:[#allocation3 + $0xe0] sm:$0xff]
    %v2757 = vld [vmem:[#allocation3 + $0xe8] sm:$0xff]
    %v2758 = vld [vmem:[#allocation3 + $0xf0] sm:$0xff]
    %v2759 = vld [vmem:[#allocation3 + $0xf8] sm:$0xff]
    %2760 = vmatprep.subr.mxu0 %v1203
    %2761 = vmatpush1.msra.mxu0 %v1202
    %2762 = vmatprep.subr.mxu0 %v1199
    %2763 = vmatpush1.msra.mxu0 %v1198
    %2764 = vmatprep.subr.mxu0 %v1195
    %2765 = vmatpush1.msra.mxu0 %v1194
    %2766 = vmatprep.subr.mxu0 %v1191
    %2767 = vmatpush1.msra.mxu0 %v1190
    %2768 = vmatprep.subr.mxu0 %v1187
    %2769 = vmatpush1.msra.mxu0 %v1186
    %2770 = vmatprep.subr.mxu0 %v1183
    %2771 = vmatpush1.msra.mxu0 %v1182
    %2772 = vmatprep.subr.mxu0 %v1179
    %2773 = vmatpush1.msra.mxu0 %v1178
    %2774 = vmatprep.subr.mxu0 %v1175
    %2775 = vmatpush1.msra.mxu0 %v1174
    %2776 = vmatprep.subr.mxu0 %v1171
    %2777 = vmatpush1.msra.mxu0 %v1170
    %2778 = vmatprep.subr.mxu0 %v1167
    %2779 = vmatpush1.msra.mxu0 %v1166
    %2780 = vmatprep.subr.mxu0 %v1163
    %2781 = vmatpush1.msra.mxu0 %v1162
    %2782 = vmatprep.subr.mxu0 %v1159
    %2783 = vmatpush1.msra.mxu0 %v1158
    %2784 = vmatprep.subr.mxu0 %v1155
    %2785 = vmatpush1.msra.mxu0 %v1154
    %2786 = vmatprep.subr.mxu0 %v1151
    %2787 = vmatpush1.msra.mxu0 %v1150
    %2788 = vmatprep.subr.mxu0 %v1147
    %2789 = vmatpush1.msra.mxu0 %v1146
    %2790 = vmatprep.subr.mxu0 %v1143
    %2791 = vmatpush1.msra.mxu0 %v1142
    %2792 = vmatprep.subr.mxu0 0.0
    %2793 = vmatpush2.msra.mxu0 0.0
    %2794 = vmatprep.subr.mxu0 0.0
    %2795 = vmatpush2.msra.mxu0 0.0
    %2796 = vmatprep.subr.mxu0 0.0
    %2797 = vmatpush2.msra.mxu0 0.0
    %2798 = vmatprep.subr.mxu0 0.0
    %2799 = vmatpush2.msra.mxu0 0.0
    %2800 = vmatprep.subr.mxu0 0.0
    %2801 = vmatpush2.msra.mxu0 0.0
    %2802 = vmatprep.subr.mxu0 0.0
    %2803 = vmatpush2.msra.mxu0 0.0
    %2804 = vmatprep.subr.mxu0 0.0
    %2805 = vmatpush2.msra.mxu0 0.0
    %2806 = vmatprep.subr.mxu0 0.0
    %2807 = vmatpush2.msra.mxu0 0.0
    %2808 = vmatprep.subr.mxu0 0.0
    %2809 = vmatpush2.msra.mxu0 0.0
    %2810 = vmatprep.subr.mxu0 0.0
    %2811 = vmatpush2.msra.mxu0 0.0
    %2812 = vmatprep.subr.mxu0 0.0
    %2813 = vmatpush2.msra.mxu0 0.0
    %2814 = vmatprep.subr.mxu0 0.0
    %2815 = vmatpush2.msra.mxu0 0.0
    %2816 = vmatprep.subr.mxu0 0.0
    %2817 = vmatpush2.msra.mxu0 0.0
    %2818 = vmatprep.subr.mxu0 0.0
    %2819 = vmatpush2.msra.mxu0 0.0
    %2820 = vmatprep.subr.mxu0 0.0
    %2821 = vmatpush2.msra.mxu0 0.0
    %2822 = vmatprep.subr.mxu0 0.0
    %2823 = vmatpush2.msra.mxu0 0.0
    %2824 = vmatprep.mubr.f32.mxu0 0.0
    %2825 = vmatmul.mubr.f32.gmra.mxu0 %v2603
    %v2826 = vpop.f32.mrf.mxu0
    %v2827 = vadd.f32 0.0, %v2826
    %v2828 = vpop.f32.mrf.mxu0
    %v2829 = vadd.f32 0.0, %v2828
    %2830 = vdwg.mxu0
    %2831 = vmatprep.subr.mxu0 %v1205
    %2832 = vmatpush1.msra.mxu0 %v1204
    %2833 = vmatprep.subr.mxu0 %v1201
    %2834 = vmatpush1.msra.mxu0 %v1200
    %2835 = vmatprep.subr.mxu0 %v1197
    %2836 = vmatpush1.msra.mxu0 %v1196
    %2837 = vmatprep.subr.mxu0 %v1193
    %2838 = vmatpush1.msra.mxu0 %v1192
    %2839 = vmatprep.subr.mxu0 %v1189
    %2840 = vmatpush1.msra.mxu0 %v1188
    %2841 = vmatprep.subr.mxu0 %v1185
    %2842 = vmatpush1.msra.mxu0 %v1184
    %2843 = vmatprep.subr.mxu0 %v1181
    %2844 = vmatpush1.msra.mxu0 %v1180
    %2845 = vmatprep.subr.mxu0 %v1177
    %2846 = vmatpush1.msra.mxu0 %v1176
    %2847 = vmatprep.subr.mxu0 %v1173
    %2848 = vmatpush1.msra.mxu0 %v1172
    %2849 = vmatprep.subr.mxu0 %v1169
    %2850 = vmatpush1.msra.mxu0 %v1168
    %2851 = vmatprep.subr.mxu0 %v1165
    %2852 = vmatpush1.msra.mxu0 %v1164
    %2853 = vmatprep.subr.mxu0 %v1161
    %2854 = vmatpush1.msra.mxu0 %v1160
    %2855 = vmatprep.subr.mxu0 %v1157
    %2856 = vmatpush1.msra.mxu0 %v1156
    %2857 = vmatprep.subr.mxu0 %v1153
    %2858 = vmatpush1.msra.mxu0 %v1152
    %2859 = vmatprep.subr.mxu0 %v1149
    %2860 = vmatpush1.msra.mxu0 %v1148
    %2861 = vmatprep.subr.mxu0 %v1145
    %2862 = vmatpush1.msra.mxu0 %v1144
    %2863 = vmatprep.subr.mxu0 0.0
    %2864 = vmatpush2.msra.mxu0 0.0
    %2865 = vmatprep.subr.mxu0 0.0
    %2866 = vmatpush2.msra.mxu0 0.0
    %2867 = vmatprep.subr.mxu0 0.0
    %2868 = vmatpush2.msra.mxu0 0.0
    %2869 = vmatprep.subr.mxu0 0.0
    %2870 = vmatpush2.msra.mxu0 0.0
    %2871 = vmatprep.subr.mxu0 0.0
    %2872 = vmatpush2.msra.mxu0 0.0
    %2873 = vmatprep.subr.mxu0 0.0
    %2874 = vmatpush2.msra.mxu0 0.0
    %2875 = vmatprep.subr.mxu0 0.0
    %2876 = vmatpush2.msra.mxu0 0.0
    %2877 = vmatprep.subr.mxu0 0.0
    %2878 = vmatpush2.msra.mxu0 0.0
    %2879 = vmatprep.subr.mxu0 0.0
    %2880 = vmatpush2.msra.mxu0 0.0
    %2881 = vmatprep.subr.mxu0 0.0
    %2882 = vmatpush2.msra.mxu0 0.0
    %2883 = vmatprep.subr.mxu0 0.0
    %2884 = vmatpush2.msra.mxu0 0.0
    %2885 = vmatprep.subr.mxu0 0.0
    %2886 = vmatpush2.msra.mxu0 0.0
    %2887 = vmatprep.subr.mxu0 0.0
    %2888 = vmatpush2.msra.mxu0 0.0
    %2889 = vmatprep.subr.mxu0 0.0
    %2890 = vmatpush2.msra.mxu0 0.0
    %2891 = vmatprep.subr.mxu0 0.0
    %2892 = vmatpush2.msra.mxu0 0.0
    %2893 = vmatprep.subr.mxu0 0.0
    %2894 = vmatpush2.msra.mxu0 0.0
    %2895 = vmatprep.mubr.f32.mxu0 0.0
    %2896 = vmatmul.mubr.f32.gmra.mxu0 %v2603
    %v2897 = vpop.f32.mrf.mxu0
    %v2898 = vadd.f32 0.0, %v2897
    %v2899 = vpop.f32.mrf.mxu0
    %v2900 = vadd.f32 0.0, %v2899
    %2901 = vdwg.mxu0
    %v2902 = vadd.f32 %v2756, %v2827
    %v2903 = vadd.f32 %v2757, %v2829
    %v2904 = vadd.f32 %v2758, %v2898
    %v2905 = vadd.f32 %v2759, %v2900
    %v2906 = vxor.u32 %v2752, 2147483648
    %v2907 = vmul.f32 %v2906, 1.442695
    %v2908 = vpow.pop %v2907
    %v2909 = vadd.f32 %v2908, 1.0
    %v2910 = vrcp.pop %v2909
    %v2911 = vmul.f32 1.0, %v2910
    %v2912 = vxor.u32 %v2753, 2147483648
    %v2913 = vmul.f32 %v2912, 1.442695
    %v2914 = vpow.pop %v2913
    %v2915 = vadd.f32 %v2914, 1.0
    %v2916 = vrcp.pop %v2915
    %v2917 = vmul.f32 1.0, %v2916
    %v2918 = vtanh.pop %v2754
    %v2919 = vxor.u32 %v2755, 2147483648
    %v2920 = vmul.f32 %v2919, 1.442695
    %v2921 = vpow.pop %v2920
    %v2922 = vadd.f32 %v2921, 1.0
    %v2923 = vrcp.pop %v2922
    %v2924 = vmul.f32 1.0, %v2923
    %v2925 = vmul.f32 %v2917, %v2577
    %v2926 = vmul.f32 %v2911, %v2918
    %v2927 = vadd.f32 %v2925, %v2926
    %v2928 = vtanh.pop %v2927
    %v2929 = vmul.f32 %v2924, %v2928
    %v2930 = vxor.u32 %v2902, 2147483648
    %v2931 = vmul.f32 %v2930, 1.442695
    %v2932 = vpow.pop %v2931
    %v2933 = vadd.f32 %v2932, 1.0
    %v2934 = vrcp.pop %v2933
    %v2935 = vmul.f32 1.0, %v2934
    %v2936 = vxor.u32 %v2903, 2147483648
    %v2937 = vmul.f32 %v2936, 1.442695
    %v2938 = vpow.pop %v2937
    %v2939 = vadd.f32 %v2938, 1.0
    %v2940 = vrcp.pop %v2939
    %v2941 = vmul.f32 1.0, %v2940
    %v2942 = vtanh.pop %v2904
    %v2943 = vxor.u32 %v2905, 2147483648
    %v2944 = vmul.f32 %v2943, 1.442695
    %v2945 = vpow.pop %v2944
    %v2946 = vadd.f32 %v2945, 1.0
    %v2947 = vrcp.pop %v2946
    %v2948 = vmul.f32 1.0, %v2947
    %v2949 = vmul.f32 %v2941, %v2601
    %v2950 = vmul.f32 %v2935, %v2942
    %v2951 = vadd.f32 %v2949, %v2950
    %v2952 = vtanh.pop %v2951
    %v2953 = vmul.f32 %v2948, %v2952
    %2954 = vst [vmem:[#allocation2 + $0x40] sm:$0xff] %v2929
    %2955 = vst [vmem:[#allocation2 + $0x38] sm:$0xff] %v2953
    %v2956 = vld [vmem:[#allocation3 + $0x140] sm:$0xff]
    %v2957 = vld [vmem:[#allocation3 + $0x148] sm:$0xff]
    %v2958 = vld [vmem:[#allocation3 + $0x150] sm:$0xff]
    %v2959 = vld [vmem:[#allocation3 + $0x158] sm:$0xff]
    %2960 = vmatprep.subr.mxu0 %v1138
    %2961 = vmatpush1.msra.mxu0 %v1137
    %2962 = vmatprep.subr.mxu0 %v1134
    %2963 = vmatpush1.msra.mxu0 %v1133
    %2964 = vmatprep.subr.mxu0 %v1130
    %2965 = vmatpush1.msra.mxu0 %v1129
    %2966 = vmatprep.subr.mxu0 %v1126
    %2967 = vmatpush1.msra.mxu0 %v1125
    %2968 = vmatprep.subr.mxu0 %v1122
    %2969 = vmatpush1.msra.mxu0 %v1121
    %2970 = vmatprep.subr.mxu0 %v1118
    %2971 = vmatpush1.msra.mxu0 %v1117
    %2972 = vmatprep.subr.mxu0 %v1114
    %2973 = vmatpush1.msra.mxu0 %v1113
    %2974 = vmatprep.subr.mxu0 %v1110
    %2975 = vmatpush1.msra.mxu0 %v1109
    %2976 = vmatprep.subr.mxu0 %v1106
    %2977 = vmatpush1.msra.mxu0 %v1105
    %2978 = vmatprep.subr.mxu0 %v1102
    %2979 = vmatpush1.msra.mxu0 %v1101
    %2980 = vmatprep.subr.mxu0 %v1098
    %2981 = vmatpush1.msra.mxu0 %v1097
    %2982 = vmatprep.subr.mxu0 %v1094
    %2983 = vmatpush1.msra.mxu0 %v1093
    %2984 = vmatprep.subr.mxu0 %v1090
    %2985 = vmatpush1.msra.mxu0 %v1089
    %2986 = vmatprep.subr.mxu0 %v1086
    %2987 = vmatpush1.msra.mxu0 %v1085
    %2988 = vmatprep.subr.mxu0 %v1082
    %2989 = vmatpush1.msra.mxu0 %v1081
    %2990 = vmatprep.subr.mxu0 %v1078
    %2991 = vmatpush1.msra.mxu0 %v1077
    %2992 = vmatprep.subr.mxu0 0.0
    %2993 = vmatpush2.msra.mxu0 0.0
    %2994 = vmatprep.subr.mxu0 0.0
    %2995 = vmatpush2.msra.mxu0 0.0
    %2996 = vmatprep.subr.mxu0 0.0
    %2997 = vmatpush2.msra.mxu0 0.0
    %2998 = vmatprep.subr.mxu0 0.0
    %2999 = vmatpush2.msra.mxu0 0.0
    %3000 = vmatprep.subr.mxu0 0.0
    %3001 = vmatpush2.msra.mxu0 0.0
    %3002 = vmatprep.subr.mxu0 0.0
    %3003 = vmatpush2.msra.mxu0 0.0
    %3004 = vmatprep.subr.mxu0 0.0
    %3005 = vmatpush2.msra.mxu0 0.0
    %3006 = vmatprep.subr.mxu0 0.0
    %3007 = vmatpush2.msra.mxu0 0.0
    %3008 = vmatprep.subr.mxu0 0.0
    %3009 = vmatpush2.msra.mxu0 0.0
    %3010 = vmatprep.subr.mxu0 0.0
    %3011 = vmatpush2.msra.mxu0 0.0
    %3012 = vmatprep.subr.mxu0 0.0
    %3013 = vmatpush2.msra.mxu0 0.0
    %3014 = vmatprep.subr.mxu0 0.0
    %3015 = vmatpush2.msra.mxu0 0.0
    %3016 = vmatprep.subr.mxu0 0.0
    %3017 = vmatpush2.msra.mxu0 0.0
    %3018 = vmatprep.subr.mxu0 0.0
    %3019 = vmatpush2.msra.mxu0 0.0
    %3020 = vmatprep.subr.mxu0 0.0
    %3021 = vmatpush2.msra.mxu0 0.0
    %3022 = vmatprep.subr.mxu0 0.0
    %3023 = vmatpush2.msra.mxu0 0.0
    %3024 = vmatprep.mubr.f32.mxu0 0.0
    %3025 = vmatmul.mubr.f32.gmra.mxu0 %v2929
    %v3026 = vpop.f32.mrf.mxu0
    %v3027 = vadd.f32 0.0, %v3026
    %v3028 = vpop.f32.mrf.mxu0
    %v3029 = vadd.f32 0.0, %v3028
    %3030 = vdwg.mxu0
    %3031 = vmatprep.subr.mxu0 %v1140
    %3032 = vmatpush1.msra.mxu0 %v1139
    %3033 = vmatprep.subr.mxu0 %v1136
    %3034 = vmatpush1.msra.mxu0 %v1135
    %3035 = vmatprep.subr.mxu0 %v1132
    %3036 = vmatpush1.msra.mxu0 %v1131
    %3037 = vmatprep.subr.mxu0 %v1128
    %3038 = vmatpush1.msra.mxu0 %v1127
    %3039 = vmatprep.subr.mxu0 %v1124
    %3040 = vmatpush1.msra.mxu0 %v1123
    %3041 = vmatprep.subr.mxu0 %v1120
    %3042 = vmatpush1.msra.mxu0 %v1119
    %3043 = vmatprep.subr.mxu0 %v1116
    %3044 = vmatpush1.msra.mxu0 %v1115
    %3045 = vmatprep.subr.mxu0 %v1112
    %3046 = vmatpush1.msra.mxu0 %v1111
    %3047 = vmatprep.subr.mxu0 %v1108
    %3048 = vmatpush1.msra.mxu0 %v1107
    %3049 = vmatprep.subr.mxu0 %v1104
    %3050 = vmatpush1.msra.mxu0 %v1103
    %3051 = vmatprep.subr.mxu0 %v1100
    %3052 = vmatpush1.msra.mxu0 %v1099
    %3053 = vmatprep.subr.mxu0 %v1096
    %3054 = vmatpush1.msra.mxu0 %v1095
    %3055 = vmatprep.subr.mxu0 %v1092
    %3056 = vmatpush1.msra.mxu0 %v1091
    %3057 = vmatprep.subr.mxu0 %v1088
    %3058 = vmatpush1.msra.mxu0 %v1087
    %3059 = vmatprep.subr.mxu0 %v1084
    %3060 = vmatpush1.msra.mxu0 %v1083
    %3061 = vmatprep.subr.mxu0 %v1080
    %3062 = vmatpush1.msra.mxu0 %v1079
    %3063 = vmatprep.subr.mxu0 0.0
    %3064 = vmatpush2.msra.mxu0 0.0
    %3065 = vmatprep.subr.mxu0 0.0
    %3066 = vmatpush2.msra.mxu0 0.0
    %3067 = vmatprep.subr.mxu0 0.0
    %3068 = vmatpush2.msra.mxu0 0.0
    %3069 = vmatprep.subr.mxu0 0.0
    %3070 = vmatpush2.msra.mxu0 0.0
    %3071 = vmatprep.subr.mxu0 0.0
    %3072 = vmatpush2.msra.mxu0 0.0
    %3073 = vmatprep.subr.mxu0 0.0
    %3074 = vmatpush2.msra.mxu0 0.0
    %3075 = vmatprep.subr.mxu0 0.0
    %3076 = vmatpush2.msra.mxu0 0.0
    %3077 = vmatprep.subr.mxu0 0.0
    %3078 = vmatpush2.msra.mxu0 0.0
    %3079 = vmatprep.subr.mxu0 0.0
    %3080 = vmatpush2.msra.mxu0 0.0
    %3081 = vmatprep.subr.mxu0 0.0
    %3082 = vmatpush2.msra.mxu0 0.0
    %3083 = vmatprep.subr.mxu0 0.0
    %3084 = vmatpush2.msra.mxu0 0.0
    %3085 = vmatprep.subr.mxu0 0.0
    %3086 = vmatpush2.msra.mxu0 0.0
    %3087 = vmatprep.subr.mxu0 0.0
    %3088 = vmatpush2.msra.mxu0 0.0
    %3089 = vmatprep.subr.mxu0 0.0
    %3090 = vmatpush2.msra.mxu0 0.0
    %3091 = vmatprep.subr.mxu0 0.0
    %3092 = vmatpush2.msra.mxu0 0.0
    %3093 = vmatprep.subr.mxu0 0.0
    %3094 = vmatpush2.msra.mxu0 0.0
    %3095 = vmatprep.mubr.f32.mxu0 0.0
    %3096 = vmatmul.mubr.f32.gmra.mxu0 %v2929
    %v3097 = vpop.f32.mrf.mxu0
    %v3098 = vadd.f32 0.0, %v3097
    %v3099 = vpop.f32.mrf.mxu0
    %v3100 = vadd.f32 0.0, %v3099
    %3101 = vdwg.mxu0
    %v3102 = vadd.f32 %v2956, %v3027
    %v3103 = vadd.f32 %v2957, %v3029
    %v3104 = vadd.f32 %v2958, %v3098
    %v3105 = vadd.f32 %v2959, %v3100
    %v3106 = vld [vmem:[#allocation3 + $0xa0] sm:$0xff]
    %v3107 = vld [vmem:[#allocation3 + $0xa8] sm:$0xff]
    %v3108 = vld [vmem:[#allocation3 + $0xb0] sm:$0xff]
    %v3109 = vld [vmem:[#allocation3 + $0xb8] sm:$0xff]
    %3110 = vmatprep.subr.mxu0 %v1203
    %3111 = vmatpush1.msra.mxu0 %v1202
    %3112 = vmatprep.subr.mxu0 %v1199
    %3113 = vmatpush1.msra.mxu0 %v1198
    %3114 = vmatprep.subr.mxu0 %v1195
    %3115 = vmatpush1.msra.mxu0 %v1194
    %3116 = vmatprep.subr.mxu0 %v1191
    %3117 = vmatpush1.msra.mxu0 %v1190
    %3118 = vmatprep.subr.mxu0 %v1187
    %3119 = vmatpush1.msra.mxu0 %v1186
    %3120 = vmatprep.subr.mxu0 %v1183
    %3121 = vmatpush1.msra.mxu0 %v1182
    %3122 = vmatprep.subr.mxu0 %v1179
    %3123 = vmatpush1.msra.mxu0 %v1178
    %3124 = vmatprep.subr.mxu0 %v1175
    %3125 = vmatpush1.msra.mxu0 %v1174
    %3126 = vmatprep.subr.mxu0 %v1171
    %3127 = vmatpush1.msra.mxu0 %v1170
    %3128 = vmatprep.subr.mxu0 %v1167
    %3129 = vmatpush1.msra.mxu0 %v1166
    %3130 = vmatprep.subr.mxu0 %v1163
    %3131 = vmatpush1.msra.mxu0 %v1162
    %3132 = vmatprep.subr.mxu0 %v1159
    %3133 = vmatpush1.msra.mxu0 %v1158
    %3134 = vmatprep.subr.mxu0 %v1155
    %3135 = vmatpush1.msra.mxu0 %v1154
    %3136 = vmatprep.subr.mxu0 %v1151
    %3137 = vmatpush1.msra.mxu0 %v1150
    %3138 = vmatprep.subr.mxu0 %v1147
    %3139 = vmatpush1.msra.mxu0 %v1146
    %3140 = vmatprep.subr.mxu0 %v1143
    %3141 = vmatpush1.msra.mxu0 %v1142
    %3142 = vmatprep.subr.mxu0 0.0
    %3143 = vmatpush2.msra.mxu0 0.0
    %3144 = vmatprep.subr.mxu0 0.0
    %3145 = vmatpush2.msra.mxu0 0.0
    %3146 = vmatprep.subr.mxu0 0.0
    %3147 = vmatpush2.msra.mxu0 0.0
    %3148 = vmatprep.subr.mxu0 0.0
    %3149 = vmatpush2.msra.mxu0 0.0
    %3150 = vmatprep.subr.mxu0 0.0
    %3151 = vmatpush2.msra.mxu0 0.0
    %3152 = vmatprep.subr.mxu0 0.0
    %3153 = vmatpush2.msra.mxu0 0.0
    %3154 = vmatprep.subr.mxu0 0.0
    %3155 = vmatpush2.msra.mxu0 0.0
    %3156 = vmatprep.subr.mxu0 0.0
    %3157 = vmatpush2.msra.mxu0 0.0
    %3158 = vmatprep.subr.mxu0 0.0
    %3159 = vmatpush2.msra.mxu0 0.0
    %3160 = vmatprep.subr.mxu0 0.0
    %3161 = vmatpush2.msra.mxu0 0.0
    %3162 = vmatprep.subr.mxu0 0.0
    %3163 = vmatpush2.msra.mxu0 0.0
    %3164 = vmatprep.subr.mxu0 0.0
    %3165 = vmatpush2.msra.mxu0 0.0
    %3166 = vmatprep.subr.mxu0 0.0
    %3167 = vmatpush2.msra.mxu0 0.0
    %3168 = vmatprep.subr.mxu0 0.0
    %3169 = vmatpush2.msra.mxu0 0.0
    %3170 = vmatprep.subr.mxu0 0.0
    %3171 = vmatpush2.msra.mxu0 0.0
    %3172 = vmatprep.subr.mxu0 0.0
    %3173 = vmatpush2.msra.mxu0 0.0
    %3174 = vmatprep.mubr.f32.mxu0 0.0
    %3175 = vmatmul.mubr.f32.gmra.mxu0 %v2953
    %v3176 = vpop.f32.mrf.mxu0
    %v3177 = vadd.f32 0.0, %v3176
    %v3178 = vpop.f32.mrf.mxu0
    %v3179 = vadd.f32 0.0, %v3178
    %3180 = vdwg.mxu0
    %3181 = vmatprep.subr.mxu0 %v1205
    %3182 = vmatpush1.msra.mxu0 %v1204
    %3183 = vmatprep.subr.mxu0 %v1201
    %3184 = vmatpush1.msra.mxu0 %v1200
    %3185 = vmatprep.subr.mxu0 %v1197
    %3186 = vmatpush1.msra.mxu0 %v1196
    %3187 = vmatprep.subr.mxu0 %v1193
    %3188 = vmatpush1.msra.mxu0 %v1192
    %3189 = vmatprep.subr.mxu0 %v1189
    %3190 = vmatpush1.msra.mxu0 %v1188
    %3191 = vmatprep.subr.mxu0 %v1185
    %3192 = vmatpush1.msra.mxu0 %v1184
    %3193 = vmatprep.subr.mxu0 %v1181
    %3194 = vmatpush1.msra.mxu0 %v1180
    %3195 = vmatprep.subr.mxu0 %v1177
    %3196 = vmatpush1.msra.mxu0 %v1176
    %3197 = vmatprep.subr.mxu0 %v1173
    %3198 = vmatpush1.msra.mxu0 %v1172
    %3199 = vmatprep.subr.mxu0 %v1169
    %3200 = vmatpush1.msra.mxu0 %v1168
    %3201 = vmatprep.subr.mxu0 %v1165
    %3202 = vmatpush1.msra.mxu0 %v1164
    %3203 = vmatprep.subr.mxu0 %v1161
    %3204 = vmatpush1.msra.mxu0 %v1160
    %3205 = vmatprep.subr.mxu0 %v1157
    %3206 = vmatpush1.msra.mxu0 %v1156
    %3207 = vmatprep.subr.mxu0 %v1153
    %3208 = vmatpush1.msra.mxu0 %v1152
    %3209 = vmatprep.subr.mxu0 %v1149
    %3210 = vmatpush1.msra.mxu0 %v1148
    %3211 = vmatprep.subr.mxu0 %v1145
    %3212 = vmatpush1.msra.mxu0 %v1144
    %3213 = vmatprep.subr.mxu0 0.0
    %3214 = vmatpush2.msra.mxu0 0.0
    %3215 = vmatprep.subr.mxu0 0.0
    %3216 = vmatpush2.msra.mxu0 0.0
    %3217 = vmatprep.subr.mxu0 0.0
    %3218 = vmatpush2.msra.mxu0 0.0
    %3219 = vmatprep.subr.mxu0 0.0
    %3220 = vmatpush2.msra.mxu0 0.0
    %3221 = vmatprep.subr.mxu0 0.0
    %3222 = vmatpush2.msra.mxu0 0.0
    %3223 = vmatprep.subr.mxu0 0.0
    %3224 = vmatpush2.msra.mxu0 0.0
    %3225 = vmatprep.subr.mxu0 0.0
    %3226 = vmatpush2.msra.mxu0 0.0
    %3227 = vmatprep.subr.mxu0 0.0
    %3228 = vmatpush2.msra.mxu0 0.0
    %3229 = vmatprep.subr.mxu0 0.0
    %3230 = vmatpush2.msra.mxu0 0.0
    %3231 = vmatprep.subr.mxu0 0.0
    %3232 = vmatpush2.msra.mxu0 0.0
    %3233 = vmatprep.subr.mxu0 0.0
    %3234 = vmatpush2.msra.mxu0 0.0
    %3235 = vmatprep.subr.mxu0 0.0
    %3236 = vmatpush2.msra.mxu0 0.0
    %3237 = vmatprep.subr.mxu0 0.0
    %3238 = vmatpush2.msra.mxu0 0.0
    %3239 = vmatprep.subr.mxu0 0.0
    %3240 = vmatpush2.msra.mxu0 0.0
    %3241 = vmatprep.subr.mxu0 0.0
    %3242 = vmatpush2.msra.mxu0 0.0
    %3243 = vmatprep.subr.mxu0 0.0
    %3244 = vmatpush2.msra.mxu0 0.0
    %3245 = vmatprep.mubr.f32.mxu0 0.0
    %3246 = vmatmul.mubr.f32.gmra.mxu0 %v2953
    %v3247 = vpop.f32.mrf.mxu0
    %v3248 = vadd.f32 0.0, %v3247
    %v3249 = vpop.f32.mrf.mxu0
    %v3250 = vadd.f32 0.0, %v3249
    %3251 = vdwg.mxu0
    %v3252 = vadd.f32 %v3106, %v3177
    %v3253 = vadd.f32 %v3107, %v3179
    %v3254 = vadd.f32 %v3108, %v3248
    %v3255 = vadd.f32 %v3109, %v3250
    %v3256 = vxor.u32 %v3102, 2147483648
    %v3257 = vmul.f32 %v3256, 1.442695
    %v3258 = vpow.pop %v3257
    %v3259 = vadd.f32 %v3258, 1.0
    %v3260 = vrcp.pop %v3259
    %v3261 = vmul.f32 1.0, %v3260
    %v3262 = vxor.u32 %v3103, 2147483648
    %v3263 = vmul.f32 %v3262, 1.442695
    %v3264 = vpow.pop %v3263
    %v3265 = vadd.f32 %v3264, 1.0
    %v3266 = vrcp.pop %v3265
    %v3267 = vmul.f32 1.0, %v3266
    %v3268 = vtanh.pop %v3104
    %v3269 = vxor.u32 %v3105, 2147483648
    %v3270 = vmul.f32 %v3269, 1.442695
    %v3271 = vpow.pop %v3270
    %v3272 = vadd.f32 %v3271, 1.0
    %v3273 = vrcp.pop %v3272
    %v3274 = vmul.f32 1.0, %v3273
    %v3275 = vmul.f32 %v3267, %v2927
    %v3276 = vmul.f32 %v3261, %v3268
    %v3277 = vadd.f32 %v3275, %v3276
    %v3278 = vtanh.pop %v3277
    %v3279 = vmul.f32 %v3274, %v3278
    %v3280 = vxor.u32 %v3252, 2147483648
    %v3281 = vmul.f32 %v3280, 1.442695
    %v3282 = vpow.pop %v3281
    %v3283 = vadd.f32 %v3282, 1.0
    %v3284 = vrcp.pop %v3283
    %v3285 = vmul.f32 1.0, %v3284
    %v3286 = vxor.u32 %v3253, 2147483648
    %v3287 = vmul.f32 %v3286, 1.442695
    %v3288 = vpow.pop %v3287
    %v3289 = vadd.f32 %v3288, 1.0
    %v3290 = vrcp.pop %v3289
    %v3291 = vmul.f32 1.0, %v3290
    %v3292 = vtanh.pop %v3254
    %v3293 = vxor.u32 %v3255, 2147483648
    %v3294 = vmul.f32 %v3293, 1.442695
    %v3295 = vpow.pop %v3294
    %v3296 = vadd.f32 %v3295, 1.0
    %v3297 = vrcp.pop %v3296
    %v3298 = vmul.f32 1.0, %v3297
    %v3299 = vmul.f32 %v3291, %v2951
    %v3300 = vmul.f32 %v3285, %v3292
    %v3301 = vadd.f32 %v3299, %v3300
    %v3302 = vtanh.pop %v3301
    %v3303 = vmul.f32 %v3298, %v3302
    %3304 = vst [vmem:[#allocation2 + $0x50] sm:$0xff] %v3279
    %3305 = vst [vmem:[#allocation2 + $0x28] sm:$0xff] %v3303
    %v3306 = vld [vmem:[#allocation3 + $0x180] sm:$0xff]
    %v3307 = vld [vmem:[#allocation3 + $0x188] sm:$0xff]
    %v3308 = vld [vmem:[#allocation3 + $0x190] sm:$0xff]
    %v3309 = vld [vmem:[#allocation3 + $0x198] sm:$0xff]
    %3310 = vmatprep.subr.mxu0 %v1138
    %3311 = vmatpush1.msra.mxu0 %v1137
    %3312 = vmatprep.subr.mxu0 %v1134
    %3313 = vmatpush1.msra.mxu0 %v1133
    %3314 = vmatprep.subr.mxu0 %v1130
    %3315 = vmatpush1.msra.mxu0 %v1129
    %3316 = vmatprep.subr.mxu0 %v1126
    %3317 = vmatpush1.msra.mxu0 %v1125
    %3318 = vmatprep.subr.mxu0 %v1122
    %3319 = vmatpush1.msra.mxu0 %v1121
    %3320 = vmatprep.subr.mxu0 %v1118
    %3321 = vmatpush1.msra.mxu0 %v1117
    %3322 = vmatprep.subr.mxu0 %v1114
    %3323 = vmatpush1.msra.mxu0 %v1113
    %3324 = vmatprep.subr.mxu0 %v1110
    %3325 = vmatpush1.msra.mxu0 %v1109
    %3326 = vmatprep.subr.mxu0 %v1106
    %3327 = vmatpush1.msra.mxu0 %v1105
    %3328 = vmatprep.subr.mxu0 %v1102
    %3329 = vmatpush1.msra.mxu0 %v1101
    %3330 = vmatprep.subr.mxu0 %v1098
    %3331 = vmatpush1.msra.mxu0 %v1097
    %3332 = vmatprep.subr.mxu0 %v1094
    %3333 = vmatpush1.msra.mxu0 %v1093
    %3334 = vmatprep.subr.mxu0 %v1090
    %3335 = vmatpush1.msra.mxu0 %v1089
    %3336 = vmatprep.subr.mxu0 %v1086
    %3337 = vmatpush1.msra.mxu0 %v1085
    %3338 = vmatprep.subr.mxu0 %v1082
    %3339 = vmatpush1.msra.mxu0 %v1081
    %3340 = vmatprep.subr.mxu0 %v1078
    %3341 = vmatpush1.msra.mxu0 %v1077
    %3342 = vmatprep.subr.mxu0 0.0
    %3343 = vmatpush2.msra.mxu0 0.0
    %3344 = vmatprep.subr.mxu0 0.0
    %3345 = vmatpush2.msra.mxu0 0.0
    %3346 = vmatprep.subr.mxu0 0.0
    %3347 = vmatpush2.msra.mxu0 0.0
    %3348 = vmatprep.subr.mxu0 0.0
    %3349 = vmatpush2.msra.mxu0 0.0
    %3350 = vmatprep.subr.mxu0 0.0
    %3351 = vmatpush2.msra.mxu0 0.0
    %3352 = vmatprep.subr.mxu0 0.0
    %3353 = vmatpush2.msra.mxu0 0.0
    %3354 = vmatprep.subr.mxu0 0.0
    %3355 = vmatpush2.msra.mxu0 0.0
    %3356 = vmatprep.subr.mxu0 0.0
    %3357 = vmatpush2.msra.mxu0 0.0
    %3358 = vmatprep.subr.mxu0 0.0
    %3359 = vmatpush2.msra.mxu0 0.0
    %3360 = vmatprep.subr.mxu0 0.0
    %3361 = vmatpush2.msra.mxu0 0.0
    %3362 = vmatprep.subr.mxu0 0.0
    %3363 = vmatpush2.msra.mxu0 0.0
    %3364 = vmatprep.subr.mxu0 0.0
    %3365 = vmatpush2.msra.mxu0 0.0
    %3366 = vmatprep.subr.mxu0 0.0
    %3367 = vmatpush2.msra.mxu0 0.0
    %3368 = vmatprep.subr.mxu0 0.0
    %3369 = vmatpush2.msra.mxu0 0.0
    %3370 = vmatprep.subr.mxu0 0.0
    %3371 = vmatpush2.msra.mxu0 0.0
    %3372 = vmatprep.subr.mxu0 0.0
    %3373 = vmatpush2.msra.mxu0 0.0
    %3374 = vmatprep.mubr.f32.mxu0 0.0
    %3375 = vmatmul.mubr.f32.gmra.mxu0 %v3279
    %v3376 = vpop.f32.mrf.mxu0
    %v3377 = vadd.f32 0.0, %v3376
    %v3378 = vpop.f32.mrf.mxu0
    %v3379 = vadd.f32 0.0, %v3378
    %3380 = vdwg.mxu0
    %3381 = vmatprep.subr.mxu0 %v1140
    %3382 = vmatpush1.msra.mxu0 %v1139
    %3383 = vmatprep.subr.mxu0 %v1136
    %3384 = vmatpush1.msra.mxu0 %v1135
    %3385 = vmatprep.subr.mxu0 %v1132
    %3386 = vmatpush1.msra.mxu0 %v1131
    %3387 = vmatprep.subr.mxu0 %v1128
    %3388 = vmatpush1.msra.mxu0 %v1127
    %3389 = vmatprep.subr.mxu0 %v1124
    %3390 = vmatpush1.msra.mxu0 %v1123
    %3391 = vmatprep.subr.mxu0 %v1120
    %3392 = vmatpush1.msra.mxu0 %v1119
    %3393 = vmatprep.subr.mxu0 %v1116
    %3394 = vmatpush1.msra.mxu0 %v1115
    %3395 = vmatprep.subr.mxu0 %v1112
    %3396 = vmatpush1.msra.mxu0 %v1111
    %3397 = vmatprep.subr.mxu0 %v1108
    %3398 = vmatpush1.msra.mxu0 %v1107
    %3399 = vmatprep.subr.mxu0 %v1104
    %3400 = vmatpush1.msra.mxu0 %v1103
    %3401 = vmatprep.subr.mxu0 %v1100
    %3402 = vmatpush1.msra.mxu0 %v1099
    %3403 = vmatprep.subr.mxu0 %v1096
    %3404 = vmatpush1.msra.mxu0 %v1095
    %3405 = vmatprep.subr.mxu0 %v1092
    %3406 = vmatpush1.msra.mxu0 %v1091
    %3407 = vmatprep.subr.mxu0 %v1088
    %3408 = vmatpush1.msra.mxu0 %v1087
    %3409 = vmatprep.subr.mxu0 %v1084
    %3410 = vmatpush1.msra.mxu0 %v1083
    %3411 = vmatprep.subr.mxu0 %v1080
    %3412 = vmatpush1.msra.mxu0 %v1079
    %3413 = vmatprep.subr.mxu0 0.0
    %3414 = vmatpush2.msra.mxu0 0.0
    %3415 = vmatprep.subr.mxu0 0.0
    %3416 = vmatpush2.msra.mxu0 0.0
    %3417 = vmatprep.subr.mxu0 0.0
    %3418 = vmatpush2.msra.mxu0 0.0
    %3419 = vmatprep.subr.mxu0 0.0
    %3420 = vmatpush2.msra.mxu0 0.0
    %3421 = vmatprep.subr.mxu0 0.0
    %3422 = vmatpush2.msra.mxu0 0.0
    %3423 = vmatprep.subr.mxu0 0.0
    %3424 = vmatpush2.msra.mxu0 0.0
    %3425 = vmatprep.subr.mxu0 0.0
    %3426 = vmatpush2.msra.mxu0 0.0
    %3427 = vmatprep.subr.mxu0 0.0
    %3428 = vmatpush2.msra.mxu0 0.0
    %3429 = vmatprep.subr.mxu0 0.0
    %3430 = vmatpush2.msra.mxu0 0.0
    %3431 = vmatprep.subr.mxu0 0.0
    %3432 = vmatpush2.msra.mxu0 0.0
    %3433 = vmatprep.subr.mxu0 0.0
    %3434 = vmatpush2.msra.mxu0 0.0
    %3435 = vmatprep.subr.mxu0 0.0
    %3436 = vmatpush2.msra.mxu0 0.0
    %3437 = vmatprep.subr.mxu0 0.0
    %3438 = vmatpush2.msra.mxu0 0.0
    %3439 = vmatprep.subr.mxu0 0.0
    %3440 = vmatpush2.msra.mxu0 0.0
    %3441 = vmatprep.subr.mxu0 0.0
    %3442 = vmatpush2.msra.mxu0 0.0
    %3443 = vmatprep.subr.mxu0 0.0
    %3444 = vmatpush2.msra.mxu0 0.0
    %3445 = vmatprep.mubr.f32.mxu0 0.0
    %3446 = vmatmul.mubr.f32.gmra.mxu0 %v3279
    %v3447 = vpop.f32.mrf.mxu0
    %v3448 = vadd.f32 0.0, %v3447
    %v3449 = vpop.f32.mrf.mxu0
    %v3450 = vadd.f32 0.0, %v3449
    %3451 = vdwg.mxu0
    %v3452 = vadd.f32 %v3306, %v3377
    %v3453 = vadd.f32 %v3307, %v3379
    %v3454 = vadd.f32 %v3308, %v3448
    %v3455 = vadd.f32 %v3309, %v3450
    %v3456 = vld [vmem:[#allocation3 + $0x60] sm:$0xff]
    %v3457 = vld [vmem:[#allocation3 + $0x68] sm:$0xff]
    %v3458 = vld [vmem:[#allocation3 + $0x70] sm:$0xff]
    %v3459 = vld [vmem:[#allocation3 + $0x78] sm:$0xff]
    %3460 = vmatprep.subr.mxu0 %v1203
    %3461 = vmatpush1.msra.mxu0 %v1202
    %3462 = vmatprep.subr.mxu0 %v1199
    %3463 = vmatpush1.msra.mxu0 %v1198
    %3464 = vmatprep.subr.mxu0 %v1195
    %3465 = vmatpush1.msra.mxu0 %v1194
    %3466 = vmatprep.subr.mxu0 %v1191
    %3467 = vmatpush1.msra.mxu0 %v1190
    %3468 = vmatprep.subr.mxu0 %v1187
    %3469 = vmatpush1.msra.mxu0 %v1186
    %3470 = vmatprep.subr.mxu0 %v1183
    %3471 = vmatpush1.msra.mxu0 %v1182
    %3472 = vmatprep.subr.mxu0 %v1179
    %3473 = vmatpush1.msra.mxu0 %v1178
    %3474 = vmatprep.subr.mxu0 %v1175
    %3475 = vmatpush1.msra.mxu0 %v1174
    %3476 = vmatprep.subr.mxu0 %v1171
    %3477 = vmatpush1.msra.mxu0 %v1170
    %3478 = vmatprep.subr.mxu0 %v1167
    %3479 = vmatpush1.msra.mxu0 %v1166
    %3480 = vmatprep.subr.mxu0 %v1163
    %3481 = vmatpush1.msra.mxu0 %v1162
    %3482 = vmatprep.subr.mxu0 %v1159
    %3483 = vmatpush1.msra.mxu0 %v1158
    %3484 = vmatprep.subr.mxu0 %v1155
    %3485 = vmatpush1.msra.mxu0 %v1154
    %3486 = vmatprep.subr.mxu0 %v1151
    %3487 = vmatpush1.msra.mxu0 %v1150
    %3488 = vmatprep.subr.mxu0 %v1147
    %3489 = vmatpush1.msra.mxu0 %v1146
    %3490 = vmatprep.subr.mxu0 %v1143
    %3491 = vmatpush1.msra.mxu0 %v1142
    %3492 = vmatprep.subr.mxu0 0.0
    %3493 = vmatpush2.msra.mxu0 0.0
    %3494 = vmatprep.subr.mxu0 0.0
    %3495 = vmatpush2.msra.mxu0 0.0
    %3496 = vmatprep.subr.mxu0 0.0
    %3497 = vmatpush2.msra.mxu0 0.0
    %3498 = vmatprep.subr.mxu0 0.0
    %3499 = vmatpush2.msra.mxu0 0.0
    %3500 = vmatprep.subr.mxu0 0.0
    %3501 = vmatpush2.msra.mxu0 0.0
    %3502 = vmatprep.subr.mxu0 0.0
    %3503 = vmatpush2.msra.mxu0 0.0
    %3504 = vmatprep.subr.mxu0 0.0
    %3505 = vmatpush2.msra.mxu0 0.0
    %3506 = vmatprep.subr.mxu0 0.0
    %3507 = vmatpush2.msra.mxu0 0.0
    %3508 = vmatprep.subr.mxu0 0.0
    %3509 = vmatpush2.msra.mxu0 0.0
    %3510 = vmatprep.subr.mxu0 0.0
    %3511 = vmatpush2.msra.mxu0 0.0
    %3512 = vmatprep.subr.mxu0 0.0
    %3513 = vmatpush2.msra.mxu0 0.0
    %3514 = vmatprep.subr.mxu0 0.0
    %3515 = vmatpush2.msra.mxu0 0.0
    %3516 = vmatprep.subr.mxu0 0.0
    %3517 = vmatpush2.msra.mxu0 0.0
    %3518 = vmatprep.subr.mxu0 0.0
    %3519 = vmatpush2.msra.mxu0 0.0
    %3520 = vmatprep.subr.mxu0 0.0
    %3521 = vmatpush2.msra.mxu0 0.0
    %3522 = vmatprep.subr.mxu0 0.0
    %3523 = vmatpush2.msra.mxu0 0.0
    %3524 = vmatprep.mubr.f32.mxu0 0.0
    %3525 = vmatmul.mubr.f32.gmra.mxu0 %v3303
    %v3526 = vpop.f32.mrf.mxu0
    %v3527 = vadd.f32 0.0, %v3526
    %v3528 = vpop.f32.mrf.mxu0
    %v3529 = vadd.f32 0.0, %v3528
    %3530 = vdwg.mxu0
    %3531 = vmatprep.subr.mxu0 %v1205
    %3532 = vmatpush1.msra.mxu0 %v1204
    %3533 = vmatprep.subr.mxu0 %v1201
    %3534 = vmatpush1.msra.mxu0 %v1200
    %3535 = vmatprep.subr.mxu0 %v1197
    %3536 = vmatpush1.msra.mxu0 %v1196
    %3537 = vmatprep.subr.mxu0 %v1193
    %3538 = vmatpush1.msra.mxu0 %v1192
    %3539 = vmatprep.subr.mxu0 %v1189
    %3540 = vmatpush1.msra.mxu0 %v1188
    %3541 = vmatprep.subr.mxu0 %v1185
    %3542 = vmatpush1.msra.mxu0 %v1184
    %3543 = vmatprep.subr.mxu0 %v1181
    %3544 = vmatpush1.msra.mxu0 %v1180
    %3545 = vmatprep.subr.mxu0 %v1177
    %3546 = vmatpush1.msra.mxu0 %v1176
    %3547 = vmatprep.subr.mxu0 %v1173
    %3548 = vmatpush1.msra.mxu0 %v1172
    %3549 = vmatprep.subr.mxu0 %v1169
    %3550 = vmatpush1.msra.mxu0 %v1168
    %3551 = vmatprep.subr.mxu0 %v1165
    %3552 = vmatpush1.msra.mxu0 %v1164
    %3553 = vmatprep.subr.mxu0 %v1161
    %3554 = vmatpush1.msra.mxu0 %v1160
    %3555 = vmatprep.subr.mxu0 %v1157
    %3556 = vmatpush1.msra.mxu0 %v1156
    %3557 = vmatprep.subr.mxu0 %v1153
    %3558 = vmatpush1.msra.mxu0 %v1152
    %3559 = vmatprep.subr.mxu0 %v1149
    %3560 = vmatpush1.msra.mxu0 %v1148
    %3561 = vmatprep.subr.mxu0 %v1145
    %3562 = vmatpush1.msra.mxu0 %v1144
    %3563 = vmatprep.subr.mxu0 0.0
    %3564 = vmatpush2.msra.mxu0 0.0
    %3565 = vmatprep.subr.mxu0 0.0
    %3566 = vmatpush2.msra.mxu0 0.0
    %3567 = vmatprep.subr.mxu0 0.0
    %3568 = vmatpush2.msra.mxu0 0.0
    %3569 = vmatprep.subr.mxu0 0.0
    %3570 = vmatpush2.msra.mxu0 0.0
    %3571 = vmatprep.subr.mxu0 0.0
    %3572 = vmatpush2.msra.mxu0 0.0
    %3573 = vmatprep.subr.mxu0 0.0
    %3574 = vmatpush2.msra.mxu0 0.0
    %3575 = vmatprep.subr.mxu0 0.0
    %3576 = vmatpush2.msra.mxu0 0.0
    %3577 = vmatprep.subr.mxu0 0.0
    %3578 = vmatpush2.msra.mxu0 0.0
    %3579 = vmatprep.subr.mxu0 0.0
    %3580 = vmatpush2.msra.mxu0 0.0
    %3581 = vmatprep.subr.mxu0 0.0
    %3582 = vmatpush2.msra.mxu0 0.0
    %3583 = vmatprep.subr.mxu0 0.0
    %3584 = vmatpush2.msra.mxu0 0.0
    %3585 = vmatprep.subr.mxu0 0.0
    %3586 = vmatpush2.msra.mxu0 0.0
    %3587 = vmatprep.subr.mxu0 0.0
    %3588 = vmatpush2.msra.mxu0 0.0
    %3589 = vmatprep.subr.mxu0 0.0
    %3590 = vmatpush2.msra.mxu0 0.0
    %3591 = vmatprep.subr.mxu0 0.0
    %3592 = vmatpush2.msra.mxu0 0.0
    %3593 = vmatprep.subr.mxu0 0.0
    %3594 = vmatpush2.msra.mxu0 0.0
    %3595 = vmatprep.mubr.f32.mxu0 0.0
    %3596 = vmatmul.mubr.f32.gmra.mxu0 %v3303
    %v3597 = vpop.f32.mrf.mxu0
    %v3598 = vadd.f32 0.0, %v3597
    %v3599 = vpop.f32.mrf.mxu0
    %v3600 = vadd.f32 0.0, %v3599
    %3601 = vdwg.mxu0
    %v3602 = vadd.f32 %v3456, %v3527
    %v3603 = vadd.f32 %v3457, %v3529
    %v3604 = vadd.f32 %v3458, %v3598
    %v3605 = vadd.f32 %v3459, %v3600
    %v3606 = vxor.u32 %v3452, 2147483648
    %v3607 = vmul.f32 %v3606, 1.442695
    %v3608 = vpow.pop %v3607
    %v3609 = vadd.f32 %v3608, 1.0
    %v3610 = vrcp.pop %v3609
    %v3611 = vmul.f32 1.0, %v3610
    %v3612 = vxor.u32 %v3453, 2147483648
    %v3613 = vmul.f32 %v3612, 1.442695
    %v3614 = vpow.pop %v3613
    %v3615 = vadd.f32 %v3614, 1.0
    %v3616 = vrcp.pop %v3615
    %v3617 = vmul.f32 1.0, %v3616
    %v3618 = vtanh.pop %v3454
    %v3619 = vxor.u32 %v3455, 2147483648
    %v3620 = vmul.f32 %v3619, 1.442695
    %v3621 = vpow.pop %v3620
    %v3622 = vadd.f32 %v3621, 1.0
    %v3623 = vrcp.pop %v3622
    %v3624 = vmul.f32 1.0, %v3623
    %v3625 = vmul.f32 %v3617, %v3277
    %v3626 = vmul.f32 %v3611, %v3618
    %v3627 = vadd.f32 %v3625, %v3626
    %v3628 = vtanh.pop %v3627
    %v3629 = vmul.f32 %v3624, %v3628
    %v3630 = vxor.u32 %v3602, 2147483648
    %v3631 = vmul.f32 %v3630, 1.442695
    %v3632 = vpow.pop %v3631
    %v3633 = vadd.f32 %v3632, 1.0
    %v3634 = vrcp.pop %v3633
    %v3635 = vmul.f32 1.0, %v3634
    %v3636 = vxor.u32 %v3603, 2147483648
    %v3637 = vmul.f32 %v3636, 1.442695
    %v3638 = vpow.pop %v3637
    %v3639 = vadd.f32 %v3638, 1.0
    %v3640 = vrcp.pop %v3639
    %v3641 = vmul.f32 1.0, %v3640
    %v3642 = vtanh.pop %v3604
    %v3643 = vxor.u32 %v3605, 2147483648
    %v3644 = vmul.f32 %v3643, 1.442695
    %v3645 = vpow.pop %v3644
    %v3646 = vadd.f32 %v3645, 1.0
    %v3647 = vrcp.pop %v3646
    %v3648 = vmul.f32 1.0, %v3647
    %v3649 = vmul.f32 %v3641, %v3301
    %v3650 = vmul.f32 %v3635, %v3642
    %v3651 = vadd.f32 %v3649, %v3650
    %v3652 = vtanh.pop %v3651
    %v3653 = vmul.f32 %v3648, %v3652
    %3654 = vst [vmem:[#allocation2 + $0x60] sm:$0xff] %v3629
    %3655 = vst [vmem:[#allocation2 + $0x18] sm:$0xff] %v3653
    %v3656 = vld [vmem:[#allocation3 + $0x1c0] sm:$0xff]
    %v3657 = vld [vmem:[#allocation3 + $0x1c8] sm:$0xff]
    %v3658 = vld [vmem:[#allocation3 + $0x1d0] sm:$0xff]
    %v3659 = vld [vmem:[#allocation3 + $0x1d8] sm:$0xff]
    %3660 = vmatprep.subr.mxu0 %v1138
    %3661 = vmatpush1.msra.mxu0 %v1137
    %3662 = vmatprep.subr.mxu0 %v1134
    %3663 = vmatpush1.msra.mxu0 %v1133
    %3664 = vmatprep.subr.mxu0 %v1130
    %3665 = vmatpush1.msra.mxu0 %v1129
    %3666 = vmatprep.subr.mxu0 %v1126
    %3667 = vmatpush1.msra.mxu0 %v1125
    %3668 = vmatprep.subr.mxu0 %v1122
    %3669 = vmatpush1.msra.mxu0 %v1121
    %3670 = vmatprep.subr.mxu0 %v1118
    %3671 = vmatpush1.msra.mxu0 %v1117
    %3672 = vmatprep.subr.mxu0 %v1114
    %3673 = vmatpush1.msra.mxu0 %v1113
    %3674 = vmatprep.subr.mxu0 %v1110
    %3675 = vmatpush1.msra.mxu0 %v1109
    %3676 = vmatprep.subr.mxu0 %v1106
    %3677 = vmatpush1.msra.mxu0 %v1105
    %3678 = vmatprep.subr.mxu0 %v1102
    %3679 = vmatpush1.msra.mxu0 %v1101
    %3680 = vmatprep.subr.mxu0 %v1098
    %3681 = vmatpush1.msra.mxu0 %v1097
    %3682 = vmatprep.subr.mxu0 %v1094
    %3683 = vmatpush1.msra.mxu0 %v1093
    %3684 = vmatprep.subr.mxu0 %v1090
    %3685 = vmatpush1.msra.mxu0 %v1089
    %3686 = vmatprep.subr.mxu0 %v1086
    %3687 = vmatpush1.msra.mxu0 %v1085
    %3688 = vmatprep.subr.mxu0 %v1082
    %3689 = vmatpush1.msra.mxu0 %v1081
    %3690 = vmatprep.subr.mxu0 %v1078
    %3691 = vmatpush1.msra.mxu0 %v1077
    %3692 = vmatprep.subr.mxu0 0.0
    %3693 = vmatpush2.msra.mxu0 0.0
    %3694 = vmatprep.subr.mxu0 0.0
    %3695 = vmatpush2.msra.mxu0 0.0
    %3696 = vmatprep.subr.mxu0 0.0
    %3697 = vmatpush2.msra.mxu0 0.0
    %3698 = vmatprep.subr.mxu0 0.0
    %3699 = vmatpush2.msra.mxu0 0.0
    %3700 = vmatprep.subr.mxu0 0.0
    %3701 = vmatpush2.msra.mxu0 0.0
    %3702 = vmatprep.subr.mxu0 0.0
    %3703 = vmatpush2.msra.mxu0 0.0
    %3704 = vmatprep.subr.mxu0 0.0
    %3705 = vmatpush2.msra.mxu0 0.0
    %3706 = vmatprep.subr.mxu0 0.0
    %3707 = vmatpush2.msra.mxu0 0.0
    %3708 = vmatprep.subr.mxu0 0.0
    %3709 = vmatpush2.msra.mxu0 0.0
    %3710 = vmatprep.subr.mxu0 0.0
    %3711 = vmatpush2.msra.mxu0 0.0
    %3712 = vmatprep.subr.mxu0 0.0
    %3713 = vmatpush2.msra.mxu0 0.0
    %3714 = vmatprep.subr.mxu0 0.0
    %3715 = vmatpush2.msra.mxu0 0.0
    %3716 = vmatprep.subr.mxu0 0.0
    %3717 = vmatpush2.msra.mxu0 0.0
    %3718 = vmatprep.subr.mxu0 0.0
    %3719 = vmatpush2.msra.mxu0 0.0
    %3720 = vmatprep.subr.mxu0 0.0
    %3721 = vmatpush2.msra.mxu0 0.0
    %3722 = vmatprep.subr.mxu0 0.0
    %3723 = vmatpush2.msra.mxu0 0.0
    %3724 = vmatprep.mubr.f32.mxu0 0.0
    %3725 = vmatmul.mubr.f32.gmra.mxu0 %v3629
    %v3726 = vpop.f32.mrf.mxu0
    %v3727 = vadd.f32 0.0, %v3726
    %v3728 = vpop.f32.mrf.mxu0
    %v3729 = vadd.f32 0.0, %v3728
    %3730 = vdwg.mxu0
    %3731 = vmatprep.subr.mxu0 %v1140
    %3732 = vmatpush1.msra.mxu0 %v1139
    %3733 = vmatprep.subr.mxu0 %v1136
    %3734 = vmatpush1.msra.mxu0 %v1135
    %3735 = vmatprep.subr.mxu0 %v1132
    %3736 = vmatpush1.msra.mxu0 %v1131
    %3737 = vmatprep.subr.mxu0 %v1128
    %3738 = vmatpush1.msra.mxu0 %v1127
    %3739 = vmatprep.subr.mxu0 %v1124
    %3740 = vmatpush1.msra.mxu0 %v1123
    %3741 = vmatprep.subr.mxu0 %v1120
    %3742 = vmatpush1.msra.mxu0 %v1119
    %3743 = vmatprep.subr.mxu0 %v1116
    %3744 = vmatpush1.msra.mxu0 %v1115
    %3745 = vmatprep.subr.mxu0 %v1112
    %3746 = vmatpush1.msra.mxu0 %v1111
    %3747 = vmatprep.subr.mxu0 %v1108
    %3748 = vmatpush1.msra.mxu0 %v1107
    %3749 = vmatprep.subr.mxu0 %v1104
    %3750 = vmatpush1.msra.mxu0 %v1103
    %3751 = vmatprep.subr.mxu0 %v1100
    %3752 = vmatpush1.msra.mxu0 %v1099
    %3753 = vmatprep.subr.mxu0 %v1096
    %3754 = vmatpush1.msra.mxu0 %v1095
    %3755 = vmatprep.subr.mxu0 %v1092
    %3756 = vmatpush1.msra.mxu0 %v1091
    %3757 = vmatprep.subr.mxu0 %v1088
    %3758 = vmatpush1.msra.mxu0 %v1087
    %3759 = vmatprep.subr.mxu0 %v1084
    %3760 = vmatpush1.msra.mxu0 %v1083
    %3761 = vmatprep.subr.mxu0 %v1080
    %3762 = vmatpush1.msra.mxu0 %v1079
    %3763 = vmatprep.subr.mxu0 0.0
    %3764 = vmatpush2.msra.mxu0 0.0
    %3765 = vmatprep.subr.mxu0 0.0
    %3766 = vmatpush2.msra.mxu0 0.0
    %3767 = vmatprep.subr.mxu0 0.0
    %3768 = vmatpush2.msra.mxu0 0.0
    %3769 = vmatprep.subr.mxu0 0.0
    %3770 = vmatpush2.msra.mxu0 0.0
    %3771 = vmatprep.subr.mxu0 0.0
    %3772 = vmatpush2.msra.mxu0 0.0
    %3773 = vmatprep.subr.mxu0 0.0
    %3774 = vmatpush2.msra.mxu0 0.0
    %3775 = vmatprep.subr.mxu0 0.0
    %3776 = vmatpush2.msra.mxu0 0.0
    %3777 = vmatprep.subr.mxu0 0.0
    %3778 = vmatpush2.msra.mxu0 0.0
    %3779 = vmatprep.subr.mxu0 0.0
    %3780 = vmatpush2.msra.mxu0 0.0
    %3781 = vmatprep.subr.mxu0 0.0
    %3782 = vmatpush2.msra.mxu0 0.0
    %3783 = vmatprep.subr.mxu0 0.0
    %3784 = vmatpush2.msra.mxu0 0.0
    %3785 = vmatprep.subr.mxu0 0.0
    %3786 = vmatpush2.msra.mxu0 0.0
    %3787 = vmatprep.subr.mxu0 0.0
    %3788 = vmatpush2.msra.mxu0 0.0
    %3789 = vmatprep.subr.mxu0 0.0
    %3790 = vmatpush2.msra.mxu0 0.0
    %3791 = vmatprep.subr.mxu0 0.0
    %3792 = vmatpush2.msra.mxu0 0.0
    %3793 = vmatprep.subr.mxu0 0.0
    %3794 = vmatpush2.msra.mxu0 0.0
    %3795 = vmatprep.mubr.f32.mxu0 0.0
    %3796 = vmatmul.mubr.f32.gmra.mxu0 %v3629
    %v3797 = vpop.f32.mrf.mxu0
    %v3798 = vadd.f32 0.0, %v3797
    %v3799 = vpop.f32.mrf.mxu0
    %v3800 = vadd.f32 0.0, %v3799
    %3801 = vdwg.mxu0
    %v3802 = vadd.f32 %v3656, %v3727
    %v3803 = vadd.f32 %v3657, %v3729
    %v3804 = vadd.f32 %v3658, %v3798
    %v3805 = vadd.f32 %v3659, %v3800
    %v3806 = vld [vmem:[#allocation3 + $0x20] sm:$0xff]
    %v3807 = vld [vmem:[#allocation3 + $0x28] sm:$0xff]
    %v3808 = vld [vmem:[#allocation3 + $0x30] sm:$0xff]
    %v3809 = vld [vmem:[#allocation3 + $0x38] sm:$0xff]
    %3810 = vmatprep.subr.mxu0 %v1203
    %3811 = vmatpush1.msra.mxu0 %v1202
    %3812 = vmatprep.subr.mxu0 %v1199
    %3813 = vmatpush1.msra.mxu0 %v1198
    %3814 = vmatprep.subr.mxu0 %v1195
    %3815 = vmatpush1.msra.mxu0 %v1194
    %3816 = vmatprep.subr.mxu0 %v1191
    %3817 = vmatpush1.msra.mxu0 %v1190
    %3818 = vmatprep.subr.mxu0 %v1187
    %3819 = vmatpush1.msra.mxu0 %v1186
    %3820 = vmatprep.subr.mxu0 %v1183
    %3821 = vmatpush1.msra.mxu0 %v1182
    %3822 = vmatprep.subr.mxu0 %v1179
    %3823 = vmatpush1.msra.mxu0 %v1178
    %3824 = vmatprep.subr.mxu0 %v1175
    %3825 = vmatpush1.msra.mxu0 %v1174
    %3826 = vmatprep.subr.mxu0 %v1171
    %3827 = vmatpush1.msra.mxu0 %v1170
    %3828 = vmatprep.subr.mxu0 %v1167
    %3829 = vmatpush1.msra.mxu0 %v1166
    %3830 = vmatprep.subr.mxu0 %v1163
    %3831 = vmatpush1.msra.mxu0 %v1162
    %3832 = vmatprep.subr.mxu0 %v1159
    %3833 = vmatpush1.msra.mxu0 %v1158
    %3834 = vmatprep.subr.mxu0 %v1155
    %3835 = vmatpush1.msra.mxu0 %v1154
    %3836 = vmatprep.subr.mxu0 %v1151
    %3837 = vmatpush1.msra.mxu0 %v1150
    %3838 = vmatprep.subr.mxu0 %v1147
    %3839 = vmatpush1.msra.mxu0 %v1146
    %3840 = vmatprep.subr.mxu0 %v1143
    %3841 = vmatpush1.msra.mxu0 %v1142
    %3842 = vmatprep.subr.mxu0 0.0
    %3843 = vmatpush2.msra.mxu0 0.0
    %3844 = vmatprep.subr.mxu0 0.0
    %3845 = vmatpush2.msra.mxu0 0.0
    %3846 = vmatprep.subr.mxu0 0.0
    %3847 = vmatpush2.msra.mxu0 0.0
    %3848 = vmatprep.subr.mxu0 0.0
    %3849 = vmatpush2.msra.mxu0 0.0
    %3850 = vmatprep.subr.mxu0 0.0
    %3851 = vmatpush2.msra.mxu0 0.0
    %3852 = vmatprep.subr.mxu0 0.0
    %3853 = vmatpush2.msra.mxu0 0.0
    %3854 = vmatprep.subr.mxu0 0.0
    %3855 = vmatpush2.msra.mxu0 0.0
    %3856 = vmatprep.subr.mxu0 0.0
    %3857 = vmatpush2.msra.mxu0 0.0
    %3858 = vmatprep.subr.mxu0 0.0
    %3859 = vmatpush2.msra.mxu0 0.0
    %3860 = vmatprep.subr.mxu0 0.0
    %3861 = vmatpush2.msra.mxu0 0.0
    %3862 = vmatprep.subr.mxu0 0.0
    %3863 = vmatpush2.msra.mxu0 0.0
    %3864 = vmatprep.subr.mxu0 0.0
    %3865 = vmatpush2.msra.mxu0 0.0
    %3866 = vmatprep.subr.mxu0 0.0
    %3867 = vmatpush2.msra.mxu0 0.0
    %3868 = vmatprep.subr.mxu0 0.0
    %3869 = vmatpush2.msra.mxu0 0.0
    %3870 = vmatprep.subr.mxu0 0.0
    %3871 = vmatpush2.msra.mxu0 0.0
    %3872 = vmatprep.subr.mxu0 0.0
    %3873 = vmatpush2.msra.mxu0 0.0
    %3874 = vmatprep.mubr.f32.mxu0 0.0
    %3875 = vmatmul.mubr.f32.gmra.mxu0 %v3653
    %v3876 = vpop.f32.mrf.mxu0
    %v3877 = vadd.f32 0.0, %v3876
    %v3878 = vpop.f32.mrf.mxu0
    %v3879 = vadd.f32 0.0, %v3878
    %3880 = vdwg.mxu0
    %3881 = vmatprep.subr.mxu0 %v1205
    %3882 = vmatpush1.msra.mxu0 %v1204
    %3883 = vmatprep.subr.mxu0 %v1201
    %3884 = vmatpush1.msra.mxu0 %v1200
    %3885 = vmatprep.subr.mxu0 %v1197
    %3886 = vmatpush1.msra.mxu0 %v1196
    %3887 = vmatprep.subr.mxu0 %v1193
    %3888 = vmatpush1.msra.mxu0 %v1192
    %3889 = vmatprep.subr.mxu0 %v1189
    %3890 = vmatpush1.msra.mxu0 %v1188
    %3891 = vmatprep.subr.mxu0 %v1185
    %3892 = vmatpush1.msra.mxu0 %v1184
    %3893 = vmatprep.subr.mxu0 %v1181
    %3894 = vmatpush1.msra.mxu0 %v1180
    %3895 = vmatprep.subr.mxu0 %v1177
    %3896 = vmatpush1.msra.mxu0 %v1176
    %3897 = vmatprep.subr.mxu0 %v1173
    %3898 = vmatpush1.msra.mxu0 %v1172
    %3899 = vmatprep.subr.mxu0 %v1169
    %3900 = vmatpush1.msra.mxu0 %v1168
    %3901 = vmatprep.subr.mxu0 %v1165
    %3902 = vmatpush1.msra.mxu0 %v1164
    %3903 = vmatprep.subr.mxu0 %v1161
    %3904 = vmatpush1.msra.mxu0 %v1160
    %3905 = vmatprep.subr.mxu0 %v1157
    %3906 = vmatpush1.msra.mxu0 %v1156
    %3907 = vmatprep.subr.mxu0 %v1153
    %3908 = vmatpush1.msra.mxu0 %v1152
    %3909 = vmatprep.subr.mxu0 %v1149
    %3910 = vmatpush1.msra.mxu0 %v1148
    %3911 = vmatprep.subr.mxu0 %v1145
    %3912 = vmatpush1.msra.mxu0 %v1144
    %3913 = vmatprep.subr.mxu0 0.0
    %3914 = vmatpush2.msra.mxu0 0.0
    %3915 = vmatprep.subr.mxu0 0.0
    %3916 = vmatpush2.msra.mxu0 0.0
    %3917 = vmatprep.subr.mxu0 0.0
    %3918 = vmatpush2.msra.mxu0 0.0
    %3919 = vmatprep.subr.mxu0 0.0
    %3920 = vmatpush2.msra.mxu0 0.0
    %3921 = vmatprep.subr.mxu0 0.0
    %3922 = vmatpush2.msra.mxu0 0.0
    %3923 = vmatprep.subr.mxu0 0.0
    %3924 = vmatpush2.msra.mxu0 0.0
    %3925 = vmatprep.subr.mxu0 0.0
    %3926 = vmatpush2.msra.mxu0 0.0
    %3927 = vmatprep.subr.mxu0 0.0
    %3928 = vmatpush2.msra.mxu0 0.0
    %3929 = vmatprep.subr.mxu0 0.0
    %3930 = vmatpush2.msra.mxu0 0.0
    %3931 = vmatprep.subr.mxu0 0.0
    %3932 = vmatpush2.msra.mxu0 0.0
    %3933 = vmatprep.subr.mxu0 0.0
    %3934 = vmatpush2.msra.mxu0 0.0
    %3935 = vmatprep.subr.mxu0 0.0
    %3936 = vmatpush2.msra.mxu0 0.0
    %3937 = vmatprep.subr.mxu0 0.0
    %3938 = vmatpush2.msra.mxu0 0.0
    %3939 = vmatprep.subr.mxu0 0.0
    %3940 = vmatpush2.msra.mxu0 0.0
    %3941 = vmatprep.subr.mxu0 0.0
    %3942 = vmatpush2.msra.mxu0 0.0
    %3943 = vmatprep.subr.mxu0 0.0
    %3944 = vmatpush2.msra.mxu0 0.0
    %3945 = vmatprep.mubr.f32.mxu0 0.0
    %3946 = vmatmul.mubr.f32.gmra.mxu0 %v3653
    %v3947 = vpop.f32.mrf.mxu0
    %v3948 = vadd.f32 0.0, %v3947
    %v3949 = vpop.f32.mrf.mxu0
    %v3950 = vadd.f32 0.0, %v3949
    %3951 = vdwg.mxu0
    %v3952 = vadd.f32 %v3806, %v3877
    %v3953 = vadd.f32 %v3807, %v3879
    %v3954 = vadd.f32 %v3808, %v3948
    %v3955 = vadd.f32 %v3809, %v3950
    %v3956 = vxor.u32 %v3802, 2147483648
    %v3957 = vmul.f32 %v3956, 1.442695
    %v3958 = vpow.pop %v3957
    %v3959 = vadd.f32 %v3958, 1.0
    %v3960 = vrcp.pop %v3959
    %v3961 = vmul.f32 1.0, %v3960
    %v3962 = vxor.u32 %v3803, 2147483648
    %v3963 = vmul.f32 %v3962, 1.442695
    %v3964 = vpow.pop %v3963
    %v3965 = vadd.f32 %v3964, 1.0
    %v3966 = vrcp.pop %v3965
    %v3967 = vmul.f32 1.0, %v3966
    %v3968 = vtanh.pop %v3804
    %v3969 = vxor.u32 %v3805, 2147483648
    %v3970 = vmul.f32 %v3969, 1.442695
    %v3971 = vpow.pop %v3970
    %v3972 = vadd.f32 %v3971, 1.0
    %v3973 = vrcp.pop %v3972
    %v3974 = vmul.f32 1.0, %v3973
    %v3975 = vmul.f32 %v3967, %v3627
    %v3976 = vmul.f32 %v3961, %v3968
    %v3977 = vadd.f32 %v3975, %v3976
    %v3978 = vtanh.pop %v3977
    %v3979 = vmul.f32 %v3974, %v3978
    %v3980 = vxor.u32 %v3952, 2147483648
    %v3981 = vmul.f32 %v3980, 1.442695
    %v3982 = vpow.pop %v3981
    %v3983 = vadd.f32 %v3982, 1.0
    %v3984 = vrcp.pop %v3983
    %v3985 = vmul.f32 1.0, %v3984
    %v3986 = vxor.u32 %v3953, 2147483648
    %v3987 = vmul.f32 %v3986, 1.442695
    %v3988 = vpow.pop %v3987
    %v3989 = vadd.f32 %v3988, 1.0
    %v3990 = vrcp.pop %v3989
    %v3991 = vmul.f32 1.0, %v3990
    %v3992 = vtanh.pop %v3954
    %v3993 = vxor.u32 %v3955, 2147483648
    %v3994 = vmul.f32 %v3993, 1.442695
    %v3995 = vpow.pop %v3994
    %v3996 = vadd.f32 %v3995, 1.0
    %v3997 = vrcp.pop %v3996
    %v3998 = vmul.f32 1.0, %v3997
    %v3999 = vmul.f32 %v3991, %v3651
    %v4000 = vmul.f32 %v3985, %v3992
    %v4001 = vadd.f32 %v3999, %v4000
    %v4002 = vtanh.pop %v4001
    %v4003 = vmul.f32 %v3998, %v4002
    %4004 = vst [vmem:[#allocation2 + $0x70] sm:$0xff] %v3979
    %4005 = vst [vmem:[#allocation2 + $0x8] sm:$0xff] %v4003
    %s4006 = smul.u32 8, 2
    %s4007 = smul.u32 %s4006, 32
    %s4008 = smul.u32 %s4007, 4
    %s4009 = sshll.u32 %s4008, 4
    %4010 = dma.done [#allocation8], %s4009
    %s4011 = smul.u32 8, 16
    %s4012 = smul.u32 %s4011, 4
    %s4013 = sshll.u32 %s4012, 4
    %4014 = dma.done %s65, %s4013
    %s4015 = smul.u32 256, 1
    %s4016 = sshll.u32 %s4015, 4
    %4017 = dma.done %s235, %s4016
    %v4018 = vld [vmem:[#allocation2] sm:$0xff]
    %v4019 = vld [vmem:[#allocation2 + $0x8] sm:$0xff]
    %v4020 = vld [vmem:[#allocation2 + $0x10] sm:$0xff]
    %v4021 = vld [vmem:[#allocation2 + $0x18] sm:$0xff]
    %v4022 = vld [vmem:[#allocation2 + $0x20] sm:$0xff]
    %v4023 = vld [vmem:[#allocation2 + $0x28] sm:$0xff]
    %v4024 = vld [vmem:[#allocation2 + $0x30] sm:$0xff]
    %v4025 = vld [vmem:[#allocation2 + $0x38] sm:$0xff]
    %v4026 = vld [vmem:[#allocation2 + $0x40] sm:$0xff]
    %v4027 = vld [vmem:[#allocation2 + $0x48] sm:$0xff]
    %v4028 = vld [vmem:[#allocation2 + $0x50] sm:$0xff]
    %v4029 = vld [vmem:[#allocation2 + $0x58] sm:$0xff]
    %v4030 = vld [vmem:[#allocation2 + $0x60] sm:$0xff]
    %v4031 = vld [vmem:[#allocation2 + $0x68] sm:$0xff]
    %v4032 = vld [vmem:[#allocation2 + $0x70] sm:$0xff]
    %v4033 = vld [vmem:[#allocation2 + $0x78] sm:$0xff]
    %v4034 = vld [vmem:[#allocation5] sm:$0xff]
    %v4035 = vld [vmem:[#allocation5 + $0x8] sm:$0xff]
    %v4036 = vld [vmem:[#allocation5 + $0x10] sm:$0xff]
    %v4037 = vld [vmem:[#allocation5 + $0x18] sm:$0xff]
    %v4038 = vld [vmem:[#allocation5 + $0x20] sm:$0xff]
    %v4039 = vld [vmem:[#allocation5 + $0x28] sm:$0xff]
    %v4040 = vld [vmem:[#allocation5 + $0x30] sm:$0xff]
    %v4041 = vld [vmem:[#allocation5 + $0x38] sm:$0xff]
    %v4042 = vld [vmem:[#allocation5 + $0x40] sm:$0xff]
    %v4043 = vld [vmem:[#allocation5 + $0x48] sm:$0xff]
    %v4044 = vld [vmem:[#allocation5 + $0x50] sm:$0xff]
    %v4045 = vld [vmem:[#allocation5 + $0x58] sm:$0xff]
    %v4046 = vld [vmem:[#allocation5 + $0x60] sm:$0xff]
    %v4047 = vld [vmem:[#allocation5 + $0x68] sm:$0xff]
    %v4048 = vld [vmem:[#allocation5 + $0x70] sm:$0xff]
    %v4049 = vld [vmem:[#allocation5 + $0x78] sm:$0xff]
    %v4050 = vld [vmem:[#allocation5 + $0x80] sm:$0xff]
    %v4051 = vld [vmem:[#allocation5 + $0x88] sm:$0xff]
    %v4052 = vld [vmem:[#allocation5 + $0x90] sm:$0xff]
    %v4053 = vld [vmem:[#allocation5 + $0x98] sm:$0xff]
    %v4054 = vld [vmem:[#allocation5 + $0xa0] sm:$0xff]
    %v4055 = vld [vmem:[#allocation5 + $0xa8] sm:$0xff]
    %v4056 = vld [vmem:[#allocation5 + $0xb0] sm:$0xff]
    %v4057 = vld [vmem:[#allocation5 + $0xb8] sm:$0xff]
    %v4058 = vld [vmem:[#allocation5 + $0xc0] sm:$0xff]
    %v4059 = vld [vmem:[#allocation5 + $0xc8] sm:$0xff]
    %v4060 = vld [vmem:[#allocation5 + $0xd0] sm:$0xff]
    %v4061 = vld [vmem:[#allocation5 + $0xd8] sm:$0xff]
    %v4062 = vld [vmem:[#allocation5 + $0xe0] sm:$0xff]
    %v4063 = vld [vmem:[#allocation5 + $0xe8] sm:$0xff]
    %v4064 = vld [vmem:[#allocation5 + $0xf0] sm:$0xff]
    %v4065 = vld [vmem:[#allocation5 + $0xf8] sm:$0xff]
    %v4066 = vld [vmem:[#allocation5 + $0x100] sm:$0xff]
    %v4067 = vld [vmem:[#allocation5 + $0x108] sm:$0xff]
    %v4068 = vld [vmem:[#allocation5 + $0x110] sm:$0xff]
    %v4069 = vld [vmem:[#allocation5 + $0x118] sm:$0xff]
    %v4070 = vld [vmem:[#allocation5 + $0x120] sm:$0xff]
    %v4071 = vld [vmem:[#allocation5 + $0x128] sm:$0xff]
    %v4072 = vld [vmem:[#allocation5 + $0x130] sm:$0xff]
    %v4073 = vld [vmem:[#allocation5 + $0x138] sm:$0xff]
    %v4074 = vld [vmem:[#allocation5 + $0x140] sm:$0xff]
    %v4075 = vld [vmem:[#allocation5 + $0x148] sm:$0xff]
    %v4076 = vld [vmem:[#allocation5 + $0x150] sm:$0xff]
    %v4077 = vld [vmem:[#allocation5 + $0x158] sm:$0xff]
    %v4078 = vld [vmem:[#allocation5 + $0x160] sm:$0xff]
    %v4079 = vld [vmem:[#allocation5 + $0x168] sm:$0xff]
    %v4080 = vld [vmem:[#allocation5 + $0x170] sm:$0xff]
    %v4081 = vld [vmem:[#allocation5 + $0x178] sm:$0xff]
    %v4082 = vld [vmem:[#allocation5 + $0x180] sm:$0xff]
    %v4083 = vld [vmem:[#allocation5 + $0x188] sm:$0xff]
    %v4084 = vld [vmem:[#allocation5 + $0x190] sm:$0xff]
    %v4085 = vld [vmem:[#allocation5 + $0x198] sm:$0xff]
    %v4086 = vld [vmem:[#allocation5 + $0x1a0] sm:$0xff]
    %v4087 = vld [vmem:[#allocation5 + $0x1a8] sm:$0xff]
    %v4088 = vld [vmem:[#allocation5 + $0x1b0] sm:$0xff]
    %v4089 = vld [vmem:[#allocation5 + $0x1b8] sm:$0xff]
    %v4090 = vld [vmem:[#allocation5 + $0x1c0] sm:$0xff]
    %v4091 = vld [vmem:[#allocation5 + $0x1c8] sm:$0xff]
    %v4092 = vld [vmem:[#allocation5 + $0x1d0] sm:$0xff]
    %v4093 = vld [vmem:[#allocation5 + $0x1d8] sm:$0xff]
    %v4094 = vld [vmem:[#allocation5 + $0x1e0] sm:$0xff]
    %v4095 = vld [vmem:[#allocation5 + $0x1e8] sm:$0xff]
    %v4096 = vld [vmem:[#allocation5 + $0x1f0] sm:$0xff]
    %v4097 = vld [vmem:[#allocation5 + $0x1f8] sm:$0xff]
    %v4098 = vld [vmem:[#allocation5 + $0x200] sm:$0xff]
    %v4099 = vld [vmem:[#allocation5 + $0x208] sm:$0xff]
    %v4100 = vld [vmem:[#allocation5 + $0x210] sm:$0xff]
    %v4101 = vld [vmem:[#allocation5 + $0x218] sm:$0xff]
    %v4102 = vld [vmem:[#allocation5 + $0x220] sm:$0xff]
    %v4103 = vld [vmem:[#allocation5 + $0x228] sm:$0xff]
    %v4104 = vld [vmem:[#allocation5 + $0x230] sm:$0xff]
    %v4105 = vld [vmem:[#allocation5 + $0x238] sm:$0xff]
    %v4106 = vld [vmem:[#allocation5 + $0x240] sm:$0xff]
    %v4107 = vld [vmem:[#allocation5 + $0x248] sm:$0xff]
    %v4108 = vld [vmem:[#allocation5 + $0x250] sm:$0xff]
    %v4109 = vld [vmem:[#allocation5 + $0x258] sm:$0xff]
    %v4110 = vld [vmem:[#allocation5 + $0x260] sm:$0xff]
    %v4111 = vld [vmem:[#allocation5 + $0x268] sm:$0xff]
    %v4112 = vld [vmem:[#allocation5 + $0x270] sm:$0xff]
    %v4113 = vld [vmem:[#allocation5 + $0x278] sm:$0xff]
    %v4114 = vld [vmem:[#allocation5 + $0x280] sm:$0xff]
    %v4115 = vld [vmem:[#allocation5 + $0x288] sm:$0xff]
    %v4116 = vld [vmem:[#allocation5 + $0x290] sm:$0xff]
    %v4117 = vld [vmem:[#allocation5 + $0x298] sm:$0xff]
    %v4118 = vld [vmem:[#allocation5 + $0x2a0] sm:$0xff]
    %v4119 = vld [vmem:[#allocation5 + $0x2a8] sm:$0xff]
    %v4120 = vld [vmem:[#allocation5 + $0x2b0] sm:$0xff]
    %v4121 = vld [vmem:[#allocation5 + $0x2b8] sm:$0xff]
    %v4122 = vld [vmem:[#allocation5 + $0x2c0] sm:$0xff]
    %v4123 = vld [vmem:[#allocation5 + $0x2c8] sm:$0xff]
    %v4124 = vld [vmem:[#allocation5 + $0x2d0] sm:$0xff]
    %v4125 = vld [vmem:[#allocation5 + $0x2d8] sm:$0xff]
    %v4126 = vld [vmem:[#allocation5 + $0x2e0] sm:$0xff]
    %v4127 = vld [vmem:[#allocation5 + $0x2e8] sm:$0xff]
    %v4128 = vld [vmem:[#allocation5 + $0x2f0] sm:$0xff]
    %v4129 = vld [vmem:[#allocation5 + $0x2f8] sm:$0xff]
    %v4130 = vld [vmem:[#allocation5 + $0x300] sm:$0xff]
    %v4131 = vld [vmem:[#allocation5 + $0x308] sm:$0xff]
    %v4132 = vld [vmem:[#allocation5 + $0x310] sm:$0xff]
    %v4133 = vld [vmem:[#allocation5 + $0x318] sm:$0xff]
    %v4134 = vld [vmem:[#allocation5 + $0x320] sm:$0xff]
    %v4135 = vld [vmem:[#allocation5 + $0x328] sm:$0xff]
    %v4136 = vld [vmem:[#allocation5 + $0x330] sm:$0xff]
    %v4137 = vld [vmem:[#allocation5 + $0x338] sm:$0xff]
    %v4138 = vld [vmem:[#allocation5 + $0x340] sm:$0xff]
    %v4139 = vld [vmem:[#allocation5 + $0x348] sm:$0xff]
    %v4140 = vld [vmem:[#allocation5 + $0x350] sm:$0xff]
    %v4141 = vld [vmem:[#allocation5 + $0x358] sm:$0xff]
    %v4142 = vld [vmem:[#allocation5 + $0x360] sm:$0xff]
    %v4143 = vld [vmem:[#allocation5 + $0x368] sm:$0xff]
    %v4144 = vld [vmem:[#allocation5 + $0x370] sm:$0xff]
    %v4145 = vld [vmem:[#allocation5 + $0x378] sm:$0xff]
    %v4146 = vld [vmem:[#allocation5 + $0x380] sm:$0xff]
    %v4147 = vld [vmem:[#allocation5 + $0x388] sm:$0xff]
    %v4148 = vld [vmem:[#allocation5 + $0x390] sm:$0xff]
    %v4149 = vld [vmem:[#allocation5 + $0x398] sm:$0xff]
    %v4150 = vld [vmem:[#allocation5 + $0x3a0] sm:$0xff]
    %v4151 = vld [vmem:[#allocation5 + $0x3a8] sm:$0xff]
    %v4152 = vld [vmem:[#allocation5 + $0x3b0] sm:$0xff]
    %v4153 = vld [vmem:[#allocation5 + $0x3b8] sm:$0xff]
    %v4154 = vld [vmem:[#allocation5 + $0x3c0] sm:$0xff]
    %v4155 = vld [vmem:[#allocation5 + $0x3c8] sm:$0xff]
    %v4156 = vld [vmem:[#allocation5 + $0x3d0] sm:$0xff]
    %v4157 = vld [vmem:[#allocation5 + $0x3d8] sm:$0xff]
    %v4158 = vld [vmem:[#allocation5 + $0x3e0] sm:$0xff]
    %v4159 = vld [vmem:[#allocation5 + $0x3e8] sm:$0xff]
    %v4160 = vld [vmem:[#allocation5 + $0x3f0] sm:$0xff]
    %v4161 = vld [vmem:[#allocation5 + $0x3f8] sm:$0xff]
    %v4162 = vld [vmem:[%s4] sm:$0xf]
    %v4164 = vlaneseq
    %v4165 = vshrl.u32 %v4164, 7
    %v4166 = vsub.s32 0, %v4165
    %v4167 = vrot.slane %v4162, %v4166
    %v4168 = vlaneseq
    %v4169 = vshrl.u32 %v4168, 7
    %v4170 = vsub.s32 1, %v4169
    %v4171 = vrot.slane %v4162, %v4170
    %v4172 = vlaneseq
    %v4173 = vshrl.u32 %v4172, 7
    %v4174 = vsub.s32 2, %v4173
    %v4175 = vrot.slane %v4162, %v4174
    %v4176 = vlaneseq
    %v4177 = vshrl.u32 %v4176, 7
    %v4178 = vsub.s32 3, %v4177
    %v4179 = vrot.slane %v4162, %v4178
    %4184 = vmatprep.subr.mxu0 %v4095
    %4185 = vmatpush1.msra.mxu0 %v4094
    %4186 = vmatprep.subr.mxu0 %v4091
    %4187 = vmatpush1.msra.mxu0 %v4090
    %4188 = vmatprep.subr.mxu0 %v4087
    %4189 = vmatpush1.msra.mxu0 %v4086
    %4190 = vmatprep.subr.mxu0 %v4083
    %4191 = vmatpush1.msra.mxu0 %v4082
    %4192 = vmatprep.subr.mxu0 %v4079
    %4193 = vmatpush1.msra.mxu0 %v4078
    %4194 = vmatprep.subr.mxu0 %v4075
    %4195 = vmatpush1.msra.mxu0 %v4074
    %4196 = vmatprep.subr.mxu0 %v4071
    %4197 = vmatpush1.msra.mxu0 %v4070
    %4198 = vmatprep.subr.mxu0 %v4067
    %4199 = vmatpush1.msra.mxu0 %v4066
    %4200 = vmatprep.subr.mxu0 %v4063
    %4201 = vmatpush1.msra.mxu0 %v4062
    %4202 = vmatprep.subr.mxu0 %v4059
    %4203 = vmatpush1.msra.mxu0 %v4058
    %4204 = vmatprep.subr.mxu0 %v4055
    %4205 = vmatpush1.msra.mxu0 %v4054
    %4206 = vmatprep.subr.mxu0 %v4051
    %4207 = vmatpush1.msra.mxu0 %v4050
    %4208 = vmatprep.subr.mxu0 %v4047
    %4209 = vmatpush1.msra.mxu0 %v4046
    %4210 = vmatprep.subr.mxu0 %v4043
    %4211 = vmatpush1.msra.mxu0 %v4042
    %4212 = vmatprep.subr.mxu0 %v4039
    %4213 = vmatpush1.msra.mxu0 %v4038
    %4214 = vmatprep.subr.mxu0 %v4035
    %4215 = vmatpush1.msra.mxu0 %v4034
    %4216 = vmatprep.subr.mxu0 %v4159
    %4217 = vmatpush2.msra.mxu0 %v4158
    %4218 = vmatprep.subr.mxu0 %v4155
    %4219 = vmatpush2.msra.mxu0 %v4154
    %4220 = vmatprep.subr.mxu0 %v4151
    %4221 = vmatpush2.msra.mxu0 %v4150
    %4222 = vmatprep.subr.mxu0 %v4147
    %4223 = vmatpush2.msra.mxu0 %v4146
    %4224 = vmatprep.subr.mxu0 %v4143
    %4225 = vmatpush2.msra.mxu0 %v4142
    %4226 = vmatprep.subr.mxu0 %v4139
    %4227 = vmatpush2.msra.mxu0 %v4138
    %4228 = vmatprep.subr.mxu0 %v4135
    %4229 = vmatpush2.msra.mxu0 %v4134
    %4230 = vmatprep.subr.mxu0 %v4131
    %4231 = vmatpush2.msra.mxu0 %v4130
    %4232 = vmatprep.subr.mxu0 %v4127
    %4233 = vmatpush2.msra.mxu0 %v4126
    %4234 = vmatprep.subr.mxu0 %v4123
    %4235 = vmatpush2.msra.mxu0 %v4122
    %4236 = vmatprep.subr.mxu0 %v4119
    %4237 = vmatpush2.msra.mxu0 %v4118
    %4238 = vmatprep.subr.mxu0 %v4115
    %4239 = vmatpush2.msra.mxu0 %v4114
    %4240 = vmatprep.subr.mxu0 %v4111
    %4241 = vmatpush2.msra.mxu0 %v4110
    %4242 = vmatprep.subr.mxu0 %v4107
    %4243 = vmatpush2.msra.mxu0 %v4106
    %4244 = vmatprep.subr.mxu0 %v4103
    %4245 = vmatpush2.msra.mxu0 %v4102
    %4246 = vmatprep.subr.mxu0 %v4099
    %4247 = vmatpush2.msra.mxu0 %v4098
    %4248 = vmatprep.mubr.f32.mxu0 %v4019
    %4249 = vmatmul.mubr.f32.gmra.mxu0 %v4018
    %v4250 = vpop.f32.mrf.mxu0
    %v4251 = vadd.f32 %v4167, %v4250
    %v4252 = vpop.f32.mrf.mxu0
    %v4253 = vadd.f32 %v4171, %v4252
    %4254 = vmatprep.mubr.f32.mxu0 %v4021
    %4255 = vmatmul.mubr.f32.gmra.mxu0 %v4020
    %v4256 = vpop.f32.mrf.mxu0
    %v4257 = vadd.f32 %v4167, %v4256
    %v4258 = vpop.f32.mrf.mxu0
    %v4259 = vadd.f32 %v4171, %v4258
    %4260 = vmatprep.mubr.f32.mxu0 %v4023
    %4261 = vmatmul.mubr.f32.gmra.mxu0 %v4022
    %v4262 = vpop.f32.mrf.mxu0
    %v4263 = vadd.f32 %v4167, %v4262
    %v4264 = vpop.f32.mrf.mxu0
    %v4265 = vadd.f32 %v4171, %v4264
    %4266 = vmatprep.mubr.f32.mxu0 %v4025
    %4267 = vmatmul.mubr.f32.gmra.mxu0 %v4024
    %v4268 = vpop.f32.mrf.mxu0
    %v4269 = vadd.f32 %v4167, %v4268
    %v4270 = vpop.f32.mrf.mxu0
    %v4271 = vadd.f32 %v4171, %v4270
    %4272 = vmatprep.mubr.f32.mxu0 %v4027
    %4273 = vmatmul.mubr.f32.gmra.mxu0 %v4026
    %v4274 = vpop.f32.mrf.mxu0
    %v4275 = vadd.f32 %v4167, %v4274
    %v4276 = vpop.f32.mrf.mxu0
    %v4277 = vadd.f32 %v4171, %v4276
    %4278 = vmatprep.mubr.f32.mxu0 %v4029
    %4279 = vmatmul.mubr.f32.gmra.mxu0 %v4028
    %v4280 = vpop.f32.mrf.mxu0
    %v4281 = vadd.f32 %v4167, %v4280
    %v4282 = vpop.f32.mrf.mxu0
    %v4283 = vadd.f32 %v4171, %v4282
    %4284 = vmatprep.mubr.f32.mxu0 %v4031
    %4285 = vmatmul.mubr.f32.gmra.mxu0 %v4030
    %v4286 = vpop.f32.mrf.mxu0
    %v4287 = vadd.f32 %v4167, %v4286
    %v4288 = vpop.f32.mrf.mxu0
    %v4289 = vadd.f32 %v4171, %v4288
    %4290 = vmatprep.mubr.f32.mxu0 %v4033
    %4291 = vmatmul.mubr.f32.gmra.mxu0 %v4032
    %v4292 = vpop.f32.mrf.mxu0
    %v4293 = vadd.f32 %v4167, %v4292
    %v4294 = vpop.f32.mrf.mxu0
    %v4295 = vadd.f32 %v4171, %v4294
    %4296 = vdwg.mxu0
    %4297 = vmatprep.subr.mxu0 %v4097
    %4298 = vmatpush1.msra.mxu0 %v4096
    %4299 = vmatprep.subr.mxu0 %v4093
    %4300 = vmatpush1.msra.mxu0 %v4092
    %4301 = vmatprep.subr.mxu0 %v4089
    %4302 = vmatpush1.msra.mxu0 %v4088
    %4303 = vmatprep.subr.mxu0 %v4085
    %4304 = vmatpush1.msra.mxu0 %v4084
    %4305 = vmatprep.subr.mxu0 %v4081
    %4306 = vmatpush1.msra.mxu0 %v4080
    %4307 = vmatprep.subr.mxu0 %v4077
    %4308 = vmatpush1.msra.mxu0 %v4076
    %4309 = vmatprep.subr.mxu0 %v4073
    %4310 = vmatpush1.msra.mxu0 %v4072
    %4311 = vmatprep.subr.mxu0 %v4069
    %4312 = vmatpush1.msra.mxu0 %v4068
    %4313 = vmatprep.subr.mxu0 %v4065
    %4314 = vmatpush1.msra.mxu0 %v4064
    %4315 = vmatprep.subr.mxu0 %v4061
    %4316 = vmatpush1.msra.mxu0 %v4060
    %4317 = vmatprep.subr.mxu0 %v4057
    %4318 = vmatpush1.msra.mxu0 %v4056
    %4319 = vmatprep.subr.mxu0 %v4053
    %4320 = vmatpush1.msra.mxu0 %v4052
    %4321 = vmatprep.subr.mxu0 %v4049
    %4322 = vmatpush1.msra.mxu0 %v4048
    %4323 = vmatprep.subr.mxu0 %v4045
    %4324 = vmatpush1.msra.mxu0 %v4044
    %4325 = vmatprep.subr.mxu0 %v4041
    %4326 = vmatpush1.msra.mxu0 %v4040
    %4327 = vmatprep.subr.mxu0 %v4037
    %4328 = vmatpush1.msra.mxu0 %v4036
    %4329 = vmatprep.subr.mxu0 %v4161
    %4330 = vmatpush2.msra.mxu0 %v4160
    %4331 = vmatprep.subr.mxu0 %v4157
    %4332 = vmatpush2.msra.mxu0 %v4156
    %4333 = vmatprep.subr.mxu0 %v4153
    %4334 = vmatpush2.msra.mxu0 %v4152
    %4335 = vmatprep.subr.mxu0 %v4149
    %4336 = vmatpush2.msra.mxu0 %v4148
    %4337 = vmatprep.subr.mxu0 %v4145
    %4338 = vmatpush2.msra.mxu0 %v4144
    %4339 = vmatprep.subr.mxu0 %v4141
    %4340 = vmatpush2.msra.mxu0 %v4140
    %4341 = vmatprep.subr.mxu0 %v4137
    %4342 = vmatpush2.msra.mxu0 %v4136
    %4343 = vmatprep.subr.mxu0 %v4133
    %4344 = vmatpush2.msra.mxu0 %v4132
    %4345 = vmatprep.subr.mxu0 %v4129
    %4346 = vmatpush2.msra.mxu0 %v4128
    %4347 = vmatprep.subr.mxu0 %v4125
    %4348 = vmatpush2.msra.mxu0 %v4124
    %4349 = vmatprep.subr.mxu0 %v4121
    %4350 = vmatpush2.msra.mxu0 %v4120
    %4351 = vmatprep.subr.mxu0 %v4117
    %4352 = vmatpush2.msra.mxu0 %v4116
    %4353 = vmatprep.subr.mxu0 %v4113
    %4354 = vmatpush2.msra.mxu0 %v4112
    %4355 = vmatprep.subr.mxu0 %v4109
    %4356 = vmatpush2.msra.mxu0 %v4108
    %4357 = vmatprep.subr.mxu0 %v4105
    %4358 = vmatpush2.msra.mxu0 %v4104
    %4359 = vmatprep.subr.mxu0 %v4101
    %4360 = vmatpush2.msra.mxu0 %v4100
    %4361 = vmatprep.mubr.f32.mxu0 %v4019
    %4362 = vmatmul.mubr.f32.gmra.mxu0 %v4018
    %v4363 = vpop.f32.mrf.mxu0
    %v4364 = vadd.f32 %v4175, %v4363
    %v4365 = vpop.f32.mrf.mxu0
    %v4366 = vadd.f32 %v4179, %v4365
    %4367 = vmatprep.mubr.f32.mxu0 %v4021
    %4368 = vmatmul.mubr.f32.gmra.mxu0 %v4020
    %v4369 = vpop.f32.mrf.mxu0
    %v4370 = vadd.f32 %v4175, %v4369
    %v4371 = vpop.f32.mrf.mxu0
    %v4372 = vadd.f32 %v4179, %v4371
    %4373 = vmatprep.mubr.f32.mxu0 %v4023
    %4374 = vmatmul.mubr.f32.gmra.mxu0 %v4022
    %v4375 = vpop.f32.mrf.mxu0
    %v4376 = vadd.f32 %v4175, %v4375
    %v4377 = vpop.f32.mrf.mxu0
    %v4378 = vadd.f32 %v4179, %v4377
    %4379 = vmatprep.mubr.f32.mxu0 %v4025
    %4380 = vmatmul.mubr.f32.gmra.mxu0 %v4024
    %v4381 = vpop.f32.mrf.mxu0
    %v4382 = vadd.f32 %v4175, %v4381
    %v4383 = vpop.f32.mrf.mxu0
    %v4384 = vadd.f32 %v4179, %v4383
    %4385 = vmatprep.mubr.f32.mxu0 %v4027
    %4386 = vmatmul.mubr.f32.gmra.mxu0 %v4026
    %v4387 = vpop.f32.mrf.mxu0
    %v4388 = vadd.f32 %v4175, %v4387
    %v4389 = vpop.f32.mrf.mxu0
    %v4390 = vadd.f32 %v4179, %v4389
    %4391 = vmatprep.mubr.f32.mxu0 %v4029
    %4392 = vmatmul.mubr.f32.gmra.mxu0 %v4028
    %v4393 = vpop.f32.mrf.mxu0
    %v4394 = vadd.f32 %v4175, %v4393
    %v4395 = vpop.f32.mrf.mxu0
    %v4396 = vadd.f32 %v4179, %v4395
    %4397 = vmatprep.mubr.f32.mxu0 %v4031
    %4398 = vmatmul.mubr.f32.gmra.mxu0 %v4030
    %v4399 = vpop.f32.mrf.mxu0
    %v4400 = vadd.f32 %v4175, %v4399
    %v4401 = vpop.f32.mrf.mxu0
    %v4402 = vadd.f32 %v4179, %v4401
    %4403 = vmatprep.mubr.f32.mxu0 %v4033
    %4404 = vmatmul.mubr.f32.gmra.mxu0 %v4032
    %v4405 = vpop.f32.mrf.mxu0
    %v4406 = vadd.f32 %v4175, %v4405
    %v4407 = vpop.f32.mrf.mxu0
    %v4408 = vadd.f32 %v4179, %v4407
    %4409 = vdwg.mxu0
    %4410 = vst [vmem:[#allocation4] sm:$0xff] %v4251
    %4411 = vst [vmem:[#allocation4 + $0x8] sm:$0xff] %v4253
    %4412 = vst [vmem:[#allocation4 + $0x10] sm:$0xff] %v4364
    %4413 = vst [vmem:[#allocation4 + $0x18] sm:$0xff] %v4366
    %4414 = vst [vmem:[#allocation4 + $0x20] sm:$0xff] %v4257
    %4415 = vst [vmem:[#allocation4 + $0x28] sm:$0xff] %v4259
    %4416 = vst [vmem:[#allocation4 + $0x30] sm:$0xff] %v4370
    %4417 = vst [vmem:[#allocation4 + $0x38] sm:$0xff] %v4372
    %4418 = vst [vmem:[#allocation4 + $0x40] sm:$0xff] %v4263
    %4419 = vst [vmem:[#allocation4 + $0x48] sm:$0xff] %v4265
    %4420 = vst [vmem:[#allocation4 + $0x50] sm:$0xff] %v4376
    %4421 = vst [vmem:[#allocation4 + $0x58] sm:$0xff] %v4378
    %4422 = vst [vmem:[#allocation4 + $0x60] sm:$0xff] %v4269
    %4423 = vst [vmem:[#allocation4 + $0x68] sm:$0xff] %v4271
    %4424 = vst [vmem:[#allocation4 + $0x70] sm:$0xff] %v4382
    %4425 = vst [vmem:[#allocation4 + $0x78] sm:$0xff] %v4384
    %4426 = vst [vmem:[#allocation4 + $0x80] sm:$0xff] %v4275
    %4427 = vst [vmem:[#allocation4 + $0x88] sm:$0xff] %v4277
    %4428 = vst [vmem:[#allocation4 + $0x90] sm:$0xff] %v4388
    %4429 = vst [vmem:[#allocation4 + $0x98] sm:$0xff] %v4390
    %4430 = vst [vmem:[#allocation4 + $0xa0] sm:$0xff] %v4281
    %4431 = vst [vmem:[#allocation4 + $0xa8] sm:$0xff] %v4283
    %4432 = vst [vmem:[#allocation4 + $0xb0] sm:$0xff] %v4394
    %4433 = vst [vmem:[#allocation4 + $0xb8] sm:$0xff] %v4396
    %4434 = vst [vmem:[#allocation4 + $0xc0] sm:$0xff] %v4287
    %4435 = vst [vmem:[#allocation4 + $0xc8] sm:$0xff] %v4289
    %4436 = vst [vmem:[#allocation4 + $0xd0] sm:$0xff] %v4400
    %4437 = vst [vmem:[#allocation4 + $0xd8] sm:$0xff] %v4402
    %4438 = vst [vmem:[#allocation4 + $0xe0] sm:$0xff] %v4293
    %4439 = vst [vmem:[#allocation4 + $0xe8] sm:$0xff] %v4295
    %4440 = vst [vmem:[#allocation4 + $0xf0] sm:$0xff] %v4406
    %4441 = vst [vmem:[#allocation4 + $0xf8] sm:$0xff] %v4408
    %v4442 = vld [vmem:[#allocation6] sm:$0xff]
    %v4443 = vld [vmem:[#allocation6 + $0x8] sm:$0xff]
    %v4444 = vld [vmem:[#allocation6 + $0x10] sm:$0xff]
    %v4445 = vld [vmem:[#allocation6 + $0x18] sm:$0xff]
    %v4446 = vld [vmem:[#allocation6 + $0x20] sm:$0xff]
    %v4447 = vld [vmem:[#allocation6 + $0x28] sm:$0xff]
    %v4448 = vld [vmem:[#allocation6 + $0x30] sm:$0xff]
    %v4449 = vld [vmem:[#allocation6 + $0x38] sm:$0xff]
    %v4450 = vld [vmem:[#allocation6 + $0x40] sm:$0xff]
    %v4451 = vld [vmem:[#allocation6 + $0x48] sm:$0xff]
    %v4452 = vld [vmem:[#allocation6 + $0x50] sm:$0xff]
    %v4453 = vld [vmem:[#allocation6 + $0x58] sm:$0xff]
    %v4454 = vld [vmem:[#allocation6 + $0x60] sm:$0xff]
    %v4455 = vld [vmem:[#allocation6 + $0x68] sm:$0xff]
    %v4456 = vld [vmem:[#allocation6 + $0x70] sm:$0xff]
    %v4457 = vld [vmem:[#allocation6 + $0x78] sm:$0xff]
    %v4458 = vld [vmem:[#allocation6 + $0x80] sm:$0xff]
    %v4459 = vld [vmem:[#allocation6 + $0x88] sm:$0xff]
    %v4460 = vld [vmem:[#allocation6 + $0x90] sm:$0xff]
    %v4461 = vld [vmem:[#allocation6 + $0x98] sm:$0xff]
    %v4462 = vld [vmem:[#allocation6 + $0xa0] sm:$0xff]
    %v4463 = vld [vmem:[#allocation6 + $0xa8] sm:$0xff]
    %v4464 = vld [vmem:[#allocation6 + $0xb0] sm:$0xff]
    %v4465 = vld [vmem:[#allocation6 + $0xb8] sm:$0xff]
    %v4466 = vld [vmem:[#allocation6 + $0xc0] sm:$0xff]
    %v4467 = vld [vmem:[#allocation6 + $0xc8] sm:$0xff]
    %v4468 = vld [vmem:[#allocation6 + $0xd0] sm:$0xff]
    %v4469 = vld [vmem:[#allocation6 + $0xd8] sm:$0xff]
    %v4470 = vld [vmem:[#allocation6 + $0xe0] sm:$0xff]
    %v4471 = vld [vmem:[#allocation6 + $0xe8] sm:$0xff]
    %v4472 = vld [vmem:[#allocation6 + $0xf0] sm:$0xff]
    %v4473 = vld [vmem:[#allocation6 + $0xf8] sm:$0xff]
    %v4474 = vld [vmem:[#allocation6 + $0x100] sm:$0xff]
    %v4475 = vld [vmem:[#allocation6 + $0x108] sm:$0xff]
    %v4476 = vld [vmem:[#allocation6 + $0x110] sm:$0xff]
    %v4477 = vld [vmem:[#allocation6 + $0x118] sm:$0xff]
    %v4478 = vld [vmem:[#allocation6 + $0x120] sm:$0xff]
    %v4479 = vld [vmem:[#allocation6 + $0x128] sm:$0xff]
    %v4480 = vld [vmem:[#allocation6 + $0x130] sm:$0xff]
    %v4481 = vld [vmem:[#allocation6 + $0x138] sm:$0xff]
    %v4482 = vld [vmem:[#allocation6 + $0x140] sm:$0xff]
    %v4483 = vld [vmem:[#allocation6 + $0x148] sm:$0xff]
    %v4484 = vld [vmem:[#allocation6 + $0x150] sm:$0xff]
    %v4485 = vld [vmem:[#allocation6 + $0x158] sm:$0xff]
    %v4486 = vld [vmem:[#allocation6 + $0x160] sm:$0xff]
    %v4487 = vld [vmem:[#allocation6 + $0x168] sm:$0xff]
    %v4488 = vld [vmem:[#allocation6 + $0x170] sm:$0xff]
    %v4489 = vld [vmem:[#allocation6 + $0x178] sm:$0xff]
    %v4490 = vld [vmem:[#allocation6 + $0x180] sm:$0xff]
    %v4491 = vld [vmem:[#allocation6 + $0x188] sm:$0xff]
    %v4492 = vld [vmem:[#allocation6 + $0x190] sm:$0xff]
    %v4493 = vld [vmem:[#allocation6 + $0x198] sm:$0xff]
    %v4494 = vld [vmem:[#allocation6 + $0x1a0] sm:$0xff]
    %v4495 = vld [vmem:[#allocation6 + $0x1a8] sm:$0xff]
    %v4496 = vld [vmem:[#allocation6 + $0x1b0] sm:$0xff]
    %v4497 = vld [vmem:[#allocation6 + $0x1b8] sm:$0xff]
    %v4498 = vld [vmem:[#allocation6 + $0x1c0] sm:$0xff]
    %v4499 = vld [vmem:[#allocation6 + $0x1c8] sm:$0xff]
    %v4500 = vld [vmem:[#allocation6 + $0x1d0] sm:$0xff]
    %v4501 = vld [vmem:[#allocation6 + $0x1d8] sm:$0xff]
    %v4502 = vld [vmem:[#allocation6 + $0x1e0] sm:$0xff]
    %v4503 = vld [vmem:[#allocation6 + $0x1e8] sm:$0xff]
    %v4504 = vld [vmem:[#allocation6 + $0x1f0] sm:$0xff]
    %v4505 = vld [vmem:[#allocation6 + $0x1f8] sm:$0xff]
    %v4506 = vld [vmem:[#allocation4] sm:$0xff]
    %v4507 = vld [vmem:[#allocation4 + $0x8] sm:$0xff]
    %v4508 = vld [vmem:[#allocation4 + $0x10] sm:$0xff]
    %v4509 = vld [vmem:[#allocation4 + $0x18] sm:$0xff]
    %4510 = vmatprep.subr.mxu0 %v4503
    %4511 = vmatpush1.msra.mxu0 %v4502
    %4512 = vmatprep.subr.mxu0 %v4499
    %4513 = vmatpush1.msra.mxu0 %v4498
    %4514 = vmatprep.subr.mxu0 %v4495
    %4515 = vmatpush1.msra.mxu0 %v4494
    %4516 = vmatprep.subr.mxu0 %v4491
    %4517 = vmatpush1.msra.mxu0 %v4490
    %4518 = vmatprep.subr.mxu0 %v4487
    %4519 = vmatpush1.msra.mxu0 %v4486
    %4520 = vmatprep.subr.mxu0 %v4483
    %4521 = vmatpush1.msra.mxu0 %v4482
    %4522 = vmatprep.subr.mxu0 %v4479
    %4523 = vmatpush1.msra.mxu0 %v4478
    %4524 = vmatprep.subr.mxu0 %v4475
    %4525 = vmatpush1.msra.mxu0 %v4474
    %4526 = vmatprep.subr.mxu0 %v4471
    %4527 = vmatpush1.msra.mxu0 %v4470
    %4528 = vmatprep.subr.mxu0 %v4467
    %4529 = vmatpush1.msra.mxu0 %v4466
    %4530 = vmatprep.subr.mxu0 %v4463
    %4531 = vmatpush1.msra.mxu0 %v4462
    %4532 = vmatprep.subr.mxu0 %v4459
    %4533 = vmatpush1.msra.mxu0 %v4458
    %4534 = vmatprep.subr.mxu0 %v4455
    %4535 = vmatpush1.msra.mxu0 %v4454
    %4536 = vmatprep.subr.mxu0 %v4451
    %4537 = vmatpush1.msra.mxu0 %v4450
    %4538 = vmatprep.subr.mxu0 %v4447
    %4539 = vmatpush1.msra.mxu0 %v4446
    %4540 = vmatprep.subr.mxu0 %v4443
    %4541 = vmatpush1.msra.mxu0 %v4442
    %4542 = vmatprep.subr.mxu0 0.0
    %4543 = vmatpush2.msra.mxu0 0.0
    %4544 = vmatprep.subr.mxu0 0.0
    %4545 = vmatpush2.msra.mxu0 0.0
    %4546 = vmatprep.subr.mxu0 0.0
    %4547 = vmatpush2.msra.mxu0 0.0
    %4548 = vmatprep.subr.mxu0 0.0
    %4549 = vmatpush2.msra.mxu0 0.0
    %4550 = vmatprep.subr.mxu0 0.0
    %4551 = vmatpush2.msra.mxu0 0.0
    %4552 = vmatprep.subr.mxu0 0.0
    %4553 = vmatpush2.msra.mxu0 0.0
    %4554 = vmatprep.subr.mxu0 0.0
    %4555 = vmatpush2.msra.mxu0 0.0
    %4556 = vmatprep.subr.mxu0 0.0
    %4557 = vmatpush2.msra.mxu0 0.0
    %4558 = vmatprep.subr.mxu0 0.0
    %4559 = vmatpush2.msra.mxu0 0.0
    %4560 = vmatprep.subr.mxu0 0.0
    %4561 = vmatpush2.msra.mxu0 0.0
    %4562 = vmatprep.subr.mxu0 0.0
    %4563 = vmatpush2.msra.mxu0 0.0
    %4564 = vmatprep.subr.mxu0 0.0
    %4565 = vmatpush2.msra.mxu0 0.0
    %4566 = vmatprep.subr.mxu0 0.0
    %4567 = vmatpush2.msra.mxu0 0.0
    %4568 = vmatprep.subr.mxu0 0.0
    %4569 = vmatpush2.msra.mxu0 0.0
    %4570 = vmatprep.subr.mxu0 0.0
    %4571 = vmatpush2.msra.mxu0 0.0
    %4572 = vmatprep.subr.mxu0 0.0
    %4573 = vmatpush2.msra.mxu0 0.0
    %4574 = vmatprep.mubr.f32.mxu0 0.0
    %4575 = vmatmul.mubr.f32.gmra.mxu0 0.0
    %v4576 = vpop.f32.mrf.mxu0
    %v4577 = vadd.f32 0.0, %v4576
    %v4578 = vpop.f32.mrf.mxu0
    %v4579 = vadd.f32 0.0, %v4578
    %4580 = vdwg.mxu0
    %4581 = vmatprep.subr.mxu0 %v4505
    %4582 = vmatpush1.msra.mxu0 %v4504
    %4583 = vmatprep.subr.mxu0 %v4501
    %4584 = vmatpush1.msra.mxu0 %v4500
    %4585 = vmatprep.subr.mxu0 %v4497
    %4586 = vmatpush1.msra.mxu0 %v4496
    %4587 = vmatprep.subr.mxu0 %v4493
    %4588 = vmatpush1.msra.mxu0 %v4492
    %4589 = vmatprep.subr.mxu0 %v4489
    %4590 = vmatpush1.msra.mxu0 %v4488
    %4591 = vmatprep.subr.mxu0 %v4485
    %4592 = vmatpush1.msra.mxu0 %v4484
    %4593 = vmatprep.subr.mxu0 %v4481
    %4594 = vmatpush1.msra.mxu0 %v4480
    %4595 = vmatprep.subr.mxu0 %v4477
    %4596 = vmatpush1.msra.mxu0 %v4476
    %4597 = vmatprep.subr.mxu0 %v4473
    %4598 = vmatpush1.msra.mxu0 %v4472
    %4599 = vmatprep.subr.mxu0 %v4469
    %4600 = vmatpush1.msra.mxu0 %v4468
    %4601 = vmatprep.subr.mxu0 %v4465
    %4602 = vmatpush1.msra.mxu0 %v4464
    %4603 = vmatprep.subr.mxu0 %v4461
    %4604 = vmatpush1.msra.mxu0 %v4460
    %4605 = vmatprep.subr.mxu0 %v4457
    %4606 = vmatpush1.msra.mxu0 %v4456
    %4607 = vmatprep.subr.mxu0 %v4453
    %4608 = vmatpush1.msra.mxu0 %v4452
    %4609 = vmatprep.subr.mxu0 %v4449
    %4610 = vmatpush1.msra.mxu0 %v4448
    %4611 = vmatprep.subr.mxu0 %v4445
    %4612 = vmatpush1.msra.mxu0 %v4444
    %4613 = vmatprep.subr.mxu0 0.0
    %4614 = vmatpush2.msra.mxu0 0.0
    %4615 = vmatprep.subr.mxu0 0.0
    %4616 = vmatpush2.msra.mxu0 0.0
    %4617 = vmatprep.subr.mxu0 0.0
    %4618 = vmatpush2.msra.mxu0 0.0
    %4619 = vmatprep.subr.mxu0 0.0
    %4620 = vmatpush2.msra.mxu0 0.0
    %4621 = vmatprep.subr.mxu0 0.0
    %4622 = vmatpush2.msra.mxu0 0.0
    %4623 = vmatprep.subr.mxu0 0.0
    %4624 = vmatpush2.msra.mxu0 0.0
    %4625 = vmatprep.subr.mxu0 0.0
    %4626 = vmatpush2.msra.mxu0 0.0
    %4627 = vmatprep.subr.mxu0 0.0
    %4628 = vmatpush2.msra.mxu0 0.0
    %4629 = vmatprep.subr.mxu0 0.0
    %4630 = vmatpush2.msra.mxu0 0.0
    %4631 = vmatprep.subr.mxu0 0.0
    %4632 = vmatpush2.msra.mxu0 0.0
    %4633 = vmatprep.subr.mxu0 0.0
    %4634 = vmatpush2.msra.mxu0 0.0
    %4635 = vmatprep.subr.mxu0 0.0
    %4636 = vmatpush2.msra.mxu0 0.0
    %4637 = vmatprep.subr.mxu0 0.0
    %4638 = vmatpush2.msra.mxu0 0.0
    %4639 = vmatprep.subr.mxu0 0.0
    %4640 = vmatpush2.msra.mxu0 0.0
    %4641 = vmatprep.subr.mxu0 0.0
    %4642 = vmatpush2.msra.mxu0 0.0
    %4643 = vmatprep.subr.mxu0 0.0
    %4644 = vmatpush2.msra.mxu0 0.0
    %4645 = vmatprep.mubr.f32.mxu0 0.0
    %4646 = vmatmul.mubr.f32.gmra.mxu0 0.0
    %v4647 = vpop.f32.mrf.mxu0
    %v4648 = vadd.f32 0.0, %v4647
    %v4649 = vpop.f32.mrf.mxu0
    %v4650 = vadd.f32 0.0, %v4649
    %4651 = vdwg.mxu0
    %v4652 = vadd.f32 %v4506, %v4577
    %v4653 = vadd.f32 %v4507, %v4579
    %v4654 = vadd.f32 %v4508, %v4648
    %v4655 = vadd.f32 %v4509, %v4650
    %v4656 = vxor.u32 %v4652, 2147483648
    %v4657 = vmul.f32 %v4656, 1.442695
    %v4658 = vpow.pop %v4657
    %v4659 = vadd.f32 %v4658, 1.0
    %v4660 = vrcp.pop %v4659
    %v4661 = vmul.f32 1.0, %v4660
    %v4662 = vxor.u32 %v4653, 2147483648
    %v4663 = vmul.f32 %v4662, 1.442695
    %v4664 = vpow.pop %v4663
    %v4665 = vadd.f32 %v4664, 1.0
    %v4666 = vrcp.pop %v4665
    %v4667 = vmul.f32 1.0, %v4666
    %v4668 = vtanh.pop %v4654
    %v4669 = vxor.u32 %v4655, 2147483648
    %v4670 = vmul.f32 %v4669, 1.442695
    %v4671 = vpow.pop %v4670
    %v4672 = vadd.f32 %v4671, 1.0
    %v4673 = vrcp.pop %v4672
    %v4674 = vmul.f32 1.0, %v4673
    %v4675 = vmul.f32 %v4667, 0.0
    %v4676 = vmul.f32 %v4661, %v4668
    %v4677 = vadd.f32 %v4675, %v4676
    %v4678 = vtanh.pop %v4677
    %v4679 = vmul.f32 %v4674, %v4678
    %v4680 = vld [vmem:[#allocation4 + $0x20] sm:$0xff]
    %v4681 = vld [vmem:[#allocation4 + $0x28] sm:$0xff]
    %v4682 = vld [vmem:[#allocation4 + $0x30] sm:$0xff]
    %v4683 = vld [vmem:[#allocation4 + $0x38] sm:$0xff]
    %4684 = vmatprep.subr.mxu0 %v4503
    %4685 = vmatpush1.msra.mxu0 %v4502
    %4686 = vmatprep.subr.mxu0 %v4499
    %4687 = vmatpush1.msra.mxu0 %v4498
    %4688 = vmatprep.subr.mxu0 %v4495
    %4689 = vmatpush1.msra.mxu0 %v4494
    %4690 = vmatprep.subr.mxu0 %v4491
    %4691 = vmatpush1.msra.mxu0 %v4490
    %4692 = vmatprep.subr.mxu0 %v4487
    %4693 = vmatpush1.msra.mxu0 %v4486
    %4694 = vmatprep.subr.mxu0 %v4483
    %4695 = vmatpush1.msra.mxu0 %v4482
    %4696 = vmatprep.subr.mxu0 %v4479
    %4697 = vmatpush1.msra.mxu0 %v4478
    %4698 = vmatprep.subr.mxu0 %v4475
    %4699 = vmatpush1.msra.mxu0 %v4474
    %4700 = vmatprep.subr.mxu0 %v4471
    %4701 = vmatpush1.msra.mxu0 %v4470
    %4702 = vmatprep.subr.mxu0 %v4467
    %4703 = vmatpush1.msra.mxu0 %v4466
    %4704 = vmatprep.subr.mxu0 %v4463
    %4705 = vmatpush1.msra.mxu0 %v4462
    %4706 = vmatprep.subr.mxu0 %v4459
    %4707 = vmatpush1.msra.mxu0 %v4458
    %4708 = vmatprep.subr.mxu0 %v4455
    %4709 = vmatpush1.msra.mxu0 %v4454
    %4710 = vmatprep.subr.mxu0 %v4451
    %4711 = vmatpush1.msra.mxu0 %v4450
    %4712 = vmatprep.subr.mxu0 %v4447
    %4713 = vmatpush1.msra.mxu0 %v4446
    %4714 = vmatprep.subr.mxu0 %v4443
    %4715 = vmatpush1.msra.mxu0 %v4442
    %4716 = vmatprep.subr.mxu0 0.0
    %4717 = vmatpush2.msra.mxu0 0.0
    %4718 = vmatprep.subr.mxu0 0.0
    %4719 = vmatpush2.msra.mxu0 0.0
    %4720 = vmatprep.subr.mxu0 0.0
    %4721 = vmatpush2.msra.mxu0 0.0
    %4722 = vmatprep.subr.mxu0 0.0
    %4723 = vmatpush2.msra.mxu0 0.0
    %4724 = vmatprep.subr.mxu0 0.0
    %4725 = vmatpush2.msra.mxu0 0.0
    %4726 = vmatprep.subr.mxu0 0.0
    %4727 = vmatpush2.msra.mxu0 0.0
    %4728 = vmatprep.subr.mxu0 0.0
    %4729 = vmatpush2.msra.mxu0 0.0
    %4730 = vmatprep.subr.mxu0 0.0
    %4731 = vmatpush2.msra.mxu0 0.0
    %4732 = vmatprep.subr.mxu0 0.0
    %4733 = vmatpush2.msra.mxu0 0.0
    %4734 = vmatprep.subr.mxu0 0.0
    %4735 = vmatpush2.msra.mxu0 0.0
    %4736 = vmatprep.subr.mxu0 0.0
    %4737 = vmatpush2.msra.mxu0 0.0
    %4738 = vmatprep.subr.mxu0 0.0
    %4739 = vmatpush2.msra.mxu0 0.0
    %4740 = vmatprep.subr.mxu0 0.0
    %4741 = vmatpush2.msra.mxu0 0.0
    %4742 = vmatprep.subr.mxu0 0.0
    %4743 = vmatpush2.msra.mxu0 0.0
    %4744 = vmatprep.subr.mxu0 0.0
    %4745 = vmatpush2.msra.mxu0 0.0
    %4746 = vmatprep.subr.mxu0 0.0
    %4747 = vmatpush2.msra.mxu0 0.0
    %4748 = vmatprep.mubr.f32.mxu0 0.0
    %4749 = vmatmul.mubr.f32.gmra.mxu0 %v4679
    %v4750 = vpop.f32.mrf.mxu0
    %v4751 = vadd.f32 0.0, %v4750
    %v4752 = vpop.f32.mrf.mxu0
    %v4753 = vadd.f32 0.0, %v4752
    %4754 = vdwg.mxu0
    %4755 = vmatprep.subr.mxu0 %v4505
    %4756 = vmatpush1.msra.mxu0 %v4504
    %4757 = vmatprep.subr.mxu0 %v4501
    %4758 = vmatpush1.msra.mxu0 %v4500
    %4759 = vmatprep.subr.mxu0 %v4497
    %4760 = vmatpush1.msra.mxu0 %v4496
    %4761 = vmatprep.subr.mxu0 %v4493
    %4762 = vmatpush1.msra.mxu0 %v4492
    %4763 = vmatprep.subr.mxu0 %v4489
    %4764 = vmatpush1.msra.mxu0 %v4488
    %4765 = vmatprep.subr.mxu0 %v4485
    %4766 = vmatpush1.msra.mxu0 %v4484
    %4767 = vmatprep.subr.mxu0 %v4481
    %4768 = vmatpush1.msra.mxu0 %v4480
    %4769 = vmatprep.subr.mxu0 %v4477
    %4770 = vmatpush1.msra.mxu0 %v4476
    %4771 = vmatprep.subr.mxu0 %v4473
    %4772 = vmatpush1.msra.mxu0 %v4472
    %4773 = vmatprep.subr.mxu0 %v4469
    %4774 = vmatpush1.msra.mxu0 %v4468
    %4775 = vmatprep.subr.mxu0 %v4465
    %4776 = vmatpush1.msra.mxu0 %v4464
    %4777 = vmatprep.subr.mxu0 %v4461
    %4778 = vmatpush1.msra.mxu0 %v4460
    %4779 = vmatprep.subr.mxu0 %v4457
    %4780 = vmatpush1.msra.mxu0 %v4456
    %4781 = vmatprep.subr.mxu0 %v4453
    %4782 = vmatpush1.msra.mxu0 %v4452
    %4783 = vmatprep.subr.mxu0 %v4449
    %4784 = vmatpush1.msra.mxu0 %v4448
    %4785 = vmatprep.subr.mxu0 %v4445
    %4786 = vmatpush1.msra.mxu0 %v4444
    %4787 = vmatprep.subr.mxu0 0.0
    %4788 = vmatpush2.msra.mxu0 0.0
    %4789 = vmatprep.subr.mxu0 0.0
    %4790 = vmatpush2.msra.mxu0 0.0
    %4791 = vmatprep.subr.mxu0 0.0
    %4792 = vmatpush2.msra.mxu0 0.0
    %4793 = vmatprep.subr.mxu0 0.0
    %4794 = vmatpush2.msra.mxu0 0.0
    %4795 = vmatprep.subr.mxu0 0.0
    %4796 = vmatpush2.msra.mxu0 0.0
    %4797 = vmatprep.subr.mxu0 0.0
    %4798 = vmatpush2.msra.mxu0 0.0
    %4799 = vmatprep.subr.mxu0 0.0
    %4800 = vmatpush2.msra.mxu0 0.0
    %4801 = vmatprep.subr.mxu0 0.0
    %4802 = vmatpush2.msra.mxu0 0.0
    %4803 = vmatprep.subr.mxu0 0.0
    %4804 = vmatpush2.msra.mxu0 0.0
    %4805 = vmatprep.subr.mxu0 0.0
    %4806 = vmatpush2.msra.mxu0 0.0
    %4807 = vmatprep.subr.mxu0 0.0
    %4808 = vmatpush2.msra.mxu0 0.0
    %4809 = vmatprep.subr.mxu0 0.0
    %4810 = vmatpush2.msra.mxu0 0.0
    %4811 = vmatprep.subr.mxu0 0.0
    %4812 = vmatpush2.msra.mxu0 0.0
    %4813 = vmatprep.subr.mxu0 0.0
    %4814 = vmatpush2.msra.mxu0 0.0
    %4815 = vmatprep.subr.mxu0 0.0
    %4816 = vmatpush2.msra.mxu0 0.0
    %4817 = vmatprep.subr.mxu0 0.0
    %4818 = vmatpush2.msra.mxu0 0.0
    %4819 = vmatprep.mubr.f32.mxu0 0.0
    %4820 = vmatmul.mubr.f32.gmra.mxu0 %v4679
    %v4821 = vpop.f32.mrf.mxu0
    %v4822 = vadd.f32 0.0, %v4821
    %v4823 = vpop.f32.mrf.mxu0
    %v4824 = vadd.f32 0.0, %v4823
    %4825 = vdwg.mxu0
    %v4826 = vadd.f32 %v4680, %v4751
    %v4827 = vadd.f32 %v4681, %v4753
    %v4828 = vadd.f32 %v4682, %v4822
    %v4829 = vadd.f32 %v4683, %v4824
    %v4830 = vxor.u32 %v4826, 2147483648
    %v4831 = vmul.f32 %v4830, 1.442695
    %v4832 = vpow.pop %v4831
    %v4833 = vadd.f32 %v4832, 1.0
    %v4834 = vrcp.pop %v4833
    %v4835 = vmul.f32 1.0, %v4834
    %v4836 = vxor.u32 %v4827, 2147483648
    %v4837 = vmul.f32 %v4836, 1.442695
    %v4838 = vpow.pop %v4837
    %v4839 = vadd.f32 %v4838, 1.0
    %v4840 = vrcp.pop %v4839
    %v4841 = vmul.f32 1.0, %v4840
    %v4842 = vtanh.pop %v4828
    %v4843 = vxor.u32 %v4829, 2147483648
    %v4844 = vmul.f32 %v4843, 1.442695
    %v4845 = vpow.pop %v4844
    %v4846 = vadd.f32 %v4845, 1.0
    %v4847 = vrcp.pop %v4846
    %v4848 = vmul.f32 1.0, %v4847
    %v4849 = vmul.f32 %v4841, %v4677
    %v4850 = vmul.f32 %v4835, %v4842
    %v4851 = vadd.f32 %v4849, %v4850
    %v4852 = vtanh.pop %v4851
    %v4853 = vmul.f32 %v4848, %v4852
    %v4854 = vld [vmem:[#allocation4 + $0x40] sm:$0xff]
    %v4855 = vld [vmem:[#allocation4 + $0x48] sm:$0xff]
    %v4856 = vld [vmem:[#allocation4 + $0x50] sm:$0xff]
    %v4857 = vld [vmem:[#allocation4 + $0x58] sm:$0xff]
    %4858 = vmatprep.subr.mxu0 %v4503
    %4859 = vmatpush1.msra.mxu0 %v4502
    %4860 = vmatprep.subr.mxu0 %v4499
    %4861 = vmatpush1.msra.mxu0 %v4498
    %4862 = vmatprep.subr.mxu0 %v4495
    %4863 = vmatpush1.msra.mxu0 %v4494
    %4864 = vmatprep.subr.mxu0 %v4491
    %4865 = vmatpush1.msra.mxu0 %v4490
    %4866 = vmatprep.subr.mxu0 %v4487
    %4867 = vmatpush1.msra.mxu0 %v4486
    %4868 = vmatprep.subr.mxu0 %v4483
    %4869 = vmatpush1.msra.mxu0 %v4482
    %4870 = vmatprep.subr.mxu0 %v4479
    %4871 = vmatpush1.msra.mxu0 %v4478
    %4872 = vmatprep.subr.mxu0 %v4475
    %4873 = vmatpush1.msra.mxu0 %v4474
    %4874 = vmatprep.subr.mxu0 %v4471
    %4875 = vmatpush1.msra.mxu0 %v4470
    %4876 = vmatprep.subr.mxu0 %v4467
    %4877 = vmatpush1.msra.mxu0 %v4466
    %4878 = vmatprep.subr.mxu0 %v4463
    %4879 = vmatpush1.msra.mxu0 %v4462
    %4880 = vmatprep.subr.mxu0 %v4459
    %4881 = vmatpush1.msra.mxu0 %v4458
    %4882 = vmatprep.subr.mxu0 %v4455
    %4883 = vmatpush1.msra.mxu0 %v4454
    %4884 = vmatprep.subr.mxu0 %v4451
    %4885 = vmatpush1.msra.mxu0 %v4450
    %4886 = vmatprep.subr.mxu0 %v4447
    %4887 = vmatpush1.msra.mxu0 %v4446
    %4888 = vmatprep.subr.mxu0 %v4443
    %4889 = vmatpush1.msra.mxu0 %v4442
    %4890 = vmatprep.subr.mxu0 0.0
    %4891 = vmatpush2.msra.mxu0 0.0
    %4892 = vmatprep.subr.mxu0 0.0
    %4893 = vmatpush2.msra.mxu0 0.0
    %4894 = vmatprep.subr.mxu0 0.0
    %4895 = vmatpush2.msra.mxu0 0.0
    %4896 = vmatprep.subr.mxu0 0.0
    %4897 = vmatpush2.msra.mxu0 0.0
    %4898 = vmatprep.subr.mxu0 0.0
    %4899 = vmatpush2.msra.mxu0 0.0
    %4900 = vmatprep.subr.mxu0 0.0
    %4901 = vmatpush2.msra.mxu0 0.0
    %4902 = vmatprep.subr.mxu0 0.0
    %4903 = vmatpush2.msra.mxu0 0.0
    %4904 = vmatprep.subr.mxu0 0.0
    %4905 = vmatpush2.msra.mxu0 0.0
    %4906 = vmatprep.subr.mxu0 0.0
    %4907 = vmatpush2.msra.mxu0 0.0
    %4908 = vmatprep.subr.mxu0 0.0
    %4909 = vmatpush2.msra.mxu0 0.0
    %4910 = vmatprep.subr.mxu0 0.0
    %4911 = vmatpush2.msra.mxu0 0.0
    %4912 = vmatprep.subr.mxu0 0.0
    %4913 = vmatpush2.msra.mxu0 0.0
    %4914 = vmatprep.subr.mxu0 0.0
    %4915 = vmatpush2.msra.mxu0 0.0
    %4916 = vmatprep.subr.mxu0 0.0
    %4917 = vmatpush2.msra.mxu0 0.0
    %4918 = vmatprep.subr.mxu0 0.0
    %4919 = vmatpush2.msra.mxu0 0.0
    %4920 = vmatprep.subr.mxu0 0.0
    %4921 = vmatpush2.msra.mxu0 0.0
    %4922 = vmatprep.mubr.f32.mxu0 0.0
    %4923 = vmatmul.mubr.f32.gmra.mxu0 %v4853
    %v4924 = vpop.f32.mrf.mxu0
    %v4925 = vadd.f32 0.0, %v4924
    %v4926 = vpop.f32.mrf.mxu0
    %v4927 = vadd.f32 0.0, %v4926
    %4928 = vdwg.mxu0
    %4929 = vmatprep.subr.mxu0 %v4505
    %4930 = vmatpush1.msra.mxu0 %v4504
    %4931 = vmatprep.subr.mxu0 %v4501
    %4932 = vmatpush1.msra.mxu0 %v4500
    %4933 = vmatprep.subr.mxu0 %v4497
    %4934 = vmatpush1.msra.mxu0 %v4496
    %4935 = vmatprep.subr.mxu0 %v4493
    %4936 = vmatpush1.msra.mxu0 %v4492
    %4937 = vmatprep.subr.mxu0 %v4489
    %4938 = vmatpush1.msra.mxu0 %v4488
    %4939 = vmatprep.subr.mxu0 %v4485
    %4940 = vmatpush1.msra.mxu0 %v4484
    %4941 = vmatprep.subr.mxu0 %v4481
    %4942 = vmatpush1.msra.mxu0 %v4480
    %4943 = vmatprep.subr.mxu0 %v4477
    %4944 = vmatpush1.msra.mxu0 %v4476
    %4945 = vmatprep.subr.mxu0 %v4473
    %4946 = vmatpush1.msra.mxu0 %v4472
    %4947 = vmatprep.subr.mxu0 %v4469
    %4948 = vmatpush1.msra.mxu0 %v4468
    %4949 = vmatprep.subr.mxu0 %v4465
    %4950 = vmatpush1.msra.mxu0 %v4464
    %4951 = vmatprep.subr.mxu0 %v4461
    %4952 = vmatpush1.msra.mxu0 %v4460
    %4953 = vmatprep.subr.mxu0 %v4457
    %4954 = vmatpush1.msra.mxu0 %v4456
    %4955 = vmatprep.subr.mxu0 %v4453
    %4956 = vmatpush1.msra.mxu0 %v4452
    %4957 = vmatprep.subr.mxu0 %v4449
    %4958 = vmatpush1.msra.mxu0 %v4448
    %4959 = vmatprep.subr.mxu0 %v4445
    %4960 = vmatpush1.msra.mxu0 %v4444
    %4961 = vmatprep.subr.mxu0 0.0
    %4962 = vmatpush2.msra.mxu0 0.0
    %4963 = vmatprep.subr.mxu0 0.0
    %4964 = vmatpush2.msra.mxu0 0.0
    %4965 = vmatprep.subr.mxu0 0.0
    %4966 = vmatpush2.msra.mxu0 0.0
    %4967 = vmatprep.subr.mxu0 0.0
    %4968 = vmatpush2.msra.mxu0 0.0
    %4969 = vmatprep.subr.mxu0 0.0
    %4970 = vmatpush2.msra.mxu0 0.0
    %4971 = vmatprep.subr.mxu0 0.0
    %4972 = vmatpush2.msra.mxu0 0.0
    %4973 = vmatprep.subr.mxu0 0.0
    %4974 = vmatpush2.msra.mxu0 0.0
    %4975 = vmatprep.subr.mxu0 0.0
    %4976 = vmatpush2.msra.mxu0 0.0
    %4977 = vmatprep.subr.mxu0 0.0
    %4978 = vmatpush2.msra.mxu0 0.0
    %4979 = vmatprep.subr.mxu0 0.0
    %4980 = vmatpush2.msra.mxu0 0.0
    %4981 = vmatprep.subr.mxu0 0.0
    %4982 = vmatpush2.msra.mxu0 0.0
    %4983 = vmatprep.subr.mxu0 0.0
    %4984 = vmatpush2.msra.mxu0 0.0
    %4985 = vmatprep.subr.mxu0 0.0
    %4986 = vmatpush2.msra.mxu0 0.0
    %4987 = vmatprep.subr.mxu0 0.0
    %4988 = vmatpush2.msra.mxu0 0.0
    %4989 = vmatprep.subr.mxu0 0.0
    %4990 = vmatpush2.msra.mxu0 0.0
    %4991 = vmatprep.subr.mxu0 0.0
    %4992 = vmatpush2.msra.mxu0 0.0
    %4993 = vmatprep.mubr.f32.mxu0 0.0
    %4994 = vmatmul.mubr.f32.gmra.mxu0 %v4853
    %v4995 = vpop.f32.mrf.mxu0
    %v4996 = vadd.f32 0.0, %v4995
    %v4997 = vpop.f32.mrf.mxu0
    %v4998 = vadd.f32 0.0, %v4997
    %4999 = vdwg.mxu0
    %v5000 = vadd.f32 %v4854, %v4925
    %v5001 = vadd.f32 %v4855, %v4927
    %v5002 = vadd.f32 %v4856, %v4996
    %v5003 = vadd.f32 %v4857, %v4998
    %v5004 = vxor.u32 %v5000, 2147483648
    %v5005 = vmul.f32 %v5004, 1.442695
    %v5006 = vpow.pop %v5005
    %v5007 = vadd.f32 %v5006, 1.0
    %v5008 = vrcp.pop %v5007
    %v5009 = vmul.f32 1.0, %v5008
    %v5010 = vxor.u32 %v5001, 2147483648
    %v5011 = vmul.f32 %v5010, 1.442695
    %v5012 = vpow.pop %v5011
    %v5013 = vadd.f32 %v5012, 1.0
    %v5014 = vrcp.pop %v5013
    %v5015 = vmul.f32 1.0, %v5014
    %v5016 = vtanh.pop %v5002
    %v5017 = vxor.u32 %v5003, 2147483648
    %v5018 = vmul.f32 %v5017, 1.442695
    %v5019 = vpow.pop %v5018
    %v5020 = vadd.f32 %v5019, 1.0
    %v5021 = vrcp.pop %v5020
    %v5022 = vmul.f32 1.0, %v5021
    %v5023 = vmul.f32 %v5015, %v4851
    %v5024 = vmul.f32 %v5009, %v5016
    %v5025 = vadd.f32 %v5023, %v5024
    %v5026 = vtanh.pop %v5025
    %v5027 = vmul.f32 %v5022, %v5026
    %v5028 = vld [vmem:[#allocation4 + $0x60] sm:$0xff]
    %v5029 = vld [vmem:[#allocation4 + $0x68] sm:$0xff]
    %v5030 = vld [vmem:[#allocation4 + $0x70] sm:$0xff]
    %v5031 = vld [vmem:[#allocation4 + $0x78] sm:$0xff]
    %5032 = vmatprep.subr.mxu0 %v4503
    %5033 = vmatpush1.msra.mxu0 %v4502
    %5034 = vmatprep.subr.mxu0 %v4499
    %5035 = vmatpush1.msra.mxu0 %v4498
    %5036 = vmatprep.subr.mxu0 %v4495
    %5037 = vmatpush1.msra.mxu0 %v4494
    %5038 = vmatprep.subr.mxu0 %v4491
    %5039 = vmatpush1.msra.mxu0 %v4490
    %5040 = vmatprep.subr.mxu0 %v4487
    %5041 = vmatpush1.msra.mxu0 %v4486
    %5042 = vmatprep.subr.mxu0 %v4483
    %5043 = vmatpush1.msra.mxu0 %v4482
    %5044 = vmatprep.subr.mxu0 %v4479
    %5045 = vmatpush1.msra.mxu0 %v4478
    %5046 = vmatprep.subr.mxu0 %v4475
    %5047 = vmatpush1.msra.mxu0 %v4474
    %5048 = vmatprep.subr.mxu0 %v4471
    %5049 = vmatpush1.msra.mxu0 %v4470
    %5050 = vmatprep.subr.mxu0 %v4467
    %5051 = vmatpush1.msra.mxu0 %v4466
    %5052 = vmatprep.subr.mxu0 %v4463
    %5053 = vmatpush1.msra.mxu0 %v4462
    %5054 = vmatprep.subr.mxu0 %v4459
    %5055 = vmatpush1.msra.mxu0 %v4458
    %5056 = vmatprep.subr.mxu0 %v4455
    %5057 = vmatpush1.msra.mxu0 %v4454
    %5058 = vmatprep.subr.mxu0 %v4451
    %5059 = vmatpush1.msra.mxu0 %v4450
    %5060 = vmatprep.subr.mxu0 %v4447
    %5061 = vmatpush1.msra.mxu0 %v4446
    %5062 = vmatprep.subr.mxu0 %v4443
    %5063 = vmatpush1.msra.mxu0 %v4442
    %5064 = vmatprep.subr.mxu0 0.0
    %5065 = vmatpush2.msra.mxu0 0.0
    %5066 = vmatprep.subr.mxu0 0.0
    %5067 = vmatpush2.msra.mxu0 0.0
    %5068 = vmatprep.subr.mxu0 0.0
    %5069 = vmatpush2.msra.mxu0 0.0
    %5070 = vmatprep.subr.mxu0 0.0
    %5071 = vmatpush2.msra.mxu0 0.0
    %5072 = vmatprep.subr.mxu0 0.0
    %5073 = vmatpush2.msra.mxu0 0.0
    %5074 = vmatprep.subr.mxu0 0.0
    %5075 = vmatpush2.msra.mxu0 0.0
    %5076 = vmatprep.subr.mxu0 0.0
    %5077 = vmatpush2.msra.mxu0 0.0
    %5078 = vmatprep.subr.mxu0 0.0
    %5079 = vmatpush2.msra.mxu0 0.0
    %5080 = vmatprep.subr.mxu0 0.0
    %5081 = vmatpush2.msra.mxu0 0.0
    %5082 = vmatprep.subr.mxu0 0.0
    %5083 = vmatpush2.msra.mxu0 0.0
    %5084 = vmatprep.subr.mxu0 0.0
    %5085 = vmatpush2.msra.mxu0 0.0
    %5086 = vmatprep.subr.mxu0 0.0
    %5087 = vmatpush2.msra.mxu0 0.0
    %5088 = vmatprep.subr.mxu0 0.0
    %5089 = vmatpush2.msra.mxu0 0.0
    %5090 = vmatprep.subr.mxu0 0.0
    %5091 = vmatpush2.msra.mxu0 0.0
    %5092 = vmatprep.subr.mxu0 0.0
    %5093 = vmatpush2.msra.mxu0 0.0
    %5094 = vmatprep.subr.mxu0 0.0
    %5095 = vmatpush2.msra.mxu0 0.0
    %5096 = vmatprep.mubr.f32.mxu0 0.0
    %5097 = vmatmul.mubr.f32.gmra.mxu0 %v5027
    %v5098 = vpop.f32.mrf.mxu0
    %v5099 = vadd.f32 0.0, %v5098
    %v5100 = vpop.f32.mrf.mxu0
    %v5101 = vadd.f32 0.0, %v5100
    %5102 = vdwg.mxu0
    %5103 = vmatprep.subr.mxu0 %v4505
    %5104 = vmatpush1.msra.mxu0 %v4504
    %5105 = vmatprep.subr.mxu0 %v4501
    %5106 = vmatpush1.msra.mxu0 %v4500
    %5107 = vmatprep.subr.mxu0 %v4497
    %5108 = vmatpush1.msra.mxu0 %v4496
    %5109 = vmatprep.subr.mxu0 %v4493
    %5110 = vmatpush1.msra.mxu0 %v4492
    %5111 = vmatprep.subr.mxu0 %v4489
    %5112 = vmatpush1.msra.mxu0 %v4488
    %5113 = vmatprep.subr.mxu0 %v4485
    %5114 = vmatpush1.msra.mxu0 %v4484
    %5115 = vmatprep.subr.mxu0 %v4481
    %5116 = vmatpush1.msra.mxu0 %v4480
    %5117 = vmatprep.subr.mxu0 %v4477
    %5118 = vmatpush1.msra.mxu0 %v4476
    %5119 = vmatprep.subr.mxu0 %v4473
    %5120 = vmatpush1.msra.mxu0 %v4472
    %5121 = vmatprep.subr.mxu0 %v4469
    %5122 = vmatpush1.msra.mxu0 %v4468
    %5123 = vmatprep.subr.mxu0 %v4465
    %5124 = vmatpush1.msra.mxu0 %v4464
    %5125 = vmatprep.subr.mxu0 %v4461
    %5126 = vmatpush1.msra.mxu0 %v4460
    %5127 = vmatprep.subr.mxu0 %v4457
    %5128 = vmatpush1.msra.mxu0 %v4456
    %5129 = vmatprep.subr.mxu0 %v4453
    %5130 = vmatpush1.msra.mxu0 %v4452
    %5131 = vmatprep.subr.mxu0 %v4449
    %5132 = vmatpush1.msra.mxu0 %v4448
    %5133 = vmatprep.subr.mxu0 %v4445
    %5134 = vmatpush1.msra.mxu0 %v4444
    %5135 = vmatprep.subr.mxu0 0.0
    %5136 = vmatpush2.msra.mxu0 0.0
    %5137 = vmatprep.subr.mxu0 0.0
    %5138 = vmatpush2.msra.mxu0 0.0
    %5139 = vmatprep.subr.mxu0 0.0
    %5140 = vmatpush2.msra.mxu0 0.0
    %5141 = vmatprep.subr.mxu0 0.0
    %5142 = vmatpush2.msra.mxu0 0.0
    %5143 = vmatprep.subr.mxu0 0.0
    %5144 = vmatpush2.msra.mxu0 0.0
    %5145 = vmatprep.subr.mxu0 0.0
    %5146 = vmatpush2.msra.mxu0 0.0
    %5147 = vmatprep.subr.mxu0 0.0
    %5148 = vmatpush2.msra.mxu0 0.0
    %5149 = vmatprep.subr.mxu0 0.0
    %5150 = vmatpush2.msra.mxu0 0.0
    %5151 = vmatprep.subr.mxu0 0.0
    %5152 = vmatpush2.msra.mxu0 0.0
    %5153 = vmatprep.subr.mxu0 0.0
    %5154 = vmatpush2.msra.mxu0 0.0
    %5155 = vmatprep.subr.mxu0 0.0
    %5156 = vmatpush2.msra.mxu0 0.0
    %5157 = vmatprep.subr.mxu0 0.0
    %5158 = vmatpush2.msra.mxu0 0.0
    %5159 = vmatprep.subr.mxu0 0.0
    %5160 = vmatpush2.msra.mxu0 0.0
    %5161 = vmatprep.subr.mxu0 0.0
    %5162 = vmatpush2.msra.mxu0 0.0
    %5163 = vmatprep.subr.mxu0 0.0
    %5164 = vmatpush2.msra.mxu0 0.0
    %5165 = vmatprep.subr.mxu0 0.0
    %5166 = vmatpush2.msra.mxu0 0.0
    %5167 = vmatprep.mubr.f32.mxu0 0.0
    %5168 = vmatmul.mubr.f32.gmra.mxu0 %v5027
    %v5169 = vpop.f32.mrf.mxu0
    %v5170 = vadd.f32 0.0, %v5169
    %v5171 = vpop.f32.mrf.mxu0
    %v5172 = vadd.f32 0.0, %v5171
    %5173 = vdwg.mxu0
    %v5174 = vadd.f32 %v5028, %v5099
    %v5175 = vadd.f32 %v5029, %v5101
    %v5176 = vadd.f32 %v5030, %v5170
    %v5177 = vadd.f32 %v5031, %v5172
    %v5178 = vxor.u32 %v5174, 2147483648
    %v5179 = vmul.f32 %v5178, 1.442695
    %v5180 = vpow.pop %v5179
    %v5181 = vadd.f32 %v5180, 1.0
    %v5182 = vrcp.pop %v5181
    %v5183 = vmul.f32 1.0, %v5182
    %v5184 = vxor.u32 %v5175, 2147483648
    %v5185 = vmul.f32 %v5184, 1.442695
    %v5186 = vpow.pop %v5185
    %v5187 = vadd.f32 %v5186, 1.0
    %v5188 = vrcp.pop %v5187
    %v5189 = vmul.f32 1.0, %v5188
    %v5190 = vtanh.pop %v5176
    %v5191 = vxor.u32 %v5177, 2147483648
    %v5192 = vmul.f32 %v5191, 1.442695
    %v5193 = vpow.pop %v5192
    %v5194 = vadd.f32 %v5193, 1.0
    %v5195 = vrcp.pop %v5194
    %v5196 = vmul.f32 1.0, %v5195
    %v5197 = vmul.f32 %v5189, %v5025
    %v5198 = vmul.f32 %v5183, %v5190
    %v5199 = vadd.f32 %v5197, %v5198
    %v5200 = vtanh.pop %v5199
    %v5201 = vmul.f32 %v5196, %v5200
    %v5202 = vld [vmem:[#allocation4 + $0x80] sm:$0xff]
    %v5203 = vld [vmem:[#allocation4 + $0x88] sm:$0xff]
    %v5204 = vld [vmem:[#allocation4 + $0x90] sm:$0xff]
    %v5205 = vld [vmem:[#allocation4 + $0x98] sm:$0xff]
    %5206 = vmatprep.subr.mxu0 %v4503
    %5207 = vmatpush1.msra.mxu0 %v4502
    %5208 = vmatprep.subr.mxu0 %v4499
    %5209 = vmatpush1.msra.mxu0 %v4498
    %5210 = vmatprep.subr.mxu0 %v4495
    %5211 = vmatpush1.msra.mxu0 %v4494
    %5212 = vmatprep.subr.mxu0 %v4491
    %5213 = vmatpush1.msra.mxu0 %v4490
    %5214 = vmatprep.subr.mxu0 %v4487
    %5215 = vmatpush1.msra.mxu0 %v4486
    %5216 = vmatprep.subr.mxu0 %v4483
    %5217 = vmatpush1.msra.mxu0 %v4482
    %5218 = vmatprep.subr.mxu0 %v4479
    %5219 = vmatpush1.msra.mxu0 %v4478
    %5220 = vmatprep.subr.mxu0 %v4475
    %5221 = vmatpush1.msra.mxu0 %v4474
    %5222 = vmatprep.subr.mxu0 %v4471
    %5223 = vmatpush1.msra.mxu0 %v4470
    %5224 = vmatprep.subr.mxu0 %v4467
    %5225 = vmatpush1.msra.mxu0 %v4466
    %5226 = vmatprep.subr.mxu0 %v4463
    %5227 = vmatpush1.msra.mxu0 %v4462
    %5228 = vmatprep.subr.mxu0 %v4459
    %5229 = vmatpush1.msra.mxu0 %v4458
    %5230 = vmatprep.subr.mxu0 %v4455
    %5231 = vmatpush1.msra.mxu0 %v4454
    %5232 = vmatprep.subr.mxu0 %v4451
    %5233 = vmatpush1.msra.mxu0 %v4450
    %5234 = vmatprep.subr.mxu0 %v4447
    %5235 = vmatpush1.msra.mxu0 %v4446
    %5236 = vmatprep.subr.mxu0 %v4443
    %5237 = vmatpush1.msra.mxu0 %v4442
    %5238 = vmatprep.subr.mxu0 0.0
    %5239 = vmatpush2.msra.mxu0 0.0
    %5240 = vmatprep.subr.mxu0 0.0
    %5241 = vmatpush2.msra.mxu0 0.0
    %5242 = vmatprep.subr.mxu0 0.0
    %5243 = vmatpush2.msra.mxu0 0.0
    %5244 = vmatprep.subr.mxu0 0.0
    %5245 = vmatpush2.msra.mxu0 0.0
    %5246 = vmatprep.subr.mxu0 0.0
    %5247 = vmatpush2.msra.mxu0 0.0
    %5248 = vmatprep.subr.mxu0 0.0
    %5249 = vmatpush2.msra.mxu0 0.0
    %5250 = vmatprep.subr.mxu0 0.0
    %5251 = vmatpush2.msra.mxu0 0.0
    %5252 = vmatprep.subr.mxu0 0.0
    %5253 = vmatpush2.msra.mxu0 0.0
    %5254 = vmatprep.subr.mxu0 0.0
    %5255 = vmatpush2.msra.mxu0 0.0
    %5256 = vmatprep.subr.mxu0 0.0
    %5257 = vmatpush2.msra.mxu0 0.0
    %5258 = vmatprep.subr.mxu0 0.0
    %5259 = vmatpush2.msra.mxu0 0.0
    %5260 = vmatprep.subr.mxu0 0.0
    %5261 = vmatpush2.msra.mxu0 0.0
    %5262 = vmatprep.subr.mxu0 0.0
    %5263 = vmatpush2.msra.mxu0 0.0
    %5264 = vmatprep.subr.mxu0 0.0
    %5265 = vmatpush2.msra.mxu0 0.0
    %5266 = vmatprep.subr.mxu0 0.0
    %5267 = vmatpush2.msra.mxu0 0.0
    %5268 = vmatprep.subr.mxu0 0.0
    %5269 = vmatpush2.msra.mxu0 0.0
    %5270 = vmatprep.mubr.f32.mxu0 0.0
    %5271 = vmatmul.mubr.f32.gmra.mxu0 %v5201
    %v5272 = vpop.f32.mrf.mxu0
    %v5273 = vadd.f32 0.0, %v5272
    %v5274 = vpop.f32.mrf.mxu0
    %v5275 = vadd.f32 0.0, %v5274
    %5276 = vdwg.mxu0
    %5277 = vmatprep.subr.mxu0 %v4505
    %5278 = vmatpush1.msra.mxu0 %v4504
    %5279 = vmatprep.subr.mxu0 %v4501
    %5280 = vmatpush1.msra.mxu0 %v4500
    %5281 = vmatprep.subr.mxu0 %v4497
    %5282 = vmatpush1.msra.mxu0 %v4496
    %5283 = vmatprep.subr.mxu0 %v4493
    %5284 = vmatpush1.msra.mxu0 %v4492
    %5285 = vmatprep.subr.mxu0 %v4489
    %5286 = vmatpush1.msra.mxu0 %v4488
    %5287 = vmatprep.subr.mxu0 %v4485
    %5288 = vmatpush1.msra.mxu0 %v4484
    %5289 = vmatprep.subr.mxu0 %v4481
    %5290 = vmatpush1.msra.mxu0 %v4480
    %5291 = vmatprep.subr.mxu0 %v4477
    %5292 = vmatpush1.msra.mxu0 %v4476
    %5293 = vmatprep.subr.mxu0 %v4473
    %5294 = vmatpush1.msra.mxu0 %v4472
    %5295 = vmatprep.subr.mxu0 %v4469
    %5296 = vmatpush1.msra.mxu0 %v4468
    %5297 = vmatprep.subr.mxu0 %v4465
    %5298 = vmatpush1.msra.mxu0 %v4464
    %5299 = vmatprep.subr.mxu0 %v4461
    %5300 = vmatpush1.msra.mxu0 %v4460
    %5301 = vmatprep.subr.mxu0 %v4457
    %5302 = vmatpush1.msra.mxu0 %v4456
    %5303 = vmatprep.subr.mxu0 %v4453
    %5304 = vmatpush1.msra.mxu0 %v4452
    %5305 = vmatprep.subr.mxu0 %v4449
    %5306 = vmatpush1.msra.mxu0 %v4448
    %5307 = vmatprep.subr.mxu0 %v4445
    %5308 = vmatpush1.msra.mxu0 %v4444
    %5309 = vmatprep.subr.mxu0 0.0
    %5310 = vmatpush2.msra.mxu0 0.0
    %5311 = vmatprep.subr.mxu0 0.0
    %5312 = vmatpush2.msra.mxu0 0.0
    %5313 = vmatprep.subr.mxu0 0.0
    %5314 = vmatpush2.msra.mxu0 0.0
    %5315 = vmatprep.subr.mxu0 0.0
    %5316 = vmatpush2.msra.mxu0 0.0
    %5317 = vmatprep.subr.mxu0 0.0
    %5318 = vmatpush2.msra.mxu0 0.0
    %5319 = vmatprep.subr.mxu0 0.0
    %5320 = vmatpush2.msra.mxu0 0.0
    %5321 = vmatprep.subr.mxu0 0.0
    %5322 = vmatpush2.msra.mxu0 0.0
    %5323 = vmatprep.subr.mxu0 0.0
    %5324 = vmatpush2.msra.mxu0 0.0
    %5325 = vmatprep.subr.mxu0 0.0
    %5326 = vmatpush2.msra.mxu0 0.0
    %5327 = vmatprep.subr.mxu0 0.0
    %5328 = vmatpush2.msra.mxu0 0.0
    %5329 = vmatprep.subr.mxu0 0.0
    %5330 = vmatpush2.msra.mxu0 0.0
    %5331 = vmatprep.subr.mxu0 0.0
    %5332 = vmatpush2.msra.mxu0 0.0
    %5333 = vmatprep.subr.mxu0 0.0
    %5334 = vmatpush2.msra.mxu0 0.0
    %5335 = vmatprep.subr.mxu0 0.0
    %5336 = vmatpush2.msra.mxu0 0.0
    %5337 = vmatprep.subr.mxu0 0.0
    %5338 = vmatpush2.msra.mxu0 0.0
    %5339 = vmatprep.subr.mxu0 0.0
    %5340 = vmatpush2.msra.mxu0 0.0
    %5341 = vmatprep.mubr.f32.mxu0 0.0
    %5342 = vmatmul.mubr.f32.gmra.mxu0 %v5201
    %v5343 = vpop.f32.mrf.mxu0
    %v5344 = vadd.f32 0.0, %v5343
    %v5345 = vpop.f32.mrf.mxu0
    %v5346 = vadd.f32 0.0, %v5345
    %5347 = vdwg.mxu0
    %v5348 = vadd.f32 %v5202, %v5273
    %v5349 = vadd.f32 %v5203, %v5275
    %v5350 = vadd.f32 %v5204, %v5344
    %v5351 = vadd.f32 %v5205, %v5346
    %v5352 = vxor.u32 %v5348, 2147483648
    %v5353 = vmul.f32 %v5352, 1.442695
    %v5354 = vpow.pop %v5353
    %v5355 = vadd.f32 %v5354, 1.0
    %v5356 = vrcp.pop %v5355
    %v5357 = vmul.f32 1.0, %v5356
    %v5358 = vxor.u32 %v5349, 2147483648
    %v5359 = vmul.f32 %v5358, 1.442695
    %v5360 = vpow.pop %v5359
    %v5361 = vadd.f32 %v5360, 1.0
    %v5362 = vrcp.pop %v5361
    %v5363 = vmul.f32 1.0, %v5362
    %v5364 = vtanh.pop %v5350
    %v5365 = vxor.u32 %v5351, 2147483648
    %v5366 = vmul.f32 %v5365, 1.442695
    %v5367 = vpow.pop %v5366
    %v5368 = vadd.f32 %v5367, 1.0
    %v5369 = vrcp.pop %v5368
    %v5370 = vmul.f32 1.0, %v5369
    %v5371 = vmul.f32 %v5363, %v5199
    %v5372 = vmul.f32 %v5357, %v5364
    %v5373 = vadd.f32 %v5371, %v5372
    %v5374 = vtanh.pop %v5373
    %v5375 = vmul.f32 %v5370, %v5374
    %v5376 = vld [vmem:[#allocation4 + $0xa0] sm:$0xff]
    %v5377 = vld [vmem:[#allocation4 + $0xa8] sm:$0xff]
    %v5378 = vld [vmem:[#allocation4 + $0xb0] sm:$0xff]
    %v5379 = vld [vmem:[#allocation4 + $0xb8] sm:$0xff]
    %5380 = vmatprep.subr.mxu0 %v4503
    %5381 = vmatpush1.msra.mxu0 %v4502
    %5382 = vmatprep.subr.mxu0 %v4499
    %5383 = vmatpush1.msra.mxu0 %v4498
    %5384 = vmatprep.subr.mxu0 %v4495
    %5385 = vmatpush1.msra.mxu0 %v4494
    %5386 = vmatprep.subr.mxu0 %v4491
    %5387 = vmatpush1.msra.mxu0 %v4490
    %5388 = vmatprep.subr.mxu0 %v4487
    %5389 = vmatpush1.msra.mxu0 %v4486
    %5390 = vmatprep.subr.mxu0 %v4483
    %5391 = vmatpush1.msra.mxu0 %v4482
    %5392 = vmatprep.subr.mxu0 %v4479
    %5393 = vmatpush1.msra.mxu0 %v4478
    %5394 = vmatprep.subr.mxu0 %v4475
    %5395 = vmatpush1.msra.mxu0 %v4474
    %5396 = vmatprep.subr.mxu0 %v4471
    %5397 = vmatpush1.msra.mxu0 %v4470
    %5398 = vmatprep.subr.mxu0 %v4467
    %5399 = vmatpush1.msra.mxu0 %v4466
    %5400 = vmatprep.subr.mxu0 %v4463
    %5401 = vmatpush1.msra.mxu0 %v4462
    %5402 = vmatprep.subr.mxu0 %v4459
    %5403 = vmatpush1.msra.mxu0 %v4458
    %5404 = vmatprep.subr.mxu0 %v4455
    %5405 = vmatpush1.msra.mxu0 %v4454
    %5406 = vmatprep.subr.mxu0 %v4451
    %5407 = vmatpush1.msra.mxu0 %v4450
    %5408 = vmatprep.subr.mxu0 %v4447
    %5409 = vmatpush1.msra.mxu0 %v4446
    %5410 = vmatprep.subr.mxu0 %v4443
    %5411 = vmatpush1.msra.mxu0 %v4442
    %5412 = vmatprep.subr.mxu0 0.0
    %5413 = vmatpush2.msra.mxu0 0.0
    %5414 = vmatprep.subr.mxu0 0.0
    %5415 = vmatpush2.msra.mxu0 0.0
    %5416 = vmatprep.subr.mxu0 0.0
    %5417 = vmatpush2.msra.mxu0 0.0
    %5418 = vmatprep.subr.mxu0 0.0
    %5419 = vmatpush2.msra.mxu0 0.0
    %5420 = vmatprep.subr.mxu0 0.0
    %5421 = vmatpush2.msra.mxu0 0.0
    %5422 = vmatprep.subr.mxu0 0.0
    %5423 = vmatpush2.msra.mxu0 0.0
    %5424 = vmatprep.subr.mxu0 0.0
    %5425 = vmatpush2.msra.mxu0 0.0
    %5426 = vmatprep.subr.mxu0 0.0
    %5427 = vmatpush2.msra.mxu0 0.0
    %5428 = vmatprep.subr.mxu0 0.0
    %5429 = vmatpush2.msra.mxu0 0.0
    %5430 = vmatprep.subr.mxu0 0.0
    %5431 = vmatpush2.msra.mxu0 0.0
    %5432 = vmatprep.subr.mxu0 0.0
    %5433 = vmatpush2.msra.mxu0 0.0
    %5434 = vmatprep.subr.mxu0 0.0
    %5435 = vmatpush2.msra.mxu0 0.0
    %5436 = vmatprep.subr.mxu0 0.0
    %5437 = vmatpush2.msra.mxu0 0.0
    %5438 = vmatprep.subr.mxu0 0.0
    %5439 = vmatpush2.msra.mxu0 0.0
    %5440 = vmatprep.subr.mxu0 0.0
    %5441 = vmatpush2.msra.mxu0 0.0
    %5442 = vmatprep.subr.mxu0 0.0
    %5443 = vmatpush2.msra.mxu0 0.0
    %5444 = vmatprep.mubr.f32.mxu0 0.0
    %5445 = vmatmul.mubr.f32.gmra.mxu0 %v5375
    %v5446 = vpop.f32.mrf.mxu0
    %v5447 = vadd.f32 0.0, %v5446
    %v5448 = vpop.f32.mrf.mxu0
    %v5449 = vadd.f32 0.0, %v5448
    %5450 = vdwg.mxu0
    %5451 = vmatprep.subr.mxu0 %v4505
    %5452 = vmatpush1.msra.mxu0 %v4504
    %5453 = vmatprep.subr.mxu0 %v4501
    %5454 = vmatpush1.msra.mxu0 %v4500
    %5455 = vmatprep.subr.mxu0 %v4497
    %5456 = vmatpush1.msra.mxu0 %v4496
    %5457 = vmatprep.subr.mxu0 %v4493
    %5458 = vmatpush1.msra.mxu0 %v4492
    %5459 = vmatprep.subr.mxu0 %v4489
    %5460 = vmatpush1.msra.mxu0 %v4488
    %5461 = vmatprep.subr.mxu0 %v4485
    %5462 = vmatpush1.msra.mxu0 %v4484
    %5463 = vmatprep.subr.mxu0 %v4481
    %5464 = vmatpush1.msra.mxu0 %v4480
    %5465 = vmatprep.subr.mxu0 %v4477
    %5466 = vmatpush1.msra.mxu0 %v4476
    %5467 = vmatprep.subr.mxu0 %v4473
    %5468 = vmatpush1.msra.mxu0 %v4472
    %5469 = vmatprep.subr.mxu0 %v4469
    %5470 = vmatpush1.msra.mxu0 %v4468
    %5471 = vmatprep.subr.mxu0 %v4465
    %5472 = vmatpush1.msra.mxu0 %v4464
    %5473 = vmatprep.subr.mxu0 %v4461
    %5474 = vmatpush1.msra.mxu0 %v4460
    %5475 = vmatprep.subr.mxu0 %v4457
    %5476 = vmatpush1.msra.mxu0 %v4456
    %5477 = vmatprep.subr.mxu0 %v4453
    %5478 = vmatpush1.msra.mxu0 %v4452
    %5479 = vmatprep.subr.mxu0 %v4449
    %5480 = vmatpush1.msra.mxu0 %v4448
    %5481 = vmatprep.subr.mxu0 %v4445
    %5482 = vmatpush1.msra.mxu0 %v4444
    %5483 = vmatprep.subr.mxu0 0.0
    %5484 = vmatpush2.msra.mxu0 0.0
    %5485 = vmatprep.subr.mxu0 0.0
    %5486 = vmatpush2.msra.mxu0 0.0
    %5487 = vmatprep.subr.mxu0 0.0
    %5488 = vmatpush2.msra.mxu0 0.0
    %5489 = vmatprep.subr.mxu0 0.0
    %5490 = vmatpush2.msra.mxu0 0.0
    %5491 = vmatprep.subr.mxu0 0.0
    %5492 = vmatpush2.msra.mxu0 0.0
    %5493 = vmatprep.subr.mxu0 0.0
    %5494 = vmatpush2.msra.mxu0 0.0
    %5495 = vmatprep.subr.mxu0 0.0
    %5496 = vmatpush2.msra.mxu0 0.0
    %5497 = vmatprep.subr.mxu0 0.0
    %5498 = vmatpush2.msra.mxu0 0.0
    %5499 = vmatprep.subr.mxu0 0.0
    %5500 = vmatpush2.msra.mxu0 0.0
    %5501 = vmatprep.subr.mxu0 0.0
    %5502 = vmatpush2.msra.mxu0 0.0
    %5503 = vmatprep.subr.mxu0 0.0
    %5504 = vmatpush2.msra.mxu0 0.0
    %5505 = vmatprep.subr.mxu0 0.0
    %5506 = vmatpush2.msra.mxu0 0.0
    %5507 = vmatprep.subr.mxu0 0.0
    %5508 = vmatpush2.msra.mxu0 0.0
    %5509 = vmatprep.subr.mxu0 0.0
    %5510 = vmatpush2.msra.mxu0 0.0
    %5511 = vmatprep.subr.mxu0 0.0
    %5512 = vmatpush2.msra.mxu0 0.0
    %5513 = vmatprep.subr.mxu0 0.0
    %5514 = vmatpush2.msra.mxu0 0.0
    %5515 = vmatprep.mubr.f32.mxu0 0.0
    %5516 = vmatmul.mubr.f32.gmra.mxu0 %v5375
    %v5517 = vpop.f32.mrf.mxu0
    %v5518 = vadd.f32 0.0, %v5517
    %v5519 = vpop.f32.mrf.mxu0
    %v5520 = vadd.f32 0.0, %v5519
    %5521 = vdwg.mxu0
    %v5522 = vadd.f32 %v5376, %v5447
    %v5523 = vadd.f32 %v5377, %v5449
    %v5524 = vadd.f32 %v5378, %v5518
    %v5525 = vadd.f32 %v5379, %v5520
    %v5526 = vxor.u32 %v5522, 2147483648
    %v5527 = vmul.f32 %v5526, 1.442695
    %v5528 = vpow.pop %v5527
    %v5529 = vadd.f32 %v5528, 1.0
    %v5530 = vrcp.pop %v5529
    %v5531 = vmul.f32 1.0, %v5530
    %v5532 = vxor.u32 %v5523, 2147483648
    %v5533 = vmul.f32 %v5532, 1.442695
    %v5534 = vpow.pop %v5533
    %v5535 = vadd.f32 %v5534, 1.0
    %v5536 = vrcp.pop %v5535
    %v5537 = vmul.f32 1.0, %v5536
    %v5538 = vtanh.pop %v5524
    %v5539 = vxor.u32 %v5525, 2147483648
    %v5540 = vmul.f32 %v5539, 1.442695
    %v5541 = vpow.pop %v5540
    %v5542 = vadd.f32 %v5541, 1.0
    %v5543 = vrcp.pop %v5542
    %v5544 = vmul.f32 1.0, %v5543
    %v5545 = vmul.f32 %v5537, %v5373
    %v5546 = vmul.f32 %v5531, %v5538
    %v5547 = vadd.f32 %v5545, %v5546
    %v5548 = vtanh.pop %v5547
    %v5549 = vmul.f32 %v5544, %v5548
    %v5550 = vld [vmem:[#allocation4 + $0xc0] sm:$0xff]
    %v5551 = vld [vmem:[#allocation4 + $0xc8] sm:$0xff]
    %v5552 = vld [vmem:[#allocation4 + $0xd0] sm:$0xff]
    %v5553 = vld [vmem:[#allocation4 + $0xd8] sm:$0xff]
    %5554 = vmatprep.subr.mxu0 %v4503
    %5555 = vmatpush1.msra.mxu0 %v4502
    %5556 = vmatprep.subr.mxu0 %v4499
    %5557 = vmatpush1.msra.mxu0 %v4498
    %5558 = vmatprep.subr.mxu0 %v4495
    %5559 = vmatpush1.msra.mxu0 %v4494
    %5560 = vmatprep.subr.mxu0 %v4491
    %5561 = vmatpush1.msra.mxu0 %v4490
    %5562 = vmatprep.subr.mxu0 %v4487
    %5563 = vmatpush1.msra.mxu0 %v4486
    %5564 = vmatprep.subr.mxu0 %v4483
    %5565 = vmatpush1.msra.mxu0 %v4482
    %5566 = vmatprep.subr.mxu0 %v4479
    %5567 = vmatpush1.msra.mxu0 %v4478
    %5568 = vmatprep.subr.mxu0 %v4475
    %5569 = vmatpush1.msra.mxu0 %v4474
    %5570 = vmatprep.subr.mxu0 %v4471
    %5571 = vmatpush1.msra.mxu0 %v4470
    %5572 = vmatprep.subr.mxu0 %v4467
    %5573 = vmatpush1.msra.mxu0 %v4466
    %5574 = vmatprep.subr.mxu0 %v4463
    %5575 = vmatpush1.msra.mxu0 %v4462
    %5576 = vmatprep.subr.mxu0 %v4459
    %5577 = vmatpush1.msra.mxu0 %v4458
    %5578 = vmatprep.subr.mxu0 %v4455
    %5579 = vmatpush1.msra.mxu0 %v4454
    %5580 = vmatprep.subr.mxu0 %v4451
    %5581 = vmatpush1.msra.mxu0 %v4450
    %5582 = vmatprep.subr.mxu0 %v4447
    %5583 = vmatpush1.msra.mxu0 %v4446
    %5584 = vmatprep.subr.mxu0 %v4443
    %5585 = vmatpush1.msra.mxu0 %v4442
    %5586 = vmatprep.subr.mxu0 0.0
    %5587 = vmatpush2.msra.mxu0 0.0
    %5588 = vmatprep.subr.mxu0 0.0
    %5589 = vmatpush2.msra.mxu0 0.0
    %5590 = vmatprep.subr.mxu0 0.0
    %5591 = vmatpush2.msra.mxu0 0.0
    %5592 = vmatprep.subr.mxu0 0.0
    %5593 = vmatpush2.msra.mxu0 0.0
    %5594 = vmatprep.subr.mxu0 0.0
    %5595 = vmatpush2.msra.mxu0 0.0
    %5596 = vmatprep.subr.mxu0 0.0
    %5597 = vmatpush2.msra.mxu0 0.0
    %5598 = vmatprep.subr.mxu0 0.0
    %5599 = vmatpush2.msra.mxu0 0.0
    %5600 = vmatprep.subr.mxu0 0.0
    %5601 = vmatpush2.msra.mxu0 0.0
    %5602 = vmatprep.subr.mxu0 0.0
    %5603 = vmatpush2.msra.mxu0 0.0
    %5604 = vmatprep.subr.mxu0 0.0
    %5605 = vmatpush2.msra.mxu0 0.0
    %5606 = vmatprep.subr.mxu0 0.0
    %5607 = vmatpush2.msra.mxu0 0.0
    %5608 = vmatprep.subr.mxu0 0.0
    %5609 = vmatpush2.msra.mxu0 0.0
    %5610 = vmatprep.subr.mxu0 0.0
    %5611 = vmatpush2.msra.mxu0 0.0
    %5612 = vmatprep.subr.mxu0 0.0
    %5613 = vmatpush2.msra.mxu0 0.0
    %5614 = vmatprep.subr.mxu0 0.0
    %5615 = vmatpush2.msra.mxu0 0.0
    %5616 = vmatprep.subr.mxu0 0.0
    %5617 = vmatpush2.msra.mxu0 0.0
    %5618 = vmatprep.mubr.f32.mxu0 0.0
    %5619 = vmatmul.mubr.f32.gmra.mxu0 %v5549
    %v5620 = vpop.f32.mrf.mxu0
    %v5621 = vadd.f32 0.0, %v5620
    %v5622 = vpop.f32.mrf.mxu0
    %v5623 = vadd.f32 0.0, %v5622
    %5624 = vdwg.mxu0
    %5625 = vmatprep.subr.mxu0 %v4505
    %5626 = vmatpush1.msra.mxu0 %v4504
    %5627 = vmatprep.subr.mxu0 %v4501
    %5628 = vmatpush1.msra.mxu0 %v4500
    %5629 = vmatprep.subr.mxu0 %v4497
    %5630 = vmatpush1.msra.mxu0 %v4496
    %5631 = vmatprep.subr.mxu0 %v4493
    %5632 = vmatpush1.msra.mxu0 %v4492
    %5633 = vmatprep.subr.mxu0 %v4489
    %5634 = vmatpush1.msra.mxu0 %v4488
    %5635 = vmatprep.subr.mxu0 %v4485
    %5636 = vmatpush1.msra.mxu0 %v4484
    %5637 = vmatprep.subr.mxu0 %v4481
    %5638 = vmatpush1.msra.mxu0 %v4480
    %5639 = vmatprep.subr.mxu0 %v4477
    %5640 = vmatpush1.msra.mxu0 %v4476
    %5641 = vmatprep.subr.mxu0 %v4473
    %5642 = vmatpush1.msra.mxu0 %v4472
    %5643 = vmatprep.subr.mxu0 %v4469
    %5644 = vmatpush1.msra.mxu0 %v4468
    %5645 = vmatprep.subr.mxu0 %v4465
    %5646 = vmatpush1.msra.mxu0 %v4464
    %5647 = vmatprep.subr.mxu0 %v4461
    %5648 = vmatpush1.msra.mxu0 %v4460
    %5649 = vmatprep.subr.mxu0 %v4457
    %5650 = vmatpush1.msra.mxu0 %v4456
    %5651 = vmatprep.subr.mxu0 %v4453
    %5652 = vmatpush1.msra.mxu0 %v4452
    %5653 = vmatprep.subr.mxu0 %v4449
    %5654 = vmatpush1.msra.mxu0 %v4448
    %5655 = vmatprep.subr.mxu0 %v4445
    %5656 = vmatpush1.msra.mxu0 %v4444
    %5657 = vmatprep.subr.mxu0 0.0
    %5658 = vmatpush2.msra.mxu0 0.0
    %5659 = vmatprep.subr.mxu0 0.0
    %5660 = vmatpush2.msra.mxu0 0.0
    %5661 = vmatprep.subr.mxu0 0.0
    %5662 = vmatpush2.msra.mxu0 0.0
    %5663 = vmatprep.subr.mxu0 0.0
    %5664 = vmatpush2.msra.mxu0 0.0
    %5665 = vmatprep.subr.mxu0 0.0
    %5666 = vmatpush2.msra.mxu0 0.0
    %5667 = vmatprep.subr.mxu0 0.0
    %5668 = vmatpush2.msra.mxu0 0.0
    %5669 = vmatprep.subr.mxu0 0.0
    %5670 = vmatpush2.msra.mxu0 0.0
    %5671 = vmatprep.subr.mxu0 0.0
    %5672 = vmatpush2.msra.mxu0 0.0
    %5673 = vmatprep.subr.mxu0 0.0
    %5674 = vmatpush2.msra.mxu0 0.0
    %5675 = vmatprep.subr.mxu0 0.0
    %5676 = vmatpush2.msra.mxu0 0.0
    %5677 = vmatprep.subr.mxu0 0.0
    %5678 = vmatpush2.msra.mxu0 0.0
    %5679 = vmatprep.subr.mxu0 0.0
    %5680 = vmatpush2.msra.mxu0 0.0
    %5681 = vmatprep.subr.mxu0 0.0
    %5682 = vmatpush2.msra.mxu0 0.0
    %5683 = vmatprep.subr.mxu0 0.0
    %5684 = vmatpush2.msra.mxu0 0.0
    %5685 = vmatprep.subr.mxu0 0.0
    %5686 = vmatpush2.msra.mxu0 0.0
    %5687 = vmatprep.subr.mxu0 0.0
    %5688 = vmatpush2.msra.mxu0 0.0
    %5689 = vmatprep.mubr.f32.mxu0 0.0
    %5690 = vmatmul.mubr.f32.gmra.mxu0 %v5549
    %v5691 = vpop.f32.mrf.mxu0
    %v5692 = vadd.f32 0.0, %v5691
    %v5693 = vpop.f32.mrf.mxu0
    %v5694 = vadd.f32 0.0, %v5693
    %5695 = vdwg.mxu0
    %v5696 = vadd.f32 %v5550, %v5621
    %v5697 = vadd.f32 %v5551, %v5623
    %v5698 = vadd.f32 %v5552, %v5692
    %v5699 = vadd.f32 %v5553, %v5694
    %v5700 = vxor.u32 %v5696, 2147483648
    %v5701 = vmul.f32 %v5700, 1.442695
    %v5702 = vpow.pop %v5701
    %v5703 = vadd.f32 %v5702, 1.0
    %v5704 = vrcp.pop %v5703
    %v5705 = vmul.f32 1.0, %v5704
    %v5706 = vxor.u32 %v5697, 2147483648
    %v5707 = vmul.f32 %v5706, 1.442695
    %v5708 = vpow.pop %v5707
    %v5709 = vadd.f32 %v5708, 1.0
    %v5710 = vrcp.pop %v5709
    %v5711 = vmul.f32 1.0, %v5710
    %v5712 = vtanh.pop %v5698
    %v5713 = vxor.u32 %v5699, 2147483648
    %v5714 = vmul.f32 %v5713, 1.442695
    %v5715 = vpow.pop %v5714
    %v5716 = vadd.f32 %v5715, 1.0
    %v5717 = vrcp.pop %v5716
    %v5718 = vmul.f32 1.0, %v5717
    %v5719 = vmul.f32 %v5711, %v5547
    %v5720 = vmul.f32 %v5705, %v5712
    %v5721 = vadd.f32 %v5719, %v5720
    %v5722 = vtanh.pop %v5721
    %v5723 = vmul.f32 %v5718, %v5722
    %v5724 = vld [vmem:[#allocation4 + $0xe0] sm:$0xff]
    %v5725 = vld [vmem:[#allocation4 + $0xe8] sm:$0xff]
    %v5726 = vld [vmem:[#allocation4 + $0xf0] sm:$0xff]
    %v5727 = vld [vmem:[#allocation4 + $0xf8] sm:$0xff]
    %5728 = vmatprep.subr.mxu0 %v4503
    %5729 = vmatpush1.msra.mxu0 %v4502
    %5730 = vmatprep.subr.mxu0 %v4499
    %5731 = vmatpush1.msra.mxu0 %v4498
    %5732 = vmatprep.subr.mxu0 %v4495
    %5733 = vmatpush1.msra.mxu0 %v4494
    %5734 = vmatprep.subr.mxu0 %v4491
    %5735 = vmatpush1.msra.mxu0 %v4490
    %5736 = vmatprep.subr.mxu0 %v4487
    %5737 = vmatpush1.msra.mxu0 %v4486
    %5738 = vmatprep.subr.mxu0 %v4483
    %5739 = vmatpush1.msra.mxu0 %v4482
    %5740 = vmatprep.subr.mxu0 %v4479
    %5741 = vmatpush1.msra.mxu0 %v4478
    %5742 = vmatprep.subr.mxu0 %v4475
    %5743 = vmatpush1.msra.mxu0 %v4474
    %5744 = vmatprep.subr.mxu0 %v4471
    %5745 = vmatpush1.msra.mxu0 %v4470
    %5746 = vmatprep.subr.mxu0 %v4467
    %5747 = vmatpush1.msra.mxu0 %v4466
    %5748 = vmatprep.subr.mxu0 %v4463
    %5749 = vmatpush1.msra.mxu0 %v4462
    %5750 = vmatprep.subr.mxu0 %v4459
    %5751 = vmatpush1.msra.mxu0 %v4458
    %5752 = vmatprep.subr.mxu0 %v4455
    %5753 = vmatpush1.msra.mxu0 %v4454
    %5754 = vmatprep.subr.mxu0 %v4451
    %5755 = vmatpush1.msra.mxu0 %v4450
    %5756 = vmatprep.subr.mxu0 %v4447
    %5757 = vmatpush1.msra.mxu0 %v4446
    %5758 = vmatprep.subr.mxu0 %v4443
    %5759 = vmatpush1.msra.mxu0 %v4442
    %5760 = vmatprep.subr.mxu0 0.0
    %5761 = vmatpush2.msra.mxu0 0.0
    %5762 = vmatprep.subr.mxu0 0.0
    %5763 = vmatpush2.msra.mxu0 0.0
    %5764 = vmatprep.subr.mxu0 0.0
    %5765 = vmatpush2.msra.mxu0 0.0
    %5766 = vmatprep.subr.mxu0 0.0
    %5767 = vmatpush2.msra.mxu0 0.0
    %5768 = vmatprep.subr.mxu0 0.0
    %5769 = vmatpush2.msra.mxu0 0.0
    %5770 = vmatprep.subr.mxu0 0.0
    %5771 = vmatpush2.msra.mxu0 0.0
    %5772 = vmatprep.subr.mxu0 0.0
    %5773 = vmatpush2.msra.mxu0 0.0
    %5774 = vmatprep.subr.mxu0 0.0
    %5775 = vmatpush2.msra.mxu0 0.0
    %5776 = vmatprep.subr.mxu0 0.0
    %5777 = vmatpush2.msra.mxu0 0.0
    %5778 = vmatprep.subr.mxu0 0.0
    %5779 = vmatpush2.msra.mxu0 0.0
    %5780 = vmatprep.subr.mxu0 0.0
    %5781 = vmatpush2.msra.mxu0 0.0
    %5782 = vmatprep.subr.mxu0 0.0
    %5783 = vmatpush2.msra.mxu0 0.0
    %5784 = vmatprep.subr.mxu0 0.0
    %5785 = vmatpush2.msra.mxu0 0.0
    %5786 = vmatprep.subr.mxu0 0.0
    %5787 = vmatpush2.msra.mxu0 0.0
    %5788 = vmatprep.subr.mxu0 0.0
    %5789 = vmatpush2.msra.mxu0 0.0
    %5790 = vmatprep.subr.mxu0 0.0
    %5791 = vmatpush2.msra.mxu0 0.0
    %5792 = vmatprep.mubr.f32.mxu0 0.0
    %5793 = vmatmul.mubr.f32.gmra.mxu0 %v5723
    %v5794 = vpop.f32.mrf.mxu0
    %v5795 = vadd.f32 0.0, %v5794
    %v5796 = vpop.f32.mrf.mxu0
    %v5797 = vadd.f32 0.0, %v5796
    %5798 = vdwg.mxu0
    %5799 = vmatprep.subr.mxu0 %v4505
    %5800 = vmatpush1.msra.mxu0 %v4504
    %5801 = vmatprep.subr.mxu0 %v4501
    %5802 = vmatpush1.msra.mxu0 %v4500
    %5803 = vmatprep.subr.mxu0 %v4497
    %5804 = vmatpush1.msra.mxu0 %v4496
    %5805 = vmatprep.subr.mxu0 %v4493
    %5806 = vmatpush1.msra.mxu0 %v4492
    %5807 = vmatprep.subr.mxu0 %v4489
    %5808 = vmatpush1.msra.mxu0 %v4488
    %5809 = vmatprep.subr.mxu0 %v4485
    %5810 = vmatpush1.msra.mxu0 %v4484
    %5811 = vmatprep.subr.mxu0 %v4481
    %5812 = vmatpush1.msra.mxu0 %v4480
    %5813 = vmatprep.subr.mxu0 %v4477
    %5814 = vmatpush1.msra.mxu0 %v4476
    %5815 = vmatprep.subr.mxu0 %v4473
    %5816 = vmatpush1.msra.mxu0 %v4472
    %5817 = vmatprep.subr.mxu0 %v4469
    %5818 = vmatpush1.msra.mxu0 %v4468
    %5819 = vmatprep.subr.mxu0 %v4465
    %5820 = vmatpush1.msra.mxu0 %v4464
    %5821 = vmatprep.subr.mxu0 %v4461
    %5822 = vmatpush1.msra.mxu0 %v4460
    %5823 = vmatprep.subr.mxu0 %v4457
    %5824 = vmatpush1.msra.mxu0 %v4456
    %5825 = vmatprep.subr.mxu0 %v4453
    %5826 = vmatpush1.msra.mxu0 %v4452
    %5827 = vmatprep.subr.mxu0 %v4449
    %5828 = vmatpush1.msra.mxu0 %v4448
    %5829 = vmatprep.subr.mxu0 %v4445
    %5830 = vmatpush1.msra.mxu0 %v4444
    %5831 = vmatprep.subr.mxu0 0.0
    %5832 = vmatpush2.msra.mxu0 0.0
    %5833 = vmatprep.subr.mxu0 0.0
    %5834 = vmatpush2.msra.mxu0 0.0
    %5835 = vmatprep.subr.mxu0 0.0
    %5836 = vmatpush2.msra.mxu0 0.0
    %5837 = vmatprep.subr.mxu0 0.0
    %5838 = vmatpush2.msra.mxu0 0.0
    %5839 = vmatprep.subr.mxu0 0.0
    %5840 = vmatpush2.msra.mxu0 0.0
    %5841 = vmatprep.subr.mxu0 0.0
    %5842 = vmatpush2.msra.mxu0 0.0
    %5843 = vmatprep.subr.mxu0 0.0
    %5844 = vmatpush2.msra.mxu0 0.0
    %5845 = vmatprep.subr.mxu0 0.0
    %5846 = vmatpush2.msra.mxu0 0.0
    %5847 = vmatprep.subr.mxu0 0.0
    %5848 = vmatpush2.msra.mxu0 0.0
    %5849 = vmatprep.subr.mxu0 0.0
    %5850 = vmatpush2.msra.mxu0 0.0
    %5851 = vmatprep.subr.mxu0 0.0
    %5852 = vmatpush2.msra.mxu0 0.0
    %5853 = vmatprep.subr.mxu0 0.0
    %5854 = vmatpush2.msra.mxu0 0.0
    %5855 = vmatprep.subr.mxu0 0.0
    %5856 = vmatpush2.msra.mxu0 0.0
    %5857 = vmatprep.subr.mxu0 0.0
    %5858 = vmatpush2.msra.mxu0 0.0
    %5859 = vmatprep.subr.mxu0 0.0
    %5860 = vmatpush2.msra.mxu0 0.0
    %5861 = vmatprep.subr.mxu0 0.0
    %5862 = vmatpush2.msra.mxu0 0.0
    %5863 = vmatprep.mubr.f32.mxu0 0.0
    %5864 = vmatmul.mubr.f32.gmra.mxu0 %v5723
    %v5865 = vpop.f32.mrf.mxu0
    %v5866 = vadd.f32 0.0, %v5865
    %v5867 = vpop.f32.mrf.mxu0
    %v5868 = vadd.f32 0.0, %v5867
    %5869 = vdwg.mxu0
    %v5870 = vadd.f32 %v5724, %v5795
    %v5871 = vadd.f32 %v5725, %v5797
    %v5872 = vadd.f32 %v5726, %v5866
    %v5873 = vadd.f32 %v5727, %v5868
    %v5874 = vxor.u32 %v5870, 2147483648
    %v5875 = vmul.f32 %v5874, 1.442695
    %v5876 = vpow.pop %v5875
    %v5877 = vadd.f32 %v5876, 1.0
    %v5878 = vrcp.pop %v5877
    %v5879 = vmul.f32 1.0, %v5878
    %v5880 = vxor.u32 %v5871, 2147483648
    %v5881 = vmul.f32 %v5880, 1.442695
    %v5882 = vpow.pop %v5881
    %v5883 = vadd.f32 %v5882, 1.0
    %v5884 = vrcp.pop %v5883
    %v5885 = vmul.f32 1.0, %v5884
    %v5886 = vtanh.pop %v5872
    %v5887 = vxor.u32 %v5873, 2147483648
    %v5888 = vmul.f32 %v5887, 1.442695
    %v5889 = vpow.pop %v5888
    %v5890 = vadd.f32 %v5889, 1.0
    %v5891 = vrcp.pop %v5890
    %v5892 = vmul.f32 1.0, %v5891
    %v5893 = vmul.f32 %v5885, %v5721
    %v5894 = vmul.f32 %v5879, %v5886
    %v5895 = vadd.f32 %v5893, %v5894
    %v5896 = vtanh.pop %v5895
    %v5897 = vmul.f32 %v5892, %v5896
    %v5898 = vld [vmem:[#allocation2 + $0x70] sm:$0xff]
    %v5899 = vld [vmem:[#allocation2 + $0x78] sm:$0xff]
    %s5900 = scalar_lea.vmem [#allocation5], 1024
    %v5901 = vld [vmem:[%s5900] sm:$0xff]
    %v5902 = vld [vmem:[%s5900 + $0x8] sm:$0xff]
    %v5903 = vld [vmem:[%s5900 + $0x10] sm:$0xff]
    %v5904 = vld [vmem:[%s5900 + $0x18] sm:$0xff]
    %v5905 = vld [vmem:[%s5900 + $0x20] sm:$0xff]
    %v5906 = vld [vmem:[%s5900 + $0x28] sm:$0xff]
    %v5907 = vld [vmem:[%s5900 + $0x30] sm:$0xff]
    %v5908 = vld [vmem:[%s5900 + $0x38] sm:$0xff]
    %v5909 = vld [vmem:[%s5900 + $0x40] sm:$0xff]
    %v5910 = vld [vmem:[%s5900 + $0x48] sm:$0xff]
    %v5911 = vld [vmem:[%s5900 + $0x50] sm:$0xff]
    %v5912 = vld [vmem:[%s5900 + $0x58] sm:$0xff]
    %v5913 = vld [vmem:[%s5900 + $0x60] sm:$0xff]
    %v5914 = vld [vmem:[%s5900 + $0x68] sm:$0xff]
    %v5915 = vld [vmem:[%s5900 + $0x70] sm:$0xff]
    %v5916 = vld [vmem:[%s5900 + $0x78] sm:$0xff]
    %v5917 = vld [vmem:[%s5900 + $0x80] sm:$0xff]
    %v5918 = vld [vmem:[%s5900 + $0x88] sm:$0xff]
    %v5919 = vld [vmem:[%s5900 + $0x90] sm:$0xff]
    %v5920 = vld [vmem:[%s5900 + $0x98] sm:$0xff]
    %v5921 = vld [vmem:[%s5900 + $0xa0] sm:$0xff]
    %v5922 = vld [vmem:[%s5900 + $0xa8] sm:$0xff]
    %v5923 = vld [vmem:[%s5900 + $0xb0] sm:$0xff]
    %v5924 = vld [vmem:[%s5900 + $0xb8] sm:$0xff]
    %v5925 = vld [vmem:[%s5900 + $0xc0] sm:$0xff]
    %v5926 = vld [vmem:[%s5900 + $0xc8] sm:$0xff]
    %v5927 = vld [vmem:[%s5900 + $0xd0] sm:$0xff]
    %v5928 = vld [vmem:[%s5900 + $0xd8] sm:$0xff]
    %v5929 = vld [vmem:[%s5900 + $0xe0] sm:$0xff]
    %v5930 = vld [vmem:[%s5900 + $0xe8] sm:$0xff]
    %v5931 = vld [vmem:[%s5900 + $0xf0] sm:$0xff]
    %v5932 = vld [vmem:[%s5900 + $0xf8] sm:$0xff]
    %v5933 = vld [vmem:[%s5900 + $0x100] sm:$0xff]
    %v5934 = vld [vmem:[%s5900 + $0x108] sm:$0xff]
    %v5935 = vld [vmem:[%s5900 + $0x110] sm:$0xff]
    %v5936 = vld [vmem:[%s5900 + $0x118] sm:$0xff]
    %v5937 = vld [vmem:[%s5900 + $0x120] sm:$0xff]
    %v5938 = vld [vmem:[%s5900 + $0x128] sm:$0xff]
    %v5939 = vld [vmem:[%s5900 + $0x130] sm:$0xff]
    %v5940 = vld [vmem:[%s5900 + $0x138] sm:$0xff]
    %v5941 = vld [vmem:[%s5900 + $0x140] sm:$0xff]
    %v5942 = vld [vmem:[%s5900 + $0x148] sm:$0xff]
    %v5943 = vld [vmem:[%s5900 + $0x150] sm:$0xff]
    %v5944 = vld [vmem:[%s5900 + $0x158] sm:$0xff]
    %v5945 = vld [vmem:[%s5900 + $0x160] sm:$0xff]
    %v5946 = vld [vmem:[%s5900 + $0x168] sm:$0xff]
    %v5947 = vld [vmem:[%s5900 + $0x170] sm:$0xff]
    %v5948 = vld [vmem:[%s5900 + $0x178] sm:$0xff]
    %v5949 = vld [vmem:[%s5900 + $0x180] sm:$0xff]
    %v5950 = vld [vmem:[%s5900 + $0x188] sm:$0xff]
    %v5951 = vld [vmem:[%s5900 + $0x190] sm:$0xff]
    %v5952 = vld [vmem:[%s5900 + $0x198] sm:$0xff]
    %v5953 = vld [vmem:[%s5900 + $0x1a0] sm:$0xff]
    %v5954 = vld [vmem:[%s5900 + $0x1a8] sm:$0xff]
    %v5955 = vld [vmem:[%s5900 + $0x1b0] sm:$0xff]
    %v5956 = vld [vmem:[%s5900 + $0x1b8] sm:$0xff]
    %v5957 = vld [vmem:[%s5900 + $0x1c0] sm:$0xff]
    %v5958 = vld [vmem:[%s5900 + $0x1c8] sm:$0xff]
    %v5959 = vld [vmem:[%s5900 + $0x1d0] sm:$0xff]
    %v5960 = vld [vmem:[%s5900 + $0x1d8] sm:$0xff]
    %v5961 = vld [vmem:[%s5900 + $0x1e0] sm:$0xff]
    %v5962 = vld [vmem:[%s5900 + $0x1e8] sm:$0xff]
    %v5963 = vld [vmem:[%s5900 + $0x1f0] sm:$0xff]
    %v5964 = vld [vmem:[%s5900 + $0x1f8] sm:$0xff]
    %v5965 = vld [vmem:[%s5900 + $0x200] sm:$0xff]
    %v5966 = vld [vmem:[%s5900 + $0x208] sm:$0xff]
    %v5967 = vld [vmem:[%s5900 + $0x210] sm:$0xff]
    %v5968 = vld [vmem:[%s5900 + $0x218] sm:$0xff]
    %v5969 = vld [vmem:[%s5900 + $0x220] sm:$0xff]
    %v5970 = vld [vmem:[%s5900 + $0x228] sm:$0xff]
    %v5971 = vld [vmem:[%s5900 + $0x230] sm:$0xff]
    %v5972 = vld [vmem:[%s5900 + $0x238] sm:$0xff]
    %v5973 = vld [vmem:[%s5900 + $0x240] sm:$0xff]
    %v5974 = vld [vmem:[%s5900 + $0x248] sm:$0xff]
    %v5975 = vld [vmem:[%s5900 + $0x250] sm:$0xff]
    %v5976 = vld [vmem:[%s5900 + $0x258] sm:$0xff]
    %v5977 = vld [vmem:[%s5900 + $0x260] sm:$0xff]
    %v5978 = vld [vmem:[%s5900 + $0x268] sm:$0xff]
    %v5979 = vld [vmem:[%s5900 + $0x270] sm:$0xff]
    %v5980 = vld [vmem:[%s5900 + $0x278] sm:$0xff]
    %v5981 = vld [vmem:[%s5900 + $0x280] sm:$0xff]
    %v5982 = vld [vmem:[%s5900 + $0x288] sm:$0xff]
    %v5983 = vld [vmem:[%s5900 + $0x290] sm:$0xff]
    %v5984 = vld [vmem:[%s5900 + $0x298] sm:$0xff]
    %v5985 = vld [vmem:[%s5900 + $0x2a0] sm:$0xff]
    %v5986 = vld [vmem:[%s5900 + $0x2a8] sm:$0xff]
    %v5987 = vld [vmem:[%s5900 + $0x2b0] sm:$0xff]
    %v5988 = vld [vmem:[%s5900 + $0x2b8] sm:$0xff]
    %v5989 = vld [vmem:[%s5900 + $0x2c0] sm:$0xff]
    %v5990 = vld [vmem:[%s5900 + $0x2c8] sm:$0xff]
    %v5991 = vld [vmem:[%s5900 + $0x2d0] sm:$0xff]
    %v5992 = vld [vmem:[%s5900 + $0x2d8] sm:$0xff]
    %v5993 = vld [vmem:[%s5900 + $0x2e0] sm:$0xff]
    %v5994 = vld [vmem:[%s5900 + $0x2e8] sm:$0xff]
    %v5995 = vld [vmem:[%s5900 + $0x2f0] sm:$0xff]
    %v5996 = vld [vmem:[%s5900 + $0x2f8] sm:$0xff]
    %v5997 = vld [vmem:[%s5900 + $0x300] sm:$0xff]
    %v5998 = vld [vmem:[%s5900 + $0x308] sm:$0xff]
    %v5999 = vld [vmem:[%s5900 + $0x310] sm:$0xff]
    %v6000 = vld [vmem:[%s5900 + $0x318] sm:$0xff]
    %v6001 = vld [vmem:[%s5900 + $0x320] sm:$0xff]
    %v6002 = vld [vmem:[%s5900 + $0x328] sm:$0xff]
    %v6003 = vld [vmem:[%s5900 + $0x330] sm:$0xff]
    %v6004 = vld [vmem:[%s5900 + $0x338] sm:$0xff]
    %v6005 = vld [vmem:[%s5900 + $0x340] sm:$0xff]
    %v6006 = vld [vmem:[%s5900 + $0x348] sm:$0xff]
    %v6007 = vld [vmem:[%s5900 + $0x350] sm:$0xff]
    %v6008 = vld [vmem:[%s5900 + $0x358] sm:$0xff]
    %v6009 = vld [vmem:[%s5900 + $0x360] sm:$0xff]
    %v6010 = vld [vmem:[%s5900 + $0x368] sm:$0xff]
    %v6011 = vld [vmem:[%s5900 + $0x370] sm:$0xff]
    %v6012 = vld [vmem:[%s5900 + $0x378] sm:$0xff]
    %v6013 = vld [vmem:[%s5900 + $0x380] sm:$0xff]
    %v6014 = vld [vmem:[%s5900 + $0x388] sm:$0xff]
    %v6015 = vld [vmem:[%s5900 + $0x390] sm:$0xff]
    %v6016 = vld [vmem:[%s5900 + $0x398] sm:$0xff]
    %v6017 = vld [vmem:[%s5900 + $0x3a0] sm:$0xff]
    %v6018 = vld [vmem:[%s5900 + $0x3a8] sm:$0xff]
    %v6019 = vld [vmem:[%s5900 + $0x3b0] sm:$0xff]
    %v6020 = vld [vmem:[%s5900 + $0x3b8] sm:$0xff]
    %v6021 = vld [vmem:[%s5900 + $0x3c0] sm:$0xff]
    %v6022 = vld [vmem:[%s5900 + $0x3c8] sm:$0xff]
    %v6023 = vld [vmem:[%s5900 + $0x3d0] sm:$0xff]
    %v6024 = vld [vmem:[%s5900 + $0x3d8] sm:$0xff]
    %v6025 = vld [vmem:[%s5900 + $0x3e0] sm:$0xff]
    %v6026 = vld [vmem:[%s5900 + $0x3e8] sm:$0xff]
    %v6027 = vld [vmem:[%s5900 + $0x3f0] sm:$0xff]
    %v6028 = vld [vmem:[%s5900 + $0x3f8] sm:$0xff]
    %s6029 = scalar_lea.vmem %s4, 4
    %v6030 = vld [vmem:[%s6029] sm:$0xf]
    %v6032 = vlaneseq
    %v6033 = vshrl.u32 %v6032, 7
    %v6034 = vsub.s32 0, %v6033
    %v6035 = vrot.slane %v6030, %v6034
    %v6036 = vlaneseq
    %v6037 = vshrl.u32 %v6036, 7
    %v6038 = vsub.s32 1, %v6037
    %v6039 = vrot.slane %v6030, %v6038
    %v6040 = vlaneseq
    %v6041 = vshrl.u32 %v6040, 7
    %v6042 = vsub.s32 2, %v6041
    %v6043 = vrot.slane %v6030, %v6042
    %v6044 = vlaneseq
    %v6045 = vshrl.u32 %v6044, 7
    %v6046 = vsub.s32 3, %v6045
    %v6047 = vrot.slane %v6030, %v6046
    %6052 = vmatprep.subr.mxu0 %v5962
    %6053 = vmatpush1.msra.mxu0 %v5961
    %6054 = vmatprep.subr.mxu0 %v5958
    %6055 = vmatpush1.msra.mxu0 %v5957
    %6056 = vmatprep.subr.mxu0 %v5954
    %6057 = vmatpush1.msra.mxu0 %v5953
    %6058 = vmatprep.subr.mxu0 %v5950
    %6059 = vmatpush1.msra.mxu0 %v5949
    %6060 = vmatprep.subr.mxu0 %v5946
    %6061 = vmatpush1.msra.mxu0 %v5945
    %6062 = vmatprep.subr.mxu0 %v5942
    %6063 = vmatpush1.msra.mxu0 %v5941
    %6064 = vmatprep.subr.mxu0 %v5938
    %6065 = vmatpush1.msra.mxu0 %v5937
    %6066 = vmatprep.subr.mxu0 %v5934
    %6067 = vmatpush1.msra.mxu0 %v5933
    %6068 = vmatprep.subr.mxu0 %v5930
    %6069 = vmatpush1.msra.mxu0 %v5929
    %6070 = vmatprep.subr.mxu0 %v5926
    %6071 = vmatpush1.msra.mxu0 %v5925
    %6072 = vmatprep.subr.mxu0 %v5922
    %6073 = vmatpush1.msra.mxu0 %v5921
    %6074 = vmatprep.subr.mxu0 %v5918
    %6075 = vmatpush1.msra.mxu0 %v5917
    %6076 = vmatprep.subr.mxu0 %v5914
    %6077 = vmatpush1.msra.mxu0 %v5913
    %6078 = vmatprep.subr.mxu0 %v5910
    %6079 = vmatpush1.msra.mxu0 %v5909
    %6080 = vmatprep.subr.mxu0 %v5906
    %6081 = vmatpush1.msra.mxu0 %v5905
    %6082 = vmatprep.subr.mxu0 %v5902
    %6083 = vmatpush1.msra.mxu0 %v5901
    %6084 = vmatprep.subr.mxu0 %v6026
    %6085 = vmatpush2.msra.mxu0 %v6025
    %6086 = vmatprep.subr.mxu0 %v6022
    %6087 = vmatpush2.msra.mxu0 %v6021
    %6088 = vmatprep.subr.mxu0 %v6018
    %6089 = vmatpush2.msra.mxu0 %v6017
    %6090 = vmatprep.subr.mxu0 %v6014
    %6091 = vmatpush2.msra.mxu0 %v6013
    %6092 = vmatprep.subr.mxu0 %v6010
    %6093 = vmatpush2.msra.mxu0 %v6009
    %6094 = vmatprep.subr.mxu0 %v6006
    %6095 = vmatpush2.msra.mxu0 %v6005
    %6096 = vmatprep.subr.mxu0 %v6002
    %6097 = vmatpush2.msra.mxu0 %v6001
    %6098 = vmatprep.subr.mxu0 %v5998
    %6099 = vmatpush2.msra.mxu0 %v5997
    %6100 = vmatprep.subr.mxu0 %v5994
    %6101 = vmatpush2.msra.mxu0 %v5993
    %6102 = vmatprep.subr.mxu0 %v5990
    %6103 = vmatpush2.msra.mxu0 %v5989
    %6104 = vmatprep.subr.mxu0 %v5986
    %6105 = vmatpush2.msra.mxu0 %v5985
    %6106 = vmatprep.subr.mxu0 %v5982
    %6107 = vmatpush2.msra.mxu0 %v5981
    %6108 = vmatprep.subr.mxu0 %v5978
    %6109 = vmatpush2.msra.mxu0 %v5977
    %6110 = vmatprep.subr.mxu0 %v5974
    %6111 = vmatpush2.msra.mxu0 %v5973
    %6112 = vmatprep.subr.mxu0 %v5970
    %6113 = vmatpush2.msra.mxu0 %v5969
    %6114 = vmatprep.subr.mxu0 %v5966
    %6115 = vmatpush2.msra.mxu0 %v5965
    %6116 = vmatprep.mubr.f32.mxu0 %v5899
    %6117 = vmatmul.mubr.f32.gmra.mxu0 %v5898
    %v6118 = vpop.f32.mrf.mxu0
    %v6119 = vadd.f32 %v6035, %v6118
    %v6120 = vpop.f32.mrf.mxu0
    %v6121 = vadd.f32 %v6039, %v6120
    %6122 = vdwg.mxu0
    %6123 = vmatprep.subr.mxu0 %v5964
    %6124 = vmatpush1.msra.mxu0 %v5963
    %6125 = vmatprep.subr.mxu0 %v5960
    %6126 = vmatpush1.msra.mxu0 %v5959
    %6127 = vmatprep.subr.mxu0 %v5956
    %6128 = vmatpush1.msra.mxu0 %v5955
    %6129 = vmatprep.subr.mxu0 %v5952
    %6130 = vmatpush1.msra.mxu0 %v5951
    %6131 = vmatprep.subr.mxu0 %v5948
    %6132 = vmatpush1.msra.mxu0 %v5947
    %6133 = vmatprep.subr.mxu0 %v5944
    %6134 = vmatpush1.msra.mxu0 %v5943
    %6135 = vmatprep.subr.mxu0 %v5940
    %6136 = vmatpush1.msra.mxu0 %v5939
    %6137 = vmatprep.subr.mxu0 %v5936
    %6138 = vmatpush1.msra.mxu0 %v5935
    %6139 = vmatprep.subr.mxu0 %v5932
    %6140 = vmatpush1.msra.mxu0 %v5931
    %6141 = vmatprep.subr.mxu0 %v5928
    %6142 = vmatpush1.msra.mxu0 %v5927
    %6143 = vmatprep.subr.mxu0 %v5924
    %6144 = vmatpush1.msra.mxu0 %v5923
    %6145 = vmatprep.subr.mxu0 %v5920
    %6146 = vmatpush1.msra.mxu0 %v5919
    %6147 = vmatprep.subr.mxu0 %v5916
    %6148 = vmatpush1.msra.mxu0 %v5915
    %6149 = vmatprep.subr.mxu0 %v5912
    %6150 = vmatpush1.msra.mxu0 %v5911
    %6151 = vmatprep.subr.mxu0 %v5908
    %6152 = vmatpush1.msra.mxu0 %v5907
    %6153 = vmatprep.subr.mxu0 %v5904
    %6154 = vmatpush1.msra.mxu0 %v5903
    %6155 = vmatprep.subr.mxu0 %v6028
    %6156 = vmatpush2.msra.mxu0 %v6027
    %6157 = vmatprep.subr.mxu0 %v6024
    %6158 = vmatpush2.msra.mxu0 %v6023
    %6159 = vmatprep.subr.mxu0 %v6020
    %6160 = vmatpush2.msra.mxu0 %v6019
    %6161 = vmatprep.subr.mxu0 %v6016
    %6162 = vmatpush2.msra.mxu0 %v6015
    %6163 = vmatprep.subr.mxu0 %v6012
    %6164 = vmatpush2.msra.mxu0 %v6011
    %6165 = vmatprep.subr.mxu0 %v6008
    %6166 = vmatpush2.msra.mxu0 %v6007
    %6167 = vmatprep.subr.mxu0 %v6004
    %6168 = vmatpush2.msra.mxu0 %v6003
    %6169 = vmatprep.subr.mxu0 %v6000
    %6170 = vmatpush2.msra.mxu0 %v5999
    %6171 = vmatprep.subr.mxu0 %v5996
    %6172 = vmatpush2.msra.mxu0 %v5995
    %6173 = vmatprep.subr.mxu0 %v5992
    %6174 = vmatpush2.msra.mxu0 %v5991
    %6175 = vmatprep.subr.mxu0 %v5988
    %6176 = vmatpush2.msra.mxu0 %v5987
    %6177 = vmatprep.subr.mxu0 %v5984
    %6178 = vmatpush2.msra.mxu0 %v5983
    %6179 = vmatprep.subr.mxu0 %v5980
    %6180 = vmatpush2.msra.mxu0 %v5979
    %6181 = vmatprep.subr.mxu0 %v5976
    %6182 = vmatpush2.msra.mxu0 %v5975
    %6183 = vmatprep.subr.mxu0 %v5972
    %6184 = vmatpush2.msra.mxu0 %v5971
    %6185 = vmatprep.subr.mxu0 %v5968
    %6186 = vmatpush2.msra.mxu0 %v5967
    %6187 = vmatprep.mubr.f32.mxu0 %v5899
    %6188 = vmatmul.mubr.f32.gmra.mxu0 %v5898
    %v6189 = vpop.f32.mrf.mxu0
    %v6190 = vadd.f32 %v6043, %v6189
    %v6191 = vpop.f32.mrf.mxu0
    %v6192 = vadd.f32 %v6047, %v6191
    %6193 = vdwg.mxu0
    %v6194 = vxor.u32 %v6119, 2147483648
    %v6195 = vmul.f32 %v6194, 1.442695
    %v6196 = vpow.pop %v6195
    %v6197 = vadd.f32 %v6196, 1.0
    %v6198 = vrcp.pop %v6197
    %v6199 = vmul.f32 1.0, %v6198
    %v6200 = vxor.u32 %v6121, 2147483648
    %v6201 = vmul.f32 %v6200, 1.442695
    %v6202 = vpow.pop %v6201
    %v6203 = vadd.f32 %v6202, 1.0
    %v6204 = vrcp.pop %v6203
    %v6205 = vmul.f32 1.0, %v6204
    %v6206 = vtanh.pop %v6190
    %v6207 = vxor.u32 %v6192, 2147483648
    %v6208 = vmul.f32 %v6207, 1.442695
    %v6209 = vpow.pop %v6208
    %v6210 = vadd.f32 %v6209, 1.0
    %v6211 = vrcp.pop %v6210
    %v6212 = vmul.f32 1.0, %v6211
    %v6213 = vmul.f32 %v6205, 0.0
    %v6214 = vmul.f32 %v6199, %v6206
    %v6215 = vadd.f32 %v6213, %v6214
    %v6216 = vtanh.pop %v6215
    %v6217 = vmul.f32 %v6212, %v6216
    %v6218 = vld [vmem:[#allocation7] sm:$0xff]
    %v6219 = vld [vmem:[#allocation7 + $0x8] sm:$0xff]
    %v6220 = vld [vmem:[#allocation7 + $0x10] sm:$0xff]
    %v6221 = vld [vmem:[#allocation7 + $0x18] sm:$0xff]
    %v6222 = vld [vmem:[#allocation7 + $0x20] sm:$0xff]
    %v6223 = vld [vmem:[#allocation7 + $0x28] sm:$0xff]
    %v6224 = vld [vmem:[#allocation7 + $0x30] sm:$0xff]
    %v6225 = vld [vmem:[#allocation7 + $0x38] sm:$0xff]
    %v6226 = vld [vmem:[#allocation7 + $0x40] sm:$0xff]
    %v6227 = vld [vmem:[#allocation7 + $0x48] sm:$0xff]
    %v6228 = vld [vmem:[#allocation7 + $0x50] sm:$0xff]
    %v6229 = vld [vmem:[#allocation7 + $0x58] sm:$0xff]
    %v6230 = vld [vmem:[#allocation7 + $0x60] sm:$0xff]
    %v6231 = vld [vmem:[#allocation7 + $0x68] sm:$0xff]
    %v6232 = vld [vmem:[#allocation7 + $0x70] sm:$0xff]
    %v6233 = vld [vmem:[#allocation7 + $0x78] sm:$0xff]
    %v6234 = vld [vmem:[#allocation7 + $0x80] sm:$0xff]
    %v6235 = vld [vmem:[#allocation7 + $0x88] sm:$0xff]
    %v6236 = vld [vmem:[#allocation7 + $0x90] sm:$0xff]
    %v6237 = vld [vmem:[#allocation7 + $0x98] sm:$0xff]
    %v6238 = vld [vmem:[#allocation7 + $0xa0] sm:$0xff]
    %v6239 = vld [vmem:[#allocation7 + $0xa8] sm:$0xff]
    %v6240 = vld [vmem:[#allocation7 + $0xb0] sm:$0xff]
    %v6241 = vld [vmem:[#allocation7 + $0xb8] sm:$0xff]
    %v6242 = vld [vmem:[#allocation7 + $0xc0] sm:$0xff]
    %v6243 = vld [vmem:[#allocation7 + $0xc8] sm:$0xff]
    %v6244 = vld [vmem:[#allocation7 + $0xd0] sm:$0xff]
    %v6245 = vld [vmem:[#allocation7 + $0xd8] sm:$0xff]
    %v6246 = vld [vmem:[#allocation7 + $0xe0] sm:$0xff]
    %v6247 = vld [vmem:[#allocation7 + $0xe8] sm:$0xff]
    %v6248 = vld [vmem:[#allocation7 + $0xf0] sm:$0xff]
    %v6249 = vld [vmem:[#allocation7 + $0xf8] sm:$0xff]
    %6250 = vmatprep.subr.mxu0 0.0
    %6251 = vmatpush1.msra.mxu0 %v6249
    %6252 = vmatprep.subr.mxu0 0.0
    %6253 = vmatpush1.msra.mxu0 %v6248
    %6254 = vmatprep.subr.mxu0 0.0
    %6255 = vmatpush1.msra.mxu0 %v6247
    %6256 = vmatprep.subr.mxu0 0.0
    %6257 = vmatpush1.msra.mxu0 %v6246
    %6258 = vmatprep.subr.mxu0 0.0
    %6259 = vmatpush1.msra.mxu0 %v6245
    %6260 = vmatprep.subr.mxu0 0.0
    %6261 = vmatpush1.msra.mxu0 %v6244
    %6262 = vmatprep.subr.mxu0 0.0
    %6263 = vmatpush1.msra.mxu0 %v6243
    %6264 = vmatprep.subr.mxu0 0.0
    %6265 = vmatpush1.msra.mxu0 %v6242
    %6266 = vmatprep.subr.mxu0 0.0
    %6267 = vmatpush1.msra.mxu0 %v6241
    %6268 = vmatprep.subr.mxu0 0.0
    %6269 = vmatpush1.msra.mxu0 %v6240
    %6270 = vmatprep.subr.mxu0 0.0
    %6271 = vmatpush1.msra.mxu0 %v6239
    %6272 = vmatprep.subr.mxu0 0.0
    %6273 = vmatpush1.msra.mxu0 %v6238
    %6274 = vmatprep.subr.mxu0 0.0
    %6275 = vmatpush1.msra.mxu0 %v6237
    %6276 = vmatprep.subr.mxu0 0.0
    %6277 = vmatpush1.msra.mxu0 %v6236
    %6278 = vmatprep.subr.mxu0 0.0
    %6279 = vmatpush1.msra.mxu0 %v6235
    %6280 = vmatprep.subr.mxu0 0.0
    %6281 = vmatpush1.msra.mxu0 %v6234
    %6282 = vmatprep.subr.mxu0 0.0
    %6283 = vmatpush2.msra.mxu0 0.0
    %6284 = vmatprep.subr.mxu0 0.0
    %6285 = vmatpush2.msra.mxu0 0.0
    %6286 = vmatprep.subr.mxu0 0.0
    %6287 = vmatpush2.msra.mxu0 0.0
    %6288 = vmatprep.subr.mxu0 0.0
    %6289 = vmatpush2.msra.mxu0 0.0
    %6290 = vmatprep.subr.mxu0 0.0
    %6291 = vmatpush2.msra.mxu0 0.0
    %6292 = vmatprep.subr.mxu0 0.0
    %6293 = vmatpush2.msra.mxu0 0.0
    %6294 = vmatprep.subr.mxu0 0.0
    %6295 = vmatpush2.msra.mxu0 0.0
    %6296 = vmatprep.subr.mxu0 0.0
    %6297 = vmatpush2.msra.mxu0 0.0
    %6298 = vmatprep.subr.mxu0 0.0
    %6299 = vmatpush2.msra.mxu0 0.0
    %6300 = vmatprep.subr.mxu0 0.0
    %6301 = vmatpush2.msra.mxu0 0.0
    %6302 = vmatprep.subr.mxu0 0.0
    %6303 = vmatpush2.msra.mxu0 0.0
    %6304 = vmatprep.subr.mxu0 0.0
    %6305 = vmatpush2.msra.mxu0 0.0
    %6306 = vmatprep.subr.mxu0 0.0
    %6307 = vmatpush2.msra.mxu0 0.0
    %6308 = vmatprep.subr.mxu0 0.0
    %6309 = vmatpush2.msra.mxu0 0.0
    %6310 = vmatprep.subr.mxu0 0.0
    %6311 = vmatpush2.msra.mxu0 0.0
    %6312 = vmatprep.subr.mxu0 0.0
    %6313 = vmatpush2.msra.mxu0 0.0
    %6314 = vmatprep.mubr.f32.mxu0 0.0
    %6315 = vmatmul.mubr.f32.gmra.mxu0 %v6217
    %v6316 = vpop.f32.mrf.mxu0
    %v6317 = vadd.f32 0.0, %v6316
    %v6318 = vpop.f32.mrf.mxu0
    %6319 = vdwg.mxu0
    %6320 = vmatprep.subr.mxu0 0.0
    %6321 = vmatpush1.msra.mxu0 %v6233
    %6322 = vmatprep.subr.mxu0 0.0
    %6323 = vmatpush1.msra.mxu0 %v6232
    %6324 = vmatprep.subr.mxu0 0.0
    %6325 = vmatpush1.msra.mxu0 %v6231
    %6326 = vmatprep.subr.mxu0 0.0
    %6327 = vmatpush1.msra.mxu0 %v6230
    %6328 = vmatprep.subr.mxu0 0.0
    %6329 = vmatpush1.msra.mxu0 %v6229
    %6330 = vmatprep.subr.mxu0 0.0
    %6331 = vmatpush1.msra.mxu0 %v6228
    %6332 = vmatprep.subr.mxu0 0.0
    %6333 = vmatpush1.msra.mxu0 %v6227
    %6334 = vmatprep.subr.mxu0 0.0
    %6335 = vmatpush1.msra.mxu0 %v6226
    %6336 = vmatprep.subr.mxu0 0.0
    %6337 = vmatpush1.msra.mxu0 %v6225
    %6338 = vmatprep.subr.mxu0 0.0
    %6339 = vmatpush1.msra.mxu0 %v6224
    %6340 = vmatprep.subr.mxu0 0.0
    %6341 = vmatpush1.msra.mxu0 %v6223
    %6342 = vmatprep.subr.mxu0 0.0
    %6343 = vmatpush1.msra.mxu0 %v6222
    %6344 = vmatprep.subr.mxu0 0.0
    %6345 = vmatpush1.msra.mxu0 %v6221
    %6346 = vmatprep.subr.mxu0 0.0
    %6347 = vmatpush1.msra.mxu0 %v6220
    %6348 = vmatprep.subr.mxu0 0.0
    %6349 = vmatpush1.msra.mxu0 %v6219
    %6350 = vmatprep.subr.mxu0 0.0
    %6351 = vmatpush1.msra.mxu0 %v6218
    %6352 = vmatprep.subr.mxu0 0.0
    %6353 = vmatpush2.msra.mxu0 0.0
    %6354 = vmatprep.subr.mxu0 0.0
    %6355 = vmatpush2.msra.mxu0 0.0
    %6356 = vmatprep.subr.mxu0 0.0
    %6357 = vmatpush2.msra.mxu0 0.0
    %6358 = vmatprep.subr.mxu0 0.0
    %6359 = vmatpush2.msra.mxu0 0.0
    %6360 = vmatprep.subr.mxu0 0.0
    %6361 = vmatpush2.msra.mxu0 0.0
    %6362 = vmatprep.subr.mxu0 0.0
    %6363 = vmatpush2.msra.mxu0 0.0
    %6364 = vmatprep.subr.mxu0 0.0
    %6365 = vmatpush2.msra.mxu0 0.0
    %6366 = vmatprep.subr.mxu0 0.0
    %6367 = vmatpush2.msra.mxu0 0.0
    %6368 = vmatprep.subr.mxu0 0.0
    %6369 = vmatpush2.msra.mxu0 0.0
    %6370 = vmatprep.subr.mxu0 0.0
    %6371 = vmatpush2.msra.mxu0 0.0
    %6372 = vmatprep.subr.mxu0 0.0
    %6373 = vmatpush2.msra.mxu0 0.0
    %6374 = vmatprep.subr.mxu0 0.0
    %6375 = vmatpush2.msra.mxu0 0.0
    %6376 = vmatprep.subr.mxu0 0.0
    %6377 = vmatpush2.msra.mxu0 0.0
    %6378 = vmatprep.subr.mxu0 0.0
    %6379 = vmatpush2.msra.mxu0 0.0
    %6380 = vmatprep.subr.mxu0 0.0
    %6381 = vmatpush2.msra.mxu0 0.0
    %6382 = vmatprep.subr.mxu0 0.0
    %6383 = vmatpush2.msra.mxu0 0.0
    %6384 = vmatprep.mubr.f32.mxu0 0.0
    %6385 = vmatmul.mubr.f32.gmra.mxu0 %v5897
    %v6386 = vpop.f32.mrf.mxu0
    %v6387 = vadd.f32 %v6317, %v6386
    %v6388 = vpop.f32.mrf.mxu0
    %6389 = vdwg.mxu0
    %v6390 = vld [vmem:[%s5] sm:$0x1]
    %v6392 = vlaneseq
    %v6393 = vshrl.u32 %v6392, 7
    %v6394 = vsub.s32 0, %v6393
    %v6395 = vrot.slane %v6390, %v6394
    %v6397 = vadd.f32 %v6387, %v6395
    %6398 = vst [vmem:[%s9] sm:$0xff] %v6397
    // Predicated region
    $region76: #{text_rnn_forward.1} parent=1 // pred_check
      _
    $region77: #{text_rnn_forward.1} parent=1 // pred_check_branch
      %6400 = sbr.rel (0) target = $region79
    $region78: #{text_rnn_forward.1} parent=1 // pred_region
      _
    $region79: #{text_rnn_forward.1} parent=1 // pred_fallthru
      _
    // Predicated region
    $region80: #{text_rnn_forward.1} parent=1 // pred_check
      _
    $region81: #{text_rnn_forward.1} parent=1 // pred_check_branch
      %6402 = sbr.rel (0) target = $region83
    $region82: #{text_rnn_forward.1} parent=1 // pred_region
      _
    $region83: #{text_rnn_forward.1} parent=1 // pred_fallthru
      _
    %6403 = vsyncpa [#allocation10], 1
    %6404 = vsyncpa [#allocation12], 1
  %6405 = vsyncmov [#allocation8]
  %s6406 = vpop.sfrf %6405
  %p6407 = scmp.eq.s32.totalorder %s6406, 0
  %p6408 = pneg %p6407
  %6410 = shalt.err (%p6408)
  %s6411 = scalar_lea.sflag [#allocation8], 1
  %6412 = vsyncmov %s6411
  %s6413 = vpop.sfrf %6412
  %p6414 = scmp.eq.s32.totalorder %s6413, 0
  %p6415 = pneg %p6414
  %6417 = shalt.err (%p6415)
  %s6418 = scalar_lea.sflag [#allocation8], 2
  %6419 = vsyncmov %s6418
  %s6420 = vpop.sfrf %6419
  %p6421 = scmp.eq.s32.totalorder %s6420, 0
  %p6422 = pneg %p6421
  %6424 = shalt.err (%p6422)

</llo_original>
